<compile_context>
chip_gen: v7x
topology: tpu7x:2x2x1
jax: 0.10.0
libtpu: 0.0.40
codegen_flags: <defaults>
</compile_context>

<pallas_src>
import numpy as np
import jax
import jax.numpy as jnp
from jax import lax
from jax.experimental import pallas as pl
from jax.experimental.pallas import tpu as pltpu

MAX_D = 4  # largest dilation -> spatial pad on each side


def _mrf_kernel(x_ref, w_im_ref, w_fuse_ref, shift_ref, o_ref, xpad_ref):
    """One batch element per grid step.

    x_ref     : (1, H, W, C)        unpadded NHWC input (bf16)
    w_im_ref  : (4, 9*C, Cq)        per-dilation im2col conv weights (bf16)
    w_fuse_ref: (4, Cq, C)          per-dilation row-blocks of the 1x1 fusion
                                    weight with BN scale folded in (bf16)
    shift_ref : (1, 1, C)           folded conv-bias + fusion-bias + BN shift (f32)
    o_ref     : (1, H, W, C)        output (f32)
    xpad_ref  : (Hp, Wp, C) VMEM    zero-padded image scratch (bf16)
    """
    H, W, C = x_ref.shape[1], x_ref.shape[2], x_ref.shape[3]

    # Fused zero padding: zero the scratch (every step, so it is also correct
    # when the batch axis is sharded across TensorCores) and copy the interior.
    xpad_ref[...] = jnp.zeros(xpad_ref.shape, xpad_ref.dtype)
    xpad_ref[MAX_D:MAX_D + H, MAX_D:MAX_D + W, :] = x_ref[0]

    acc = jnp.zeros((H, W, C), jnp.float32)
    for d in range(1, MAX_D + 1):
        # im2col for dilation d: 9 shifted (H, W, C) views stacked along the
        # contraction axis -> a single K = 9*C matmul (MXU accumulates over K).
        taps = []
        for kh in range(3):
            for kw in range(3):
                h0 = MAX_D + d * (kh - 1)
                w0 = MAX_D + d * (kw - 1)
                taps.append(xpad_ref[h0:h0 + H, w0:w0 + W, :])
        col = jnp.concatenate(taps, axis=-1)                          # (H, W, 9C)

        feat = jnp.einsum('hwk,kq->hwq', col, w_im_ref[d - 1],
                          preferred_element_type=jnp.float32)         # (H, W, Cq)

        # Fold this dilation's features straight through its slice of the 1x1
        # fusion conv -- no channel concat, one running f32 accumulator.
        acc = acc + jnp.einsum('hwq,qc->hwc',
                               feat.astype(w_fuse_ref.dtype),
                               w_fuse_ref[d - 1],
                               preferred_element_type=jnp.float32)    # (H, W, C)

    fused = jnp.maximum(acc + shift_ref[...], 0.0)                    # bias+BN+ReLU
    residual = x_ref[0].astype(jnp.float32)
    o_ref[0] = (residual + fused).astype(o_ref.dtype)


def multi_resolution_fusion(x_nchw, w_im, w_fuse, shift):
    N, C, H, W = x_nchw.shape
    assert C % 4 == 0
    Cq = C // 4
    Hp, Wp = H + 2 * MAX_D, W + 2 * MAX_D

    # bf16 activations for the matmuls / DMA; accumulation stays f32 in-kernel.
    x = jnp.transpose(x_nchw, (0, 2, 3, 1)).astype(jnp.bfloat16)      # NHWC

    out_nhwc = pl.pallas_call(
        _mrf_kernel,
        out_shape=jax.ShapeDtypeStruct((N, H, W, C), jnp.float32),
        grid_spec=pltpu.PrefetchScalarGridSpec(
            num_scalar_prefetch=0,
            grid=(N,),
            in_specs=[
                pl.BlockSpec((1, H, W, C), lambda n: (n, 0, 0, 0)),
                pl.BlockSpec((4, 9 * C, Cq), lambda n: (0, 0, 0)),
                pl.BlockSpec((4, Cq, C), lambda n: (0, 0, 0)),
                pl.BlockSpec((1, 1, C), lambda n: (0, 0, 0)),
            ],
            out_specs=pl.BlockSpec((1, H, W, C), lambda n: (n, 0, 0, 0)),
            scratch_shapes=[pltpu.VMEM((Hp, Wp, C), jnp.bfloat16)],
        ),
        compiler_params=pltpu.CompilerParams(
            dimension_semantics=("parallel",)),
    )(x, w_im, w_fuse, shift)

    return jnp.transpose(out_nhwc, (0, 3, 1, 2))                      # back to NCHW


def init_params(key, C):
    """Deterministic synthetic parameters matching the module's __init__ shapes."""
    Cq = C // 4
    ks = jax.random.split(key, 8)
    wd = 0.1 * jax.random.normal(ks[0], (4, 3, 3, C, Cq), jnp.float32)  # HWIO, dil 1..4
    bd = 0.1 * jax.random.normal(ks[1], (4, Cq), jnp.float32)
    wf = 0.1 * jax.random.normal(ks[2], (C, C), jnp.float32)            # (in, out)
    bf = 0.1 * jax.random.normal(ks[3], (C,), jnp.float32)
    gamma = 1.0 + 0.1 * jax.random.normal(ks[4], (C,), jnp.float32)
    beta = 0.1 * jax.random.normal(ks[5], (C,), jnp.float32)
    r_mean = 0.1 * jax.random.normal(ks[6], (C,), jnp.float32)
    r_var = jnp.abs(jax.random.normal(ks[7], (C,), jnp.float32)) + 0.5
    return wd, bd, wf, bf, gamma, beta, r_mean, r_var


def fold_params(wd, bd, wf, bf, gamma, beta, r_mean, r_var, eps=1e-5):
    """Fold eval-mode BN into the 1x1 conv, fold all biases into one shift,
    reshape weights for the im2col / per-dilation accumulate kernel, cast to bf16."""
    C = wf.shape[0]
    Cq = C // 4
    s = gamma / jnp.sqrt(r_var + eps)
    t = beta - r_mean * s
    wf_eff = wf * s[None, :]                                  # BN scale folded (in, out)
    # conv biases + fusion bias + BN shift -> one per-channel shift
    shift = (bd.reshape(-1) @ wf_eff + bf * s + t).reshape(1, 1, C).astype(jnp.float32)
    # (4, 3, 3, C, Cq) -> (4, 9*C, Cq); row order (kh, kw, cin) matches the
    # in-kernel tap concatenation order.
    w_im = wd.reshape(4, 9 * C, Cq).astype(jnp.bfloat16)
    # Row-blocks of the fusion weight, one (Cq, C) block per dilation.
    w_fuse = wf_eff.reshape(4, Cq, C).astype(jnp.bfloat16)
    return w_im, w_fuse, shift


def ref_forward(x_nchw, wd, bd, wf, bf, gamma, beta, r_mean, r_var, eps=1e-5):
    """Pure-JAX f32 reference of the PyTorch forward (eval-mode BN)."""
    x = jnp.transpose(x_nchw, (0, 2, 3, 1))  # NHWC
    feats = []
    for d in range(1, MAX_D + 1):
        y = lax.conv_general_dilated(
            x, wd[d - 1], window_strides=(1, 1),
            padding=[(d, d), (d, d)], rhs_dilation=(d, d),
            dimension_numbers=('NHWC', 'HWIO', 'NHWC'))
        feats.append(y + bd[d - 1])
    multi = jnp.concatenate(feats, axis=-1)
    y = jnp.einsum('nhwc,cd->nhwd', multi, wf) + bf
    y = (y - r_mean) / jnp.sqrt(r_var + eps) * gamma + beta
    y = jnp.maximum(y, 0.0)
    return jnp.transpose(x + y, (0, 3, 1, 2))


if __name__ == "__main__":
    key = jax.random.PRNGKey(0)
    k_x, k_p = jax.random.split(key)

    N, C, H, W = 2, 8, 16, 16  # in_channels divisible by 4
    x = jax.random.normal(k_x, (N, C, H, W), jnp.float32)

    raw = init_params(k_p, C)
    w_im, w_fuse, shift = fold_params(*raw)

    out = multi_resolution_fusion(x, w_im, w_fuse, shift)
    out = jax.block_until_ready(out)

    ref = ref_forward(x, *raw)
    assert out.shape == (N, C, H, W)
    # bf16 matmul operands -> compare against the f32 reference with a loose tolerance.
    np.testing.assert_allclose(np.asarray(out), np.asarray(ref), atol=5e-2, rtol=5e-2)

    print("KERNEL_OK")
</pallas_src>

<mosaic_0001>
module attributes {stable_mosaic.version = 11 : i64} {
  func.func @_mrf_kernel(%arg0: i32, %arg1: memref<1x16x16x8xbf16, #tpu.memory_space<vmem>>, %arg2: memref<4x72x2xbf16, #tpu.memory_space<vmem>>, %arg3: memref<4x2x8xbf16, #tpu.memory_space<vmem>>, %arg4: memref<1x1x8xf32, #tpu.memory_space<vmem>>, %arg5: memref<1x16x16x8xf32, #tpu.memory_space<vmem>>, %arg6: memref<24x24x8xbf16, #tpu.memory_space<vmem>>) attributes {dimension_semantics = [#tpu.dimension_semantics<parallel>], iteration_bounds = array<i64: 2>, scalar_prefetch = 0 : i64, scratch_operands = 1 : i64, tpu.core_type = #tpu.core_type<tc>, window_params = [{transform_indices = @transform_0, window_bounds = array<i64: 1, 16, 16, 8>}, {pipeline_mode = #tpu.pipeline_mode<synchronous>, transform_indices = @transform_1, window_bounds = array<i64: 4, 72, 2>}, {pipeline_mode = #tpu.pipeline_mode<synchronous>, transform_indices = @transform_2, window_bounds = array<i64: 4, 2, 8>}, {pipeline_mode = #tpu.pipeline_mode<synchronous>, transform_indices = @transform_3, window_bounds = array<i64: 1, 1, 8>}, {transform_indices = @transform_4, window_bounds = array<i64: 1, 16, 16, 8>}]} {
    %cst = arith.constant 0.000000e+00 : bf16
    %0 = vector.broadcast %cst : bf16 to vector<24x24x8xbf16>
    %c0 = arith.constant 0 : index
    %c0_0 = arith.constant 0 : index
    %c0_1 = arith.constant 0 : index
    %1 = vector.load %arg6[%c0, %c0_0, %c0_1] : memref<24x24x8xbf16, #tpu.memory_space<vmem>>, vector<24x24x8xbf16>
    tpu.vector_store %arg6[%c0, %c0_0, %c0_1], %0 {strides = array<i32>} : memref<24x24x8xbf16, #tpu.memory_space<vmem>>, vector<24x24x8xbf16>,
    %c0_2 = arith.constant 0 : index
    %c0_3 = arith.constant 0 : index
    %c0_4 = arith.constant 0 : index
    %c0_5 = arith.constant 0 : index
    %2 = vector.load %arg1[%c0_2, %c0_3, %c0_4, %c0_5] : memref<1x16x16x8xbf16, #tpu.memory_space<vmem>>, vector<1x16x16x8xbf16>
    %3 = vector.shape_cast %2 : vector<1x16x16x8xbf16> to vector<16x16x8xbf16>
    %c4 = arith.constant 4 : index
    %c4_6 = arith.constant 4 : index
    %c0_7 = arith.constant 0 : index
    %4 = vector.load %arg6[%c4, %c4_6, %c0_7] : memref<24x24x8xbf16, #tpu.memory_space<vmem>>, vector<16x16x8xbf16>
    tpu.vector_store %arg6[%c4, %c4_6, %c0_7], %3 {strides = array<i32>} : memref<24x24x8xbf16, #tpu.memory_space<vmem>>, vector<16x16x8xbf16>,
    %cst_8 = arith.constant 0.000000e+00 : f32
    %5 = vector.broadcast %cst_8 : f32 to vector<16x16x8xf32>
    %c3 = arith.constant 3 : index
    %c3_9 = arith.constant 3 : index
    %c0_10 = arith.constant 0 : index
    %6 = vector.load %arg6[%c3, %c3_9, %c0_10] : memref<24x24x8xbf16, #tpu.memory_space<vmem>>, vector<16x16x8xbf16>
    %c3_11 = arith.constant 3 : index
    %c4_12 = arith.constant 4 : index
    %c0_13 = arith.constant 0 : index
    %7 = vector.load %arg6[%c3_11, %c4_12, %c0_13] : memref<24x24x8xbf16, #tpu.memory_space<vmem>>, vector<16x16x8xbf16>
    %c3_14 = arith.constant 3 : index
    %c5 = arith.constant 5 : index
    %c0_15 = arith.constant 0 : index
    %8 = vector.load %arg6[%c3_14, %c5, %c0_15] : memref<24x24x8xbf16, #tpu.memory_space<vmem>>, vector<16x16x8xbf16>
    %c4_16 = arith.constant 4 : index
    %c3_17 = arith.constant 3 : index
    %c0_18 = arith.constant 0 : index
    %9 = vector.load %arg6[%c4_16, %c3_17, %c0_18] : memref<24x24x8xbf16, #tpu.memory_space<vmem>>, vector<16x16x8xbf16>
    %c4_19 = arith.constant 4 : index
    %c4_20 = arith.constant 4 : index
    %c0_21 = arith.constant 0 : index
    %10 = vector.load %arg6[%c4_19, %c4_20, %c0_21] : memref<24x24x8xbf16, #tpu.memory_space<vmem>>, vector<16x16x8xbf16>
    %c4_22 = arith.constant 4 : index
    %c5_23 = arith.constant 5 : index
    %c0_24 = arith.constant 0 : index
    %11 = vector.load %arg6[%c4_22, %c5_23, %c0_24] : memref<24x24x8xbf16, #tpu.memory_space<vmem>>, vector<16x16x8xbf16>
    %c5_25 = arith.constant 5 : index
    %c3_26 = arith.constant 3 : index
    %c0_27 = arith.constant 0 : index
    %12 = vector.load %arg6[%c5_25, %c3_26, %c0_27] : memref<24x24x8xbf16, #tpu.memory_space<vmem>>, vector<16x16x8xbf16>
    %c5_28 = arith.constant 5 : index
    %c4_29 = arith.constant 4 : index
    %c0_30 = arith.constant 0 : index
    %13 = vector.load %arg6[%c5_28, %c4_29, %c0_30] : memref<24x24x8xbf16, #tpu.memory_space<vmem>>, vector<16x16x8xbf16>
    %c5_31 = arith.constant 5 : index
    %c5_32 = arith.constant 5 : index
    %c0_33 = arith.constant 0 : index
    %14 = vector.load %arg6[%c5_31, %c5_32, %c0_33] : memref<24x24x8xbf16, #tpu.memory_space<vmem>>, vector<16x16x8xbf16>
    %15 = tpu.concatenate %6, %7, %8, %9, %10, %11, %12, %13, %14 in 2 : vector<16x16x8xbf16>, vector<16x16x8xbf16>, vector<16x16x8xbf16>, vector<16x16x8xbf16>, vector<16x16x8xbf16>, vector<16x16x8xbf16>, vector<16x16x8xbf16>, vector<16x16x8xbf16>, vector<16x16x8xbf16> -> vector<16x16x72xbf16>
    %c0_34 = arith.constant 0 : index
    %c0_35 = arith.constant 0 : index
    %c0_36 = arith.constant 0 : index
    %16 = vector.load %arg2[%c0_34, %c0_35, %c0_36] : memref<4x72x2xbf16, #tpu.memory_space<vmem>>, vector<1x72x2xbf16>
    %17 = vector.shape_cast %16 : vector<1x72x2xbf16> to vector<72x2xbf16>
    "tpu.trace_start"() <{level = 10 : i32, message = "hwk,kq->hwq"}> : () -> ()
    %cst_37 = arith.constant dense<0.000000e+00> : vector<16x16x2xf32>
    %18 = tpu.matmul %15, %17, %cst_37 {dimension_numbers = #tpu.dot_dimension_numbers<[2], [0], [0, 1], [1], [0, 0, 0, 1, 1, 1], [], []>} : vector<16x16x72xbf16>, vector<72x2xbf16>, vector<16x16x2xf32> -> vector<16x16x2xf32>
    "tpu.trace_stop"() : () -> ()
    %19 = arith.truncf %18 : vector<16x16x2xf32> to vector<16x16x2xbf16>
    %c0_38 = arith.constant 0 : index
    %c0_39 = arith.constant 0 : index
    %c0_40 = arith.constant 0 : index
    %20 = vector.load %arg3[%c0_38, %c0_39, %c0_40] : memref<4x2x8xbf16, #tpu.memory_space<vmem>>, vector<1x2x8xbf16>
    %21 = vector.shape_cast %20 : vector<1x2x8xbf16> to vector<2x8xbf16>
    "tpu.trace_start"() <{level = 10 : i32, message = "hwq,qc->hwc"}> : () -> ()
    %cst_41 = arith.constant dense<0.000000e+00> : vector<16x16x8xf32>
    %22 = tpu.matmul %19, %21, %cst_41 {dimension_numbers = #tpu.dot_dimension_numbers<[2], [0], [0, 1], [1], [0, 0, 0, 1, 1, 1], [], []>} : vector<16x16x2xbf16>, vector<2x8xbf16>, vector<16x16x8xf32> -> vector<16x16x8xf32>
    "tpu.trace_stop"() : () -> ()
    %23 = arith.addf %5, %22 : vector<16x16x8xf32>
    %c2 = arith.constant 2 : index
    %c2_42 = arith.constant 2 : index
    %c0_43 = arith.constant 0 : index
    %24 = vector.load %arg6[%c2, %c2_42, %c0_43] : memref<24x24x8xbf16, #tpu.memory_space<vmem>>, vector<16x16x8xbf16>
    %c2_44 = arith.constant 2 : index
    %c4_45 = arith.constant 4 : index
    %c0_46 = arith.constant 0 : index
    %25 = vector.load %arg6[%c2_44, %c4_45, %c0_46] : memref<24x24x8xbf16, #tpu.memory_space<vmem>>, vector<16x16x8xbf16>
    %c2_47 = arith.constant 2 : index
    %c6 = arith.constant 6 : index
    %c0_48 = arith.constant 0 : index
    %26 = vector.load %arg6[%c2_47, %c6, %c0_48] : memref<24x24x8xbf16, #tpu.memory_space<vmem>>, vector<16x16x8xbf16>
    %c4_49 = arith.constant 4 : index
    %c2_50 = arith.constant 2 : index
    %c0_51 = arith.constant 0 : index
    %27 = vector.load %arg6[%c4_49, %c2_50, %c0_51] : memref<24x24x8xbf16, #tpu.memory_space<vmem>>, vector<16x16x8xbf16>
    %c4_52 = arith.constant 4 : index
    %c4_53 = arith.constant 4 : index
    %c0_54 = arith.constant 0 : index
    %28 = vector.load %arg6[%c4_52, %c4_53, %c0_54] : memref<24x24x8xbf16, #tpu.memory_space<vmem>>, vector<16x16x8xbf16>
    %c4_55 = arith.constant 4 : index
    %c6_56 = arith.constant 6 : index
    %c0_57 = arith.constant 0 : index
    %29 = vector.load %arg6[%c4_55, %c6_56, %c0_57] : memref<24x24x8xbf16, #tpu.memory_space<vmem>>, vector<16x16x8xbf16>
    %c6_58 = arith.constant 6 : index
    %c2_59 = arith.constant 2 : index
    %c0_60 = arith.constant 0 : index
    %30 = vector.load %arg6[%c6_58, %c2_59, %c0_60] : memref<24x24x8xbf16, #tpu.memory_space<vmem>>, vector<16x16x8xbf16>
    %c6_61 = arith.constant 6 : index
    %c4_62 = arith.constant 4 : index
    %c0_63 = arith.constant 0 : index
    %31 = vector.load %arg6[%c6_61, %c4_62, %c0_63] : memref<24x24x8xbf16, #tpu.memory_space<vmem>>, vector<16x16x8xbf16>
    %c6_64 = arith.constant 6 : index
    %c6_65 = arith.constant 6 : index
    %c0_66 = arith.constant 0 : index
    %32 = vector.load %arg6[%c6_64, %c6_65, %c0_66] : memref<24x24x8xbf16, #tpu.memory_space<vmem>>, vector<16x16x8xbf16>
    %33 = tpu.concatenate %24, %25, %26, %27, %28, %29, %30, %31, %32 in 2 : vector<16x16x8xbf16>, vector<16x16x8xbf16>, vector<16x16x8xbf16>, vector<16x16x8xbf16>, vector<16x16x8xbf16>, vector<16x16x8xbf16>, vector<16x16x8xbf16>, vector<16x16x8xbf16>, vector<16x16x8xbf16> -> vector<16x16x72xbf16>
    %c1 = arith.constant 1 : index
    %c0_67 = arith.constant 0 : index
    %c0_68 = arith.constant 0 : index
    %34 = vector.load %arg2[%c1, %c0_67, %c0_68] : memref<4x72x2xbf16, #tpu.memory_space<vmem>>, vector<1x72x2xbf16>
    %35 = vector.shape_cast %34 : vector<1x72x2xbf16> to vector<72x2xbf16>
    "tpu.trace_start"() <{level = 10 : i32, message = "hwk,kq->hwq"}> : () -> ()
    %cst_69 = arith.constant dense<0.000000e+00> : vector<16x16x2xf32>
    %36 = tpu.matmul %33, %35, %cst_69 {dimension_numbers = #tpu.dot_dimension_numbers<[2], [0], [0, 1], [1], [0, 0, 0, 1, 1, 1], [], []>} : vector<16x16x72xbf16>, vector<72x2xbf16>, vector<16x16x2xf32> -> vector<16x16x2xf32>
    "tpu.trace_stop"() : () -> ()
    %37 = arith.truncf %36 : vector<16x16x2xf32> to vector<16x16x2xbf16>
    %c1_70 = arith.constant 1 : index
    %c0_71 = arith.constant 0 : index
    %c0_72 = arith.constant 0 : index
    %38 = vector.load %arg3[%c1_70, %c0_71, %c0_72] : memref<4x2x8xbf16, #tpu.memory_space<vmem>>, vector<1x2x8xbf16>
    %39 = vector.shape_cast %38 : vector<1x2x8xbf16> to vector<2x8xbf16>
    "tpu.trace_start"() <{level = 10 : i32, message = "hwq,qc->hwc"}> : () -> ()
    %cst_73 = arith.constant dense<0.000000e+00> : vector<16x16x8xf32>
    %40 = tpu.matmul %37, %39, %cst_73 {dimension_numbers = #tpu.dot_dimension_numbers<[2], [0], [0, 1], [1], [0, 0, 0, 1, 1, 1], [], []>} : vector<16x16x2xbf16>, vector<2x8xbf16>, vector<16x16x8xf32> -> vector<16x16x8xf32>
    "tpu.trace_stop"() : () -> ()
    %41 = arith.addf %23, %40 : vector<16x16x8xf32>
    %c1_74 = arith.constant 1 : index
    %c1_75 = arith.constant 1 : index
    %c0_76 = arith.constant 0 : index
    %42 = vector.load %arg6[%c1_74, %c1_75, %c0_76] : memref<24x24x8xbf16, #tpu.memory_space<vmem>>, vector<16x16x8xbf16>
    %c1_77 = arith.constant 1 : index
    %c4_78 = arith.constant 4 : index
    %c0_79 = arith.constant 0 : index
    %43 = vector.load %arg6[%c1_77, %c4_78, %c0_79] : memref<24x24x8xbf16, #tpu.memory_space<vmem>>, vector<16x16x8xbf16>
    %c1_80 = arith.constant 1 : index
    %c7 = arith.constant 7 : index
    %c0_81 = arith.constant 0 : index
    %44 = vector.load %arg6[%c1_80, %c7, %c0_81] : memref<24x24x8xbf16, #tpu.memory_space<vmem>>, vector<16x16x8xbf16>
    %c4_82 = arith.constant 4 : index
    %c1_83 = arith.constant 1 : index
    %c0_84 = arith.constant 0 : index
    %45 = vector.load %arg6[%c4_82, %c1_83, %c0_84] : memref<24x24x8xbf16, #tpu.memory_space<vmem>>, vector<16x16x8xbf16>
    %c4_85 = arith.constant 4 : index
    %c4_86 = arith.constant 4 : index
    %c0_87 = arith.constant 0 : index
    %46 = vector.load %arg6[%c4_85, %c4_86, %c0_87] : memref<24x24x8xbf16, #tpu.memory_space<vmem>>, vector<16x16x8xbf16>
    %c4_88 = arith.constant 4 : index
    %c7_89 = arith.constant 7 : index
    %c0_90 = arith.constant 0 : index
    %47 = vector.load %arg6[%c4_88, %c7_89, %c0_90] : memref<24x24x8xbf16, #tpu.memory_space<vmem>>, vector<16x16x8xbf16>
    %c7_91 = arith.constant 7 : index
    %c1_92 = arith.constant 1 : index
    %c0_93 = arith.constant 0 : index
    %48 = vector.load %arg6[%c7_91, %c1_92, %c0_93] : memref<24x24x8xbf16, #tpu.memory_space<vmem>>, vector<16x16x8xbf16>
    %c7_94 = arith.constant 7 : index
    %c4_95 = arith.constant 4 : index
    %c0_96 = arith.constant 0 : index
    %49 = vector.load %arg6[%c7_94, %c4_95, %c0_96] : memref<24x24x8xbf16, #tpu.memory_space<vmem>>, vector<16x16x8xbf16>
    %c7_97 = arith.constant 7 : index
    %c7_98 = arith.constant 7 : index
    %c0_99 = arith.constant 0 : index
    %50 = vector.load %arg6[%c7_97, %c7_98, %c0_99] : memref<24x24x8xbf16, #tpu.memory_space<vmem>>, vector<16x16x8xbf16>
    %51 = tpu.concatenate %42, %43, %44, %45, %46, %47, %48, %49, %50 in 2 : vector<16x16x8xbf16>, vector<16x16x8xbf16>, vector<16x16x8xbf16>, vector<16x16x8xbf16>, vector<16x16x8xbf16>, vector<16x16x8xbf16>, vector<16x16x8xbf16>, vector<16x16x8xbf16>, vector<16x16x8xbf16> -> vector<16x16x72xbf16>
    %c2_100 = arith.constant 2 : index
    %c0_101 = arith.constant 0 : index
    %c0_102 = arith.constant 0 : index
    %52 = vector.load %arg2[%c2_100, %c0_101, %c0_102] : memref<4x72x2xbf16, #tpu.memory_space<vmem>>, vector<1x72x2xbf16>
    %53 = vector.shape_cast %52 : vector<1x72x2xbf16> to vector<72x2xbf16>
    "tpu.trace_start"() <{level = 10 : i32, message = "hwk,kq->hwq"}> : () -> ()
    %cst_103 = arith.constant dense<0.000000e+00> : vector<16x16x2xf32>
    %54 = tpu.matmul %51, %53, %cst_103 {dimension_numbers = #tpu.dot_dimension_numbers<[2], [0], [0, 1], [1], [0, 0, 0, 1, 1, 1], [], []>} : vector<16x16x72xbf16>, vector<72x2xbf16>, vector<16x16x2xf32> -> vector<16x16x2xf32>
    "tpu.trace_stop"() : () -> ()
    %55 = arith.truncf %54 : vector<16x16x2xf32> to vector<16x16x2xbf16>
    %c2_104 = arith.constant 2 : index
    %c0_105 = arith.constant 0 : index
    %c0_106 = arith.constant 0 : index
    %56 = vector.load %arg3[%c2_104, %c0_105, %c0_106] : memref<4x2x8xbf16, #tpu.memory_space<vmem>>, vector<1x2x8xbf16>
    %57 = vector.shape_cast %56 : vector<1x2x8xbf16> to vector<2x8xbf16>
    "tpu.trace_start"() <{level = 10 : i32, message = "hwq,qc->hwc"}> : () -> ()
    %cst_107 = arith.constant dense<0.000000e+00> : vector<16x16x8xf32>
    %58 = tpu.matmul %55, %57, %cst_107 {dimension_numbers = #tpu.dot_dimension_numbers<[2], [0], [0, 1], [1], [0, 0, 0, 1, 1, 1], [], []>} : vector<16x16x2xbf16>, vector<2x8xbf16>, vector<16x16x8xf32> -> vector<16x16x8xf32>
    "tpu.trace_stop"() : () -> ()
    %59 = arith.addf %41, %58 : vector<16x16x8xf32>
    %c0_108 = arith.constant 0 : index
    %c0_109 = arith.constant 0 : index
    %c0_110 = arith.constant 0 : index
    %60 = vector.load %arg6[%c0_108, %c0_109, %c0_110] : memref<24x24x8xbf16, #tpu.memory_space<vmem>>, vector<16x16x8xbf16>
    %c0_111 = arith.constant 0 : index
    %c4_112 = arith.constant 4 : index
    %c0_113 = arith.constant 0 : index
    %61 = vector.load %arg6[%c0_111, %c4_112, %c0_113] : memref<24x24x8xbf16, #tpu.memory_space<vmem>>, vector<16x16x8xbf16>
    %c0_114 = arith.constant 0 : index
    %c8 = arith.constant 8 : index
    %c0_115 = arith.constant 0 : index
    %62 = vector.load %arg6[%c0_114, %c8, %c0_115] : memref<24x24x8xbf16, #tpu.memory_space<vmem>>, vector<16x16x8xbf16>
    %c4_116 = arith.constant 4 : index
    %c0_117 = arith.constant 0 : index
    %c0_118 = arith.constant 0 : index
    %63 = vector.load %arg6[%c4_116, %c0_117, %c0_118] : memref<24x24x8xbf16, #tpu.memory_space<vmem>>, vector<16x16x8xbf16>
    %c4_119 = arith.constant 4 : index
    %c4_120 = arith.constant 4 : index
    %c0_121 = arith.constant 0 : index
    %64 = vector.load %arg6[%c4_119, %c4_120, %c0_121] : memref<24x24x8xbf16, #tpu.memory_space<vmem>>, vector<16x16x8xbf16>
    %c4_122 = arith.constant 4 : index
    %c8_123 = arith.constant 8 : index
    %c0_124 = arith.constant 0 : index
    %65 = vector.load %arg6[%c4_122, %c8_123, %c0_124] : memref<24x24x8xbf16, #tpu.memory_space<vmem>>, vector<16x16x8xbf16>
    %c8_125 = arith.constant 8 : index
    %c0_126 = arith.constant 0 : index
    %c0_127 = arith.constant 0 : index
    %66 = vector.load %arg6[%c8_125, %c0_126, %c0_127] : memref<24x24x8xbf16, #tpu.memory_space<vmem>>, vector<16x16x8xbf16>
    %c8_128 = arith.constant 8 : index
    %c4_129 = arith.constant 4 : index
    %c0_130 = arith.constant 0 : index
    %67 = vector.load %arg6[%c8_128, %c4_129, %c0_130] : memref<24x24x8xbf16, #tpu.memory_space<vmem>>, vector<16x16x8xbf16>
    %c8_131 = arith.constant 8 : index
    %c8_132 = arith.constant 8 : index
    %c0_133 = arith.constant 0 : index
    %68 = vector.load %arg6[%c8_131, %c8_132, %c0_133] : memref<24x24x8xbf16, #tpu.memory_space<vmem>>, vector<16x16x8xbf16>
    %69 = tpu.concatenate %60, %61, %62, %63, %64, %65, %66, %67, %68 in 2 : vector<16x16x8xbf16>, vector<16x16x8xbf16>, vector<16x16x8xbf16>, vector<16x16x8xbf16>, vector<16x16x8xbf16>, vector<16x16x8xbf16>, vector<16x16x8xbf16>, vector<16x16x8xbf16>, vector<16x16x8xbf16> -> vector<16x16x72xbf16>
    %c3_134 = arith.constant 3 : index
    %c0_135 = arith.constant 0 : index
    %c0_136 = arith.constant 0 : index
    %70 = vector.load %arg2[%c3_134, %c0_135, %c0_136] : memref<4x72x2xbf16, #tpu.memory_space<vmem>>, vector<1x72x2xbf16>
    %71 = vector.shape_cast %70 : vector<1x72x2xbf16> to vector<72x2xbf16>
    "tpu.trace_start"() <{level = 10 : i32, message = "hwk,kq->hwq"}> : () -> ()
    %cst_137 = arith.constant dense<0.000000e+00> : vector<16x16x2xf32>
    %72 = tpu.matmul %69, %71, %cst_137 {dimension_numbers = #tpu.dot_dimension_numbers<[2], [0], [0, 1], [1], [0, 0, 0, 1, 1, 1], [], []>} : vector<16x16x72xbf16>, vector<72x2xbf16>, vector<16x16x2xf32> -> vector<16x16x2xf32>
    "tpu.trace_stop"() : () -> ()
    %73 = arith.truncf %72 : vector<16x16x2xf32> to vector<16x16x2xbf16>
    %c3_138 = arith.constant 3 : index
    %c0_139 = arith.constant 0 : index
    %c0_140 = arith.constant 0 : index
    %74 = vector.load %arg3[%c3_138, %c0_139, %c0_140] : memref<4x2x8xbf16, #tpu.memory_space<vmem>>, vector<1x2x8xbf16>
    %75 = vector.shape_cast %74 : vector<1x2x8xbf16> to vector<2x8xbf16>
    "tpu.trace_start"() <{level = 10 : i32, message = "hwq,qc->hwc"}> : () -> ()
    %cst_141 = arith.constant dense<0.000000e+00> : vector<16x16x8xf32>
    %76 = tpu.matmul %73, %75, %cst_141 {dimension_numbers = #tpu.dot_dimension_numbers<[2], [0], [0, 1], [1], [0, 0, 0, 1, 1, 1], [], []>} : vector<16x16x2xbf16>, vector<2x8xbf16>, vector<16x16x8xf32> -> vector<16x16x8xf32>
    "tpu.trace_stop"() : () -> ()
    %77 = arith.addf %59, %76 : vector<16x16x8xf32>
    %c0_142 = arith.constant 0 : index
    %c0_143 = arith.constant 0 : index
    %c0_144 = arith.constant 0 : index
    %78 = vector.load %arg4[%c0_142, %c0_143, %c0_144] : memref<1x1x8xf32, #tpu.memory_space<vmem>>, vector<1x1x8xf32>
    %79 = vector.broadcast %78 : vector<1x1x8xf32> to vector<16x16x8xf32>
    %80 = arith.addf %77, %79 : vector<16x16x8xf32>
    %cst_145 = arith.constant 0.000000e+00 : f32
    %81 = vector.broadcast %cst_145 : f32 to vector<16x16x8xf32>
    %82 = arith.maximumf %80, %81 : vector<16x16x8xf32>
    %c0_146 = arith.constant 0 : index
    %c0_147 = arith.constant 0 : index
    %c0_148 = arith.constant 0 : index
    %c0_149 = arith.constant 0 : index
    %83 = vector.load %arg1[%c0_146, %c0_147, %c0_148, %c0_149] : memref<1x16x16x8xbf16, #tpu.memory_space<vmem>>, vector<1x16x16x8xbf16>
    %84 = vector.shape_cast %83 : vector<1x16x16x8xbf16> to vector<16x16x8xbf16>
    %85 = arith.extf %84 : vector<16x16x8xbf16> to vector<16x16x8xf32>
    %86 = arith.addf %85, %82 : vector<16x16x8xf32>
    %c0_150 = arith.constant 0 : index
    %c0_151 = arith.constant 0 : index
    %c0_152 = arith.constant 0 : index
    %c0_153 = arith.constant 0 : index
    %87 = vector.load %arg5[%c0_150, %c0_151, %c0_152, %c0_153] : memref<1x16x16x8xf32, #tpu.memory_space<vmem>>, vector<1x16x16x8xf32>
    %88 = vector.shape_cast %87 : vector<1x16x16x8xf32> to vector<16x16x8xf32>
    %89 = vector.shape_cast %86 : vector<16x16x8xf32> to vector<1x16x16x8xf32>
    tpu.vector_store %arg5[%c0_150, %c0_151, %c0_152, %c0_153], %89 {strides = array<i32>} : memref<1x16x16x8xf32, #tpu.memory_space<vmem>>, vector<1x16x16x8xf32>,
    return
  }
  func.func @transform_0(%arg0: i32) -> (i32, i32, i32, i32) {
    %c0_i32 = arith.constant 0 : i32
    %c0_i32_0 = arith.constant 0 : i32
    %c0_i32_1 = arith.constant 0 : i32
    %c0_i32_2 = arith.constant 0 : i32
    return %arg0, %c0_i32, %c0_i32_0, %c0_i32_1 : i32, i32, i32, i32
  }
  func.func @transform_1(%arg0: i32) -> (i32, i32, i32) {
    %c0_i32 = arith.constant 0 : i32
    %c0_i32_0 = arith.constant 0 : i32
    %c0_i32_1 = arith.constant 0 : i32
    %c0_i32_2 = arith.constant 0 : i32
    return %c0_i32, %c0_i32_0, %c0_i32_1 : i32, i32, i32
  }
  func.func @transform_2(%arg0: i32) -> (i32, i32, i32) {
    %c0_i32 = arith.constant 0 : i32
    %c0_i32_0 = arith.constant 0 : i32
    %c0_i32_1 = arith.constant 0 : i32
    %c0_i32_2 = arith.constant 0 : i32
    return %c0_i32, %c0_i32_0, %c0_i32_1 : i32, i32, i32
  }
  func.func @transform_3(%arg0: i32) -> (i32, i32, i32) {
    %c0_i32 = arith.constant 0 : i32
    %c0_i32_0 = arith.constant 0 : i32
    %c0_i32_1 = arith.constant 0 : i32
    %c0_i32_2 = arith.constant 0 : i32
    return %c0_i32, %c0_i32_0, %c0_i32_1 : i32, i32, i32
  }
  func.func @transform_4(%arg0: i32) -> (i32, i32, i32, i32) {
    %c0_i32 = arith.constant 0 : i32
    %c0_i32_0 = arith.constant 0 : i32
    %c0_i32_1 = arith.constant 0 : i32
    %c0_i32_2 = arith.constant 0 : i32
    return %arg0, %c0_i32, %c0_i32_0, %c0_i32_1 : i32, i32, i32, i32
  }
}

</mosaic_0001>

<llo_original>
// kernel: tpu_custom_call.1
$region0: #{tpu_custom_call.1}
  #allocation0 [shape = 'u32[]', space=smem, size = 0x4, offset = 0x4, fixed_abs, tag = 'smem constant byte address 0x4 - core index']
  #allocation1 [shape = 'u32[144,128]{1,0:T(1,128)}', space=vmem, size = 0x12000, scoped, tag = 'internal scratch']
  #allocation2 [shape = 'bf16[24,24,8]{2,1,0:T(8,128)(2,1)}', space=vmem, size = 0x24000, scoped, tag = 'scratch operand']
  %s0 = inlined_call_operand.vmem [shape: bf16[2,16,16,8], index: 0, kind: input, shape index: {}]
  %s1 = inlined_call_operand.vmem [shape: bf16[4,72,2], index: 1, kind: input, shape index: {}]
  %s2 = inlined_call_operand.vmem [shape: bf16[4,2,8], index: 2, kind: input, shape index: {}]
  %s3 = inlined_call_operand.vmem [shape: f32[1,1,8], index: 3, kind: input, shape index: {}]
  %s4 = inlined_call_operand.vmem [shape: f32[2,16,16,8], index: 4, kind: output, shape index: {}]
  %s5 = sld [smem:[#allocation0]]
  $region49: #{tpu_custom_call.1} parent=0
    _
  %s7 = ssub.s32 1, %s5
  %s8 = scalar_select 0, %s7, %s5
  loop: start=0, step=1, limit=4
  $region2: #{tpu_custom_call.1} parent=0 // loop_pre_header
    _
  $region3: #{tpu_custom_call.1} parent=0 // loop_header
    %s10 = sphi 0, %s14
    %p11 = scmp.ge.s32.totalorder %s10, 4
    %s20 = sphi 0, %s22
    %s23 = sphi 0, %s20
    %s24 = sphi 0, %s23
    %s40 = sphi 0, %s24
    %s44 = sphi 0, %s44
    %s46 = sphi 0, %s44
    %s47 = sphi 0, %s46
    %s61 = sphi 0, %s47
    %s65 = sphi 0, %s65
    %s67 = sphi 0, %s65
    %s68 = sphi 0, %s67
    %s82 = sphi 0, %s68
    %s86 = sphi 0, %s86
    %s88 = sphi 0, %s86
    %s89 = sphi 0, %s88
    %s103 = sphi 0, %s89
    %s109 = sphi 0, %s111
    %s112 = sphi 0, %s109
    %s113 = sphi 0, %s112
    %s129 = sphi 0, %s113
  $region4: #{tpu_custom_call.1} parent=0 // loop_header_branch
    %13 = sbr.rel (%p11) target = $region8
  $region5: #{tpu_custom_call.1} parent=0 // loop_body
    %s15 = ssub.s32 %s10, 1
    %s16 = ssub.s32 %s10, 2
    %s17 = sadd.s32 %s10, 1
    %s18 = ssub.s32 %s10, %s17
    %p19 = scmp.eq.s32.totalorder %s18, 0
    %s21 = sadd.s32 %s20, 1
    %s22 = scalar_select %p19, %s20, %s21
    %p25 = pneg %p19
    %p26 = scmp.eq.s32.totalorder %s10, 1
    %p27 = por %p25, %p26
    %p28 = scmp.ne.s32.totalorder %s20, %s23
    %p29 = scmp.eq.s32.totalorder %s10, 0
    %p30 = por %p28, %p29
    %p31 = scmp.ne.s32.totalorder %s20, %s23
    %p32 = scmp.eq.s32.totalorder %s15, 1
    %p33 = por %p31, %p32
    %p34 = scmp.ne.s32.totalorder %s23, %s24
    %p35 = scmp.eq.s32.totalorder %s15, 0
    %p36 = por %p34, %p35
    %p37 = scmp.ne.s32.totalorder %s23, %s24
    %p38 = scmp.eq.s32.totalorder %s16, 1
    %p39 = por %p37, %p38
    %p41 = scmp.ne.s32.totalorder %s24, %s40
    %p42 = scmp.eq.s32.totalorder %s16, 0
    %p43 = por %p41, %p42
    %s45 = sadd.s32 %s44, 1
    %p48 = scmp.eq.s32.totalorder %s10, 1
    %p49 = scmp.ne.s32.totalorder %s44, %s46
    %p50 = scmp.eq.s32.totalorder %s10, 0
    %p51 = por %p49, %p50
    %p52 = scmp.ne.s32.totalorder %s44, %s46
    %p53 = scmp.eq.s32.totalorder %s15, 1
    %p54 = por %p52, %p53
    %p55 = scmp.ne.s32.totalorder %s46, %s47
    %p56 = scmp.eq.s32.totalorder %s15, 0
    %p57 = por %p55, %p56
    %p58 = scmp.ne.s32.totalorder %s46, %s47
    %p59 = scmp.eq.s32.totalorder %s16, 1
    %p60 = por %p58, %p59
    %p62 = scmp.ne.s32.totalorder %s47, %s61
    %p63 = scmp.eq.s32.totalorder %s16, 0
    %p64 = por %p62, %p63
    %s66 = sadd.s32 %s65, 1
    %p69 = scmp.eq.s32.totalorder %s10, 1
    %p70 = scmp.ne.s32.totalorder %s65, %s67
    %p71 = scmp.eq.s32.totalorder %s10, 0
    %p72 = por %p70, %p71
    %p73 = scmp.ne.s32.totalorder %s65, %s67
    %p74 = scmp.eq.s32.totalorder %s15, 1
    %p75 = por %p73, %p74
    %p76 = scmp.ne.s32.totalorder %s67, %s68
    %p77 = scmp.eq.s32.totalorder %s15, 0
    %p78 = por %p76, %p77
    %p79 = scmp.ne.s32.totalorder %s67, %s68
    %p80 = scmp.eq.s32.totalorder %s16, 1
    %p81 = por %p79, %p80
    %p83 = scmp.ne.s32.totalorder %s68, %s82
    %p84 = scmp.eq.s32.totalorder %s16, 0
    %p85 = por %p83, %p84
    %s87 = sadd.s32 %s86, 1
    %p90 = scmp.eq.s32.totalorder %s10, 1
    %p91 = scmp.ne.s32.totalorder %s86, %s88
    %p92 = scmp.eq.s32.totalorder %s10, 0
    %p93 = por %p91, %p92
    %p94 = scmp.ne.s32.totalorder %s86, %s88
    %p95 = scmp.eq.s32.totalorder %s15, 1
    %p96 = por %p94, %p95
    %p97 = scmp.ne.s32.totalorder %s88, %s89
    %p98 = scmp.eq.s32.totalorder %s15, 0
    %p99 = por %p97, %p98
    %p100 = scmp.ne.s32.totalorder %s88, %s89
    %p101 = scmp.eq.s32.totalorder %s16, 1
    %p102 = por %p100, %p101
    %p104 = scmp.ne.s32.totalorder %s89, %s103
    %p105 = scmp.eq.s32.totalorder %s16, 0
    %p106 = por %p104, %p105
    %s107 = ssub.s32 %s10, %s17
    %p108 = scmp.eq.s32.totalorder %s107, 0
    %s110 = sadd.s32 %s109, 1
    %s111 = scalar_select %p108, %s109, %s110
    %p114 = pneg %p108
    %p115 = scmp.eq.s32.totalorder %s10, 1
    %p116 = por %p114, %p115
    %p117 = scmp.ne.s32.totalorder %s109, %s112
    %p118 = scmp.eq.s32.totalorder %s10, 0
    %p119 = por %p117, %p118
    %p120 = scmp.ne.s32.totalorder %s109, %s112
    %p121 = scmp.eq.s32.totalorder %s15, 1
    %p122 = por %p120, %p121
    %p123 = scmp.ne.s32.totalorder %s112, %s113
    %p124 = scmp.eq.s32.totalorder %s15, 0
    %p125 = por %p123, %p124
    %p126 = scmp.ne.s32.totalorder %s112, %s113
    %p127 = scmp.eq.s32.totalorder %s16, 1
    %p128 = por %p126, %p127
    %p130 = scmp.ne.s32.totalorder %s113, %s129
    %p131 = scmp.eq.s32.totalorder %s16, 0
    %p132 = por %p130, %p131
    %p133 = scmp.le.s32.totalorder 1, %s10
    %p134 = scmp.lt.s32.totalorder %s10, 3
    %p135 = pnand %p133, %p134
    %p136 = pneg %p135
    // Predicated region
    $region9: #{tpu_custom_call.1} parent=5 // pred_check
      _
    $region10: #{tpu_custom_call.1} parent=5 // pred_check_branch
      %138 = sbr.rel (%p135) target = $region12
    $region11: #{tpu_custom_call.1} parent=5 // pred_region
      %s139 = ssub.s32 %s10, 1
      // Predicated region
      $region13: #{tpu_custom_call.1} parent=11 // pred_check
        %p140 = pneg %p57
      $region14: #{tpu_custom_call.1} parent=11 // pred_check_branch
        %142 = sbr.rel (%p140) target = $region16
      $region15: #{tpu_custom_call.1} parent=11 // pred_region
        _
      $region16: #{tpu_custom_call.1} parent=11 // pred_fallthru
        _
      // Predicated region
      $region17: #{tpu_custom_call.1} parent=11 // pred_check
        %p143 = pneg %p78
      $region18: #{tpu_custom_call.1} parent=11 // pred_check_branch
        %145 = sbr.rel (%p143) target = $region20
      $region19: #{tpu_custom_call.1} parent=11 // pred_region
        _
      $region20: #{tpu_custom_call.1} parent=11 // pred_fallthru
        _
      // Predicated region
      $region21: #{tpu_custom_call.1} parent=11 // pred_check
        %p146 = pneg %p99
      $region22: #{tpu_custom_call.1} parent=11 // pred_check_branch
        %148 = sbr.rel (%p146) target = $region24
      $region23: #{tpu_custom_call.1} parent=11 // pred_region
        _
      $region24: #{tpu_custom_call.1} parent=11 // pred_fallthru
        _
    $region12: #{tpu_custom_call.1} parent=5 // pred_fallthru
      _
    %p149 = scmp.lt.s32.totalorder %s10, 2
    // Predicated region
    $region25: #{tpu_custom_call.1} parent=5 // pred_check
      %p150 = pneg %p149
    $region26: #{tpu_custom_call.1} parent=5 // pred_check_branch
      %152 = sbr.rel (%p150) target = $region28
    $region27: #{tpu_custom_call.1} parent=5 // pred_region
      // Predicated region
      $region29: #{tpu_custom_call.1} parent=27 // pred_check
        %p153 = pneg %p30
      $region30: #{tpu_custom_call.1} parent=27 // pred_check_branch
        %155 = sbr.rel (%p153) target = $region32
      $region31: #{tpu_custom_call.1} parent=27 // pred_region
        %p156 = scmp.lt.s32.totalorder %s10, 1
        %s157 = scalar_select %p156, %s10, 1
        %s158 = smul.addr %s157, 32
        %s159 = smul.addr %s158, 4
        %s160 = scalar_lea.vmem %s0, %s159
      $region32: #{tpu_custom_call.1} parent=27 // pred_fallthru
        _
    $region28: #{tpu_custom_call.1} parent=5 // pred_fallthru
      _
    %p161 = scmp.le.s32.totalorder 1, %s10
    %p162 = scmp.lt.s32.totalorder %s10, 3
    %p163 = pnand %p161, %p162
    %p164 = pneg %p163
    // Predicated region
    $region33: #{tpu_custom_call.1} parent=5 // pred_check
      _
    $region34: #{tpu_custom_call.1} parent=5 // pred_check_branch
      %166 = sbr.rel (%p163) target = $region36
    $region35: #{tpu_custom_call.1} parent=5 // pred_region
      %s167 = ssub.s32 %s10, 1
      %p168 = scmp.lt.s32.totalorder %s15, 1
      %s169 = scalar_select %p168, %s15, 1
      %s170 = smul.addr %s169, 32
      %s171 = smul.addr %s170, 4
      %s172 = scalar_lea.vmem %s0, %s171
      %p173 = pneg %p36
      %p174 = pneg %p33
      %p175 = pneg %p57
      %p176 = pneg %p54
      %p177 = pneg %p78
      %p178 = pneg %p75
      %p179 = pneg %p99
      %p180 = pneg %p96
      %p181 = pneg %p125
      %p182 = pneg %p122
      %p183 = scmp.lt.s32.totalorder %s15, 1
      %s184 = scalar_select %p183, %s15, 1
      %s185 = smul.addr %s184, 32
      %s186 = smul.addr %s185, 8
      %s187 = scalar_lea.vmem %s4, %s186
      %p188 = scmp.lt.s32.totalorder %s15, 1
      %s189 = scalar_select %p188, %s15, 1
      %s190 = smul.addr %s189, 32
      %s191 = smul.addr %s190, 4
      %s192 = scalar_lea.vmem %s0, %s191
      %p193 = scmp.lt.s32.totalorder %s15, 1
      %s194 = scalar_select %p193, %s15, 1
      %s195 = smul.addr %s194, 32
      %s196 = smul.addr %s195, 8
      %s197 = scalar_lea.vmem %s4, %s196
      %vm199 = vcmask 60416
      %200 = vst.msk [vmem:[#allocation2] sm:$0xf] %vm199, 0
      %201 = vst.msk [vmem:[#allocation2 + $0x4] sm:$0xf] %vm199, 0
      %202 = vst.msk [vmem:[#allocation2 + $0x8] sm:$0xf] %vm199, 0
      %203 = vst.msk [vmem:[#allocation2 + $0xc] sm:$0xf] %vm199, 0
      %204 = vst.msk [vmem:[#allocation2 + $0x10] sm:$0xf] %vm199, 0
      %205 = vst.msk [vmem:[#allocation2 + $0x14] sm:$0xf] %vm199, 0
      %206 = vst.msk [vmem:[#allocation2 + $0x18] sm:$0xf] %vm199, 0
      %207 = vst.msk [vmem:[#allocation2 + $0x1c] sm:$0xf] %vm199, 0
      %208 = vst.msk [vmem:[#allocation2 + $0x20] sm:$0xf] %vm199, 0
      %209 = vst.msk [vmem:[#allocation2 + $0x24] sm:$0xf] %vm199, 0
      %210 = vst.msk [vmem:[#allocation2 + $0x28] sm:$0xf] %vm199, 0
      %211 = vst.msk [vmem:[#allocation2 + $0x2c] sm:$0xf] %vm199, 0
      %212 = vst.msk [vmem:[#allocation2 + $0x30] sm:$0xf] %vm199, 0
      %213 = vst.msk [vmem:[#allocation2 + $0x34] sm:$0xf] %vm199, 0
      %214 = vst.msk [vmem:[#allocation2 + $0x38] sm:$0xf] %vm199, 0
      %215 = vst.msk [vmem:[#allocation2 + $0x3c] sm:$0xf] %vm199, 0
      %216 = vst.msk [vmem:[#allocation2 + $0x40] sm:$0xf] %vm199, 0
      %217 = vst.msk [vmem:[#allocation2 + $0x44] sm:$0xf] %vm199, 0
      %218 = vst.msk [vmem:[#allocation2 + $0x48] sm:$0xf] %vm199, 0
      %219 = vst.msk [vmem:[#allocation2 + $0x4c] sm:$0xf] %vm199, 0
      %220 = vst.msk [vmem:[#allocation2 + $0x50] sm:$0xf] %vm199, 0
      %221 = vst.msk [vmem:[#allocation2 + $0x54] sm:$0xf] %vm199, 0
      %222 = vst.msk [vmem:[#allocation2 + $0x58] sm:$0xf] %vm199, 0
      %223 = vst.msk [vmem:[#allocation2 + $0x5c] sm:$0xf] %vm199, 0
      %224 = vst.msk [vmem:[#allocation2 + $0x60] sm:$0xf] %vm199, 0
      %225 = vst.msk [vmem:[#allocation2 + $0x64] sm:$0xf] %vm199, 0
      %226 = vst.msk [vmem:[#allocation2 + $0x68] sm:$0xf] %vm199, 0
      %227 = vst.msk [vmem:[#allocation2 + $0x6c] sm:$0xf] %vm199, 0
      %228 = vst.msk [vmem:[#allocation2 + $0x70] sm:$0xf] %vm199, 0
      %229 = vst.msk [vmem:[#allocation2 + $0x74] sm:$0xf] %vm199, 0
      %230 = vst.msk [vmem:[#allocation2 + $0x78] sm:$0xf] %vm199, 0
      %231 = vst.msk [vmem:[#allocation2 + $0x7c] sm:$0xf] %vm199, 0
      %232 = vst.msk [vmem:[#allocation2 + $0x80] sm:$0xf] %vm199, 0
      %233 = vst.msk [vmem:[#allocation2 + $0x84] sm:$0xf] %vm199, 0
      %234 = vst.msk [vmem:[#allocation2 + $0x88] sm:$0xf] %vm199, 0
      %235 = vst.msk [vmem:[#allocation2 + $0x8c] sm:$0xf] %vm199, 0
      %236 = vst.msk [vmem:[#allocation2 + $0x90] sm:$0xf] %vm199, 0
      %237 = vst.msk [vmem:[#allocation2 + $0x94] sm:$0xf] %vm199, 0
      %238 = vst.msk [vmem:[#allocation2 + $0x98] sm:$0xf] %vm199, 0
      %239 = vst.msk [vmem:[#allocation2 + $0x9c] sm:$0xf] %vm199, 0
      %240 = vst.msk [vmem:[#allocation2 + $0xa0] sm:$0xf] %vm199, 0
      %241 = vst.msk [vmem:[#allocation2 + $0xa4] sm:$0xf] %vm199, 0
      %242 = vst.msk [vmem:[#allocation2 + $0xa8] sm:$0xf] %vm199, 0
      %243 = vst.msk [vmem:[#allocation2 + $0xac] sm:$0xf] %vm199, 0
      %244 = vst.msk [vmem:[#allocation2 + $0xb0] sm:$0xf] %vm199, 0
      %245 = vst.msk [vmem:[#allocation2 + $0xb4] sm:$0xf] %vm199, 0
      %246 = vst.msk [vmem:[#allocation2 + $0xb8] sm:$0xf] %vm199, 0
      %247 = vst.msk [vmem:[#allocation2 + $0xbc] sm:$0xf] %vm199, 0
      %248 = vst.msk [vmem:[#allocation2 + $0xc0] sm:$0xf] %vm199, 0
      %249 = vst.msk [vmem:[#allocation2 + $0xc4] sm:$0xf] %vm199, 0
      %250 = vst.msk [vmem:[#allocation2 + $0xc8] sm:$0xf] %vm199, 0
      %251 = vst.msk [vmem:[#allocation2 + $0xcc] sm:$0xf] %vm199, 0
      %252 = vst.msk [vmem:[#allocation2 + $0xd0] sm:$0xf] %vm199, 0
      %253 = vst.msk [vmem:[#allocation2 + $0xd4] sm:$0xf] %vm199, 0
      %254 = vst.msk [vmem:[#allocation2 + $0xd8] sm:$0xf] %vm199, 0
      %255 = vst.msk [vmem:[#allocation2 + $0xdc] sm:$0xf] %vm199, 0
      %256 = vst.msk [vmem:[#allocation2 + $0xe0] sm:$0xf] %vm199, 0
      %257 = vst.msk [vmem:[#allocation2 + $0xe4] sm:$0xf] %vm199, 0
      %258 = vst.msk [vmem:[#allocation2 + $0xe8] sm:$0xf] %vm199, 0
      %259 = vst.msk [vmem:[#allocation2 + $0xec] sm:$0xf] %vm199, 0
      %260 = vst.msk [vmem:[#allocation2 + $0xf0] sm:$0xf] %vm199, 0
      %261 = vst.msk [vmem:[#allocation2 + $0xf4] sm:$0xf] %vm199, 0
      %262 = vst.msk [vmem:[#allocation2 + $0xf8] sm:$0xf] %vm199, 0
      %263 = vst.msk [vmem:[#allocation2 + $0xfc] sm:$0xf] %vm199, 0
      %264 = vst.msk [vmem:[#allocation2 + $0x100] sm:$0xf] %vm199, 0
      %265 = vst.msk [vmem:[#allocation2 + $0x104] sm:$0xf] %vm199, 0
      %266 = vst.msk [vmem:[#allocation2 + $0x108] sm:$0xf] %vm199, 0
      %267 = vst.msk [vmem:[#allocation2 + $0x10c] sm:$0xf] %vm199, 0
      %268 = vst.msk [vmem:[#allocation2 + $0x110] sm:$0xf] %vm199, 0
      %269 = vst.msk [vmem:[#allocation2 + $0x114] sm:$0xf] %vm199, 0
      %270 = vst.msk [vmem:[#allocation2 + $0x118] sm:$0xf] %vm199, 0
      %271 = vst.msk [vmem:[#allocation2 + $0x11c] sm:$0xf] %vm199, 0
      %v272 = vld [vmem:[%s192] sm:$0xf]
      %v273 = vld [vmem:[%s192 + $0x4] sm:$0xf]
      %v274 = vld [vmem:[%s192 + $0x8] sm:$0xf]
      %v275 = vld [vmem:[%s192 + $0xc] sm:$0xf]
      %v276 = vld [vmem:[%s192 + $0x10] sm:$0xf]
      %v277 = vld [vmem:[%s192 + $0x14] sm:$0xf]
      %v278 = vld [vmem:[%s192 + $0x18] sm:$0xf]
      %v279 = vld [vmem:[%s192 + $0x1c] sm:$0xf]
      %v280 = vld [vmem:[%s192 + $0x20] sm:$0xf]
      %v281 = vld [vmem:[%s192 + $0x24] sm:$0xf]
      %v282 = vld [vmem:[%s192 + $0x28] sm:$0xf]
      %v283 = vld [vmem:[%s192 + $0x2c] sm:$0xf]
      %v284 = vld [vmem:[%s192 + $0x30] sm:$0xf]
      %v285 = vld [vmem:[%s192 + $0x34] sm:$0xf]
      %v286 = vld [vmem:[%s192 + $0x38] sm:$0xf]
      %v287 = vld [vmem:[%s192 + $0x3c] sm:$0xf]
      %v288 = vld [vmem:[%s192 + $0x40] sm:$0xf]
      %v289 = vld [vmem:[%s192 + $0x44] sm:$0xf]
      %v290 = vld [vmem:[%s192 + $0x48] sm:$0xf]
      %v291 = vld [vmem:[%s192 + $0x4c] sm:$0xf]
      %v292 = vld [vmem:[%s192 + $0x50] sm:$0xf]
      %v293 = vld [vmem:[%s192 + $0x54] sm:$0xf]
      %v294 = vld [vmem:[%s192 + $0x58] sm:$0xf]
      %v295 = vld [vmem:[%s192 + $0x5c] sm:$0xf]
      %v296 = vld [vmem:[%s192 + $0x60] sm:$0xf]
      %v297 = vld [vmem:[%s192 + $0x64] sm:$0xf]
      %v298 = vld [vmem:[%s192 + $0x68] sm:$0xf]
      %v299 = vld [vmem:[%s192 + $0x6c] sm:$0xf]
      %v300 = vld [vmem:[%s192 + $0x70] sm:$0xf]
      %v301 = vld [vmem:[%s192 + $0x74] sm:$0xf]
      %v302 = vld [vmem:[%s192 + $0x78] sm:$0xf]
      %v303 = vld [vmem:[%s192 + $0x7c] sm:$0xf]
      %vm336 = vcmask 1041408
      %vm337 = vcmask 1045508
      %vm338 = vmor %vm336, %vm337
      %v339 = vrot.slane %v272, 6
      %v340 = vrot.slane %v339, 4
      %v341 = vrot.slane %v273, 6
      %v342 = vsel %vm338, %v340, %v341
      %v343 = vrot.slane %v341, 4
      %v344 = vrot.slane %v274, 6
      %v345 = vrot.slane %v344, 4
      %v346 = vrot.slane %v275, 6
      %v347 = vsel %vm338, %v345, %v346
      %v348 = vrot.slane %v346, 4
      %v349 = vrot.slane %v276, 6
      %v350 = vrot.slane %v349, 4
      %v351 = vrot.slane %v277, 6
      %v352 = vsel %vm338, %v350, %v351
      %v353 = vrot.slane %v351, 4
      %v354 = vrot.slane %v278, 6
      %v355 = vrot.slane %v354, 4
      %v356 = vrot.slane %v279, 6
      %v357 = vsel %vm338, %v355, %v356
      %v358 = vrot.slane %v356, 4
      %v359 = vrot.slane %v280, 6
      %v360 = vrot.slane %v359, 4
      %v361 = vrot.slane %v281, 6
      %v362 = vsel %vm338, %v360, %v361
      %v363 = vrot.slane %v361, 4
      %v364 = vrot.slane %v282, 6
      %v365 = vrot.slane %v364, 4
      %v366 = vrot.slane %v283, 6
      %v367 = vsel %vm338, %v365, %v366
      %v368 = vrot.slane %v366, 4
      %v369 = vrot.slane %v284, 6
      %v370 = vrot.slane %v369, 4
      %v371 = vrot.slane %v285, 6
      %v372 = vsel %vm338, %v370, %v371
      %v373 = vrot.slane %v371, 4
      %v374 = vrot.slane %v286, 6
      %v375 = vrot.slane %v374, 4
      %v376 = vrot.slane %v287, 6
      %v377 = vsel %vm338, %v375, %v376
      %v378 = vrot.slane %v376, 4
      %v379 = vrot.slane %v288, 6
      %v380 = vrot.slane %v379, 4
      %v381 = vrot.slane %v289, 6
      %v382 = vsel %vm338, %v380, %v381
      %v383 = vrot.slane %v381, 4
      %v384 = vrot.slane %v290, 6
      %v385 = vrot.slane %v384, 4
      %v386 = vrot.slane %v291, 6
      %v387 = vsel %vm338, %v385, %v386
      %v388 = vrot.slane %v386, 4
      %v389 = vrot.slane %v292, 6
      %v390 = vrot.slane %v389, 4
      %v391 = vrot.slane %v293, 6
      %v392 = vsel %vm338, %v390, %v391
      %v393 = vrot.slane %v391, 4
      %v394 = vrot.slane %v294, 6
      %v395 = vrot.slane %v394, 4
      %v396 = vrot.slane %v295, 6
      %v397 = vsel %vm338, %v395, %v396
      %v398 = vrot.slane %v396, 4
      %v399 = vrot.slane %v296, 6
      %v400 = vrot.slane %v399, 4
      %v401 = vrot.slane %v297, 6
      %v402 = vsel %vm338, %v400, %v401
      %v403 = vrot.slane %v401, 4
      %v404 = vrot.slane %v298, 6
      %v405 = vrot.slane %v404, 4
      %v406 = vrot.slane %v299, 6
      %v407 = vsel %vm338, %v405, %v406
      %v408 = vrot.slane %v406, 4
      %v409 = vrot.slane %v300, 6
      %v410 = vrot.slane %v409, 4
      %v411 = vrot.slane %v301, 6
      %v412 = vsel %vm338, %v410, %v411
      %v413 = vrot.slane %v411, 4
      %v414 = vrot.slane %v302, 6
      %v415 = vrot.slane %v414, 4
      %v416 = vrot.slane %v303, 6
      %v417 = vsel %vm338, %v415, %v416
      %v418 = vrot.slane %v416, 4
      %s467 = scalar_lea.vmem [#allocation2], 48
      %vm468 = vcmask 60418
      %469 = vst.msk [vmem:[%s467] sm:$0xc] %vm468, %v339
      %470 = vst.msk [vmem:[%s467 + $0x4] sm:$0xf] %vm199, %v342
      %vm471 = vcmask 58368
      %472 = vst.msk [vmem:[%s467 + $0x8] sm:$0x3] %vm471, %v343
      %473 = vst.msk [vmem:[%s467 + $0xc] sm:$0xc] %vm468, %v344
      %474 = vst.msk [vmem:[%s467 + $0x10] sm:$0xf] %vm199, %v347
      %475 = vst.msk [vmem:[%s467 + $0x14] sm:$0x3] %vm471, %v348
      %476 = vst.msk [vmem:[%s467 + $0x18] sm:$0xc] %vm468, %v349
      %477 = vst.msk [vmem:[%s467 + $0x1c] sm:$0xf] %vm199, %v352
      %478 = vst.msk [vmem:[%s467 + $0x20] sm:$0x3] %vm471, %v353
      %479 = vst.msk [vmem:[%s467 + $0x24] sm:$0xc] %vm468, %v354
      %480 = vst.msk [vmem:[%s467 + $0x28] sm:$0xf] %vm199, %v357
      %481 = vst.msk [vmem:[%s467 + $0x2c] sm:$0x3] %vm471, %v358
      %482 = vst.msk [vmem:[%s467 + $0x30] sm:$0xc] %vm468, %v359
      %483 = vst.msk [vmem:[%s467 + $0x34] sm:$0xf] %vm199, %v362
      %484 = vst.msk [vmem:[%s467 + $0x38] sm:$0x3] %vm471, %v363
      %485 = vst.msk [vmem:[%s467 + $0x3c] sm:$0xc] %vm468, %v364
      %486 = vst.msk [vmem:[%s467 + $0x40] sm:$0xf] %vm199, %v367
      %487 = vst.msk [vmem:[%s467 + $0x44] sm:$0x3] %vm471, %v368
      %488 = vst.msk [vmem:[%s467 + $0x48] sm:$0xc] %vm468, %v369
      %489 = vst.msk [vmem:[%s467 + $0x4c] sm:$0xf] %vm199, %v372
      %490 = vst.msk [vmem:[%s467 + $0x50] sm:$0x3] %vm471, %v373
      %491 = vst.msk [vmem:[%s467 + $0x54] sm:$0xc] %vm468, %v374
      %492 = vst.msk [vmem:[%s467 + $0x58] sm:$0xf] %vm199, %v377
      %493 = vst.msk [vmem:[%s467 + $0x5c] sm:$0x3] %vm471, %v378
      %494 = vst.msk [vmem:[%s467 + $0x60] sm:$0xc] %vm468, %v379
      %495 = vst.msk [vmem:[%s467 + $0x64] sm:$0xf] %vm199, %v382
      %496 = vst.msk [vmem:[%s467 + $0x68] sm:$0x3] %vm471, %v383
      %497 = vst.msk [vmem:[%s467 + $0x6c] sm:$0xc] %vm468, %v384
      %498 = vst.msk [vmem:[%s467 + $0x70] sm:$0xf] %vm199, %v387
      %499 = vst.msk [vmem:[%s467 + $0x74] sm:$0x3] %vm471, %v388
      %500 = vst.msk [vmem:[%s467 + $0x78] sm:$0xc] %vm468, %v389
      %501 = vst.msk [vmem:[%s467 + $0x7c] sm:$0xf] %vm199, %v392
      %502 = vst.msk [vmem:[%s467 + $0x80] sm:$0x3] %vm471, %v393
      %503 = vst.msk [vmem:[%s467 + $0x84] sm:$0xc] %vm468, %v394
      %504 = vst.msk [vmem:[%s467 + $0x88] sm:$0xf] %vm199, %v397
      %505 = vst.msk [vmem:[%s467 + $0x8c] sm:$0x3] %vm471, %v398
      %506 = vst.msk [vmem:[%s467 + $0x90] sm:$0xc] %vm468, %v399
      %507 = vst.msk [vmem:[%s467 + $0x94] sm:$0xf] %vm199, %v402
      %508 = vst.msk [vmem:[%s467 + $0x98] sm:$0x3] %vm471, %v403
      %509 = vst.msk [vmem:[%s467 + $0x9c] sm:$0xc] %vm468, %v404
      %510 = vst.msk [vmem:[%s467 + $0xa0] sm:$0xf] %vm199, %v407
      %511 = vst.msk [vmem:[%s467 + $0xa4] sm:$0x3] %vm471, %v408
      %512 = vst.msk [vmem:[%s467 + $0xa8] sm:$0xc] %vm468, %v409
      %513 = vst.msk [vmem:[%s467 + $0xac] sm:$0xf] %vm199, %v412
      %514 = vst.msk [vmem:[%s467 + $0xb0] sm:$0x3] %vm471, %v413
      %515 = vst.msk [vmem:[%s467 + $0xb4] sm:$0xc] %vm468, %v414
      %516 = vst.msk [vmem:[%s467 + $0xb8] sm:$0xf] %vm199, %v417
      %517 = vst.msk [vmem:[%s467 + $0xbc] sm:$0x3] %vm471, %v418
      %s518 = scalar_lea.vmem [#allocation2], 36
      %v519 = vld [vmem:[%s518] sm:$0xe]
      %v520 = vld [vmem:[%s518 + $0x4] sm:$0xf]
      %v521 = vld [vmem:[%s518 + $0x8] sm:$0x3]
      %v522 = vld [vmem:[%s518 + $0xc] sm:$0xe]
      %v523 = vld [vmem:[%s518 + $0x10] sm:$0xf]
      %v524 = vld [vmem:[%s518 + $0x14] sm:$0x3]
      %v525 = vld [vmem:[%s518 + $0x18] sm:$0xe]
      %v526 = vld [vmem:[%s518 + $0x1c] sm:$0xf]
      %v527 = vld [vmem:[%s518 + $0x20] sm:$0x3]
      %v528 = vld [vmem:[%s518 + $0x24] sm:$0xe]
      %v529 = vld [vmem:[%s518 + $0x28] sm:$0xf]
      %v530 = vld [vmem:[%s518 + $0x2c] sm:$0x3]
      %v531 = vld [vmem:[%s518 + $0x30] sm:$0xe]
      %v532 = vld [vmem:[%s518 + $0x34] sm:$0xf]
      %v533 = vld [vmem:[%s518 + $0x38] sm:$0x3]
      %v534 = vld [vmem:[%s518 + $0x3c] sm:$0xe]
      %v535 = vld [vmem:[%s518 + $0x40] sm:$0xf]
      %v536 = vld [vmem:[%s518 + $0x44] sm:$0x3]
      %v537 = vld [vmem:[%s518 + $0x48] sm:$0xe]
      %v538 = vld [vmem:[%s518 + $0x4c] sm:$0xf]
      %v539 = vld [vmem:[%s518 + $0x50] sm:$0x3]
      %v540 = vld [vmem:[%s518 + $0x54] sm:$0xe]
      %v541 = vld [vmem:[%s518 + $0x58] sm:$0xf]
      %v542 = vld [vmem:[%s518 + $0x5c] sm:$0x3]
      %v543 = vld [vmem:[%s518 + $0x60] sm:$0xe]
      %v544 = vld [vmem:[%s518 + $0x64] sm:$0xf]
      %v545 = vld [vmem:[%s518 + $0x68] sm:$0x3]
      %v546 = vld [vmem:[%s518 + $0x6c] sm:$0xe]
      %v547 = vld [vmem:[%s518 + $0x70] sm:$0xf]
      %v548 = vld [vmem:[%s518 + $0x74] sm:$0x3]
      %v549 = vld [vmem:[%s518 + $0x78] sm:$0xe]
      %v550 = vld [vmem:[%s518 + $0x7c] sm:$0xf]
      %v551 = vld [vmem:[%s518 + $0x80] sm:$0x3]
      %v552 = vld [vmem:[%s518 + $0x84] sm:$0xe]
      %v553 = vld [vmem:[%s518 + $0x88] sm:$0xf]
      %v554 = vld [vmem:[%s518 + $0x8c] sm:$0x3]
      %v555 = vld [vmem:[%s518 + $0x90] sm:$0xe]
      %v556 = vld [vmem:[%s518 + $0x94] sm:$0xf]
      %v557 = vld [vmem:[%s518 + $0x98] sm:$0x3]
      %v558 = vld [vmem:[%s518 + $0x9c] sm:$0xe]
      %v559 = vld [vmem:[%s518 + $0xa0] sm:$0xf]
      %v560 = vld [vmem:[%s518 + $0xa4] sm:$0x3]
      %v561 = vld [vmem:[%s518 + $0xa8] sm:$0xe]
      %v562 = vld [vmem:[%s518 + $0xac] sm:$0xf]
      %v563 = vld [vmem:[%s518 + $0xb0] sm:$0x3]
      %v564 = vld [vmem:[%s518 + $0xb4] sm:$0xe]
      %v565 = vld [vmem:[%s518 + $0xb8] sm:$0xf]
      %v566 = vld [vmem:[%s518 + $0xbc] sm:$0x3]
      %v567 = vld [vmem:[%s518] sm:$0xc]
      %v568 = vld [vmem:[%s518 + $0xc] sm:$0xc]
      %v569 = vld [vmem:[%s518 + $0x18] sm:$0xc]
      %v570 = vld [vmem:[%s518 + $0x24] sm:$0xc]
      %v571 = vld [vmem:[%s518 + $0x30] sm:$0xc]
      %v572 = vld [vmem:[%s518 + $0x3c] sm:$0xc]
      %v573 = vld [vmem:[%s518 + $0x48] sm:$0xc]
      %v574 = vld [vmem:[%s518 + $0x54] sm:$0xc]
      %v575 = vld [vmem:[%s518 + $0x60] sm:$0xc]
      %v576 = vld [vmem:[%s518 + $0x6c] sm:$0xc]
      %v577 = vld [vmem:[%s518 + $0x78] sm:$0xc]
      %v578 = vld [vmem:[%s518 + $0x84] sm:$0xc]
      %v579 = vld [vmem:[%s518 + $0x90] sm:$0xc]
      %v580 = vld [vmem:[%s518 + $0x9c] sm:$0xc]
      %v581 = vld [vmem:[%s518 + $0xa8] sm:$0xc]
      %v582 = vld [vmem:[%s518 + $0xb4] sm:$0xc]
      %v583 = vld [vmem:[%s518 + $0x8] sm:$0x7]
      %v584 = vld [vmem:[%s518 + $0x14] sm:$0x7]
      %v585 = vld [vmem:[%s518 + $0x20] sm:$0x7]
      %v586 = vld [vmem:[%s518 + $0x2c] sm:$0x7]
      %v587 = vld [vmem:[%s518 + $0x38] sm:$0x7]
      %v588 = vld [vmem:[%s518 + $0x44] sm:$0x7]
      %v589 = vld [vmem:[%s518 + $0x50] sm:$0x7]
      %v590 = vld [vmem:[%s518 + $0x5c] sm:$0x7]
      %v591 = vld [vmem:[%s518 + $0x68] sm:$0x7]
      %v592 = vld [vmem:[%s518 + $0x74] sm:$0x7]
      %v593 = vld [vmem:[%s518 + $0x80] sm:$0x7]
      %v594 = vld [vmem:[%s518 + $0x8c] sm:$0x7]
      %v595 = vld [vmem:[%s518 + $0x98] sm:$0x7]
      %v596 = vld [vmem:[%s518 + $0xa4] sm:$0x7]
      %v597 = vld [vmem:[%s518 + $0xb0] sm:$0x7]
      %v598 = vld [vmem:[%s518 + $0xbc] sm:$0x7]
      %v599 = vld [vmem:[%s467] sm:$0xe]
      %v600 = vld [vmem:[%s467 + $0x4] sm:$0xf]
      %v601 = vld [vmem:[%s467 + $0x8] sm:$0x3]
      %v602 = vld [vmem:[%s467 + $0xc] sm:$0xe]
      %v603 = vld [vmem:[%s467 + $0x10] sm:$0xf]
      %v604 = vld [vmem:[%s467 + $0x14] sm:$0x3]
      %v605 = vld [vmem:[%s467 + $0x18] sm:$0xe]
      %v606 = vld [vmem:[%s467 + $0x1c] sm:$0xf]
      %v607 = vld [vmem:[%s467 + $0x20] sm:$0x3]
      %v608 = vld [vmem:[%s467 + $0x24] sm:$0xe]
      %v609 = vld [vmem:[%s467 + $0x28] sm:$0xf]
      %v610 = vld [vmem:[%s467 + $0x2c] sm:$0x3]
      %v611 = vld [vmem:[%s467 + $0x30] sm:$0xe]
      %v612 = vld [vmem:[%s467 + $0x34] sm:$0xf]
      %v613 = vld [vmem:[%s467 + $0x38] sm:$0x3]
      %v614 = vld [vmem:[%s467 + $0x3c] sm:$0xe]
      %v615 = vld [vmem:[%s467 + $0x40] sm:$0xf]
      %v616 = vld [vmem:[%s467 + $0x44] sm:$0x3]
      %v617 = vld [vmem:[%s467 + $0x48] sm:$0xe]
      %v618 = vld [vmem:[%s467 + $0x4c] sm:$0xf]
      %v619 = vld [vmem:[%s467 + $0x50] sm:$0x3]
      %v620 = vld [vmem:[%s467 + $0x54] sm:$0xe]
      %v621 = vld [vmem:[%s467 + $0x58] sm:$0xf]
      %v622 = vld [vmem:[%s467 + $0x5c] sm:$0x3]
      %v623 = vld [vmem:[%s467 + $0x60] sm:$0xe]
      %v624 = vld [vmem:[%s467 + $0x64] sm:$0xf]
      %v625 = vld [vmem:[%s467 + $0x68] sm:$0x3]
      %v626 = vld [vmem:[%s467 + $0x6c] sm:$0xe]
      %v627 = vld [vmem:[%s467 + $0x70] sm:$0xf]
      %v628 = vld [vmem:[%s467 + $0x74] sm:$0x3]
      %v629 = vld [vmem:[%s467 + $0x78] sm:$0xe]
      %v630 = vld [vmem:[%s467 + $0x7c] sm:$0xf]
      %v631 = vld [vmem:[%s467 + $0x80] sm:$0x3]
      %v632 = vld [vmem:[%s467 + $0x84] sm:$0xe]
      %v633 = vld [vmem:[%s467 + $0x88] sm:$0xf]
      %v634 = vld [vmem:[%s467 + $0x8c] sm:$0x3]
      %v635 = vld [vmem:[%s467 + $0x90] sm:$0xe]
      %v636 = vld [vmem:[%s467 + $0x94] sm:$0xf]
      %v637 = vld [vmem:[%s467 + $0x98] sm:$0x3]
      %v638 = vld [vmem:[%s467 + $0x9c] sm:$0xe]
      %v639 = vld [vmem:[%s467 + $0xa0] sm:$0xf]
      %v640 = vld [vmem:[%s467 + $0xa4] sm:$0x3]
      %v641 = vld [vmem:[%s467 + $0xa8] sm:$0xe]
      %v642 = vld [vmem:[%s467 + $0xac] sm:$0xf]
      %v643 = vld [vmem:[%s467 + $0xb0] sm:$0x3]
      %v644 = vld [vmem:[%s467 + $0xb4] sm:$0xe]
      %v645 = vld [vmem:[%s467 + $0xb8] sm:$0xf]
      %v646 = vld [vmem:[%s467 + $0xbc] sm:$0x3]
      %v647 = vld [vmem:[%s467] sm:$0xc]
      %v648 = vld [vmem:[%s467 + $0xc] sm:$0xc]
      %v649 = vld [vmem:[%s467 + $0x18] sm:$0xc]
      %v650 = vld [vmem:[%s467 + $0x24] sm:$0xc]
      %v651 = vld [vmem:[%s467 + $0x30] sm:$0xc]
      %v652 = vld [vmem:[%s467 + $0x3c] sm:$0xc]
      %v653 = vld [vmem:[%s467 + $0x48] sm:$0xc]
      %v654 = vld [vmem:[%s467 + $0x54] sm:$0xc]
      %v655 = vld [vmem:[%s467 + $0x60] sm:$0xc]
      %v656 = vld [vmem:[%s467 + $0x6c] sm:$0xc]
      %v657 = vld [vmem:[%s467 + $0x78] sm:$0xc]
      %v658 = vld [vmem:[%s467 + $0x84] sm:$0xc]
      %v659 = vld [vmem:[%s467 + $0x90] sm:$0xc]
      %v660 = vld [vmem:[%s467 + $0x9c] sm:$0xc]
      %v661 = vld [vmem:[%s467 + $0xa8] sm:$0xc]
      %v662 = vld [vmem:[%s467 + $0xb4] sm:$0xc]
      %v663 = vld [vmem:[%s467 + $0x8] sm:$0x7]
      %v664 = vld [vmem:[%s467 + $0x14] sm:$0x7]
      %v665 = vld [vmem:[%s467 + $0x20] sm:$0x7]
      %v666 = vld [vmem:[%s467 + $0x2c] sm:$0x7]
      %v667 = vld [vmem:[%s467 + $0x38] sm:$0x7]
      %v668 = vld [vmem:[%s467 + $0x44] sm:$0x7]
      %v669 = vld [vmem:[%s467 + $0x50] sm:$0x7]
      %v670 = vld [vmem:[%s467 + $0x5c] sm:$0x7]
      %v671 = vld [vmem:[%s467 + $0x68] sm:$0x7]
      %v672 = vld [vmem:[%s467 + $0x74] sm:$0x7]
      %v673 = vld [vmem:[%s467 + $0x80] sm:$0x7]
      %v674 = vld [vmem:[%s467 + $0x8c] sm:$0x7]
      %v675 = vld [vmem:[%s467 + $0x98] sm:$0x7]
      %v676 = vld [vmem:[%s467 + $0xa4] sm:$0x7]
      %v677 = vld [vmem:[%s467 + $0xb0] sm:$0x7]
      %v678 = vld [vmem:[%s467 + $0xbc] sm:$0x7]
      %s679 = scalar_lea.vmem [#allocation2], 60
      %v680 = vld [vmem:[%s679] sm:$0xe]
      %v681 = vld [vmem:[%s679 + $0x4] sm:$0xf]
      %v682 = vld [vmem:[%s679 + $0x8] sm:$0x3]
      %v683 = vld [vmem:[%s679 + $0xc] sm:$0xe]
      %v684 = vld [vmem:[%s679 + $0x10] sm:$0xf]
      %v685 = vld [vmem:[%s679 + $0x14] sm:$0x3]
      %v686 = vld [vmem:[%s679 + $0x18] sm:$0xe]
      %v687 = vld [vmem:[%s679 + $0x1c] sm:$0xf]
      %v688 = vld [vmem:[%s679 + $0x20] sm:$0x3]
      %v689 = vld [vmem:[%s679 + $0x24] sm:$0xe]
      %v690 = vld [vmem:[%s679 + $0x28] sm:$0xf]
      %v691 = vld [vmem:[%s679 + $0x2c] sm:$0x3]
      %v692 = vld [vmem:[%s679 + $0x30] sm:$0xe]
      %v693 = vld [vmem:[%s679 + $0x34] sm:$0xf]
      %v694 = vld [vmem:[%s679 + $0x38] sm:$0x3]
      %v695 = vld [vmem:[%s679 + $0x3c] sm:$0xe]
      %v696 = vld [vmem:[%s679 + $0x40] sm:$0xf]
      %v697 = vld [vmem:[%s679 + $0x44] sm:$0x3]
      %v698 = vld [vmem:[%s679 + $0x48] sm:$0xe]
      %v699 = vld [vmem:[%s679 + $0x4c] sm:$0xf]
      %v700 = vld [vmem:[%s679 + $0x50] sm:$0x3]
      %v701 = vld [vmem:[%s679 + $0x54] sm:$0xe]
      %v702 = vld [vmem:[%s679 + $0x58] sm:$0xf]
      %v703 = vld [vmem:[%s679 + $0x5c] sm:$0x3]
      %v704 = vld [vmem:[%s679 + $0x60] sm:$0xe]
      %v705 = vld [vmem:[%s679 + $0x64] sm:$0xf]
      %v706 = vld [vmem:[%s679 + $0x68] sm:$0x3]
      %v707 = vld [vmem:[%s679 + $0x6c] sm:$0xe]
      %v708 = vld [vmem:[%s679 + $0x70] sm:$0xf]
      %v709 = vld [vmem:[%s679 + $0x74] sm:$0x3]
      %v710 = vld [vmem:[%s679 + $0x78] sm:$0xe]
      %v711 = vld [vmem:[%s679 + $0x7c] sm:$0xf]
      %v712 = vld [vmem:[%s679 + $0x80] sm:$0x3]
      %v713 = vld [vmem:[%s679 + $0x84] sm:$0xe]
      %v714 = vld [vmem:[%s679 + $0x88] sm:$0xf]
      %v715 = vld [vmem:[%s679 + $0x8c] sm:$0x3]
      %v716 = vld [vmem:[%s679 + $0x90] sm:$0xe]
      %v717 = vld [vmem:[%s679 + $0x94] sm:$0xf]
      %v718 = vld [vmem:[%s679 + $0x98] sm:$0x3]
      %v719 = vld [vmem:[%s679 + $0x9c] sm:$0xe]
      %v720 = vld [vmem:[%s679 + $0xa0] sm:$0xf]
      %v721 = vld [vmem:[%s679 + $0xa4] sm:$0x3]
      %v722 = vld [vmem:[%s679 + $0xa8] sm:$0xe]
      %v723 = vld [vmem:[%s679 + $0xac] sm:$0xf]
      %v724 = vld [vmem:[%s679 + $0xb0] sm:$0x3]
      %v725 = vld [vmem:[%s679 + $0xb4] sm:$0xe]
      %v726 = vld [vmem:[%s679 + $0xb8] sm:$0xf]
      %v727 = vld [vmem:[%s679 + $0xbc] sm:$0x3]
      %v728 = vld [vmem:[%s679] sm:$0xc]
      %v729 = vld [vmem:[%s679 + $0xc] sm:$0xc]
      %v730 = vld [vmem:[%s679 + $0x18] sm:$0xc]
      %v731 = vld [vmem:[%s679 + $0x24] sm:$0xc]
      %v732 = vld [vmem:[%s679 + $0x30] sm:$0xc]
      %v733 = vld [vmem:[%s679 + $0x3c] sm:$0xc]
      %v734 = vld [vmem:[%s679 + $0x48] sm:$0xc]
      %v735 = vld [vmem:[%s679 + $0x54] sm:$0xc]
      %v736 = vld [vmem:[%s679 + $0x60] sm:$0xc]
      %v737 = vld [vmem:[%s679 + $0x6c] sm:$0xc]
      %v738 = vld [vmem:[%s679 + $0x78] sm:$0xc]
      %v739 = vld [vmem:[%s679 + $0x84] sm:$0xc]
      %v740 = vld [vmem:[%s679 + $0x90] sm:$0xc]
      %v741 = vld [vmem:[%s679 + $0x9c] sm:$0xc]
      %v742 = vld [vmem:[%s679 + $0xa8] sm:$0xc]
      %v743 = vld [vmem:[%s679 + $0xb4] sm:$0xc]
      %v744 = vld [vmem:[%s679 + $0x8] sm:$0x7]
      %v745 = vld [vmem:[%s679 + $0x14] sm:$0x7]
      %v746 = vld [vmem:[%s679 + $0x20] sm:$0x7]
      %v747 = vld [vmem:[%s679 + $0x2c] sm:$0x7]
      %v748 = vld [vmem:[%s679 + $0x38] sm:$0x7]
      %v749 = vld [vmem:[%s679 + $0x44] sm:$0x7]
      %v750 = vld [vmem:[%s679 + $0x50] sm:$0x7]
      %v751 = vld [vmem:[%s679 + $0x5c] sm:$0x7]
      %v752 = vld [vmem:[%s679 + $0x68] sm:$0x7]
      %v753 = vld [vmem:[%s679 + $0x74] sm:$0x7]
      %v754 = vld [vmem:[%s679 + $0x80] sm:$0x7]
      %v755 = vld [vmem:[%s679 + $0x8c] sm:$0x7]
      %v756 = vld [vmem:[%s679 + $0x98] sm:$0x7]
      %v757 = vld [vmem:[%s679 + $0xa4] sm:$0x7]
      %v758 = vld [vmem:[%s679 + $0xb0] sm:$0x7]
      %v759 = vld [vmem:[%s679 + $0xbc] sm:$0x7]
      %v808 = vunpack.c.l.b16 %v519
      %v809 = vunpack.c.l.b16 %v520
      %v810 = vunpack.c.l.b16 %v521
      %v811 = vunpack.c.l.b16 %v522
      %v812 = vunpack.c.l.b16 %v523
      %v813 = vunpack.c.l.b16 %v524
      %v814 = vunpack.c.l.b16 %v525
      %v815 = vunpack.c.l.b16 %v526
      %v816 = vunpack.c.l.b16 %v527
      %v817 = vunpack.c.l.b16 %v528
      %v818 = vunpack.c.l.b16 %v529
      %v819 = vunpack.c.l.b16 %v530
      %v820 = vunpack.c.l.b16 %v531
      %v821 = vunpack.c.l.b16 %v532
      %v822 = vunpack.c.l.b16 %v533
      %v823 = vunpack.c.l.b16 %v534
      %v824 = vunpack.c.l.b16 %v535
      %v825 = vunpack.c.l.b16 %v536
      %v826 = vunpack.c.l.b16 %v537
      %v827 = vunpack.c.l.b16 %v538
      %v828 = vunpack.c.l.b16 %v539
      %v829 = vunpack.c.l.b16 %v540
      %v830 = vunpack.c.l.b16 %v541
      %v831 = vunpack.c.l.b16 %v542
      %v832 = vunpack.c.l.b16 %v543
      %v833 = vunpack.c.l.b16 %v544
      %v834 = vunpack.c.l.b16 %v545
      %v835 = vunpack.c.l.b16 %v546
      %v836 = vunpack.c.l.b16 %v547
      %v837 = vunpack.c.l.b16 %v548
      %v838 = vunpack.c.l.b16 %v549
      %v839 = vunpack.c.l.b16 %v550
      %v840 = vunpack.c.l.b16 %v551
      %v841 = vunpack.c.l.b16 %v552
      %v842 = vunpack.c.l.b16 %v553
      %v843 = vunpack.c.l.b16 %v554
      %v844 = vunpack.c.l.b16 %v555
      %v845 = vunpack.c.l.b16 %v556
      %v846 = vunpack.c.l.b16 %v557
      %v847 = vunpack.c.l.b16 %v558
      %v848 = vunpack.c.l.b16 %v559
      %v849 = vunpack.c.l.b16 %v560
      %v850 = vunpack.c.l.b16 %v561
      %v851 = vunpack.c.l.b16 %v562
      %v852 = vunpack.c.l.b16 %v563
      %v853 = vunpack.c.l.b16 %v564
      %v854 = vunpack.c.l.b16 %v565
      %v855 = vunpack.c.l.b16 %v566
      %v856 = vpack.c.b16 %v809, %v808
      %v857 = vpack.c.b16 %v810, %v810
      %v858 = vpack.c.b16 %v812, %v811
      %v859 = vpack.c.b16 %v813, %v813
      %v860 = vpack.c.b16 %v815, %v814
      %v861 = vpack.c.b16 %v816, %v816
      %v862 = vpack.c.b16 %v818, %v817
      %v863 = vpack.c.b16 %v819, %v819
      %v864 = vpack.c.b16 %v821, %v820
      %v865 = vpack.c.b16 %v822, %v822
      %v866 = vpack.c.b16 %v824, %v823
      %v867 = vpack.c.b16 %v825, %v825
      %v868 = vpack.c.b16 %v827, %v826
      %v869 = vpack.c.b16 %v828, %v828
      %v870 = vpack.c.b16 %v830, %v829
      %v871 = vpack.c.b16 %v831, %v831
      %v872 = vpack.c.b16 %v833, %v832
      %v873 = vpack.c.b16 %v834, %v834
      %v874 = vpack.c.b16 %v836, %v835
      %v875 = vpack.c.b16 %v837, %v837
      %v876 = vpack.c.b16 %v839, %v838
      %v877 = vpack.c.b16 %v840, %v840
      %v878 = vpack.c.b16 %v842, %v841
      %v879 = vpack.c.b16 %v843, %v843
      %v880 = vpack.c.b16 %v845, %v844
      %v881 = vpack.c.b16 %v846, %v846
      %v882 = vpack.c.b16 %v848, %v847
      %v883 = vpack.c.b16 %v849, %v849
      %v884 = vpack.c.b16 %v851, %v850
      %v885 = vpack.c.b16 %v852, %v852
      %v886 = vpack.c.b16 %v854, %v853
      %v887 = vpack.c.b16 %v855, %v855
      %v904 = vunpack.c.l.b16 %v567
      %v905 = vunpack.c.l.b16 %v568
      %v906 = vunpack.c.l.b16 %v569
      %v907 = vunpack.c.l.b16 %v570
      %v908 = vunpack.c.l.b16 %v571
      %v909 = vunpack.c.l.b16 %v572
      %v910 = vunpack.c.l.b16 %v573
      %v911 = vunpack.c.l.b16 %v574
      %v912 = vunpack.c.l.b16 %v575
      %v913 = vunpack.c.l.b16 %v576
      %v914 = vunpack.c.l.b16 %v577
      %v915 = vunpack.c.l.b16 %v578
      %v916 = vunpack.c.l.b16 %v579
      %v917 = vunpack.c.l.b16 %v580
      %v918 = vunpack.c.l.b16 %v581
      %v919 = vunpack.c.l.b16 %v582
      %v920 = vpack.c.b16 %v809, %v904
      %v921 = vpack.c.b16 %v812, %v905
      %v922 = vpack.c.b16 %v815, %v906
      %v923 = vpack.c.b16 %v818, %v907
      %v924 = vpack.c.b16 %v821, %v908
      %v925 = vpack.c.b16 %v824, %v909
      %v926 = vpack.c.b16 %v827, %v910
      %v927 = vpack.c.b16 %v830, %v911
      %v928 = vpack.c.b16 %v833, %v912
      %v929 = vpack.c.b16 %v836, %v913
      %v930 = vpack.c.b16 %v839, %v914
      %v931 = vpack.c.b16 %v842, %v915
      %v932 = vpack.c.b16 %v845, %v916
      %v933 = vpack.c.b16 %v848, %v917
      %v934 = vpack.c.b16 %v851, %v918
      %v935 = vpack.c.b16 %v854, %v919
      %vm936 = vsmask.f32 7424
      %v938 = vshrl.u32 %v920, 16
      %v940 = vshll.u32 %v920, 16
      %v942 = vrot.slane %v940, 1
      %v943 = vor.u32 %v938, %v942
      %v945 = vshll.u32 %v857, 16
      %v947 = vrot.slane %v945, 1
      %v948 = vsel %vm936, %v943, %v947
      %v949 = vshrl.u32 %v857, 16
      %v951 = vor.u32 %v949, %v947
      %v953 = vshrl.u32 %v921, 16
      %v955 = vshll.u32 %v921, 16
      %v957 = vrot.slane %v955, 1
      %v958 = vor.u32 %v953, %v957
      %v960 = vshll.u32 %v859, 16
      %v962 = vrot.slane %v960, 1
      %v963 = vsel %vm936, %v958, %v962
      %v964 = vshrl.u32 %v859, 16
      %v966 = vor.u32 %v964, %v962
      %v968 = vshrl.u32 %v922, 16
      %v970 = vshll.u32 %v922, 16
      %v972 = vrot.slane %v970, 1
      %v973 = vor.u32 %v968, %v972
      %v975 = vshll.u32 %v861, 16
      %v977 = vrot.slane %v975, 1
      %v978 = vsel %vm936, %v973, %v977
      %v979 = vshrl.u32 %v861, 16
      %v981 = vor.u32 %v979, %v977
      %v983 = vshrl.u32 %v923, 16
      %v985 = vshll.u32 %v923, 16
      %v987 = vrot.slane %v985, 1
      %v988 = vor.u32 %v983, %v987
      %v990 = vshll.u32 %v863, 16
      %v992 = vrot.slane %v990, 1
      %v993 = vsel %vm936, %v988, %v992
      %v994 = vshrl.u32 %v863, 16
      %v996 = vor.u32 %v994, %v992
      %v998 = vshrl.u32 %v924, 16
      %v1000 = vshll.u32 %v924, 16
      %v1002 = vrot.slane %v1000, 1
      %v1003 = vor.u32 %v998, %v1002
      %v1005 = vshll.u32 %v865, 16
      %v1007 = vrot.slane %v1005, 1
      %v1008 = vsel %vm936, %v1003, %v1007
      %v1009 = vshrl.u32 %v865, 16
      %v1011 = vor.u32 %v1009, %v1007
      %v1013 = vshrl.u32 %v925, 16
      %v1015 = vshll.u32 %v925, 16
      %v1017 = vrot.slane %v1015, 1
      %v1018 = vor.u32 %v1013, %v1017
      %v1020 = vshll.u32 %v867, 16
      %v1022 = vrot.slane %v1020, 1
      %v1023 = vsel %vm936, %v1018, %v1022
      %v1024 = vshrl.u32 %v867, 16
      %v1026 = vor.u32 %v1024, %v1022
      %v1028 = vshrl.u32 %v926, 16
      %v1030 = vshll.u32 %v926, 16
      %v1032 = vrot.slane %v1030, 1
      %v1033 = vor.u32 %v1028, %v1032
      %v1035 = vshll.u32 %v869, 16
      %v1037 = vrot.slane %v1035, 1
      %v1038 = vsel %vm936, %v1033, %v1037
      %v1039 = vshrl.u32 %v869, 16
      %v1041 = vor.u32 %v1039, %v1037
      %v1043 = vshrl.u32 %v927, 16
      %v1045 = vshll.u32 %v927, 16
      %v1047 = vrot.slane %v1045, 1
      %v1048 = vor.u32 %v1043, %v1047
      %v1050 = vshll.u32 %v871, 16
      %v1052 = vrot.slane %v1050, 1
      %v1053 = vsel %vm936, %v1048, %v1052
      %v1054 = vshrl.u32 %v871, 16
      %v1056 = vor.u32 %v1054, %v1052
      %v1058 = vshrl.u32 %v928, 16
      %v1060 = vshll.u32 %v928, 16
      %v1062 = vrot.slane %v1060, 1
      %v1063 = vor.u32 %v1058, %v1062
      %v1065 = vshll.u32 %v873, 16
      %v1067 = vrot.slane %v1065, 1
      %v1068 = vsel %vm936, %v1063, %v1067
      %v1069 = vshrl.u32 %v873, 16
      %v1071 = vor.u32 %v1069, %v1067
      %v1073 = vshrl.u32 %v929, 16
      %v1075 = vshll.u32 %v929, 16
      %v1077 = vrot.slane %v1075, 1
      %v1078 = vor.u32 %v1073, %v1077
      %v1080 = vshll.u32 %v875, 16
      %v1082 = vrot.slane %v1080, 1
      %v1083 = vsel %vm936, %v1078, %v1082
      %v1084 = vshrl.u32 %v875, 16
      %v1086 = vor.u32 %v1084, %v1082
      %v1088 = vshrl.u32 %v930, 16
      %v1090 = vshll.u32 %v930, 16
      %v1092 = vrot.slane %v1090, 1
      %v1093 = vor.u32 %v1088, %v1092
      %v1095 = vshll.u32 %v877, 16
      %v1097 = vrot.slane %v1095, 1
      %v1098 = vsel %vm936, %v1093, %v1097
      %v1099 = vshrl.u32 %v877, 16
      %v1101 = vor.u32 %v1099, %v1097
      %v1103 = vshrl.u32 %v931, 16
      %v1105 = vshll.u32 %v931, 16
      %v1107 = vrot.slane %v1105, 1
      %v1108 = vor.u32 %v1103, %v1107
      %v1110 = vshll.u32 %v879, 16
      %v1112 = vrot.slane %v1110, 1
      %v1113 = vsel %vm936, %v1108, %v1112
      %v1114 = vshrl.u32 %v879, 16
      %v1116 = vor.u32 %v1114, %v1112
      %v1118 = vshrl.u32 %v932, 16
      %v1120 = vshll.u32 %v932, 16
      %v1122 = vrot.slane %v1120, 1
      %v1123 = vor.u32 %v1118, %v1122
      %v1125 = vshll.u32 %v881, 16
      %v1127 = vrot.slane %v1125, 1
      %v1128 = vsel %vm936, %v1123, %v1127
      %v1129 = vshrl.u32 %v881, 16
      %v1131 = vor.u32 %v1129, %v1127
      %v1133 = vshrl.u32 %v933, 16
      %v1135 = vshll.u32 %v933, 16
      %v1137 = vrot.slane %v1135, 1
      %v1138 = vor.u32 %v1133, %v1137
      %v1140 = vshll.u32 %v883, 16
      %v1142 = vrot.slane %v1140, 1
      %v1143 = vsel %vm936, %v1138, %v1142
      %v1144 = vshrl.u32 %v883, 16
      %v1146 = vor.u32 %v1144, %v1142
      %v1148 = vshrl.u32 %v934, 16
      %v1150 = vshll.u32 %v934, 16
      %v1152 = vrot.slane %v1150, 1
      %v1153 = vor.u32 %v1148, %v1152
      %v1155 = vshll.u32 %v885, 16
      %v1157 = vrot.slane %v1155, 1
      %v1158 = vsel %vm936, %v1153, %v1157
      %v1159 = vshrl.u32 %v885, 16
      %v1161 = vor.u32 %v1159, %v1157
      %v1163 = vshrl.u32 %v935, 16
      %v1165 = vshll.u32 %v935, 16
      %v1167 = vrot.slane %v1165, 1
      %v1168 = vor.u32 %v1163, %v1167
      %v1170 = vshll.u32 %v887, 16
      %v1172 = vrot.slane %v1170, 1
      %v1173 = vsel %vm936, %v1168, %v1172
      %v1174 = vshrl.u32 %v887, 16
      %v1176 = vor.u32 %v1174, %v1172
      %1177 = vrot.lane.b32.xlu0 %v948, 8
      %v1178 = vpop.permute.xlu0 %1177
      %1179 = vrot.lane.b32.xlu0 %v951, 8
      %v1180 = vpop.permute.xlu0 %1179
      %1181 = vrot.lane.b32.xlu0 %v963, 8
      %v1182 = vpop.permute.xlu0 %1181
      %1183 = vrot.lane.b32.xlu0 %v966, 8
      %v1184 = vpop.permute.xlu0 %1183
      %1185 = vrot.lane.b32.xlu0 %v978, 8
      %v1186 = vpop.permute.xlu0 %1185
      %1187 = vrot.lane.b32.xlu0 %v981, 8
      %v1188 = vpop.permute.xlu0 %1187
      %1189 = vrot.lane.b32.xlu0 %v993, 8
      %v1190 = vpop.permute.xlu0 %1189
      %1191 = vrot.lane.b32.xlu0 %v996, 8
      %v1192 = vpop.permute.xlu0 %1191
      %1193 = vrot.lane.b32.xlu0 %v1008, 8
      %v1194 = vpop.permute.xlu0 %1193
      %1195 = vrot.lane.b32.xlu0 %v1011, 8
      %v1196 = vpop.permute.xlu0 %1195
      %1197 = vrot.lane.b32.xlu0 %v1023, 8
      %v1198 = vpop.permute.xlu0 %1197
      %1199 = vrot.lane.b32.xlu0 %v1026, 8
      %v1200 = vpop.permute.xlu0 %1199
      %1201 = vrot.lane.b32.xlu0 %v1038, 8
      %v1202 = vpop.permute.xlu0 %1201
      %1203 = vrot.lane.b32.xlu0 %v1041, 8
      %v1204 = vpop.permute.xlu0 %1203
      %1205 = vrot.lane.b32.xlu0 %v1053, 8
      %v1206 = vpop.permute.xlu0 %1205
      %1207 = vrot.lane.b32.xlu0 %v1056, 8
      %v1208 = vpop.permute.xlu0 %1207
      %1209 = vrot.lane.b32.xlu0 %v1068, 8
      %v1210 = vpop.permute.xlu0 %1209
      %1211 = vrot.lane.b32.xlu0 %v1071, 8
      %v1212 = vpop.permute.xlu0 %1211
      %1213 = vrot.lane.b32.xlu0 %v1083, 8
      %v1214 = vpop.permute.xlu0 %1213
      %1215 = vrot.lane.b32.xlu0 %v1086, 8
      %v1216 = vpop.permute.xlu0 %1215
      %1217 = vrot.lane.b32.xlu0 %v1098, 8
      %v1218 = vpop.permute.xlu0 %1217
      %1219 = vrot.lane.b32.xlu0 %v1101, 8
      %v1220 = vpop.permute.xlu0 %1219
      %1221 = vrot.lane.b32.xlu0 %v1113, 8
      %v1222 = vpop.permute.xlu0 %1221
      %1223 = vrot.lane.b32.xlu0 %v1116, 8
      %v1224 = vpop.permute.xlu0 %1223
      %1225 = vrot.lane.b32.xlu0 %v1128, 8
      %v1226 = vpop.permute.xlu0 %1225
      %1227 = vrot.lane.b32.xlu0 %v1131, 8
      %v1228 = vpop.permute.xlu0 %1227
      %1229 = vrot.lane.b32.xlu0 %v1143, 8
      %v1230 = vpop.permute.xlu0 %1229
      %1231 = vrot.lane.b32.xlu0 %v1146, 8
      %v1232 = vpop.permute.xlu0 %1231
      %1233 = vrot.lane.b32.xlu0 %v1158, 8
      %v1234 = vpop.permute.xlu0 %1233
      %1235 = vrot.lane.b32.xlu0 %v1161, 8
      %v1236 = vpop.permute.xlu0 %1235
      %1237 = vrot.lane.b32.xlu0 %v1173, 8
      %v1238 = vpop.permute.xlu0 %1237
      %1239 = vrot.lane.b32.xlu0 %v1176, 8
      %v1240 = vpop.permute.xlu0 %1239
      %v1257 = vunpack.c.l.b16 %v583
      %v1258 = vunpack.c.l.b16 %v584
      %v1259 = vunpack.c.l.b16 %v585
      %v1260 = vunpack.c.l.b16 %v586
      %v1261 = vunpack.c.l.b16 %v587
      %v1262 = vunpack.c.l.b16 %v588
      %v1263 = vunpack.c.l.b16 %v589
      %v1264 = vunpack.c.l.b16 %v590
      %v1265 = vunpack.c.l.b16 %v591
      %v1266 = vunpack.c.l.b16 %v592
      %v1267 = vunpack.c.l.b16 %v593
      %v1268 = vunpack.c.l.b16 %v594
      %v1269 = vunpack.c.l.b16 %v595
      %v1270 = vunpack.c.l.b16 %v596
      %v1271 = vunpack.c.l.b16 %v597
      %v1272 = vunpack.c.l.b16 %v598
      %v1273 = vpack.c.b16 %v1257, %v1257
      %v1274 = vpack.c.b16 %v1258, %v1258
      %v1275 = vpack.c.b16 %v1259, %v1259
      %v1276 = vpack.c.b16 %v1260, %v1260
      %v1277 = vpack.c.b16 %v1261, %v1261
      %v1278 = vpack.c.b16 %v1262, %v1262
      %v1279 = vpack.c.b16 %v1263, %v1263
      %v1280 = vpack.c.b16 %v1264, %v1264
      %v1281 = vpack.c.b16 %v1265, %v1265
      %v1282 = vpack.c.b16 %v1266, %v1266
      %v1283 = vpack.c.b16 %v1267, %v1267
      %v1284 = vpack.c.b16 %v1268, %v1268
      %v1285 = vpack.c.b16 %v1269, %v1269
      %v1286 = vpack.c.b16 %v1270, %v1270
      %v1287 = vpack.c.b16 %v1271, %v1271
      %v1288 = vpack.c.b16 %v1272, %v1272
      %vm1289 = vcmask 1046528
      %v1290 = vrot.slane %v920, 1
      %v1291 = vrot.slane %v1273, 1
      %v1292 = vsel %vm1289, %v1290, %v1291
      %v1293 = vrot.slane %v921, 1
      %v1294 = vrot.slane %v1274, 1
      %v1295 = vsel %vm1289, %v1293, %v1294
      %v1296 = vrot.slane %v922, 1
      %v1297 = vrot.slane %v1275, 1
      %v1298 = vsel %vm1289, %v1296, %v1297
      %v1299 = vrot.slane %v923, 1
      %v1300 = vrot.slane %v1276, 1
      %v1301 = vsel %vm1289, %v1299, %v1300
      %v1302 = vrot.slane %v924, 1
      %v1303 = vrot.slane %v1277, 1
      %v1304 = vsel %vm1289, %v1302, %v1303
      %v1305 = vrot.slane %v925, 1
      %v1306 = vrot.slane %v1278, 1
      %v1307 = vsel %vm1289, %v1305, %v1306
      %v1308 = vrot.slane %v926, 1
      %v1309 = vrot.slane %v1279, 1
      %v1310 = vsel %vm1289, %v1308, %v1309
      %v1311 = vrot.slane %v927, 1
      %v1312 = vrot.slane %v1280, 1
      %v1313 = vsel %vm1289, %v1311, %v1312
      %v1314 = vrot.slane %v928, 1
      %v1315 = vrot.slane %v1281, 1
      %v1316 = vsel %vm1289, %v1314, %v1315
      %v1317 = vrot.slane %v929, 1
      %v1318 = vrot.slane %v1282, 1
      %v1319 = vsel %vm1289, %v1317, %v1318
      %v1320 = vrot.slane %v930, 1
      %v1321 = vrot.slane %v1283, 1
      %v1322 = vsel %vm1289, %v1320, %v1321
      %v1323 = vrot.slane %v931, 1
      %v1324 = vrot.slane %v1284, 1
      %v1325 = vsel %vm1289, %v1323, %v1324
      %v1326 = vrot.slane %v932, 1
      %v1327 = vrot.slane %v1285, 1
      %v1328 = vsel %vm1289, %v1326, %v1327
      %v1329 = vrot.slane %v933, 1
      %v1330 = vrot.slane %v1286, 1
      %v1331 = vsel %vm1289, %v1329, %v1330
      %v1332 = vrot.slane %v934, 1
      %v1333 = vrot.slane %v1287, 1
      %v1334 = vsel %vm1289, %v1332, %v1333
      %v1335 = vrot.slane %v935, 1
      %v1336 = vrot.slane %v1288, 1
      %v1337 = vsel %vm1289, %v1335, %v1336
      %1338 = vrot.lane.b32.xlu0 %v1292, 16
      %v1339 = vpop.permute.xlu0 %1338
      %1340 = vrot.lane.b32.xlu0 %v1291, 16
      %v1341 = vpop.permute.xlu0 %1340
      %1342 = vrot.lane.b32.xlu0 %v1295, 16
      %v1343 = vpop.permute.xlu0 %1342
      %1344 = vrot.lane.b32.xlu0 %v1294, 16
      %v1345 = vpop.permute.xlu0 %1344
      %1346 = vrot.lane.b32.xlu0 %v1298, 16
      %v1347 = vpop.permute.xlu0 %1346
      %1348 = vrot.lane.b32.xlu0 %v1297, 16
      %v1349 = vpop.permute.xlu0 %1348
      %1350 = vrot.lane.b32.xlu0 %v1301, 16
      %v1351 = vpop.permute.xlu0 %1350
      %1352 = vrot.lane.b32.xlu0 %v1300, 16
      %v1353 = vpop.permute.xlu0 %1352
      %1354 = vrot.lane.b32.xlu0 %v1304, 16
      %v1355 = vpop.permute.xlu0 %1354
      %1356 = vrot.lane.b32.xlu0 %v1303, 16
      %v1357 = vpop.permute.xlu0 %1356
      %1358 = vrot.lane.b32.xlu0 %v1307, 16
      %v1359 = vpop.permute.xlu0 %1358
      %1360 = vrot.lane.b32.xlu0 %v1306, 16
      %v1361 = vpop.permute.xlu0 %1360
      %1362 = vrot.lane.b32.xlu0 %v1310, 16
      %v1363 = vpop.permute.xlu0 %1362
      %1364 = vrot.lane.b32.xlu0 %v1309, 16
      %v1365 = vpop.permute.xlu0 %1364
      %1366 = vrot.lane.b32.xlu0 %v1313, 16
      %v1367 = vpop.permute.xlu0 %1366
      %1368 = vrot.lane.b32.xlu0 %v1312, 16
      %v1369 = vpop.permute.xlu0 %1368
      %1370 = vrot.lane.b32.xlu0 %v1316, 16
      %v1371 = vpop.permute.xlu0 %1370
      %1372 = vrot.lane.b32.xlu0 %v1315, 16
      %v1373 = vpop.permute.xlu0 %1372
      %1374 = vrot.lane.b32.xlu0 %v1319, 16
      %v1375 = vpop.permute.xlu0 %1374
      %1376 = vrot.lane.b32.xlu0 %v1318, 16
      %v1377 = vpop.permute.xlu0 %1376
      %1378 = vrot.lane.b32.xlu0 %v1322, 16
      %v1379 = vpop.permute.xlu0 %1378
      %1380 = vrot.lane.b32.xlu0 %v1321, 16
      %v1381 = vpop.permute.xlu0 %1380
      %1382 = vrot.lane.b32.xlu0 %v1325, 16
      %v1383 = vpop.permute.xlu0 %1382
      %1384 = vrot.lane.b32.xlu0 %v1324, 16
      %v1385 = vpop.permute.xlu0 %1384
      %1386 = vrot.lane.b32.xlu0 %v1328, 16
      %v1387 = vpop.permute.xlu0 %1386
      %1388 = vrot.lane.b32.xlu0 %v1327, 16
      %v1389 = vpop.permute.xlu0 %1388
      %1390 = vrot.lane.b32.xlu0 %v1331, 16
      %v1391 = vpop.permute.xlu0 %1390
      %1392 = vrot.lane.b32.xlu0 %v1330, 16
      %v1393 = vpop.permute.xlu0 %1392
      %1394 = vrot.lane.b32.xlu0 %v1334, 16
      %v1395 = vpop.permute.xlu0 %1394
      %1396 = vrot.lane.b32.xlu0 %v1333, 16
      %v1397 = vpop.permute.xlu0 %1396
      %1398 = vrot.lane.b32.xlu0 %v1337, 16
      %v1399 = vpop.permute.xlu0 %1398
      %1400 = vrot.lane.b32.xlu0 %v1336, 16
      %v1401 = vpop.permute.xlu0 %1400
      %v1450 = vunpack.c.l.b16 %v599
      %v1451 = vunpack.c.l.b16 %v600
      %v1452 = vunpack.c.l.b16 %v601
      %v1453 = vunpack.c.l.b16 %v602
      %v1454 = vunpack.c.l.b16 %v603
      %v1455 = vunpack.c.l.b16 %v604
      %v1456 = vunpack.c.l.b16 %v605
      %v1457 = vunpack.c.l.b16 %v606
      %v1458 = vunpack.c.l.b16 %v607
      %v1459 = vunpack.c.l.b16 %v608
      %v1460 = vunpack.c.l.b16 %v609
      %v1461 = vunpack.c.l.b16 %v610
      %v1462 = vunpack.c.l.b16 %v611
      %v1463 = vunpack.c.l.b16 %v612
      %v1464 = vunpack.c.l.b16 %v613
      %v1465 = vunpack.c.l.b16 %v614
      %v1466 = vunpack.c.l.b16 %v615
      %v1467 = vunpack.c.l.b16 %v616
      %v1468 = vunpack.c.l.b16 %v617
      %v1469 = vunpack.c.l.b16 %v618
      %v1470 = vunpack.c.l.b16 %v619
      %v1471 = vunpack.c.l.b16 %v620
      %v1472 = vunpack.c.l.b16 %v621
      %v1473 = vunpack.c.l.b16 %v622
      %v1474 = vunpack.c.l.b16 %v623
      %v1475 = vunpack.c.l.b16 %v624
      %v1476 = vunpack.c.l.b16 %v625
      %v1477 = vunpack.c.l.b16 %v626
      %v1478 = vunpack.c.l.b16 %v627
      %v1479 = vunpack.c.l.b16 %v628
      %v1480 = vunpack.c.l.b16 %v629
      %v1481 = vunpack.c.l.b16 %v630
      %v1482 = vunpack.c.l.b16 %v631
      %v1483 = vunpack.c.l.b16 %v632
      %v1484 = vunpack.c.l.b16 %v633
      %v1485 = vunpack.c.l.b16 %v634
      %v1486 = vunpack.c.l.b16 %v635
      %v1487 = vunpack.c.l.b16 %v636
      %v1488 = vunpack.c.l.b16 %v637
      %v1489 = vunpack.c.l.b16 %v638
      %v1490 = vunpack.c.l.b16 %v639
      %v1491 = vunpack.c.l.b16 %v640
      %v1492 = vunpack.c.l.b16 %v641
      %v1493 = vunpack.c.l.b16 %v642
      %v1494 = vunpack.c.l.b16 %v643
      %v1495 = vunpack.c.l.b16 %v644
      %v1496 = vunpack.c.l.b16 %v645
      %v1497 = vunpack.c.l.b16 %v646
      %v1498 = vpack.c.b16 %v1451, %v1450
      %v1499 = vpack.c.b16 %v1452, %v1452
      %v1500 = vpack.c.b16 %v1454, %v1453
      %v1501 = vpack.c.b16 %v1455, %v1455
      %v1502 = vpack.c.b16 %v1457, %v1456
      %v1503 = vpack.c.b16 %v1458, %v1458
      %v1504 = vpack.c.b16 %v1460, %v1459
      %v1505 = vpack.c.b16 %v1461, %v1461
      %v1506 = vpack.c.b16 %v1463, %v1462
      %v1507 = vpack.c.b16 %v1464, %v1464
      %v1508 = vpack.c.b16 %v1466, %v1465
      %v1509 = vpack.c.b16 %v1467, %v1467
      %v1510 = vpack.c.b16 %v1469, %v1468
      %v1511 = vpack.c.b16 %v1470, %v1470
      %v1512 = vpack.c.b16 %v1472, %v1471
      %v1513 = vpack.c.b16 %v1473, %v1473
      %v1514 = vpack.c.b16 %v1475, %v1474
      %v1515 = vpack.c.b16 %v1476, %v1476
      %v1516 = vpack.c.b16 %v1478, %v1477
      %v1517 = vpack.c.b16 %v1479, %v1479
      %v1518 = vpack.c.b16 %v1481, %v1480
      %v1519 = vpack.c.b16 %v1482, %v1482
      %v1520 = vpack.c.b16 %v1484, %v1483
      %v1521 = vpack.c.b16 %v1485, %v1485
      %v1522 = vpack.c.b16 %v1487, %v1486
      %v1523 = vpack.c.b16 %v1488, %v1488
      %v1524 = vpack.c.b16 %v1490, %v1489
      %v1525 = vpack.c.b16 %v1491, %v1491
      %v1526 = vpack.c.b16 %v1493, %v1492
      %v1527 = vpack.c.b16 %v1494, %v1494
      %v1528 = vpack.c.b16 %v1496, %v1495
      %v1529 = vpack.c.b16 %v1497, %v1497
      %1530 = vrot.lane.b32.xlu0 %v1498, 24
      %v1531 = vpop.permute.xlu0 %1530
      %1532 = vrot.lane.b32.xlu0 %v1499, 24
      %v1533 = vpop.permute.xlu0 %1532
      %1534 = vrot.lane.b32.xlu0 %v1500, 24
      %v1535 = vpop.permute.xlu0 %1534
      %1536 = vrot.lane.b32.xlu0 %v1501, 24
      %v1537 = vpop.permute.xlu0 %1536
      %1538 = vrot.lane.b32.xlu0 %v1502, 24
      %v1539 = vpop.permute.xlu0 %1538
      %1540 = vrot.lane.b32.xlu0 %v1503, 24
      %v1541 = vpop.permute.xlu0 %1540
      %1542 = vrot.lane.b32.xlu0 %v1504, 24
      %v1543 = vpop.permute.xlu0 %1542
      %1544 = vrot.lane.b32.xlu0 %v1505, 24
      %v1545 = vpop.permute.xlu0 %1544
      %1546 = vrot.lane.b32.xlu0 %v1506, 24
      %v1547 = vpop.permute.xlu0 %1546
      %1548 = vrot.lane.b32.xlu0 %v1507, 24
      %v1549 = vpop.permute.xlu0 %1548
      %1550 = vrot.lane.b32.xlu0 %v1508, 24
      %v1551 = vpop.permute.xlu0 %1550
      %1552 = vrot.lane.b32.xlu0 %v1509, 24
      %v1553 = vpop.permute.xlu0 %1552
      %1554 = vrot.lane.b32.xlu0 %v1510, 24
      %v1555 = vpop.permute.xlu0 %1554
      %1556 = vrot.lane.b32.xlu0 %v1511, 24
      %v1557 = vpop.permute.xlu0 %1556
      %1558 = vrot.lane.b32.xlu0 %v1512, 24
      %v1559 = vpop.permute.xlu0 %1558
      %1560 = vrot.lane.b32.xlu0 %v1513, 24
      %v1561 = vpop.permute.xlu0 %1560
      %1562 = vrot.lane.b32.xlu0 %v1514, 24
      %v1563 = vpop.permute.xlu0 %1562
      %1564 = vrot.lane.b32.xlu0 %v1515, 24
      %v1565 = vpop.permute.xlu0 %1564
      %1566 = vrot.lane.b32.xlu0 %v1516, 24
      %v1567 = vpop.permute.xlu0 %1566
      %1568 = vrot.lane.b32.xlu0 %v1517, 24
      %v1569 = vpop.permute.xlu0 %1568
      %1570 = vrot.lane.b32.xlu0 %v1518, 24
      %v1571 = vpop.permute.xlu0 %1570
      %1572 = vrot.lane.b32.xlu0 %v1519, 24
      %v1573 = vpop.permute.xlu0 %1572
      %1574 = vrot.lane.b32.xlu0 %v1520, 24
      %v1575 = vpop.permute.xlu0 %1574
      %1576 = vrot.lane.b32.xlu0 %v1521, 24
      %v1577 = vpop.permute.xlu0 %1576
      %1578 = vrot.lane.b32.xlu0 %v1522, 24
      %v1579 = vpop.permute.xlu0 %1578
      %1580 = vrot.lane.b32.xlu0 %v1523, 24
      %v1581 = vpop.permute.xlu0 %1580
      %1582 = vrot.lane.b32.xlu0 %v1524, 24
      %v1583 = vpop.permute.xlu0 %1582
      %1584 = vrot.lane.b32.xlu0 %v1525, 24
      %v1585 = vpop.permute.xlu0 %1584
      %1586 = vrot.lane.b32.xlu0 %v1526, 24
      %v1587 = vpop.permute.xlu0 %1586
      %1588 = vrot.lane.b32.xlu0 %v1527, 24
      %v1589 = vpop.permute.xlu0 %1588
      %1590 = vrot.lane.b32.xlu0 %v1528, 24
      %v1591 = vpop.permute.xlu0 %1590
      %1592 = vrot.lane.b32.xlu0 %v1529, 24
      %v1593 = vpop.permute.xlu0 %1592
      %v1610 = vunpack.c.l.b16 %v647
      %v1611 = vunpack.c.l.b16 %v648
      %v1612 = vunpack.c.l.b16 %v649
      %v1613 = vunpack.c.l.b16 %v650
      %v1614 = vunpack.c.l.b16 %v651
      %v1615 = vunpack.c.l.b16 %v652
      %v1616 = vunpack.c.l.b16 %v653
      %v1617 = vunpack.c.l.b16 %v654
      %v1618 = vunpack.c.l.b16 %v655
      %v1619 = vunpack.c.l.b16 %v656
      %v1620 = vunpack.c.l.b16 %v657
      %v1621 = vunpack.c.l.b16 %v658
      %v1622 = vunpack.c.l.b16 %v659
      %v1623 = vunpack.c.l.b16 %v660
      %v1624 = vunpack.c.l.b16 %v661
      %v1625 = vunpack.c.l.b16 %v662
      %v1626 = vpack.c.b16 %v1451, %v1610
      %v1627 = vpack.c.b16 %v1454, %v1611
      %v1628 = vpack.c.b16 %v1457, %v1612
      %v1629 = vpack.c.b16 %v1460, %v1613
      %v1630 = vpack.c.b16 %v1463, %v1614
      %v1631 = vpack.c.b16 %v1466, %v1615
      %v1632 = vpack.c.b16 %v1469, %v1616
      %v1633 = vpack.c.b16 %v1472, %v1617
      %v1634 = vpack.c.b16 %v1475, %v1618
      %v1635 = vpack.c.b16 %v1478, %v1619
      %v1636 = vpack.c.b16 %v1481, %v1620
      %v1637 = vpack.c.b16 %v1484, %v1621
      %v1638 = vpack.c.b16 %v1487, %v1622
      %v1639 = vpack.c.b16 %v1490, %v1623
      %v1640 = vpack.c.b16 %v1493, %v1624
      %v1641 = vpack.c.b16 %v1496, %v1625
      %v1643 = vshrl.u32 %v1626, 16
      %v1645 = vshll.u32 %v1626, 16
      %v1647 = vrot.slane %v1645, 1
      %v1648 = vor.u32 %v1643, %v1647
      %v1650 = vshll.u32 %v1499, 16
      %v1652 = vrot.slane %v1650, 1
      %v1653 = vsel %vm936, %v1648, %v1652
      %v1654 = vshrl.u32 %v1499, 16
      %v1656 = vor.u32 %v1654, %v1652
      %v1658 = vshrl.u32 %v1627, 16
      %v1660 = vshll.u32 %v1627, 16
      %v1662 = vrot.slane %v1660, 1
      %v1663 = vor.u32 %v1658, %v1662
      %v1665 = vshll.u32 %v1501, 16
      %v1667 = vrot.slane %v1665, 1
      %v1668 = vsel %vm936, %v1663, %v1667
      %v1669 = vshrl.u32 %v1501, 16
      %v1671 = vor.u32 %v1669, %v1667
      %v1673 = vshrl.u32 %v1628, 16
      %v1675 = vshll.u32 %v1628, 16
      %v1677 = vrot.slane %v1675, 1
      %v1678 = vor.u32 %v1673, %v1677
      %v1680 = vshll.u32 %v1503, 16
      %v1682 = vrot.slane %v1680, 1
      %v1683 = vsel %vm936, %v1678, %v1682
      %v1684 = vshrl.u32 %v1503, 16
      %v1686 = vor.u32 %v1684, %v1682
      %v1688 = vshrl.u32 %v1629, 16
      %v1690 = vshll.u32 %v1629, 16
      %v1692 = vrot.slane %v1690, 1
      %v1693 = vor.u32 %v1688, %v1692
      %v1695 = vshll.u32 %v1505, 16
      %v1697 = vrot.slane %v1695, 1
      %v1698 = vsel %vm936, %v1693, %v1697
      %v1699 = vshrl.u32 %v1505, 16
      %v1701 = vor.u32 %v1699, %v1697
      %v1703 = vshrl.u32 %v1630, 16
      %v1705 = vshll.u32 %v1630, 16
      %v1707 = vrot.slane %v1705, 1
      %v1708 = vor.u32 %v1703, %v1707
      %v1710 = vshll.u32 %v1507, 16
      %v1712 = vrot.slane %v1710, 1
      %v1713 = vsel %vm936, %v1708, %v1712
      %v1714 = vshrl.u32 %v1507, 16
      %v1716 = vor.u32 %v1714, %v1712
      %v1718 = vshrl.u32 %v1631, 16
      %v1720 = vshll.u32 %v1631, 16
      %v1722 = vrot.slane %v1720, 1
      %v1723 = vor.u32 %v1718, %v1722
      %v1725 = vshll.u32 %v1509, 16
      %v1727 = vrot.slane %v1725, 1
      %v1728 = vsel %vm936, %v1723, %v1727
      %v1729 = vshrl.u32 %v1509, 16
      %v1731 = vor.u32 %v1729, %v1727
      %v1733 = vshrl.u32 %v1632, 16
      %v1735 = vshll.u32 %v1632, 16
      %v1737 = vrot.slane %v1735, 1
      %v1738 = vor.u32 %v1733, %v1737
      %v1740 = vshll.u32 %v1511, 16
      %v1742 = vrot.slane %v1740, 1
      %v1743 = vsel %vm936, %v1738, %v1742
      %v1744 = vshrl.u32 %v1511, 16
      %v1746 = vor.u32 %v1744, %v1742
      %v1748 = vshrl.u32 %v1633, 16
      %v1750 = vshll.u32 %v1633, 16
      %v1752 = vrot.slane %v1750, 1
      %v1753 = vor.u32 %v1748, %v1752
      %v1755 = vshll.u32 %v1513, 16
      %v1757 = vrot.slane %v1755, 1
      %v1758 = vsel %vm936, %v1753, %v1757
      %v1759 = vshrl.u32 %v1513, 16
      %v1761 = vor.u32 %v1759, %v1757
      %v1763 = vshrl.u32 %v1634, 16
      %v1765 = vshll.u32 %v1634, 16
      %v1767 = vrot.slane %v1765, 1
      %v1768 = vor.u32 %v1763, %v1767
      %v1770 = vshll.u32 %v1515, 16
      %v1772 = vrot.slane %v1770, 1
      %v1773 = vsel %vm936, %v1768, %v1772
      %v1774 = vshrl.u32 %v1515, 16
      %v1776 = vor.u32 %v1774, %v1772
      %v1778 = vshrl.u32 %v1635, 16
      %v1780 = vshll.u32 %v1635, 16
      %v1782 = vrot.slane %v1780, 1
      %v1783 = vor.u32 %v1778, %v1782
      %v1785 = vshll.u32 %v1517, 16
      %v1787 = vrot.slane %v1785, 1
      %v1788 = vsel %vm936, %v1783, %v1787
      %v1789 = vshrl.u32 %v1517, 16
      %v1791 = vor.u32 %v1789, %v1787
      %v1793 = vshrl.u32 %v1636, 16
      %v1795 = vshll.u32 %v1636, 16
      %v1797 = vrot.slane %v1795, 1
      %v1798 = vor.u32 %v1793, %v1797
      %v1800 = vshll.u32 %v1519, 16
      %v1802 = vrot.slane %v1800, 1
      %v1803 = vsel %vm936, %v1798, %v1802
      %v1804 = vshrl.u32 %v1519, 16
      %v1806 = vor.u32 %v1804, %v1802
      %v1808 = vshrl.u32 %v1637, 16
      %v1810 = vshll.u32 %v1637, 16
      %v1812 = vrot.slane %v1810, 1
      %v1813 = vor.u32 %v1808, %v1812
      %v1815 = vshll.u32 %v1521, 16
      %v1817 = vrot.slane %v1815, 1
      %v1818 = vsel %vm936, %v1813, %v1817
      %v1819 = vshrl.u32 %v1521, 16
      %v1821 = vor.u32 %v1819, %v1817
      %v1823 = vshrl.u32 %v1638, 16
      %v1825 = vshll.u32 %v1638, 16
      %v1827 = vrot.slane %v1825, 1
      %v1828 = vor.u32 %v1823, %v1827
      %v1830 = vshll.u32 %v1523, 16
      %v1832 = vrot.slane %v1830, 1
      %v1833 = vsel %vm936, %v1828, %v1832
      %v1834 = vshrl.u32 %v1523, 16
      %v1836 = vor.u32 %v1834, %v1832
      %v1838 = vshrl.u32 %v1639, 16
      %v1840 = vshll.u32 %v1639, 16
      %v1842 = vrot.slane %v1840, 1
      %v1843 = vor.u32 %v1838, %v1842
      %v1845 = vshll.u32 %v1525, 16
      %v1847 = vrot.slane %v1845, 1
      %v1848 = vsel %vm936, %v1843, %v1847
      %v1849 = vshrl.u32 %v1525, 16
      %v1851 = vor.u32 %v1849, %v1847
      %v1853 = vshrl.u32 %v1640, 16
      %v1855 = vshll.u32 %v1640, 16
      %v1857 = vrot.slane %v1855, 1
      %v1858 = vor.u32 %v1853, %v1857
      %v1860 = vshll.u32 %v1527, 16
      %v1862 = vrot.slane %v1860, 1
      %v1863 = vsel %vm936, %v1858, %v1862
      %v1864 = vshrl.u32 %v1527, 16
      %v1866 = vor.u32 %v1864, %v1862
      %v1868 = vshrl.u32 %v1641, 16
      %v1870 = vshll.u32 %v1641, 16
      %v1872 = vrot.slane %v1870, 1
      %v1873 = vor.u32 %v1868, %v1872
      %v1875 = vshll.u32 %v1529, 16
      %v1877 = vrot.slane %v1875, 1
      %v1878 = vsel %vm936, %v1873, %v1877
      %v1879 = vshrl.u32 %v1529, 16
      %v1881 = vor.u32 %v1879, %v1877
      %1882 = vrot.lane.b32.xlu0 %v1653, 32
      %v1883 = vpop.permute.xlu0 %1882
      %1884 = vrot.lane.b32.xlu0 %v1656, 32
      %v1885 = vpop.permute.xlu0 %1884
      %1886 = vrot.lane.b32.xlu0 %v1668, 32
      %v1887 = vpop.permute.xlu0 %1886
      %1888 = vrot.lane.b32.xlu0 %v1671, 32
      %v1889 = vpop.permute.xlu0 %1888
      %1890 = vrot.lane.b32.xlu0 %v1683, 32
      %v1891 = vpop.permute.xlu0 %1890
      %1892 = vrot.lane.b32.xlu0 %v1686, 32
      %v1893 = vpop.permute.xlu0 %1892
      %1894 = vrot.lane.b32.xlu0 %v1698, 32
      %v1895 = vpop.permute.xlu0 %1894
      %1896 = vrot.lane.b32.xlu0 %v1701, 32
      %v1897 = vpop.permute.xlu0 %1896
      %1898 = vrot.lane.b32.xlu0 %v1713, 32
      %v1899 = vpop.permute.xlu0 %1898
      %1900 = vrot.lane.b32.xlu0 %v1716, 32
      %v1901 = vpop.permute.xlu0 %1900
      %1902 = vrot.lane.b32.xlu0 %v1728, 32
      %v1903 = vpop.permute.xlu0 %1902
      %1904 = vrot.lane.b32.xlu0 %v1731, 32
      %v1905 = vpop.permute.xlu0 %1904
      %1906 = vrot.lane.b32.xlu0 %v1743, 32
      %v1907 = vpop.permute.xlu0 %1906
      %1908 = vrot.lane.b32.xlu0 %v1746, 32
      %v1909 = vpop.permute.xlu0 %1908
      %1910 = vrot.lane.b32.xlu0 %v1758, 32
      %v1911 = vpop.permute.xlu0 %1910
      %1912 = vrot.lane.b32.xlu0 %v1761, 32
      %v1913 = vpop.permute.xlu0 %1912
      %1914 = vrot.lane.b32.xlu0 %v1773, 32
      %v1915 = vpop.permute.xlu0 %1914
      %1916 = vrot.lane.b32.xlu0 %v1776, 32
      %v1917 = vpop.permute.xlu0 %1916
      %1918 = vrot.lane.b32.xlu0 %v1788, 32
      %v1919 = vpop.permute.xlu0 %1918
      %1920 = vrot.lane.b32.xlu0 %v1791, 32
      %v1921 = vpop.permute.xlu0 %1920
      %1922 = vrot.lane.b32.xlu0 %v1803, 32
      %v1923 = vpop.permute.xlu0 %1922
      %1924 = vrot.lane.b32.xlu0 %v1806, 32
      %v1925 = vpop.permute.xlu0 %1924
      %1926 = vrot.lane.b32.xlu0 %v1818, 32
      %v1927 = vpop.permute.xlu0 %1926
      %1928 = vrot.lane.b32.xlu0 %v1821, 32
      %v1929 = vpop.permute.xlu0 %1928
      %1930 = vrot.lane.b32.xlu0 %v1833, 32
      %v1931 = vpop.permute.xlu0 %1930
      %1932 = vrot.lane.b32.xlu0 %v1836, 32
      %v1933 = vpop.permute.xlu0 %1932
      %1934 = vrot.lane.b32.xlu0 %v1848, 32
      %v1935 = vpop.permute.xlu0 %1934
      %1936 = vrot.lane.b32.xlu0 %v1851, 32
      %v1937 = vpop.permute.xlu0 %1936
      %1938 = vrot.lane.b32.xlu0 %v1863, 32
      %v1939 = vpop.permute.xlu0 %1938
      %1940 = vrot.lane.b32.xlu0 %v1866, 32
      %v1941 = vpop.permute.xlu0 %1940
      %1942 = vrot.lane.b32.xlu0 %v1878, 32
      %v1943 = vpop.permute.xlu0 %1942
      %1944 = vrot.lane.b32.xlu0 %v1881, 32
      %v1945 = vpop.permute.xlu0 %1944
      %v1962 = vunpack.c.l.b16 %v663
      %v1963 = vunpack.c.l.b16 %v664
      %v1964 = vunpack.c.l.b16 %v665
      %v1965 = vunpack.c.l.b16 %v666
      %v1966 = vunpack.c.l.b16 %v667
      %v1967 = vunpack.c.l.b16 %v668
      %v1968 = vunpack.c.l.b16 %v669
      %v1969 = vunpack.c.l.b16 %v670
      %v1970 = vunpack.c.l.b16 %v671
      %v1971 = vunpack.c.l.b16 %v672
      %v1972 = vunpack.c.l.b16 %v673
      %v1973 = vunpack.c.l.b16 %v674
      %v1974 = vunpack.c.l.b16 %v675
      %v1975 = vunpack.c.l.b16 %v676
      %v1976 = vunpack.c.l.b16 %v677
      %v1977 = vunpack.c.l.b16 %v678
      %v1978 = vpack.c.b16 %v1962, %v1962
      %v1979 = vpack.c.b16 %v1963, %v1963
      %v1980 = vpack.c.b16 %v1964, %v1964
      %v1981 = vpack.c.b16 %v1965, %v1965
      %v1982 = vpack.c.b16 %v1966, %v1966
      %v1983 = vpack.c.b16 %v1967, %v1967
      %v1984 = vpack.c.b16 %v1968, %v1968
      %v1985 = vpack.c.b16 %v1969, %v1969
      %v1986 = vpack.c.b16 %v1970, %v1970
      %v1987 = vpack.c.b16 %v1971, %v1971
      %v1988 = vpack.c.b16 %v1972, %v1972
      %v1989 = vpack.c.b16 %v1973, %v1973
      %v1990 = vpack.c.b16 %v1974, %v1974
      %v1991 = vpack.c.b16 %v1975, %v1975
      %v1992 = vpack.c.b16 %v1976, %v1976
      %v1993 = vpack.c.b16 %v1977, %v1977
      %v1994 = vrot.slane %v1626, 1
      %v1995 = vrot.slane %v1978, 1
      %v1996 = vsel %vm1289, %v1994, %v1995
      %v1997 = vrot.slane %v1627, 1
      %v1998 = vrot.slane %v1979, 1
      %v1999 = vsel %vm1289, %v1997, %v1998
      %v2000 = vrot.slane %v1628, 1
      %v2001 = vrot.slane %v1980, 1
      %v2002 = vsel %vm1289, %v2000, %v2001
      %v2003 = vrot.slane %v1629, 1
      %v2004 = vrot.slane %v1981, 1
      %v2005 = vsel %vm1289, %v2003, %v2004
      %v2006 = vrot.slane %v1630, 1
      %v2007 = vrot.slane %v1982, 1
      %v2008 = vsel %vm1289, %v2006, %v2007
      %v2009 = vrot.slane %v1631, 1
      %v2010 = vrot.slane %v1983, 1
      %v2011 = vsel %vm1289, %v2009, %v2010
      %v2012 = vrot.slane %v1632, 1
      %v2013 = vrot.slane %v1984, 1
      %v2014 = vsel %vm1289, %v2012, %v2013
      %v2015 = vrot.slane %v1633, 1
      %v2016 = vrot.slane %v1985, 1
      %v2017 = vsel %vm1289, %v2015, %v2016
      %v2018 = vrot.slane %v1634, 1
      %v2019 = vrot.slane %v1986, 1
      %v2020 = vsel %vm1289, %v2018, %v2019
      %v2021 = vrot.slane %v1635, 1
      %v2022 = vrot.slane %v1987, 1
      %v2023 = vsel %vm1289, %v2021, %v2022
      %v2024 = vrot.slane %v1636, 1
      %v2025 = vrot.slane %v1988, 1
      %v2026 = vsel %vm1289, %v2024, %v2025
      %v2027 = vrot.slane %v1637, 1
      %v2028 = vrot.slane %v1989, 1
      %v2029 = vsel %vm1289, %v2027, %v2028
      %v2030 = vrot.slane %v1638, 1
      %v2031 = vrot.slane %v1990, 1
      %v2032 = vsel %vm1289, %v2030, %v2031
      %v2033 = vrot.slane %v1639, 1
      %v2034 = vrot.slane %v1991, 1
      %v2035 = vsel %vm1289, %v2033, %v2034
      %v2036 = vrot.slane %v1640, 1
      %v2037 = vrot.slane %v1992, 1
      %v2038 = vsel %vm1289, %v2036, %v2037
      %v2039 = vrot.slane %v1641, 1
      %v2040 = vrot.slane %v1993, 1
      %v2041 = vsel %vm1289, %v2039, %v2040
      %2042 = vrot.lane.b32.xlu0 %v1996, 40
      %v2043 = vpop.permute.xlu0 %2042
      %2044 = vrot.lane.b32.xlu0 %v1995, 40
      %v2045 = vpop.permute.xlu0 %2044
      %2046 = vrot.lane.b32.xlu0 %v1999, 40
      %v2047 = vpop.permute.xlu0 %2046
      %2048 = vrot.lane.b32.xlu0 %v1998, 40
      %v2049 = vpop.permute.xlu0 %2048
      %2050 = vrot.lane.b32.xlu0 %v2002, 40
      %v2051 = vpop.permute.xlu0 %2050
      %2052 = vrot.lane.b32.xlu0 %v2001, 40
      %v2053 = vpop.permute.xlu0 %2052
      %2054 = vrot.lane.b32.xlu0 %v2005, 40
      %v2055 = vpop.permute.xlu0 %2054
      %2056 = vrot.lane.b32.xlu0 %v2004, 40
      %v2057 = vpop.permute.xlu0 %2056
      %2058 = vrot.lane.b32.xlu0 %v2008, 40
      %v2059 = vpop.permute.xlu0 %2058
      %2060 = vrot.lane.b32.xlu0 %v2007, 40
      %v2061 = vpop.permute.xlu0 %2060
      %2062 = vrot.lane.b32.xlu0 %v2011, 40
      %v2063 = vpop.permute.xlu0 %2062
      %2064 = vrot.lane.b32.xlu0 %v2010, 40
      %v2065 = vpop.permute.xlu0 %2064
      %2066 = vrot.lane.b32.xlu0 %v2014, 40
      %v2067 = vpop.permute.xlu0 %2066
      %2068 = vrot.lane.b32.xlu0 %v2013, 40
      %v2069 = vpop.permute.xlu0 %2068
      %2070 = vrot.lane.b32.xlu0 %v2017, 40
      %v2071 = vpop.permute.xlu0 %2070
      %2072 = vrot.lane.b32.xlu0 %v2016, 40
      %v2073 = vpop.permute.xlu0 %2072
      %2074 = vrot.lane.b32.xlu0 %v2020, 40
      %v2075 = vpop.permute.xlu0 %2074
      %2076 = vrot.lane.b32.xlu0 %v2019, 40
      %v2077 = vpop.permute.xlu0 %2076
      %2078 = vrot.lane.b32.xlu0 %v2023, 40
      %v2079 = vpop.permute.xlu0 %2078
      %2080 = vrot.lane.b32.xlu0 %v2022, 40
      %v2081 = vpop.permute.xlu0 %2080
      %2082 = vrot.lane.b32.xlu0 %v2026, 40
      %v2083 = vpop.permute.xlu0 %2082
      %2084 = vrot.lane.b32.xlu0 %v2025, 40
      %v2085 = vpop.permute.xlu0 %2084
      %2086 = vrot.lane.b32.xlu0 %v2029, 40
      %v2087 = vpop.permute.xlu0 %2086
      %2088 = vrot.lane.b32.xlu0 %v2028, 40
      %v2089 = vpop.permute.xlu0 %2088
      %2090 = vrot.lane.b32.xlu0 %v2032, 40
      %v2091 = vpop.permute.xlu0 %2090
      %2092 = vrot.lane.b32.xlu0 %v2031, 40
      %v2093 = vpop.permute.xlu0 %2092
      %2094 = vrot.lane.b32.xlu0 %v2035, 40
      %v2095 = vpop.permute.xlu0 %2094
      %2096 = vrot.lane.b32.xlu0 %v2034, 40
      %v2097 = vpop.permute.xlu0 %2096
      %2098 = vrot.lane.b32.xlu0 %v2038, 40
      %v2099 = vpop.permute.xlu0 %2098
      %2100 = vrot.lane.b32.xlu0 %v2037, 40
      %v2101 = vpop.permute.xlu0 %2100
      %2102 = vrot.lane.b32.xlu0 %v2041, 40
      %v2103 = vpop.permute.xlu0 %2102
      %2104 = vrot.lane.b32.xlu0 %v2040, 40
      %v2105 = vpop.permute.xlu0 %2104
      %v2154 = vunpack.c.l.b16 %v680
      %v2155 = vunpack.c.l.b16 %v681
      %v2156 = vunpack.c.l.b16 %v682
      %v2157 = vunpack.c.l.b16 %v683
      %v2158 = vunpack.c.l.b16 %v684
      %v2159 = vunpack.c.l.b16 %v685
      %v2160 = vunpack.c.l.b16 %v686
      %v2161 = vunpack.c.l.b16 %v687
      %v2162 = vunpack.c.l.b16 %v688
      %v2163 = vunpack.c.l.b16 %v689
      %v2164 = vunpack.c.l.b16 %v690
      %v2165 = vunpack.c.l.b16 %v691
      %v2166 = vunpack.c.l.b16 %v692
      %v2167 = vunpack.c.l.b16 %v693
      %v2168 = vunpack.c.l.b16 %v694
      %v2169 = vunpack.c.l.b16 %v695
      %v2170 = vunpack.c.l.b16 %v696
      %v2171 = vunpack.c.l.b16 %v697
      %v2172 = vunpack.c.l.b16 %v698
      %v2173 = vunpack.c.l.b16 %v699
      %v2174 = vunpack.c.l.b16 %v700
      %v2175 = vunpack.c.l.b16 %v701
      %v2176 = vunpack.c.l.b16 %v702
      %v2177 = vunpack.c.l.b16 %v703
      %v2178 = vunpack.c.l.b16 %v704
      %v2179 = vunpack.c.l.b16 %v705
      %v2180 = vunpack.c.l.b16 %v706
      %v2181 = vunpack.c.l.b16 %v707
      %v2182 = vunpack.c.l.b16 %v708
      %v2183 = vunpack.c.l.b16 %v709
      %v2184 = vunpack.c.l.b16 %v710
      %v2185 = vunpack.c.l.b16 %v711
      %v2186 = vunpack.c.l.b16 %v712
      %v2187 = vunpack.c.l.b16 %v713
      %v2188 = vunpack.c.l.b16 %v714
      %v2189 = vunpack.c.l.b16 %v715
      %v2190 = vunpack.c.l.b16 %v716
      %v2191 = vunpack.c.l.b16 %v717
      %v2192 = vunpack.c.l.b16 %v718
      %v2193 = vunpack.c.l.b16 %v719
      %v2194 = vunpack.c.l.b16 %v720
      %v2195 = vunpack.c.l.b16 %v721
      %v2196 = vunpack.c.l.b16 %v722
      %v2197 = vunpack.c.l.b16 %v723
      %v2198 = vunpack.c.l.b16 %v724
      %v2199 = vunpack.c.l.b16 %v725
      %v2200 = vunpack.c.l.b16 %v726
      %v2201 = vunpack.c.l.b16 %v727
      %v2202 = vpack.c.b16 %v2155, %v2154
      %v2203 = vpack.c.b16 %v2156, %v2156
      %v2204 = vpack.c.b16 %v2158, %v2157
      %v2205 = vpack.c.b16 %v2159, %v2159
      %v2206 = vpack.c.b16 %v2161, %v2160
      %v2207 = vpack.c.b16 %v2162, %v2162
      %v2208 = vpack.c.b16 %v2164, %v2163
      %v2209 = vpack.c.b16 %v2165, %v2165
      %v2210 = vpack.c.b16 %v2167, %v2166
      %v2211 = vpack.c.b16 %v2168, %v2168
      %v2212 = vpack.c.b16 %v2170, %v2169
      %v2213 = vpack.c.b16 %v2171, %v2171
      %v2214 = vpack.c.b16 %v2173, %v2172
      %v2215 = vpack.c.b16 %v2174, %v2174
      %v2216 = vpack.c.b16 %v2176, %v2175
      %v2217 = vpack.c.b16 %v2177, %v2177
      %v2218 = vpack.c.b16 %v2179, %v2178
      %v2219 = vpack.c.b16 %v2180, %v2180
      %v2220 = vpack.c.b16 %v2182, %v2181
      %v2221 = vpack.c.b16 %v2183, %v2183
      %v2222 = vpack.c.b16 %v2185, %v2184
      %v2223 = vpack.c.b16 %v2186, %v2186
      %v2224 = vpack.c.b16 %v2188, %v2187
      %v2225 = vpack.c.b16 %v2189, %v2189
      %v2226 = vpack.c.b16 %v2191, %v2190
      %v2227 = vpack.c.b16 %v2192, %v2192
      %v2228 = vpack.c.b16 %v2194, %v2193
      %v2229 = vpack.c.b16 %v2195, %v2195
      %v2230 = vpack.c.b16 %v2197, %v2196
      %v2231 = vpack.c.b16 %v2198, %v2198
      %v2232 = vpack.c.b16 %v2200, %v2199
      %v2233 = vpack.c.b16 %v2201, %v2201
      %2234 = vrot.lane.b32.xlu0 %v2202, 48
      %v2235 = vpop.permute.xlu0 %2234
      %2236 = vrot.lane.b32.xlu0 %v2203, 48
      %v2237 = vpop.permute.xlu0 %2236
      %2238 = vrot.lane.b32.xlu0 %v2204, 48
      %v2239 = vpop.permute.xlu0 %2238
      %2240 = vrot.lane.b32.xlu0 %v2205, 48
      %v2241 = vpop.permute.xlu0 %2240
      %2242 = vrot.lane.b32.xlu0 %v2206, 48
      %v2243 = vpop.permute.xlu0 %2242
      %2244 = vrot.lane.b32.xlu0 %v2207, 48
      %v2245 = vpop.permute.xlu0 %2244
      %2246 = vrot.lane.b32.xlu0 %v2208, 48
      %v2247 = vpop.permute.xlu0 %2246
      %2248 = vrot.lane.b32.xlu0 %v2209, 48
      %v2249 = vpop.permute.xlu0 %2248
      %2250 = vrot.lane.b32.xlu0 %v2210, 48
      %v2251 = vpop.permute.xlu0 %2250
      %2252 = vrot.lane.b32.xlu0 %v2211, 48
      %v2253 = vpop.permute.xlu0 %2252
      %2254 = vrot.lane.b32.xlu0 %v2212, 48
      %v2255 = vpop.permute.xlu0 %2254
      %2256 = vrot.lane.b32.xlu0 %v2213, 48
      %v2257 = vpop.permute.xlu0 %2256
      %2258 = vrot.lane.b32.xlu0 %v2214, 48
      %v2259 = vpop.permute.xlu0 %2258
      %2260 = vrot.lane.b32.xlu0 %v2215, 48
      %v2261 = vpop.permute.xlu0 %2260
      %2262 = vrot.lane.b32.xlu0 %v2216, 48
      %v2263 = vpop.permute.xlu0 %2262
      %2264 = vrot.lane.b32.xlu0 %v2217, 48
      %v2265 = vpop.permute.xlu0 %2264
      %2266 = vrot.lane.b32.xlu0 %v2218, 48
      %v2267 = vpop.permute.xlu0 %2266
      %2268 = vrot.lane.b32.xlu0 %v2219, 48
      %v2269 = vpop.permute.xlu0 %2268
      %2270 = vrot.lane.b32.xlu0 %v2220, 48
      %v2271 = vpop.permute.xlu0 %2270
      %2272 = vrot.lane.b32.xlu0 %v2221, 48
      %v2273 = vpop.permute.xlu0 %2272
      %2274 = vrot.lane.b32.xlu0 %v2222, 48
      %v2275 = vpop.permute.xlu0 %2274
      %2276 = vrot.lane.b32.xlu0 %v2223, 48
      %v2277 = vpop.permute.xlu0 %2276
      %2278 = vrot.lane.b32.xlu0 %v2224, 48
      %v2279 = vpop.permute.xlu0 %2278
      %2280 = vrot.lane.b32.xlu0 %v2225, 48
      %v2281 = vpop.permute.xlu0 %2280
      %2282 = vrot.lane.b32.xlu0 %v2226, 48
      %v2283 = vpop.permute.xlu0 %2282
      %2284 = vrot.lane.b32.xlu0 %v2227, 48
      %v2285 = vpop.permute.xlu0 %2284
      %2286 = vrot.lane.b32.xlu0 %v2228, 48
      %v2287 = vpop.permute.xlu0 %2286
      %2288 = vrot.lane.b32.xlu0 %v2229, 48
      %v2289 = vpop.permute.xlu0 %2288
      %2290 = vrot.lane.b32.xlu0 %v2230, 48
      %v2291 = vpop.permute.xlu0 %2290
      %2292 = vrot.lane.b32.xlu0 %v2231, 48
      %v2293 = vpop.permute.xlu0 %2292
      %2294 = vrot.lane.b32.xlu0 %v2232, 48
      %v2295 = vpop.permute.xlu0 %2294
      %2296 = vrot.lane.b32.xlu0 %v2233, 48
      %v2297 = vpop.permute.xlu0 %2296
      %v2314 = vunpack.c.l.b16 %v728
      %v2315 = vunpack.c.l.b16 %v729
      %v2316 = vunpack.c.l.b16 %v730
      %v2317 = vunpack.c.l.b16 %v731
      %v2318 = vunpack.c.l.b16 %v732
      %v2319 = vunpack.c.l.b16 %v733
      %v2320 = vunpack.c.l.b16 %v734
      %v2321 = vunpack.c.l.b16 %v735
      %v2322 = vunpack.c.l.b16 %v736
      %v2323 = vunpack.c.l.b16 %v737
      %v2324 = vunpack.c.l.b16 %v738
      %v2325 = vunpack.c.l.b16 %v739
      %v2326 = vunpack.c.l.b16 %v740
      %v2327 = vunpack.c.l.b16 %v741
      %v2328 = vunpack.c.l.b16 %v742
      %v2329 = vunpack.c.l.b16 %v743
      %v2330 = vpack.c.b16 %v2155, %v2314
      %v2331 = vpack.c.b16 %v2158, %v2315
      %v2332 = vpack.c.b16 %v2161, %v2316
      %v2333 = vpack.c.b16 %v2164, %v2317
      %v2334 = vpack.c.b16 %v2167, %v2318
      %v2335 = vpack.c.b16 %v2170, %v2319
      %v2336 = vpack.c.b16 %v2173, %v2320
      %v2337 = vpack.c.b16 %v2176, %v2321
      %v2338 = vpack.c.b16 %v2179, %v2322
      %v2339 = vpack.c.b16 %v2182, %v2323
      %v2340 = vpack.c.b16 %v2185, %v2324
      %v2341 = vpack.c.b16 %v2188, %v2325
      %v2342 = vpack.c.b16 %v2191, %v2326
      %v2343 = vpack.c.b16 %v2194, %v2327
      %v2344 = vpack.c.b16 %v2197, %v2328
      %v2345 = vpack.c.b16 %v2200, %v2329
      %v2347 = vshrl.u32 %v2330, 16
      %v2349 = vshll.u32 %v2330, 16
      %v2351 = vrot.slane %v2349, 1
      %v2352 = vor.u32 %v2347, %v2351
      %v2354 = vshll.u32 %v2203, 16
      %v2356 = vrot.slane %v2354, 1
      %v2357 = vsel %vm936, %v2352, %v2356
      %v2358 = vshrl.u32 %v2203, 16
      %v2360 = vor.u32 %v2358, %v2356
      %v2362 = vshrl.u32 %v2331, 16
      %v2364 = vshll.u32 %v2331, 16
      %v2366 = vrot.slane %v2364, 1
      %v2367 = vor.u32 %v2362, %v2366
      %v2369 = vshll.u32 %v2205, 16
      %v2371 = vrot.slane %v2369, 1
      %v2372 = vsel %vm936, %v2367, %v2371
      %v2373 = vshrl.u32 %v2205, 16
      %v2375 = vor.u32 %v2373, %v2371
      %v2377 = vshrl.u32 %v2332, 16
      %v2379 = vshll.u32 %v2332, 16
      %v2381 = vrot.slane %v2379, 1
      %v2382 = vor.u32 %v2377, %v2381
      %v2384 = vshll.u32 %v2207, 16
      %v2386 = vrot.slane %v2384, 1
      %v2387 = vsel %vm936, %v2382, %v2386
      %v2388 = vshrl.u32 %v2207, 16
      %v2390 = vor.u32 %v2388, %v2386
      %v2392 = vshrl.u32 %v2333, 16
      %v2394 = vshll.u32 %v2333, 16
      %v2396 = vrot.slane %v2394, 1
      %v2397 = vor.u32 %v2392, %v2396
      %v2399 = vshll.u32 %v2209, 16
      %v2401 = vrot.slane %v2399, 1
      %v2402 = vsel %vm936, %v2397, %v2401
      %v2403 = vshrl.u32 %v2209, 16
      %v2405 = vor.u32 %v2403, %v2401
      %v2407 = vshrl.u32 %v2334, 16
      %v2409 = vshll.u32 %v2334, 16
      %v2411 = vrot.slane %v2409, 1
      %v2412 = vor.u32 %v2407, %v2411
      %v2414 = vshll.u32 %v2211, 16
      %v2416 = vrot.slane %v2414, 1
      %v2417 = vsel %vm936, %v2412, %v2416
      %v2418 = vshrl.u32 %v2211, 16
      %v2420 = vor.u32 %v2418, %v2416
      %v2422 = vshrl.u32 %v2335, 16
      %v2424 = vshll.u32 %v2335, 16
      %v2426 = vrot.slane %v2424, 1
      %v2427 = vor.u32 %v2422, %v2426
      %v2429 = vshll.u32 %v2213, 16
      %v2431 = vrot.slane %v2429, 1
      %v2432 = vsel %vm936, %v2427, %v2431
      %v2433 = vshrl.u32 %v2213, 16
      %v2435 = vor.u32 %v2433, %v2431
      %v2437 = vshrl.u32 %v2336, 16
      %v2439 = vshll.u32 %v2336, 16
      %v2441 = vrot.slane %v2439, 1
      %v2442 = vor.u32 %v2437, %v2441
      %v2444 = vshll.u32 %v2215, 16
      %v2446 = vrot.slane %v2444, 1
      %v2447 = vsel %vm936, %v2442, %v2446
      %v2448 = vshrl.u32 %v2215, 16
      %v2450 = vor.u32 %v2448, %v2446
      %v2452 = vshrl.u32 %v2337, 16
      %v2454 = vshll.u32 %v2337, 16
      %v2456 = vrot.slane %v2454, 1
      %v2457 = vor.u32 %v2452, %v2456
      %v2459 = vshll.u32 %v2217, 16
      %v2461 = vrot.slane %v2459, 1
      %v2462 = vsel %vm936, %v2457, %v2461
      %v2463 = vshrl.u32 %v2217, 16
      %v2465 = vor.u32 %v2463, %v2461
      %v2467 = vshrl.u32 %v2338, 16
      %v2469 = vshll.u32 %v2338, 16
      %v2471 = vrot.slane %v2469, 1
      %v2472 = vor.u32 %v2467, %v2471
      %v2474 = vshll.u32 %v2219, 16
      %v2476 = vrot.slane %v2474, 1
      %v2477 = vsel %vm936, %v2472, %v2476
      %v2478 = vshrl.u32 %v2219, 16
      %v2480 = vor.u32 %v2478, %v2476
      %v2482 = vshrl.u32 %v2339, 16
      %v2484 = vshll.u32 %v2339, 16
      %v2486 = vrot.slane %v2484, 1
      %v2487 = vor.u32 %v2482, %v2486
      %v2489 = vshll.u32 %v2221, 16
      %v2491 = vrot.slane %v2489, 1
      %v2492 = vsel %vm936, %v2487, %v2491
      %v2493 = vshrl.u32 %v2221, 16
      %v2495 = vor.u32 %v2493, %v2491
      %v2497 = vshrl.u32 %v2340, 16
      %v2499 = vshll.u32 %v2340, 16
      %v2501 = vrot.slane %v2499, 1
      %v2502 = vor.u32 %v2497, %v2501
      %v2504 = vshll.u32 %v2223, 16
      %v2506 = vrot.slane %v2504, 1
      %v2507 = vsel %vm936, %v2502, %v2506
      %v2508 = vshrl.u32 %v2223, 16
      %v2510 = vor.u32 %v2508, %v2506
      %v2512 = vshrl.u32 %v2341, 16
      %v2514 = vshll.u32 %v2341, 16
      %v2516 = vrot.slane %v2514, 1
      %v2517 = vor.u32 %v2512, %v2516
      %v2519 = vshll.u32 %v2225, 16
      %v2521 = vrot.slane %v2519, 1
      %v2522 = vsel %vm936, %v2517, %v2521
      %v2523 = vshrl.u32 %v2225, 16
      %v2525 = vor.u32 %v2523, %v2521
      %v2527 = vshrl.u32 %v2342, 16
      %v2529 = vshll.u32 %v2342, 16
      %v2531 = vrot.slane %v2529, 1
      %v2532 = vor.u32 %v2527, %v2531
      %v2534 = vshll.u32 %v2227, 16
      %v2536 = vrot.slane %v2534, 1
      %v2537 = vsel %vm936, %v2532, %v2536
      %v2538 = vshrl.u32 %v2227, 16
      %v2540 = vor.u32 %v2538, %v2536
      %v2542 = vshrl.u32 %v2343, 16
      %v2544 = vshll.u32 %v2343, 16
      %v2546 = vrot.slane %v2544, 1
      %v2547 = vor.u32 %v2542, %v2546
      %v2549 = vshll.u32 %v2229, 16
      %v2551 = vrot.slane %v2549, 1
      %v2552 = vsel %vm936, %v2547, %v2551
      %v2553 = vshrl.u32 %v2229, 16
      %v2555 = vor.u32 %v2553, %v2551
      %v2557 = vshrl.u32 %v2344, 16
      %v2559 = vshll.u32 %v2344, 16
      %v2561 = vrot.slane %v2559, 1
      %v2562 = vor.u32 %v2557, %v2561
      %v2564 = vshll.u32 %v2231, 16
      %v2566 = vrot.slane %v2564, 1
      %v2567 = vsel %vm936, %v2562, %v2566
      %v2568 = vshrl.u32 %v2231, 16
      %v2570 = vor.u32 %v2568, %v2566
      %v2572 = vshrl.u32 %v2345, 16
      %v2574 = vshll.u32 %v2345, 16
      %v2576 = vrot.slane %v2574, 1
      %v2577 = vor.u32 %v2572, %v2576
      %v2579 = vshll.u32 %v2233, 16
      %v2581 = vrot.slane %v2579, 1
      %v2582 = vsel %vm936, %v2577, %v2581
      %v2583 = vshrl.u32 %v2233, 16
      %v2585 = vor.u32 %v2583, %v2581
      %2586 = vrot.lane.b32.xlu0 %v2357, 56
      %v2587 = vpop.permute.xlu0 %2586
      %2588 = vrot.lane.b32.xlu0 %v2360, 56
      %v2589 = vpop.permute.xlu0 %2588
      %2590 = vrot.lane.b32.xlu0 %v2372, 56
      %v2591 = vpop.permute.xlu0 %2590
      %2592 = vrot.lane.b32.xlu0 %v2375, 56
      %v2593 = vpop.permute.xlu0 %2592
      %2594 = vrot.lane.b32.xlu0 %v2387, 56
      %v2595 = vpop.permute.xlu0 %2594
      %2596 = vrot.lane.b32.xlu0 %v2390, 56
      %v2597 = vpop.permute.xlu0 %2596
      %2598 = vrot.lane.b32.xlu0 %v2402, 56
      %v2599 = vpop.permute.xlu0 %2598
      %2600 = vrot.lane.b32.xlu0 %v2405, 56
      %v2601 = vpop.permute.xlu0 %2600
      %2602 = vrot.lane.b32.xlu0 %v2417, 56
      %v2603 = vpop.permute.xlu0 %2602
      %2604 = vrot.lane.b32.xlu0 %v2420, 56
      %v2605 = vpop.permute.xlu0 %2604
      %2606 = vrot.lane.b32.xlu0 %v2432, 56
      %v2607 = vpop.permute.xlu0 %2606
      %2608 = vrot.lane.b32.xlu0 %v2435, 56
      %v2609 = vpop.permute.xlu0 %2608
      %2610 = vrot.lane.b32.xlu0 %v2447, 56
      %v2611 = vpop.permute.xlu0 %2610
      %2612 = vrot.lane.b32.xlu0 %v2450, 56
      %v2613 = vpop.permute.xlu0 %2612
      %2614 = vrot.lane.b32.xlu0 %v2462, 56
      %v2615 = vpop.permute.xlu0 %2614
      %2616 = vrot.lane.b32.xlu0 %v2465, 56
      %v2617 = vpop.permute.xlu0 %2616
      %2618 = vrot.lane.b32.xlu0 %v2477, 56
      %v2619 = vpop.permute.xlu0 %2618
      %2620 = vrot.lane.b32.xlu0 %v2480, 56
      %v2621 = vpop.permute.xlu0 %2620
      %2622 = vrot.lane.b32.xlu0 %v2492, 56
      %v2623 = vpop.permute.xlu0 %2622
      %2624 = vrot.lane.b32.xlu0 %v2495, 56
      %v2625 = vpop.permute.xlu0 %2624
      %2626 = vrot.lane.b32.xlu0 %v2507, 56
      %v2627 = vpop.permute.xlu0 %2626
      %2628 = vrot.lane.b32.xlu0 %v2510, 56
      %v2629 = vpop.permute.xlu0 %2628
      %2630 = vrot.lane.b32.xlu0 %v2522, 56
      %v2631 = vpop.permute.xlu0 %2630
      %2632 = vrot.lane.b32.xlu0 %v2525, 56
      %v2633 = vpop.permute.xlu0 %2632
      %2634 = vrot.lane.b32.xlu0 %v2537, 56
      %v2635 = vpop.permute.xlu0 %2634
      %2636 = vrot.lane.b32.xlu0 %v2540, 56
      %v2637 = vpop.permute.xlu0 %2636
      %2638 = vrot.lane.b32.xlu0 %v2552, 56
      %v2639 = vpop.permute.xlu0 %2638
      %2640 = vrot.lane.b32.xlu0 %v2555, 56
      %v2641 = vpop.permute.xlu0 %2640
      %2642 = vrot.lane.b32.xlu0 %v2567, 56
      %v2643 = vpop.permute.xlu0 %2642
      %2644 = vrot.lane.b32.xlu0 %v2570, 56
      %v2645 = vpop.permute.xlu0 %2644
      %2646 = vrot.lane.b32.xlu0 %v2582, 56
      %v2647 = vpop.permute.xlu0 %2646
      %2648 = vrot.lane.b32.xlu0 %v2585, 56
      %v2649 = vpop.permute.xlu0 %2648
      %v2666 = vunpack.c.l.b16 %v744
      %v2667 = vunpack.c.l.b16 %v745
      %v2668 = vunpack.c.l.b16 %v746
      %v2669 = vunpack.c.l.b16 %v747
      %v2670 = vunpack.c.l.b16 %v748
      %v2671 = vunpack.c.l.b16 %v749
      %v2672 = vunpack.c.l.b16 %v750
      %v2673 = vunpack.c.l.b16 %v751
      %v2674 = vunpack.c.l.b16 %v752
      %v2675 = vunpack.c.l.b16 %v753
      %v2676 = vunpack.c.l.b16 %v754
      %v2677 = vunpack.c.l.b16 %v755
      %v2678 = vunpack.c.l.b16 %v756
      %v2679 = vunpack.c.l.b16 %v757
      %v2680 = vunpack.c.l.b16 %v758
      %v2681 = vunpack.c.l.b16 %v759
      %v2682 = vpack.c.b16 %v2666, %v2666
      %v2683 = vpack.c.b16 %v2667, %v2667
      %v2684 = vpack.c.b16 %v2668, %v2668
      %v2685 = vpack.c.b16 %v2669, %v2669
      %v2686 = vpack.c.b16 %v2670, %v2670
      %v2687 = vpack.c.b16 %v2671, %v2671
      %v2688 = vpack.c.b16 %v2672, %v2672
      %v2689 = vpack.c.b16 %v2673, %v2673
      %v2690 = vpack.c.b16 %v2674, %v2674
      %v2691 = vpack.c.b16 %v2675, %v2675
      %v2692 = vpack.c.b16 %v2676, %v2676
      %v2693 = vpack.c.b16 %v2677, %v2677
      %v2694 = vpack.c.b16 %v2678, %v2678
      %v2695 = vpack.c.b16 %v2679, %v2679
      %v2696 = vpack.c.b16 %v2680, %v2680
      %v2697 = vpack.c.b16 %v2681, %v2681
      %v2698 = vrot.slane %v2330, 1
      %v2699 = vrot.slane %v2682, 1
      %v2700 = vsel %vm1289, %v2698, %v2699
      %v2701 = vrot.slane %v2331, 1
      %v2702 = vrot.slane %v2683, 1
      %v2703 = vsel %vm1289, %v2701, %v2702
      %v2704 = vrot.slane %v2332, 1
      %v2705 = vrot.slane %v2684, 1
      %v2706 = vsel %vm1289, %v2704, %v2705
      %v2707 = vrot.slane %v2333, 1
      %v2708 = vrot.slane %v2685, 1
      %v2709 = vsel %vm1289, %v2707, %v2708
      %v2710 = vrot.slane %v2334, 1
      %v2711 = vrot.slane %v2686, 1
      %v2712 = vsel %vm1289, %v2710, %v2711
      %v2713 = vrot.slane %v2335, 1
      %v2714 = vrot.slane %v2687, 1
      %v2715 = vsel %vm1289, %v2713, %v2714
      %v2716 = vrot.slane %v2336, 1
      %v2717 = vrot.slane %v2688, 1
      %v2718 = vsel %vm1289, %v2716, %v2717
      %v2719 = vrot.slane %v2337, 1
      %v2720 = vrot.slane %v2689, 1
      %v2721 = vsel %vm1289, %v2719, %v2720
      %v2722 = vrot.slane %v2338, 1
      %v2723 = vrot.slane %v2690, 1
      %v2724 = vsel %vm1289, %v2722, %v2723
      %v2725 = vrot.slane %v2339, 1
      %v2726 = vrot.slane %v2691, 1
      %v2727 = vsel %vm1289, %v2725, %v2726
      %v2728 = vrot.slane %v2340, 1
      %v2729 = vrot.slane %v2692, 1
      %v2730 = vsel %vm1289, %v2728, %v2729
      %v2731 = vrot.slane %v2341, 1
      %v2732 = vrot.slane %v2693, 1
      %v2733 = vsel %vm1289, %v2731, %v2732
      %v2734 = vrot.slane %v2342, 1
      %v2735 = vrot.slane %v2694, 1
      %v2736 = vsel %vm1289, %v2734, %v2735
      %v2737 = vrot.slane %v2343, 1
      %v2738 = vrot.slane %v2695, 1
      %v2739 = vsel %vm1289, %v2737, %v2738
      %v2740 = vrot.slane %v2344, 1
      %v2741 = vrot.slane %v2696, 1
      %v2742 = vsel %vm1289, %v2740, %v2741
      %v2743 = vrot.slane %v2345, 1
      %v2744 = vrot.slane %v2697, 1
      %v2745 = vsel %vm1289, %v2743, %v2744
      %2746 = vrot.lane.b32.xlu0 %v2700, 64
      %v2747 = vpop.permute.xlu0 %2746
      %2748 = vrot.lane.b32.xlu0 %v2699, 64
      %v2749 = vpop.permute.xlu0 %2748
      %2750 = vrot.lane.b32.xlu0 %v2703, 64
      %v2751 = vpop.permute.xlu0 %2750
      %2752 = vrot.lane.b32.xlu0 %v2702, 64
      %v2753 = vpop.permute.xlu0 %2752
      %2754 = vrot.lane.b32.xlu0 %v2706, 64
      %v2755 = vpop.permute.xlu0 %2754
      %2756 = vrot.lane.b32.xlu0 %v2705, 64
      %v2757 = vpop.permute.xlu0 %2756
      %2758 = vrot.lane.b32.xlu0 %v2709, 64
      %v2759 = vpop.permute.xlu0 %2758
      %2760 = vrot.lane.b32.xlu0 %v2708, 64
      %v2761 = vpop.permute.xlu0 %2760
      %2762 = vrot.lane.b32.xlu0 %v2712, 64
      %v2763 = vpop.permute.xlu0 %2762
      %2764 = vrot.lane.b32.xlu0 %v2711, 64
      %v2765 = vpop.permute.xlu0 %2764
      %2766 = vrot.lane.b32.xlu0 %v2715, 64
      %v2767 = vpop.permute.xlu0 %2766
      %2768 = vrot.lane.b32.xlu0 %v2714, 64
      %v2769 = vpop.permute.xlu0 %2768
      %2770 = vrot.lane.b32.xlu0 %v2718, 64
      %v2771 = vpop.permute.xlu0 %2770
      %2772 = vrot.lane.b32.xlu0 %v2717, 64
      %v2773 = vpop.permute.xlu0 %2772
      %2774 = vrot.lane.b32.xlu0 %v2721, 64
      %v2775 = vpop.permute.xlu0 %2774
      %2776 = vrot.lane.b32.xlu0 %v2720, 64
      %v2777 = vpop.permute.xlu0 %2776
      %2778 = vrot.lane.b32.xlu0 %v2724, 64
      %v2779 = vpop.permute.xlu0 %2778
      %2780 = vrot.lane.b32.xlu0 %v2723, 64
      %v2781 = vpop.permute.xlu0 %2780
      %2782 = vrot.lane.b32.xlu0 %v2727, 64
      %v2783 = vpop.permute.xlu0 %2782
      %2784 = vrot.lane.b32.xlu0 %v2726, 64
      %v2785 = vpop.permute.xlu0 %2784
      %2786 = vrot.lane.b32.xlu0 %v2730, 64
      %v2787 = vpop.permute.xlu0 %2786
      %2788 = vrot.lane.b32.xlu0 %v2729, 64
      %v2789 = vpop.permute.xlu0 %2788
      %2790 = vrot.lane.b32.xlu0 %v2733, 64
      %v2791 = vpop.permute.xlu0 %2790
      %2792 = vrot.lane.b32.xlu0 %v2732, 64
      %v2793 = vpop.permute.xlu0 %2792
      %2794 = vrot.lane.b32.xlu0 %v2736, 64
      %v2795 = vpop.permute.xlu0 %2794
      %2796 = vrot.lane.b32.xlu0 %v2735, 64
      %v2797 = vpop.permute.xlu0 %2796
      %2798 = vrot.lane.b32.xlu0 %v2739, 64
      %v2799 = vpop.permute.xlu0 %2798
      %2800 = vrot.lane.b32.xlu0 %v2738, 64
      %v2801 = vpop.permute.xlu0 %2800
      %2802 = vrot.lane.b32.xlu0 %v2742, 64
      %v2803 = vpop.permute.xlu0 %2802
      %2804 = vrot.lane.b32.xlu0 %v2741, 64
      %v2805 = vpop.permute.xlu0 %2804
      %2806 = vrot.lane.b32.xlu0 %v2745, 64
      %v2807 = vpop.permute.xlu0 %2806
      %2808 = vrot.lane.b32.xlu0 %v2744, 64
      %v2809 = vpop.permute.xlu0 %2808
      %vm2810 = vcmask 64512
      %v2813 = vsel %vm2810, %v856, %v1178
      %v2815 = vsel %vm2810, %v857, %v1180
      %v2818 = vsel %vm2810, %v858, %v1182
      %v2820 = vsel %vm2810, %v859, %v1184
      %v2823 = vsel %vm2810, %v860, %v1186
      %v2825 = vsel %vm2810, %v861, %v1188
      %v2828 = vsel %vm2810, %v862, %v1190
      %v2830 = vsel %vm2810, %v863, %v1192
      %v2833 = vsel %vm2810, %v864, %v1194
      %v2835 = vsel %vm2810, %v865, %v1196
      %v2838 = vsel %vm2810, %v866, %v1198
      %v2840 = vsel %vm2810, %v867, %v1200
      %v2843 = vsel %vm2810, %v868, %v1202
      %v2845 = vsel %vm2810, %v869, %v1204
      %v2848 = vsel %vm2810, %v870, %v1206
      %v2850 = vsel %vm2810, %v871, %v1208
      %v2853 = vsel %vm2810, %v872, %v1210
      %v2855 = vsel %vm2810, %v873, %v1212
      %v2858 = vsel %vm2810, %v874, %v1214
      %v2860 = vsel %vm2810, %v875, %v1216
      %v2863 = vsel %vm2810, %v876, %v1218
      %v2865 = vsel %vm2810, %v877, %v1220
      %v2868 = vsel %vm2810, %v878, %v1222
      %v2870 = vsel %vm2810, %v879, %v1224
      %v2873 = vsel %vm2810, %v880, %v1226
      %v2875 = vsel %vm2810, %v881, %v1228
      %v2878 = vsel %vm2810, %v882, %v1230
      %v2880 = vsel %vm2810, %v883, %v1232
      %v2883 = vsel %vm2810, %v884, %v1234
      %v2885 = vsel %vm2810, %v885, %v1236
      %v2888 = vsel %vm2810, %v886, %v1238
      %v2890 = vsel %vm2810, %v887, %v1240
      %vm2891 = vcmask 130048
      %v2893 = vsel %vm2891, %v2813, %v1339
      %v2895 = vsel %vm2891, %v2815, %v1341
      %v2897 = vsel %vm2891, %v2818, %v1343
      %v2899 = vsel %vm2891, %v2820, %v1345
      %v2901 = vsel %vm2891, %v2823, %v1347
      %v2903 = vsel %vm2891, %v2825, %v1349
      %v2905 = vsel %vm2891, %v2828, %v1351
      %v2907 = vsel %vm2891, %v2830, %v1353
      %v2909 = vsel %vm2891, %v2833, %v1355
      %v2911 = vsel %vm2891, %v2835, %v1357
      %v2913 = vsel %vm2891, %v2838, %v1359
      %v2915 = vsel %vm2891, %v2840, %v1361
      %v2917 = vsel %vm2891, %v2843, %v1363
      %v2919 = vsel %vm2891, %v2845, %v1365
      %v2921 = vsel %vm2891, %v2848, %v1367
      %v2923 = vsel %vm2891, %v2850, %v1369
      %v2925 = vsel %vm2891, %v2853, %v1371
      %v2927 = vsel %vm2891, %v2855, %v1373
      %v2929 = vsel %vm2891, %v2858, %v1375
      %v2931 = vsel %vm2891, %v2860, %v1377
      %v2933 = vsel %vm2891, %v2863, %v1379
      %v2935 = vsel %vm2891, %v2865, %v1381
      %v2937 = vsel %vm2891, %v2868, %v1383
      %v2939 = vsel %vm2891, %v2870, %v1385
      %v2941 = vsel %vm2891, %v2873, %v1387
      %v2943 = vsel %vm2891, %v2875, %v1389
      %v2945 = vsel %vm2891, %v2878, %v1391
      %v2947 = vsel %vm2891, %v2880, %v1393
      %v2949 = vsel %vm2891, %v2883, %v1395
      %v2951 = vsel %vm2891, %v2885, %v1397
      %v2953 = vsel %vm2891, %v2888, %v1399
      %v2955 = vsel %vm2891, %v2890, %v1401
      %vm2956 = vcmask 195584
      %v2958 = vsel %vm2956, %v2893, %v1531
      %v2960 = vsel %vm2956, %v2895, %v1533
      %v2962 = vsel %vm2956, %v2897, %v1535
      %v2964 = vsel %vm2956, %v2899, %v1537
      %v2966 = vsel %vm2956, %v2901, %v1539
      %v2968 = vsel %vm2956, %v2903, %v1541
      %v2970 = vsel %vm2956, %v2905, %v1543
      %v2972 = vsel %vm2956, %v2907, %v1545
      %v2974 = vsel %vm2956, %v2909, %v1547
      %v2976 = vsel %vm2956, %v2911, %v1549
      %v2978 = vsel %vm2956, %v2913, %v1551
      %v2980 = vsel %vm2956, %v2915, %v1553
      %v2982 = vsel %vm2956, %v2917, %v1555
      %v2984 = vsel %vm2956, %v2919, %v1557
      %v2986 = vsel %vm2956, %v2921, %v1559
      %v2988 = vsel %vm2956, %v2923, %v1561
      %v2990 = vsel %vm2956, %v2925, %v1563
      %v2992 = vsel %vm2956, %v2927, %v1565
      %v2994 = vsel %vm2956, %v2929, %v1567
      %v2996 = vsel %vm2956, %v2931, %v1569
      %v2998 = vsel %vm2956, %v2933, %v1571
      %v3000 = vsel %vm2956, %v2935, %v1573
      %v3002 = vsel %vm2956, %v2937, %v1575
      %v3004 = vsel %vm2956, %v2939, %v1577
      %v3006 = vsel %vm2956, %v2941, %v1579
      %v3008 = vsel %vm2956, %v2943, %v1581
      %v3010 = vsel %vm2956, %v2945, %v1583
      %v3012 = vsel %vm2956, %v2947, %v1585
      %v3014 = vsel %vm2956, %v2949, %v1587
      %v3016 = vsel %vm2956, %v2951, %v1589
      %v3018 = vsel %vm2956, %v2953, %v1591
      %v3020 = vsel %vm2956, %v2955, %v1593
      %vm3021 = vcmask 261120
      %v3023 = vsel %vm3021, %v2958, %v1883
      %v3025 = vsel %vm3021, %v2960, %v1885
      %v3027 = vsel %vm3021, %v2962, %v1887
      %v3029 = vsel %vm3021, %v2964, %v1889
      %v3031 = vsel %vm3021, %v2966, %v1891
      %v3033 = vsel %vm3021, %v2968, %v1893
      %v3035 = vsel %vm3021, %v2970, %v1895
      %v3037 = vsel %vm3021, %v2972, %v1897
      %v3039 = vsel %vm3021, %v2974, %v1899
      %v3041 = vsel %vm3021, %v2976, %v1901
      %v3043 = vsel %vm3021, %v2978, %v1903
      %v3045 = vsel %vm3021, %v2980, %v1905
      %v3047 = vsel %vm3021, %v2982, %v1907
      %v3049 = vsel %vm3021, %v2984, %v1909
      %v3051 = vsel %vm3021, %v2986, %v1911
      %v3053 = vsel %vm3021, %v2988, %v1913
      %v3055 = vsel %vm3021, %v2990, %v1915
      %v3057 = vsel %vm3021, %v2992, %v1917
      %v3059 = vsel %vm3021, %v2994, %v1919
      %v3061 = vsel %vm3021, %v2996, %v1921
      %v3063 = vsel %vm3021, %v2998, %v1923
      %v3065 = vsel %vm3021, %v3000, %v1925
      %v3067 = vsel %vm3021, %v3002, %v1927
      %v3069 = vsel %vm3021, %v3004, %v1929
      %v3071 = vsel %vm3021, %v3006, %v1931
      %v3073 = vsel %vm3021, %v3008, %v1933
      %v3075 = vsel %vm3021, %v3010, %v1935
      %v3077 = vsel %vm3021, %v3012, %v1937
      %v3079 = vsel %vm3021, %v3014, %v1939
      %v3081 = vsel %vm3021, %v3016, %v1941
      %v3083 = vsel %vm3021, %v3018, %v1943
      %v3085 = vsel %vm3021, %v3020, %v1945
      %vm3086 = vcmask 326656
      %v3088 = vsel %vm3086, %v3023, %v2043
      %v3090 = vsel %vm3086, %v3025, %v2045
      %v3092 = vsel %vm3086, %v3027, %v2047
      %v3094 = vsel %vm3086, %v3029, %v2049
      %v3096 = vsel %vm3086, %v3031, %v2051
      %v3098 = vsel %vm3086, %v3033, %v2053
      %v3100 = vsel %vm3086, %v3035, %v2055
      %v3102 = vsel %vm3086, %v3037, %v2057
      %v3104 = vsel %vm3086, %v3039, %v2059
      %v3106 = vsel %vm3086, %v3041, %v2061
      %v3108 = vsel %vm3086, %v3043, %v2063
      %v3110 = vsel %vm3086, %v3045, %v2065
      %v3112 = vsel %vm3086, %v3047, %v2067
      %v3114 = vsel %vm3086, %v3049, %v2069
      %v3116 = vsel %vm3086, %v3051, %v2071
      %v3118 = vsel %vm3086, %v3053, %v2073
      %v3120 = vsel %vm3086, %v3055, %v2075
      %v3122 = vsel %vm3086, %v3057, %v2077
      %v3124 = vsel %vm3086, %v3059, %v2079
      %v3126 = vsel %vm3086, %v3061, %v2081
      %v3128 = vsel %vm3086, %v3063, %v2083
      %v3130 = vsel %vm3086, %v3065, %v2085
      %v3132 = vsel %vm3086, %v3067, %v2087
      %v3134 = vsel %vm3086, %v3069, %v2089
      %v3136 = vsel %vm3086, %v3071, %v2091
      %v3138 = vsel %vm3086, %v3073, %v2093
      %v3140 = vsel %vm3086, %v3075, %v2095
      %v3142 = vsel %vm3086, %v3077, %v2097
      %v3144 = vsel %vm3086, %v3079, %v2099
      %v3146 = vsel %vm3086, %v3081, %v2101
      %v3148 = vsel %vm3086, %v3083, %v2103
      %v3150 = vsel %vm3086, %v3085, %v2105
      %vm3151 = vcmask 392192
      %v3153 = vsel %vm3151, %v3088, %v2235
      %v3155 = vsel %vm3151, %v3090, %v2237
      %v3157 = vsel %vm3151, %v3092, %v2239
      %v3159 = vsel %vm3151, %v3094, %v2241
      %v3161 = vsel %vm3151, %v3096, %v2243
      %v3163 = vsel %vm3151, %v3098, %v2245
      %v3165 = vsel %vm3151, %v3100, %v2247
      %v3167 = vsel %vm3151, %v3102, %v2249
      %v3169 = vsel %vm3151, %v3104, %v2251
      %v3171 = vsel %vm3151, %v3106, %v2253
      %v3173 = vsel %vm3151, %v3108, %v2255
      %v3175 = vsel %vm3151, %v3110, %v2257
      %v3177 = vsel %vm3151, %v3112, %v2259
      %v3179 = vsel %vm3151, %v3114, %v2261
      %v3181 = vsel %vm3151, %v3116, %v2263
      %v3183 = vsel %vm3151, %v3118, %v2265
      %v3185 = vsel %vm3151, %v3120, %v2267
      %v3187 = vsel %vm3151, %v3122, %v2269
      %v3189 = vsel %vm3151, %v3124, %v2271
      %v3191 = vsel %vm3151, %v3126, %v2273
      %v3193 = vsel %vm3151, %v3128, %v2275
      %v3195 = vsel %vm3151, %v3130, %v2277
      %v3197 = vsel %vm3151, %v3132, %v2279
      %v3199 = vsel %vm3151, %v3134, %v2281
      %v3201 = vsel %vm3151, %v3136, %v2283
      %v3203 = vsel %vm3151, %v3138, %v2285
      %v3205 = vsel %vm3151, %v3140, %v2287
      %v3207 = vsel %vm3151, %v3142, %v2289
      %v3209 = vsel %vm3151, %v3144, %v2291
      %v3211 = vsel %vm3151, %v3146, %v2293
      %v3213 = vsel %vm3151, %v3148, %v2295
      %v3215 = vsel %vm3151, %v3150, %v2297
      %vm3216 = vcmask 457728
      %v3218 = vsel %vm3216, %v3153, %v2587
      %v3220 = vsel %vm3216, %v3155, %v2589
      %v3222 = vsel %vm3216, %v3157, %v2591
      %v3224 = vsel %vm3216, %v3159, %v2593
      %v3226 = vsel %vm3216, %v3161, %v2595
      %v3228 = vsel %vm3216, %v3163, %v2597
      %v3230 = vsel %vm3216, %v3165, %v2599
      %v3232 = vsel %vm3216, %v3167, %v2601
      %v3234 = vsel %vm3216, %v3169, %v2603
      %v3236 = vsel %vm3216, %v3171, %v2605
      %v3238 = vsel %vm3216, %v3173, %v2607
      %v3240 = vsel %vm3216, %v3175, %v2609
      %v3242 = vsel %vm3216, %v3177, %v2611
      %v3244 = vsel %vm3216, %v3179, %v2613
      %v3246 = vsel %vm3216, %v3181, %v2615
      %v3248 = vsel %vm3216, %v3183, %v2617
      %v3250 = vsel %vm3216, %v3185, %v2619
      %v3252 = vsel %vm3216, %v3187, %v2621
      %v3254 = vsel %vm3216, %v3189, %v2623
      %v3256 = vsel %vm3216, %v3191, %v2625
      %v3258 = vsel %vm3216, %v3193, %v2627
      %v3260 = vsel %vm3216, %v3195, %v2629
      %v3262 = vsel %vm3216, %v3197, %v2631
      %v3264 = vsel %vm3216, %v3199, %v2633
      %v3266 = vsel %vm3216, %v3201, %v2635
      %v3268 = vsel %vm3216, %v3203, %v2637
      %v3270 = vsel %vm3216, %v3205, %v2639
      %v3272 = vsel %vm3216, %v3207, %v2641
      %v3274 = vsel %vm3216, %v3209, %v2643
      %v3276 = vsel %vm3216, %v3211, %v2645
      %v3278 = vsel %vm3216, %v3213, %v2647
      %v3280 = vsel %vm3216, %v3215, %v2649
      %vm3281 = vcmask 523264
      %v3283 = vsel %vm3281, %v3218, %v2747
      %v3285 = vsel %vm3281, %v3220, %v2749
      %v3287 = vsel %vm3281, %v3222, %v2751
      %v3289 = vsel %vm3281, %v3224, %v2753
      %v3291 = vsel %vm3281, %v3226, %v2755
      %v3293 = vsel %vm3281, %v3228, %v2757
      %v3295 = vsel %vm3281, %v3230, %v2759
      %v3297 = vsel %vm3281, %v3232, %v2761
      %v3299 = vsel %vm3281, %v3234, %v2763
      %v3301 = vsel %vm3281, %v3236, %v2765
      %v3303 = vsel %vm3281, %v3238, %v2767
      %v3305 = vsel %vm3281, %v3240, %v2769
      %v3307 = vsel %vm3281, %v3242, %v2771
      %v3309 = vsel %vm3281, %v3244, %v2773
      %v3311 = vsel %vm3281, %v3246, %v2775
      %v3313 = vsel %vm3281, %v3248, %v2777
      %v3315 = vsel %vm3281, %v3250, %v2779
      %v3317 = vsel %vm3281, %v3252, %v2781
      %v3319 = vsel %vm3281, %v3254, %v2783
      %v3321 = vsel %vm3281, %v3256, %v2785
      %v3323 = vsel %vm3281, %v3258, %v2787
      %v3325 = vsel %vm3281, %v3260, %v2789
      %v3327 = vsel %vm3281, %v3262, %v2791
      %v3329 = vsel %vm3281, %v3264, %v2793
      %v3331 = vsel %vm3281, %v3266, %v2795
      %v3333 = vsel %vm3281, %v3268, %v2797
      %v3335 = vsel %vm3281, %v3270, %v2799
      %v3337 = vsel %vm3281, %v3272, %v2801
      %v3339 = vsel %vm3281, %v3274, %v2803
      %v3341 = vsel %vm3281, %v3276, %v2805
      %v3343 = vsel %vm3281, %v3278, %v2807
      %v3345 = vsel %vm3281, %v3280, %v2809
      %v3346 = vld [vmem:[%s1] sm:$0xf]
      %v3347 = vld [vmem:[%s1 + $0x4] sm:$0xf]
      %v3348 = vld [vmem:[%s1 + $0x8] sm:$0xf]
      %v3349 = vld [vmem:[%s1 + $0xc] sm:$0xf]
      %v3350 = vld [vmem:[%s1 + $0x10] sm:$0xf]
      %v3351 = vld [vmem:[%s1 + $0x14] sm:$0xf]
      %v3352 = vld [vmem:[%s1 + $0x18] sm:$0xf]
      %v3353 = vld [vmem:[%s1 + $0x1c] sm:$0xf]
      %v3354 = vld [vmem:[%s1 + $0x20] sm:$0xf]
      %vm3355 = vsmask.f32 6400
      %v3356 = vshrl.u32 %v3283, 16
      %v3358 = vrot.slane %v3356, 1
      %v3359 = vshll.u32 %v3283, 16
      %v3361 = vrot.slane %v3359, 2
      %v3362 = vor.u32 %v3358, %v3361
      %v3363 = vshrl.u32 %v3285, 16
      %v3365 = vrot.slane %v3363, 1
      %v3366 = vshll.u32 %v3285, 16
      %v3368 = vrot.slane %v3366, 2
      %v3369 = vor.u32 %v3365, %v3368
      %v3370 = vsel %vm3355, %v3362, %v3369
      %v3371 = vshrl.u32 %v3287, 16
      %v3373 = vrot.slane %v3371, 1
      %v3374 = vshll.u32 %v3287, 16
      %v3376 = vrot.slane %v3374, 2
      %v3377 = vor.u32 %v3373, %v3376
      %v3378 = vshrl.u32 %v3289, 16
      %v3380 = vrot.slane %v3378, 1
      %v3381 = vshll.u32 %v3289, 16
      %v3383 = vrot.slane %v3381, 2
      %v3384 = vor.u32 %v3380, %v3383
      %v3385 = vsel %vm3355, %v3377, %v3384
      %v3386 = vshrl.u32 %v3291, 16
      %v3388 = vrot.slane %v3386, 1
      %v3389 = vshll.u32 %v3291, 16
      %v3391 = vrot.slane %v3389, 2
      %v3392 = vor.u32 %v3388, %v3391
      %v3393 = vshrl.u32 %v3293, 16
      %v3395 = vrot.slane %v3393, 1
      %v3396 = vshll.u32 %v3293, 16
      %v3398 = vrot.slane %v3396, 2
      %v3399 = vor.u32 %v3395, %v3398
      %v3400 = vsel %vm3355, %v3392, %v3399
      %v3401 = vshrl.u32 %v3295, 16
      %v3403 = vrot.slane %v3401, 1
      %v3404 = vshll.u32 %v3295, 16
      %v3406 = vrot.slane %v3404, 2
      %v3407 = vor.u32 %v3403, %v3406
      %v3408 = vshrl.u32 %v3297, 16
      %v3410 = vrot.slane %v3408, 1
      %v3411 = vshll.u32 %v3297, 16
      %v3413 = vrot.slane %v3411, 2
      %v3414 = vor.u32 %v3410, %v3413
      %v3415 = vsel %vm3355, %v3407, %v3414
      %v3416 = vshrl.u32 %v3299, 16
      %v3418 = vrot.slane %v3416, 1
      %v3419 = vshll.u32 %v3299, 16
      %v3421 = vrot.slane %v3419, 2
      %v3422 = vor.u32 %v3418, %v3421
      %v3423 = vshrl.u32 %v3301, 16
      %v3425 = vrot.slane %v3423, 1
      %v3426 = vshll.u32 %v3301, 16
      %v3428 = vrot.slane %v3426, 2
      %v3429 = vor.u32 %v3425, %v3428
      %v3430 = vsel %vm3355, %v3422, %v3429
      %v3431 = vshrl.u32 %v3303, 16
      %v3433 = vrot.slane %v3431, 1
      %v3434 = vshll.u32 %v3303, 16
      %v3436 = vrot.slane %v3434, 2
      %v3437 = vor.u32 %v3433, %v3436
      %v3438 = vshrl.u32 %v3305, 16
      %v3440 = vrot.slane %v3438, 1
      %v3441 = vshll.u32 %v3305, 16
      %v3443 = vrot.slane %v3441, 2
      %v3444 = vor.u32 %v3440, %v3443
      %v3445 = vsel %vm3355, %v3437, %v3444
      %v3446 = vshrl.u32 %v3307, 16
      %v3448 = vrot.slane %v3446, 1
      %v3449 = vshll.u32 %v3307, 16
      %v3451 = vrot.slane %v3449, 2
      %v3452 = vor.u32 %v3448, %v3451
      %v3453 = vshrl.u32 %v3309, 16
      %v3455 = vrot.slane %v3453, 1
      %v3456 = vshll.u32 %v3309, 16
      %v3458 = vrot.slane %v3456, 2
      %v3459 = vor.u32 %v3455, %v3458
      %v3460 = vsel %vm3355, %v3452, %v3459
      %v3461 = vshrl.u32 %v3311, 16
      %v3463 = vrot.slane %v3461, 1
      %v3464 = vshll.u32 %v3311, 16
      %v3466 = vrot.slane %v3464, 2
      %v3467 = vor.u32 %v3463, %v3466
      %v3468 = vshrl.u32 %v3313, 16
      %v3470 = vrot.slane %v3468, 1
      %v3471 = vshll.u32 %v3313, 16
      %v3473 = vrot.slane %v3471, 2
      %v3474 = vor.u32 %v3470, %v3473
      %v3475 = vsel %vm3355, %v3467, %v3474
      %v3476 = vshrl.u32 %v3315, 16
      %v3478 = vrot.slane %v3476, 1
      %v3479 = vshll.u32 %v3315, 16
      %v3481 = vrot.slane %v3479, 2
      %v3482 = vor.u32 %v3478, %v3481
      %v3483 = vshrl.u32 %v3317, 16
      %v3485 = vrot.slane %v3483, 1
      %v3486 = vshll.u32 %v3317, 16
      %v3488 = vrot.slane %v3486, 2
      %v3489 = vor.u32 %v3485, %v3488
      %v3490 = vsel %vm3355, %v3482, %v3489
      %v3491 = vshrl.u32 %v3319, 16
      %v3493 = vrot.slane %v3491, 1
      %v3494 = vshll.u32 %v3319, 16
      %v3496 = vrot.slane %v3494, 2
      %v3497 = vor.u32 %v3493, %v3496
      %v3498 = vshrl.u32 %v3321, 16
      %v3500 = vrot.slane %v3498, 1
      %v3501 = vshll.u32 %v3321, 16
      %v3503 = vrot.slane %v3501, 2
      %v3504 = vor.u32 %v3500, %v3503
      %v3505 = vsel %vm3355, %v3497, %v3504
      %v3506 = vshrl.u32 %v3323, 16
      %v3508 = vrot.slane %v3506, 1
      %v3509 = vshll.u32 %v3323, 16
      %v3511 = vrot.slane %v3509, 2
      %v3512 = vor.u32 %v3508, %v3511
      %v3513 = vshrl.u32 %v3325, 16
      %v3515 = vrot.slane %v3513, 1
      %v3516 = vshll.u32 %v3325, 16
      %v3518 = vrot.slane %v3516, 2
      %v3519 = vor.u32 %v3515, %v3518
      %v3520 = vsel %vm3355, %v3512, %v3519
      %v3521 = vshrl.u32 %v3327, 16
      %v3523 = vrot.slane %v3521, 1
      %v3524 = vshll.u32 %v3327, 16
      %v3526 = vrot.slane %v3524, 2
      %v3527 = vor.u32 %v3523, %v3526
      %v3528 = vshrl.u32 %v3329, 16
      %v3530 = vrot.slane %v3528, 1
      %v3531 = vshll.u32 %v3329, 16
      %v3533 = vrot.slane %v3531, 2
      %v3534 = vor.u32 %v3530, %v3533
      %v3535 = vsel %vm3355, %v3527, %v3534
      %v3536 = vshrl.u32 %v3331, 16
      %v3538 = vrot.slane %v3536, 1
      %v3539 = vshll.u32 %v3331, 16
      %v3541 = vrot.slane %v3539, 2
      %v3542 = vor.u32 %v3538, %v3541
      %v3543 = vshrl.u32 %v3333, 16
      %v3545 = vrot.slane %v3543, 1
      %v3546 = vshll.u32 %v3333, 16
      %v3548 = vrot.slane %v3546, 2
      %v3549 = vor.u32 %v3545, %v3548
      %v3550 = vsel %vm3355, %v3542, %v3549
      %v3551 = vshrl.u32 %v3335, 16
      %v3553 = vrot.slane %v3551, 1
      %v3554 = vshll.u32 %v3335, 16
      %v3556 = vrot.slane %v3554, 2
      %v3557 = vor.u32 %v3553, %v3556
      %v3558 = vshrl.u32 %v3337, 16
      %v3560 = vrot.slane %v3558, 1
      %v3561 = vshll.u32 %v3337, 16
      %v3563 = vrot.slane %v3561, 2
      %v3564 = vor.u32 %v3560, %v3563
      %v3565 = vsel %vm3355, %v3557, %v3564
      %v3566 = vshrl.u32 %v3339, 16
      %v3568 = vrot.slane %v3566, 1
      %v3569 = vshll.u32 %v3339, 16
      %v3571 = vrot.slane %v3569, 2
      %v3572 = vor.u32 %v3568, %v3571
      %v3573 = vshrl.u32 %v3341, 16
      %v3575 = vrot.slane %v3573, 1
      %v3576 = vshll.u32 %v3341, 16
      %v3578 = vrot.slane %v3576, 2
      %v3579 = vor.u32 %v3575, %v3578
      %v3580 = vsel %vm3355, %v3572, %v3579
      %v3581 = vshrl.u32 %v3343, 16
      %v3583 = vrot.slane %v3581, 1
      %v3584 = vshll.u32 %v3343, 16
      %v3586 = vrot.slane %v3584, 2
      %v3587 = vor.u32 %v3583, %v3586
      %v3588 = vshrl.u32 %v3345, 16
      %v3590 = vrot.slane %v3588, 1
      %v3591 = vshll.u32 %v3345, 16
      %v3593 = vrot.slane %v3591, 2
      %v3594 = vor.u32 %v3590, %v3593
      %v3595 = vsel %vm3355, %v3587, %v3594
      %v3605 = vunpack.c.l.b16 %v3346
      %v3606 = vunpack.c.l.b16 %v3347
      %v3607 = vunpack.c.l.b16 %v3348
      %v3608 = vunpack.c.l.b16 %v3349
      %v3609 = vunpack.c.l.b16 %v3350
      %v3610 = vunpack.c.l.b16 %v3351
      %v3611 = vunpack.c.l.b16 %v3352
      %v3612 = vunpack.c.l.b16 %v3353
      %v3613 = vunpack.c.l.b16 %v3354
      %v3614 = vpack.c.b16 %v3606, %v3605
      %v3615 = vpack.c.b16 %v3608, %v3607
      %v3616 = vpack.c.b16 %v3610, %v3609
      %v3617 = vpack.c.b16 %v3612, %v3611
      %v3618 = vpack.c.b16 %v3613, %v3613
      %vm3623 = vcmask 588800
      %v3625 = vsel %vm3623, %v3370, 0
      %v3628 = vsel %vm3623, %v3385, 0
      %v3631 = vsel %vm3623, %v3400, 0
      %v3634 = vsel %vm3623, %v3415, 0
      %v3637 = vsel %vm3623, %v3430, 0
      %v3640 = vsel %vm3623, %v3445, 0
      %v3643 = vsel %vm3623, %v3460, 0
      %v3646 = vsel %vm3623, %v3475, 0
      %v3649 = vsel %vm3623, %v3490, 0
      %v3652 = vsel %vm3623, %v3505, 0
      %v3655 = vsel %vm3623, %v3520, 0
      %v3658 = vsel %vm3623, %v3535, 0
      %v3661 = vsel %vm3623, %v3550, 0
      %v3664 = vsel %vm3623, %v3565, 0
      %v3667 = vsel %vm3623, %v3580, 0
      %v3670 = vsel %vm3623, %v3595, 0
      %vm3672 = vcmask 1043456
      %v3674 = vsel %vm3672, %v3618, 0
      %3676 = vmatprep.subr.bf16.mxu0 0
      %3677 = vmatpush1.bf16.msra.mxu0 %v3614
      %3678 = vmatprep.subr.bf16.mxu0 0
      %3679 = vmatpush1.bf16.msra.mxu0 %v3615
      %3680 = vmatprep.subr.bf16.mxu0 0
      %3681 = vmatpush1.bf16.msra.mxu0 %v3616
      %3682 = vmatprep.subr.bf16.mxu0 0
      %3683 = vmatpush1.bf16.msra.mxu0 %v3617
      %3684 = vmatprep.subr.bf16.mxu0 0
      %3685 = vmatpush1.bf16.msra.mxu0 %v3674
      %3686 = vmatprep.subr.bf16.mxu0 0
      %3687 = vmatpush1.bf16.msra.mxu0 0
      %3688 = vmatprep.subr.bf16.mxu0 0
      %3689 = vmatpush1.bf16.msra.mxu0 0
      %3690 = vmatprep.subr.bf16.mxu0 0
      %3691 = vmatpush1.bf16.msra.mxu0 0
      %3692 = vmatprep.subr.bf16.mxu0 0
      %3693 = vmatpush1.bf16.msra.mxu0 0
      %3694 = vmatprep.subr.bf16.mxu0 0
      %3695 = vmatpush1.bf16.msra.mxu0 0
      %3696 = vmatprep.subr.bf16.mxu0 0
      %3697 = vmatpush1.bf16.msra.mxu0 0
      %3698 = vmatprep.subr.bf16.mxu0 0
      %3699 = vmatpush1.bf16.msra.mxu0 0
      %3700 = vmatprep.subr.bf16.mxu0 0
      %3701 = vmatpush1.bf16.msra.mxu0 0
      %3702 = vmatprep.subr.bf16.mxu0 0
      %3703 = vmatpush1.bf16.msra.mxu0 0
      %3704 = vmatprep.subr.bf16.mxu0 0
      %3705 = vmatpush1.bf16.msra.mxu0 0
      %3706 = vmatprep.subr.bf16.mxu0 0
      %3707 = vmatpush1.bf16.msra.mxu0 0
      %3708 = vmatprep.mubr.bf16.mxu0 0
      %3709 = vmatmul.mubr.bf16.gmra.mrb[0].mxu0 %v3625
      %v3710 = vpop.f32.mrb[0].mxu0
      %v3711 = vadd.f32 0.0, %v3710
      %v3712 = vpop.f32.mrb[0].mxu0
      %v3713 = vpop.f32.mrb[0].mxu0
      %v3714 = vadd.f32 0.0, %v3713
      %v3715 = vpop.f32.mrb[0].mxu0
      %3716 = vmatprep.mubr.bf16.mxu0 0
      %3717 = vmatmul.mubr.bf16.gmra.mrb[0].mxu0 %v3628
      %v3718 = vpop.f32.mrb[0].mxu0
      %v3719 = vadd.f32 0.0, %v3718
      %v3720 = vpop.f32.mrb[0].mxu0
      %v3721 = vpop.f32.mrb[0].mxu0
      %v3722 = vadd.f32 0.0, %v3721
      %v3723 = vpop.f32.mrb[0].mxu0
      %3724 = vmatprep.mubr.bf16.mxu0 0
      %3725 = vmatmul.mubr.bf16.gmra.mrb[0].mxu0 %v3631
      %v3726 = vpop.f32.mrb[0].mxu0
      %v3727 = vadd.f32 0.0, %v3726
      %v3728 = vpop.f32.mrb[0].mxu0
      %v3729 = vpop.f32.mrb[0].mxu0
      %v3730 = vadd.f32 0.0, %v3729
      %v3731 = vpop.f32.mrb[0].mxu0
      %3732 = vmatprep.mubr.bf16.mxu0 0
      %3733 = vmatmul.mubr.bf16.gmra.mrb[0].mxu0 %v3634
      %v3734 = vpop.f32.mrb[0].mxu0
      %v3735 = vadd.f32 0.0, %v3734
      %v3736 = vpop.f32.mrb[0].mxu0
      %v3737 = vpop.f32.mrb[0].mxu0
      %v3738 = vadd.f32 0.0, %v3737
      %v3739 = vpop.f32.mrb[0].mxu0
      %3740 = vmatprep.mubr.bf16.mxu0 0
      %3741 = vmatmul.mubr.bf16.gmra.mrb[0].mxu0 %v3637
      %v3742 = vpop.f32.mrb[0].mxu0
      %v3743 = vadd.f32 0.0, %v3742
      %v3744 = vpop.f32.mrb[0].mxu0
      %v3745 = vpop.f32.mrb[0].mxu0
      %v3746 = vadd.f32 0.0, %v3745
      %v3747 = vpop.f32.mrb[0].mxu0
      %3748 = vmatprep.mubr.bf16.mxu0 0
      %3749 = vmatmul.mubr.bf16.gmra.mrb[0].mxu0 %v3640
      %v3750 = vpop.f32.mrb[0].mxu0
      %v3751 = vadd.f32 0.0, %v3750
      %v3752 = vpop.f32.mrb[0].mxu0
      %v3753 = vpop.f32.mrb[0].mxu0
      %v3754 = vadd.f32 0.0, %v3753
      %v3755 = vpop.f32.mrb[0].mxu0
      %3756 = vmatprep.mubr.bf16.mxu0 0
      %3757 = vmatmul.mubr.bf16.gmra.mrb[0].mxu0 %v3643
      %v3758 = vpop.f32.mrb[0].mxu0
      %v3759 = vadd.f32 0.0, %v3758
      %v3760 = vpop.f32.mrb[0].mxu0
      %v3761 = vpop.f32.mrb[0].mxu0
      %v3762 = vadd.f32 0.0, %v3761
      %v3763 = vpop.f32.mrb[0].mxu0
      %3764 = vmatprep.mubr.bf16.mxu0 0
      %3765 = vmatmul.mubr.bf16.gmra.mrb[0].mxu0 %v3646
      %v3766 = vpop.f32.mrb[0].mxu0
      %v3767 = vadd.f32 0.0, %v3766
      %v3768 = vpop.f32.mrb[0].mxu0
      %v3769 = vpop.f32.mrb[0].mxu0
      %v3770 = vadd.f32 0.0, %v3769
      %v3771 = vpop.f32.mrb[0].mxu0
      %3772 = vmatprep.mubr.bf16.mxu0 0
      %3773 = vmatmul.mubr.bf16.gmra.mrb[0].mxu0 %v3649
      %v3774 = vpop.f32.mrb[0].mxu0
      %v3775 = vadd.f32 0.0, %v3774
      %v3776 = vpop.f32.mrb[0].mxu0
      %v3777 = vpop.f32.mrb[0].mxu0
      %v3778 = vadd.f32 0.0, %v3777
      %v3779 = vpop.f32.mrb[0].mxu0
      %3780 = vmatprep.mubr.bf16.mxu0 0
      %3781 = vmatmul.mubr.bf16.gmra.mrb[0].mxu0 %v3652
      %v3782 = vpop.f32.mrb[0].mxu0
      %v3783 = vadd.f32 0.0, %v3782
      %v3784 = vpop.f32.mrb[0].mxu0
      %v3785 = vpop.f32.mrb[0].mxu0
      %v3786 = vadd.f32 0.0, %v3785
      %v3787 = vpop.f32.mrb[0].mxu0
      %3788 = vmatprep.mubr.bf16.mxu0 0
      %3789 = vmatmul.mubr.bf16.gmra.mrb[0].mxu0 %v3655
      %v3790 = vpop.f32.mrb[0].mxu0
      %v3791 = vadd.f32 0.0, %v3790
      %v3792 = vpop.f32.mrb[0].mxu0
      %v3793 = vpop.f32.mrb[0].mxu0
      %v3794 = vadd.f32 0.0, %v3793
      %v3795 = vpop.f32.mrb[0].mxu0
      %3796 = vmatprep.mubr.bf16.mxu0 0
      %3797 = vmatmul.mubr.bf16.gmra.mrb[0].mxu0 %v3658
      %v3798 = vpop.f32.mrb[0].mxu0
      %v3799 = vadd.f32 0.0, %v3798
      %v3800 = vpop.f32.mrb[0].mxu0
      %v3801 = vpop.f32.mrb[0].mxu0
      %v3802 = vadd.f32 0.0, %v3801
      %v3803 = vpop.f32.mrb[0].mxu0
      %3804 = vmatprep.mubr.bf16.mxu0 0
      %3805 = vmatmul.mubr.bf16.gmra.mrb[0].mxu0 %v3661
      %v3806 = vpop.f32.mrb[0].mxu0
      %v3807 = vadd.f32 0.0, %v3806
      %v3808 = vpop.f32.mrb[0].mxu0
      %v3809 = vpop.f32.mrb[0].mxu0
      %v3810 = vadd.f32 0.0, %v3809
      %v3811 = vpop.f32.mrb[0].mxu0
      %3812 = vmatprep.mubr.bf16.mxu0 0
      %3813 = vmatmul.mubr.bf16.gmra.mrb[0].mxu0 %v3664
      %v3814 = vpop.f32.mrb[0].mxu0
      %v3815 = vadd.f32 0.0, %v3814
      %v3816 = vpop.f32.mrb[0].mxu0
      %v3817 = vpop.f32.mrb[0].mxu0
      %v3818 = vadd.f32 0.0, %v3817
      %v3819 = vpop.f32.mrb[0].mxu0
      %3820 = vmatprep.mubr.bf16.mxu0 0
      %3821 = vmatmul.mubr.bf16.gmra.mrb[0].mxu0 %v3667
      %v3822 = vpop.f32.mrb[0].mxu0
      %v3823 = vadd.f32 0.0, %v3822
      %v3824 = vpop.f32.mrb[0].mxu0
      %v3825 = vpop.f32.mrb[0].mxu0
      %v3826 = vadd.f32 0.0, %v3825
      %v3827 = vpop.f32.mrb[0].mxu0
      %3828 = vmatprep.mubr.bf16.mxu0 0
      %3829 = vmatmul.mubr.bf16.gmra.mrb[0].mxu0 %v3670
      %v3830 = vpop.f32.mrb[0].mxu0
      %v3831 = vadd.f32 0.0, %v3830
      %v3832 = vpop.f32.mrb[0].mxu0
      %v3833 = vpop.f32.mrb[0].mxu0
      %v3834 = vadd.f32 0.0, %v3833
      %v3835 = vpop.f32.mrb[0].mxu0
      %3836 = vdwg.mxu0
      %v3837 = vpack.c.bf16 %v3714, %v3711
      %v3838 = vpack.c.bf16 %v3722, %v3719
      %v3839 = vpack.c.bf16 %v3730, %v3727
      %v3840 = vpack.c.bf16 %v3738, %v3735
      %v3841 = vpack.c.bf16 %v3746, %v3743
      %v3842 = vpack.c.bf16 %v3754, %v3751
      %v3843 = vpack.c.bf16 %v3762, %v3759
      %v3844 = vpack.c.bf16 %v3770, %v3767
      %v3845 = vpack.c.bf16 %v3778, %v3775
      %v3846 = vpack.c.bf16 %v3786, %v3783
      %v3847 = vpack.c.bf16 %v3794, %v3791
      %v3848 = vpack.c.bf16 %v3802, %v3799
      %v3849 = vpack.c.bf16 %v3810, %v3807
      %v3850 = vpack.c.bf16 %v3818, %v3815
      %v3851 = vpack.c.bf16 %v3826, %v3823
      %v3852 = vpack.c.bf16 %v3834, %v3831
      %v3853 = vld [vmem:[%s2] sm:$0x1]
      %s3854 = scalar_lea.vmem [#allocation2], 24
      %v3855 = vld [vmem:[%s3854] sm:$0xe]
      %v3856 = vld [vmem:[%s3854 + $0x4] sm:$0xf]
      %v3857 = vld [vmem:[%s3854 + $0x8] sm:$0x1]
      %v3858 = vld [vmem:[%s3854 + $0xc] sm:$0xe]
      %v3859 = vld [vmem:[%s3854 + $0x10] sm:$0xf]
      %v3860 = vld [vmem:[%s3854 + $0x14] sm:$0x1]
      %v3861 = vld [vmem:[%s3854 + $0x18] sm:$0xe]
      %v3862 = vld [vmem:[%s3854 + $0x1c] sm:$0xf]
      %v3863 = vld [vmem:[%s3854 + $0x20] sm:$0x1]
      %v3864 = vld [vmem:[%s3854 + $0x24] sm:$0xe]
      %v3865 = vld [vmem:[%s3854 + $0x28] sm:$0xf]
      %v3866 = vld [vmem:[%s3854 + $0x2c] sm:$0x1]
      %v3867 = vld [vmem:[%s3854 + $0x30] sm:$0xe]
      %v3868 = vld [vmem:[%s3854 + $0x34] sm:$0xf]
      %v3869 = vld [vmem:[%s3854 + $0x38] sm:$0x1]
      %v3870 = vld [vmem:[%s3854 + $0x3c] sm:$0xe]
      %v3871 = vld [vmem:[%s3854 + $0x40] sm:$0xf]
      %v3872 = vld [vmem:[%s3854 + $0x44] sm:$0x1]
      %v3873 = vld [vmem:[%s3854 + $0x48] sm:$0xe]
      %v3874 = vld [vmem:[%s3854 + $0x4c] sm:$0xf]
      %v3875 = vld [vmem:[%s3854 + $0x50] sm:$0x1]
      %v3876 = vld [vmem:[%s3854 + $0x54] sm:$0xe]
      %v3877 = vld [vmem:[%s3854 + $0x58] sm:$0xf]
      %v3878 = vld [vmem:[%s3854 + $0x5c] sm:$0x1]
      %v3879 = vld [vmem:[%s3854 + $0x60] sm:$0xe]
      %v3880 = vld [vmem:[%s3854 + $0x64] sm:$0xf]
      %v3881 = vld [vmem:[%s3854 + $0x68] sm:$0x1]
      %v3882 = vld [vmem:[%s3854 + $0x6c] sm:$0xe]
      %v3883 = vld [vmem:[%s3854 + $0x70] sm:$0xf]
      %v3884 = vld [vmem:[%s3854 + $0x74] sm:$0x1]
      %v3885 = vld [vmem:[%s3854 + $0x78] sm:$0xe]
      %v3886 = vld [vmem:[%s3854 + $0x7c] sm:$0xf]
      %v3887 = vld [vmem:[%s3854 + $0x80] sm:$0x1]
      %v3888 = vld [vmem:[%s3854 + $0x84] sm:$0xe]
      %v3889 = vld [vmem:[%s3854 + $0x88] sm:$0xf]
      %v3890 = vld [vmem:[%s3854 + $0x8c] sm:$0x1]
      %v3891 = vld [vmem:[%s3854 + $0x90] sm:$0xe]
      %v3892 = vld [vmem:[%s3854 + $0x94] sm:$0xf]
      %v3893 = vld [vmem:[%s3854 + $0x98] sm:$0x1]
      %v3894 = vld [vmem:[%s3854 + $0x9c] sm:$0xe]
      %v3895 = vld [vmem:[%s3854 + $0xa0] sm:$0xf]
      %v3896 = vld [vmem:[%s3854 + $0xa4] sm:$0x1]
      %v3897 = vld [vmem:[%s3854 + $0xa8] sm:$0xe]
      %v3898 = vld [vmem:[%s3854 + $0xac] sm:$0xf]
      %v3899 = vld [vmem:[%s3854 + $0xb0] sm:$0x1]
      %v3900 = vld [vmem:[%s3854 + $0xb4] sm:$0xe]
      %v3901 = vld [vmem:[%s3854 + $0xb8] sm:$0xf]
      %v3902 = vld [vmem:[%s3854 + $0xbc] sm:$0x1]
      %v3903 = vld [vmem:[%s3854] sm:$0xc]
      %v3904 = vld [vmem:[%s3854 + $0x8] sm:$0x3]
      %v3905 = vld [vmem:[%s3854 + $0xc] sm:$0xc]
      %v3906 = vld [vmem:[%s3854 + $0x14] sm:$0x3]
      %v3907 = vld [vmem:[%s3854 + $0x18] sm:$0xc]
      %v3908 = vld [vmem:[%s3854 + $0x20] sm:$0x3]
      %v3909 = vld [vmem:[%s3854 + $0x24] sm:$0xc]
      %v3910 = vld [vmem:[%s3854 + $0x2c] sm:$0x3]
      %v3911 = vld [vmem:[%s3854 + $0x30] sm:$0xc]
      %v3912 = vld [vmem:[%s3854 + $0x38] sm:$0x3]
      %v3913 = vld [vmem:[%s3854 + $0x3c] sm:$0xc]
      %v3914 = vld [vmem:[%s3854 + $0x44] sm:$0x3]
      %v3915 = vld [vmem:[%s3854 + $0x48] sm:$0xc]
      %v3916 = vld [vmem:[%s3854 + $0x50] sm:$0x3]
      %v3917 = vld [vmem:[%s3854 + $0x54] sm:$0xc]
      %v3918 = vld [vmem:[%s3854 + $0x5c] sm:$0x3]
      %v3919 = vld [vmem:[%s3854 + $0x60] sm:$0xc]
      %v3920 = vld [vmem:[%s3854 + $0x68] sm:$0x3]
      %v3921 = vld [vmem:[%s3854 + $0x6c] sm:$0xc]
      %v3922 = vld [vmem:[%s3854 + $0x74] sm:$0x3]
      %v3923 = vld [vmem:[%s3854 + $0x78] sm:$0xc]
      %v3924 = vld [vmem:[%s3854 + $0x80] sm:$0x3]
      %v3925 = vld [vmem:[%s3854 + $0x84] sm:$0xc]
      %v3926 = vld [vmem:[%s3854 + $0x8c] sm:$0x3]
      %v3927 = vld [vmem:[%s3854 + $0x90] sm:$0xc]
      %v3928 = vld [vmem:[%s3854 + $0x98] sm:$0x3]
      %v3929 = vld [vmem:[%s3854 + $0x9c] sm:$0xc]
      %v3930 = vld [vmem:[%s3854 + $0xa4] sm:$0x3]
      %v3931 = vld [vmem:[%s3854 + $0xa8] sm:$0xc]
      %v3932 = vld [vmem:[%s3854 + $0xb0] sm:$0x3]
      %v3933 = vld [vmem:[%s3854 + $0xb4] sm:$0xc]
      %v3934 = vld [vmem:[%s3854 + $0xbc] sm:$0x3]
      %v3935 = vld [vmem:[%s3854] sm:$0x8]
      %v3936 = vld [vmem:[%s3854 + $0x8] sm:$0x7]
      %v3937 = vld [vmem:[%s3854 + $0xc] sm:$0x8]
      %v3938 = vld [vmem:[%s3854 + $0x14] sm:$0x7]
      %v3939 = vld [vmem:[%s3854 + $0x18] sm:$0x8]
      %v3940 = vld [vmem:[%s3854 + $0x20] sm:$0x7]
      %v3941 = vld [vmem:[%s3854 + $0x24] sm:$0x8]
      %v3942 = vld [vmem:[%s3854 + $0x2c] sm:$0x7]
      %v3943 = vld [vmem:[%s3854 + $0x30] sm:$0x8]
      %v3944 = vld [vmem:[%s3854 + $0x38] sm:$0x7]
      %v3945 = vld [vmem:[%s3854 + $0x3c] sm:$0x8]
      %v3946 = vld [vmem:[%s3854 + $0x44] sm:$0x7]
      %v3947 = vld [vmem:[%s3854 + $0x48] sm:$0x8]
      %v3948 = vld [vmem:[%s3854 + $0x50] sm:$0x7]
      %v3949 = vld [vmem:[%s3854 + $0x54] sm:$0x8]
      %v3950 = vld [vmem:[%s3854 + $0x5c] sm:$0x7]
      %v3951 = vld [vmem:[%s3854 + $0x60] sm:$0x8]
      %v3952 = vld [vmem:[%s3854 + $0x68] sm:$0x7]
      %v3953 = vld [vmem:[%s3854 + $0x6c] sm:$0x8]
      %v3954 = vld [vmem:[%s3854 + $0x74] sm:$0x7]
      %v3955 = vld [vmem:[%s3854 + $0x78] sm:$0x8]
      %v3956 = vld [vmem:[%s3854 + $0x80] sm:$0x7]
      %v3957 = vld [vmem:[%s3854 + $0x84] sm:$0x8]
      %v3958 = vld [vmem:[%s3854 + $0x8c] sm:$0x7]
      %v3959 = vld [vmem:[%s3854 + $0x90] sm:$0x8]
      %v3960 = vld [vmem:[%s3854 + $0x98] sm:$0x7]
      %v3961 = vld [vmem:[%s3854 + $0x9c] sm:$0x8]
      %v3962 = vld [vmem:[%s3854 + $0xa4] sm:$0x7]
      %v3963 = vld [vmem:[%s3854 + $0xa8] sm:$0x8]
      %v3964 = vld [vmem:[%s3854 + $0xb0] sm:$0x7]
      %v3965 = vld [vmem:[%s3854 + $0xb4] sm:$0x8]
      %v3966 = vld [vmem:[%s3854 + $0xbc] sm:$0x7]
      %v3967 = vld [vmem:[%s467] sm:$0xe]
      %v3968 = vld [vmem:[%s467 + $0x4] sm:$0xf]
      %v3969 = vld [vmem:[%s467 + $0x8] sm:$0x1]
      %v3970 = vld [vmem:[%s467 + $0xc] sm:$0xe]
      %v3971 = vld [vmem:[%s467 + $0x10] sm:$0xf]
      %v3972 = vld [vmem:[%s467 + $0x14] sm:$0x1]
      %v3973 = vld [vmem:[%s467 + $0x18] sm:$0xe]
      %v3974 = vld [vmem:[%s467 + $0x1c] sm:$0xf]
      %v3975 = vld [vmem:[%s467 + $0x20] sm:$0x1]
      %v3976 = vld [vmem:[%s467 + $0x24] sm:$0xe]
      %v3977 = vld [vmem:[%s467 + $0x28] sm:$0xf]
      %v3978 = vld [vmem:[%s467 + $0x2c] sm:$0x1]
      %v3979 = vld [vmem:[%s467 + $0x30] sm:$0xe]
      %v3980 = vld [vmem:[%s467 + $0x34] sm:$0xf]
      %v3981 = vld [vmem:[%s467 + $0x38] sm:$0x1]
      %v3982 = vld [vmem:[%s467 + $0x3c] sm:$0xe]
      %v3983 = vld [vmem:[%s467 + $0x40] sm:$0xf]
      %v3984 = vld [vmem:[%s467 + $0x44] sm:$0x1]
      %v3985 = vld [vmem:[%s467 + $0x48] sm:$0xe]
      %v3986 = vld [vmem:[%s467 + $0x4c] sm:$0xf]
      %v3987 = vld [vmem:[%s467 + $0x50] sm:$0x1]
      %v3988 = vld [vmem:[%s467 + $0x54] sm:$0xe]
      %v3989 = vld [vmem:[%s467 + $0x58] sm:$0xf]
      %v3990 = vld [vmem:[%s467 + $0x5c] sm:$0x1]
      %v3991 = vld [vmem:[%s467 + $0x60] sm:$0xe]
      %v3992 = vld [vmem:[%s467 + $0x64] sm:$0xf]
      %v3993 = vld [vmem:[%s467 + $0x68] sm:$0x1]
      %v3994 = vld [vmem:[%s467 + $0x6c] sm:$0xe]
      %v3995 = vld [vmem:[%s467 + $0x70] sm:$0xf]
      %v3996 = vld [vmem:[%s467 + $0x74] sm:$0x1]
      %v3997 = vld [vmem:[%s467 + $0x78] sm:$0xe]
      %v3998 = vld [vmem:[%s467 + $0x7c] sm:$0xf]
      %v3999 = vld [vmem:[%s467 + $0x80] sm:$0x1]
      %v4000 = vld [vmem:[%s467 + $0x84] sm:$0xe]
      %v4001 = vld [vmem:[%s467 + $0x88] sm:$0xf]
      %v4002 = vld [vmem:[%s467 + $0x8c] sm:$0x1]
      %v4003 = vld [vmem:[%s467 + $0x90] sm:$0xe]
      %v4004 = vld [vmem:[%s467 + $0x94] sm:$0xf]
      %v4005 = vld [vmem:[%s467 + $0x98] sm:$0x1]
      %v4006 = vld [vmem:[%s467 + $0x9c] sm:$0xe]
      %v4007 = vld [vmem:[%s467 + $0xa0] sm:$0xf]
      %v4008 = vld [vmem:[%s467 + $0xa4] sm:$0x1]
      %v4009 = vld [vmem:[%s467 + $0xa8] sm:$0xe]
      %v4010 = vld [vmem:[%s467 + $0xac] sm:$0xf]
      %v4011 = vld [vmem:[%s467 + $0xb0] sm:$0x1]
      %v4012 = vld [vmem:[%s467 + $0xb4] sm:$0xe]
      %v4013 = vld [vmem:[%s467 + $0xb8] sm:$0xf]
      %v4014 = vld [vmem:[%s467 + $0xbc] sm:$0x1]
      %v4015 = vld [vmem:[%s467] sm:$0xc]
      %v4016 = vld [vmem:[%s467 + $0x8] sm:$0x3]
      %v4017 = vld [vmem:[%s467 + $0xc] sm:$0xc]
      %v4018 = vld [vmem:[%s467 + $0x14] sm:$0x3]
      %v4019 = vld [vmem:[%s467 + $0x18] sm:$0xc]
      %v4020 = vld [vmem:[%s467 + $0x20] sm:$0x3]
      %v4021 = vld [vmem:[%s467 + $0x24] sm:$0xc]
      %v4022 = vld [vmem:[%s467 + $0x2c] sm:$0x3]
      %v4023 = vld [vmem:[%s467 + $0x30] sm:$0xc]
      %v4024 = vld [vmem:[%s467 + $0x38] sm:$0x3]
      %v4025 = vld [vmem:[%s467 + $0x3c] sm:$0xc]
      %v4026 = vld [vmem:[%s467 + $0x44] sm:$0x3]
      %v4027 = vld [vmem:[%s467 + $0x48] sm:$0xc]
      %v4028 = vld [vmem:[%s467 + $0x50] sm:$0x3]
      %v4029 = vld [vmem:[%s467 + $0x54] sm:$0xc]
      %v4030 = vld [vmem:[%s467 + $0x5c] sm:$0x3]
      %v4031 = vld [vmem:[%s467 + $0x60] sm:$0xc]
      %v4032 = vld [vmem:[%s467 + $0x68] sm:$0x3]
      %v4033 = vld [vmem:[%s467 + $0x6c] sm:$0xc]
      %v4034 = vld [vmem:[%s467 + $0x74] sm:$0x3]
      %v4035 = vld [vmem:[%s467 + $0x78] sm:$0xc]
      %v4036 = vld [vmem:[%s467 + $0x80] sm:$0x3]
      %v4037 = vld [vmem:[%s467 + $0x84] sm:$0xc]
      %v4038 = vld [vmem:[%s467 + $0x8c] sm:$0x3]
      %v4039 = vld [vmem:[%s467 + $0x90] sm:$0xc]
      %v4040 = vld [vmem:[%s467 + $0x98] sm:$0x3]
      %v4041 = vld [vmem:[%s467 + $0x9c] sm:$0xc]
      %v4042 = vld [vmem:[%s467 + $0xa4] sm:$0x3]
      %v4043 = vld [vmem:[%s467 + $0xa8] sm:$0xc]
      %v4044 = vld [vmem:[%s467 + $0xb0] sm:$0x3]
      %v4045 = vld [vmem:[%s467 + $0xb4] sm:$0xc]
      %v4046 = vld [vmem:[%s467 + $0xbc] sm:$0x3]
      %v4047 = vld [vmem:[%s467] sm:$0x8]
      %v4048 = vld [vmem:[%s467 + $0x8] sm:$0x7]
      %v4049 = vld [vmem:[%s467 + $0xc] sm:$0x8]
      %v4050 = vld [vmem:[%s467 + $0x14] sm:$0x7]
      %v4051 = vld [vmem:[%s467 + $0x18] sm:$0x8]
      %v4052 = vld [vmem:[%s467 + $0x20] sm:$0x7]
      %v4053 = vld [vmem:[%s467 + $0x24] sm:$0x8]
      %v4054 = vld [vmem:[%s467 + $0x2c] sm:$0x7]
      %v4055 = vld [vmem:[%s467 + $0x30] sm:$0x8]
      %v4056 = vld [vmem:[%s467 + $0x38] sm:$0x7]
      %v4057 = vld [vmem:[%s467 + $0x3c] sm:$0x8]
      %v4058 = vld [vmem:[%s467 + $0x44] sm:$0x7]
      %v4059 = vld [vmem:[%s467 + $0x48] sm:$0x8]
      %v4060 = vld [vmem:[%s467 + $0x50] sm:$0x7]
      %v4061 = vld [vmem:[%s467 + $0x54] sm:$0x8]
      %v4062 = vld [vmem:[%s467 + $0x5c] sm:$0x7]
      %v4063 = vld [vmem:[%s467 + $0x60] sm:$0x8]
      %v4064 = vld [vmem:[%s467 + $0x68] sm:$0x7]
      %v4065 = vld [vmem:[%s467 + $0x6c] sm:$0x8]
      %v4066 = vld [vmem:[%s467 + $0x74] sm:$0x7]
      %v4067 = vld [vmem:[%s467 + $0x78] sm:$0x8]
      %v4068 = vld [vmem:[%s467 + $0x80] sm:$0x7]
      %v4069 = vld [vmem:[%s467 + $0x84] sm:$0x8]
      %v4070 = vld [vmem:[%s467 + $0x8c] sm:$0x7]
      %v4071 = vld [vmem:[%s467 + $0x90] sm:$0x8]
      %v4072 = vld [vmem:[%s467 + $0x98] sm:$0x7]
      %v4073 = vld [vmem:[%s467 + $0x9c] sm:$0x8]
      %v4074 = vld [vmem:[%s467 + $0xa4] sm:$0x7]
      %v4075 = vld [vmem:[%s467 + $0xa8] sm:$0x8]
      %v4076 = vld [vmem:[%s467 + $0xb0] sm:$0x7]
      %v4077 = vld [vmem:[%s467 + $0xb4] sm:$0x8]
      %v4078 = vld [vmem:[%s467 + $0xbc] sm:$0x7]
      %s4079 = scalar_lea.vmem [#allocation2], 72
      %v4080 = vld [vmem:[%s4079] sm:$0xe]
      %v4081 = vld [vmem:[%s4079 + $0x4] sm:$0xf]
      %v4082 = vld [vmem:[%s4079 + $0x8] sm:$0x1]
      %v4083 = vld [vmem:[%s4079 + $0xc] sm:$0xe]
      %v4084 = vld [vmem:[%s4079 + $0x10] sm:$0xf]
      %v4085 = vld [vmem:[%s4079 + $0x14] sm:$0x1]
      %v4086 = vld [vmem:[%s4079 + $0x18] sm:$0xe]
      %v4087 = vld [vmem:[%s4079 + $0x1c] sm:$0xf]
      %v4088 = vld [vmem:[%s4079 + $0x20] sm:$0x1]
      %v4089 = vld [vmem:[%s4079 + $0x24] sm:$0xe]
      %v4090 = vld [vmem:[%s4079 + $0x28] sm:$0xf]
      %v4091 = vld [vmem:[%s4079 + $0x2c] sm:$0x1]
      %v4092 = vld [vmem:[%s4079 + $0x30] sm:$0xe]
      %v4093 = vld [vmem:[%s4079 + $0x34] sm:$0xf]
      %v4094 = vld [vmem:[%s4079 + $0x38] sm:$0x1]
      %v4095 = vld [vmem:[%s4079 + $0x3c] sm:$0xe]
      %v4096 = vld [vmem:[%s4079 + $0x40] sm:$0xf]
      %v4097 = vld [vmem:[%s4079 + $0x44] sm:$0x1]
      %v4098 = vld [vmem:[%s4079 + $0x48] sm:$0xe]
      %v4099 = vld [vmem:[%s4079 + $0x4c] sm:$0xf]
      %v4100 = vld [vmem:[%s4079 + $0x50] sm:$0x1]
      %v4101 = vld [vmem:[%s4079 + $0x54] sm:$0xe]
      %v4102 = vld [vmem:[%s4079 + $0x58] sm:$0xf]
      %v4103 = vld [vmem:[%s4079 + $0x5c] sm:$0x1]
      %v4104 = vld [vmem:[%s4079 + $0x60] sm:$0xe]
      %v4105 = vld [vmem:[%s4079 + $0x64] sm:$0xf]
      %v4106 = vld [vmem:[%s4079 + $0x68] sm:$0x1]
      %v4107 = vld [vmem:[%s4079 + $0x6c] sm:$0xe]
      %v4108 = vld [vmem:[%s4079 + $0x70] sm:$0xf]
      %v4109 = vld [vmem:[%s4079 + $0x74] sm:$0x1]
      %v4110 = vld [vmem:[%s4079 + $0x78] sm:$0xe]
      %v4111 = vld [vmem:[%s4079 + $0x7c] sm:$0xf]
      %v4112 = vld [vmem:[%s4079 + $0x80] sm:$0x1]
      %v4113 = vld [vmem:[%s4079 + $0x84] sm:$0xe]
      %v4114 = vld [vmem:[%s4079 + $0x88] sm:$0xf]
      %v4115 = vld [vmem:[%s4079 + $0x8c] sm:$0x1]
      %v4116 = vld [vmem:[%s4079 + $0x90] sm:$0xe]
      %v4117 = vld [vmem:[%s4079 + $0x94] sm:$0xf]
      %v4118 = vld [vmem:[%s4079 + $0x98] sm:$0x1]
      %v4119 = vld [vmem:[%s4079 + $0x9c] sm:$0xe]
      %v4120 = vld [vmem:[%s4079 + $0xa0] sm:$0xf]
      %v4121 = vld [vmem:[%s4079 + $0xa4] sm:$0x1]
      %v4122 = vld [vmem:[%s4079 + $0xa8] sm:$0xe]
      %v4123 = vld [vmem:[%s4079 + $0xac] sm:$0xf]
      %v4124 = vld [vmem:[%s4079 + $0xb0] sm:$0x1]
      %v4125 = vld [vmem:[%s4079 + $0xb4] sm:$0xe]
      %v4126 = vld [vmem:[%s4079 + $0xb8] sm:$0xf]
      %v4127 = vld [vmem:[%s4079 + $0xbc] sm:$0x1]
      %v4128 = vld [vmem:[%s4079] sm:$0xc]
      %v4129 = vld [vmem:[%s4079 + $0x8] sm:$0x3]
      %v4130 = vld [vmem:[%s4079 + $0xc] sm:$0xc]
      %v4131 = vld [vmem:[%s4079 + $0x14] sm:$0x3]
      %v4132 = vld [vmem:[%s4079 + $0x18] sm:$0xc]
      %v4133 = vld [vmem:[%s4079 + $0x20] sm:$0x3]
      %v4134 = vld [vmem:[%s4079 + $0x24] sm:$0xc]
      %v4135 = vld [vmem:[%s4079 + $0x2c] sm:$0x3]
      %v4136 = vld [vmem:[%s4079 + $0x30] sm:$0xc]
      %v4137 = vld [vmem:[%s4079 + $0x38] sm:$0x3]
      %v4138 = vld [vmem:[%s4079 + $0x3c] sm:$0xc]
      %v4139 = vld [vmem:[%s4079 + $0x44] sm:$0x3]
      %v4140 = vld [vmem:[%s4079 + $0x48] sm:$0xc]
      %v4141 = vld [vmem:[%s4079 + $0x50] sm:$0x3]
      %v4142 = vld [vmem:[%s4079 + $0x54] sm:$0xc]
      %v4143 = vld [vmem:[%s4079 + $0x5c] sm:$0x3]
      %v4144 = vld [vmem:[%s4079 + $0x60] sm:$0xc]
      %v4145 = vld [vmem:[%s4079 + $0x68] sm:$0x3]
      %v4146 = vld [vmem:[%s4079 + $0x6c] sm:$0xc]
      %v4147 = vld [vmem:[%s4079 + $0x74] sm:$0x3]
      %v4148 = vld [vmem:[%s4079 + $0x78] sm:$0xc]
      %v4149 = vld [vmem:[%s4079 + $0x80] sm:$0x3]
      %v4150 = vld [vmem:[%s4079 + $0x84] sm:$0xc]
      %v4151 = vld [vmem:[%s4079 + $0x8c] sm:$0x3]
      %v4152 = vld [vmem:[%s4079 + $0x90] sm:$0xc]
      %v4153 = vld [vmem:[%s4079 + $0x98] sm:$0x3]
      %v4154 = vld [vmem:[%s4079 + $0x9c] sm:$0xc]
      %v4155 = vld [vmem:[%s4079 + $0xa4] sm:$0x3]
      %v4156 = vld [vmem:[%s4079 + $0xa8] sm:$0xc]
      %v4157 = vld [vmem:[%s4079 + $0xb0] sm:$0x3]
      %v4158 = vld [vmem:[%s4079 + $0xb4] sm:$0xc]
      %v4159 = vld [vmem:[%s4079 + $0xbc] sm:$0x3]
      %v4160 = vld [vmem:[%s4079] sm:$0x8]
      %v4161 = vld [vmem:[%s4079 + $0x8] sm:$0x7]
      %v4162 = vld [vmem:[%s4079 + $0xc] sm:$0x8]
      %v4163 = vld [vmem:[%s4079 + $0x14] sm:$0x7]
      %v4164 = vld [vmem:[%s4079 + $0x18] sm:$0x8]
      %v4165 = vld [vmem:[%s4079 + $0x20] sm:$0x7]
      %v4166 = vld [vmem:[%s4079 + $0x24] sm:$0x8]
      %v4167 = vld [vmem:[%s4079 + $0x2c] sm:$0x7]
      %v4168 = vld [vmem:[%s4079 + $0x30] sm:$0x8]
      %v4169 = vld [vmem:[%s4079 + $0x38] sm:$0x7]
      %v4170 = vld [vmem:[%s4079 + $0x3c] sm:$0x8]
      %v4171 = vld [vmem:[%s4079 + $0x44] sm:$0x7]
      %v4172 = vld [vmem:[%s4079 + $0x48] sm:$0x8]
      %v4173 = vld [vmem:[%s4079 + $0x50] sm:$0x7]
      %v4174 = vld [vmem:[%s4079 + $0x54] sm:$0x8]
      %v4175 = vld [vmem:[%s4079 + $0x5c] sm:$0x7]
      %v4176 = vld [vmem:[%s4079 + $0x60] sm:$0x8]
      %v4177 = vld [vmem:[%s4079 + $0x68] sm:$0x7]
      %v4178 = vld [vmem:[%s4079 + $0x6c] sm:$0x8]
      %v4179 = vld [vmem:[%s4079 + $0x74] sm:$0x7]
      %v4180 = vld [vmem:[%s4079 + $0x78] sm:$0x8]
      %v4181 = vld [vmem:[%s4079 + $0x80] sm:$0x7]
      %v4182 = vld [vmem:[%s4079 + $0x84] sm:$0x8]
      %v4183 = vld [vmem:[%s4079 + $0x8c] sm:$0x7]
      %v4184 = vld [vmem:[%s4079 + $0x90] sm:$0x8]
      %v4185 = vld [vmem:[%s4079 + $0x98] sm:$0x7]
      %v4186 = vld [vmem:[%s4079 + $0x9c] sm:$0x8]
      %v4187 = vld [vmem:[%s4079 + $0xa4] sm:$0x7]
      %v4188 = vld [vmem:[%s4079 + $0xa8] sm:$0x8]
      %v4189 = vld [vmem:[%s4079 + $0xb0] sm:$0x7]
      %v4190 = vld [vmem:[%s4079 + $0xb4] sm:$0x8]
      %v4191 = vld [vmem:[%s4079 + $0xbc] sm:$0x7]
      %v4240 = vunpack.c.l.b16 %v3855
      %v4241 = vunpack.c.l.b16 %v3856
      %v4242 = vunpack.c.l.b16 %v3857
      %v4243 = vunpack.c.l.b16 %v3858
      %v4244 = vunpack.c.l.b16 %v3859
      %v4245 = vunpack.c.l.b16 %v3860
      %v4246 = vunpack.c.l.b16 %v3861
      %v4247 = vunpack.c.l.b16 %v3862
      %v4248 = vunpack.c.l.b16 %v3863
      %v4249 = vunpack.c.l.b16 %v3864
      %v4250 = vunpack.c.l.b16 %v3865
      %v4251 = vunpack.c.l.b16 %v3866
      %v4252 = vunpack.c.l.b16 %v3867
      %v4253 = vunpack.c.l.b16 %v3868
      %v4254 = vunpack.c.l.b16 %v3869
      %v4255 = vunpack.c.l.b16 %v3870
      %v4256 = vunpack.c.l.b16 %v3871
      %v4257 = vunpack.c.l.b16 %v3872
      %v4258 = vunpack.c.l.b16 %v3873
      %v4259 = vunpack.c.l.b16 %v3874
      %v4260 = vunpack.c.l.b16 %v3875
      %v4261 = vunpack.c.l.b16 %v3876
      %v4262 = vunpack.c.l.b16 %v3877
      %v4263 = vunpack.c.l.b16 %v3878
      %v4264 = vunpack.c.l.b16 %v3879
      %v4265 = vunpack.c.l.b16 %v3880
      %v4266 = vunpack.c.l.b16 %v3881
      %v4267 = vunpack.c.l.b16 %v3882
      %v4268 = vunpack.c.l.b16 %v3883
      %v4269 = vunpack.c.l.b16 %v3884
      %v4270 = vunpack.c.l.b16 %v3885
      %v4271 = vunpack.c.l.b16 %v3886
      %v4272 = vunpack.c.l.b16 %v3887
      %v4273 = vunpack.c.l.b16 %v3888
      %v4274 = vunpack.c.l.b16 %v3889
      %v4275 = vunpack.c.l.b16 %v3890
      %v4276 = vunpack.c.l.b16 %v3891
      %v4277 = vunpack.c.l.b16 %v3892
      %v4278 = vunpack.c.l.b16 %v3893
      %v4279 = vunpack.c.l.b16 %v3894
      %v4280 = vunpack.c.l.b16 %v3895
      %v4281 = vunpack.c.l.b16 %v3896
      %v4282 = vunpack.c.l.b16 %v3897
      %v4283 = vunpack.c.l.b16 %v3898
      %v4284 = vunpack.c.l.b16 %v3899
      %v4285 = vunpack.c.l.b16 %v3900
      %v4286 = vunpack.c.l.b16 %v3901
      %v4287 = vunpack.c.l.b16 %v3902
      %v4288 = vpack.c.b16 %v4241, %v4240
      %v4289 = vpack.c.b16 %v4242, %v4242
      %v4290 = vpack.c.b16 %v4244, %v4243
      %v4291 = vpack.c.b16 %v4245, %v4245
      %v4292 = vpack.c.b16 %v4247, %v4246
      %v4293 = vpack.c.b16 %v4248, %v4248
      %v4294 = vpack.c.b16 %v4250, %v4249
      %v4295 = vpack.c.b16 %v4251, %v4251
      %v4296 = vpack.c.b16 %v4253, %v4252
      %v4297 = vpack.c.b16 %v4254, %v4254
      %v4298 = vpack.c.b16 %v4256, %v4255
      %v4299 = vpack.c.b16 %v4257, %v4257
      %v4300 = vpack.c.b16 %v4259, %v4258
      %v4301 = vpack.c.b16 %v4260, %v4260
      %v4302 = vpack.c.b16 %v4262, %v4261
      %v4303 = vpack.c.b16 %v4263, %v4263
      %v4304 = vpack.c.b16 %v4265, %v4264
      %v4305 = vpack.c.b16 %v4266, %v4266
      %v4306 = vpack.c.b16 %v4268, %v4267
      %v4307 = vpack.c.b16 %v4269, %v4269
      %v4308 = vpack.c.b16 %v4271, %v4270
      %v4309 = vpack.c.b16 %v4272, %v4272
      %v4310 = vpack.c.b16 %v4274, %v4273
      %v4311 = vpack.c.b16 %v4275, %v4275
      %v4312 = vpack.c.b16 %v4277, %v4276
      %v4313 = vpack.c.b16 %v4278, %v4278
      %v4314 = vpack.c.b16 %v4280, %v4279
      %v4315 = vpack.c.b16 %v4281, %v4281
      %v4316 = vpack.c.b16 %v4283, %v4282
      %v4317 = vpack.c.b16 %v4284, %v4284
      %v4318 = vpack.c.b16 %v4286, %v4285
      %v4319 = vpack.c.b16 %v4287, %v4287
      %v4352 = vunpack.c.l.b16 %v3903
      %v4353 = vunpack.c.l.b16 %v3904
      %v4354 = vunpack.c.l.b16 %v3905
      %v4355 = vunpack.c.l.b16 %v3906
      %v4356 = vunpack.c.l.b16 %v3907
      %v4357 = vunpack.c.l.b16 %v3908
      %v4358 = vunpack.c.l.b16 %v3909
      %v4359 = vunpack.c.l.b16 %v3910
      %v4360 = vunpack.c.l.b16 %v3911
      %v4361 = vunpack.c.l.b16 %v3912
      %v4362 = vunpack.c.l.b16 %v3913
      %v4363 = vunpack.c.l.b16 %v3914
      %v4364 = vunpack.c.l.b16 %v3915
      %v4365 = vunpack.c.l.b16 %v3916
      %v4366 = vunpack.c.l.b16 %v3917
      %v4367 = vunpack.c.l.b16 %v3918
      %v4368 = vunpack.c.l.b16 %v3919
      %v4369 = vunpack.c.l.b16 %v3920
      %v4370 = vunpack.c.l.b16 %v3921
      %v4371 = vunpack.c.l.b16 %v3922
      %v4372 = vunpack.c.l.b16 %v3923
      %v4373 = vunpack.c.l.b16 %v3924
      %v4374 = vunpack.c.l.b16 %v3925
      %v4375 = vunpack.c.l.b16 %v3926
      %v4376 = vunpack.c.l.b16 %v3927
      %v4377 = vunpack.c.l.b16 %v3928
      %v4378 = vunpack.c.l.b16 %v3929
      %v4379 = vunpack.c.l.b16 %v3930
      %v4380 = vunpack.c.l.b16 %v3931
      %v4381 = vunpack.c.l.b16 %v3932
      %v4382 = vunpack.c.l.b16 %v3933
      %v4383 = vunpack.c.l.b16 %v3934
      %v4384 = vpack.c.b16 %v4241, %v4352
      %v4385 = vpack.c.b16 %v4353, %v4353
      %v4386 = vpack.c.b16 %v4244, %v4354
      %v4387 = vpack.c.b16 %v4355, %v4355
      %v4388 = vpack.c.b16 %v4247, %v4356
      %v4389 = vpack.c.b16 %v4357, %v4357
      %v4390 = vpack.c.b16 %v4250, %v4358
      %v4391 = vpack.c.b16 %v4359, %v4359
      %v4392 = vpack.c.b16 %v4253, %v4360
      %v4393 = vpack.c.b16 %v4361, %v4361
      %v4394 = vpack.c.b16 %v4256, %v4362
      %v4395 = vpack.c.b16 %v4363, %v4363
      %v4396 = vpack.c.b16 %v4259, %v4364
      %v4397 = vpack.c.b16 %v4365, %v4365
      %v4398 = vpack.c.b16 %v4262, %v4366
      %v4399 = vpack.c.b16 %v4367, %v4367
      %v4400 = vpack.c.b16 %v4265, %v4368
      %v4401 = vpack.c.b16 %v4369, %v4369
      %v4402 = vpack.c.b16 %v4268, %v4370
      %v4403 = vpack.c.b16 %v4371, %v4371
      %v4404 = vpack.c.b16 %v4271, %v4372
      %v4405 = vpack.c.b16 %v4373, %v4373
      %v4406 = vpack.c.b16 %v4274, %v4374
      %v4407 = vpack.c.b16 %v4375, %v4375
      %v4408 = vpack.c.b16 %v4277, %v4376
      %v4409 = vpack.c.b16 %v4377, %v4377
      %v4410 = vpack.c.b16 %v4280, %v4378
      %v4411 = vpack.c.b16 %v4379, %v4379
      %v4412 = vpack.c.b16 %v4283, %v4380
      %v4413 = vpack.c.b16 %v4381, %v4381
      %v4414 = vpack.c.b16 %v4286, %v4382
      %v4415 = vpack.c.b16 %v4383, %v4383
      %v4416 = vrot.slane %v4384, 1
      %v4417 = vrot.slane %v4385, 1
      %v4418 = vsel %vm1289, %v4416, %v4417
      %v4419 = vrot.slane %v4386, 1
      %v4420 = vrot.slane %v4387, 1
      %v4421 = vsel %vm1289, %v4419, %v4420
      %v4422 = vrot.slane %v4388, 1
      %v4423 = vrot.slane %v4389, 1
      %v4424 = vsel %vm1289, %v4422, %v4423
      %v4425 = vrot.slane %v4390, 1
      %v4426 = vrot.slane %v4391, 1
      %v4427 = vsel %vm1289, %v4425, %v4426
      %v4428 = vrot.slane %v4392, 1
      %v4429 = vrot.slane %v4393, 1
      %v4430 = vsel %vm1289, %v4428, %v4429
      %v4431 = vrot.slane %v4394, 1
      %v4432 = vrot.slane %v4395, 1
      %v4433 = vsel %vm1289, %v4431, %v4432
      %v4434 = vrot.slane %v4396, 1
      %v4435 = vrot.slane %v4397, 1
      %v4436 = vsel %vm1289, %v4434, %v4435
      %v4437 = vrot.slane %v4398, 1
      %v4438 = vrot.slane %v4399, 1
      %v4439 = vsel %vm1289, %v4437, %v4438
      %v4440 = vrot.slane %v4400, 1
      %v4441 = vrot.slane %v4401, 1
      %v4442 = vsel %vm1289, %v4440, %v4441
      %v4443 = vrot.slane %v4402, 1
      %v4444 = vrot.slane %v4403, 1
      %v4445 = vsel %vm1289, %v4443, %v4444
      %v4446 = vrot.slane %v4404, 1
      %v4447 = vrot.slane %v4405, 1
      %v4448 = vsel %vm1289, %v4446, %v4447
      %v4449 = vrot.slane %v4406, 1
      %v4450 = vrot.slane %v4407, 1
      %v4451 = vsel %vm1289, %v4449, %v4450
      %v4452 = vrot.slane %v4408, 1
      %v4453 = vrot.slane %v4409, 1
      %v4454 = vsel %vm1289, %v4452, %v4453
      %v4455 = vrot.slane %v4410, 1
      %v4456 = vrot.slane %v4411, 1
      %v4457 = vsel %vm1289, %v4455, %v4456
      %v4458 = vrot.slane %v4412, 1
      %v4459 = vrot.slane %v4413, 1
      %v4460 = vsel %vm1289, %v4458, %v4459
      %v4461 = vrot.slane %v4414, 1
      %v4462 = vrot.slane %v4415, 1
      %v4463 = vsel %vm1289, %v4461, %v4462
      %4464 = vrot.lane.b32.xlu0 %v4418, 8
      %v4465 = vpop.permute.xlu0 %4464
      %4466 = vrot.lane.b32.xlu0 %v4417, 8
      %v4467 = vpop.permute.xlu0 %4466
      %4468 = vrot.lane.b32.xlu0 %v4421, 8
      %v4469 = vpop.permute.xlu0 %4468
      %4470 = vrot.lane.b32.xlu0 %v4420, 8
      %v4471 = vpop.permute.xlu0 %4470
      %4472 = vrot.lane.b32.xlu0 %v4424, 8
      %v4473 = vpop.permute.xlu0 %4472
      %4474 = vrot.lane.b32.xlu0 %v4423, 8
      %v4475 = vpop.permute.xlu0 %4474
      %4476 = vrot.lane.b32.xlu0 %v4427, 8
      %v4477 = vpop.permute.xlu0 %4476
      %4478 = vrot.lane.b32.xlu0 %v4426, 8
      %v4479 = vpop.permute.xlu0 %4478
      %4480 = vrot.lane.b32.xlu0 %v4430, 8
      %v4481 = vpop.permute.xlu0 %4480
      %4482 = vrot.lane.b32.xlu0 %v4429, 8
      %v4483 = vpop.permute.xlu0 %4482
      %4484 = vrot.lane.b32.xlu0 %v4433, 8
      %v4485 = vpop.permute.xlu0 %4484
      %4486 = vrot.lane.b32.xlu0 %v4432, 8
      %v4487 = vpop.permute.xlu0 %4486
      %4488 = vrot.lane.b32.xlu0 %v4436, 8
      %v4489 = vpop.permute.xlu0 %4488
      %4490 = vrot.lane.b32.xlu0 %v4435, 8
      %v4491 = vpop.permute.xlu0 %4490
      %4492 = vrot.lane.b32.xlu0 %v4439, 8
      %v4493 = vpop.permute.xlu0 %4492
      %4494 = vrot.lane.b32.xlu0 %v4438, 8
      %v4495 = vpop.permute.xlu0 %4494
      %4496 = vrot.lane.b32.xlu0 %v4442, 8
      %v4497 = vpop.permute.xlu0 %4496
      %4498 = vrot.lane.b32.xlu0 %v4441, 8
      %v4499 = vpop.permute.xlu0 %4498
      %4500 = vrot.lane.b32.xlu0 %v4445, 8
      %v4501 = vpop.permute.xlu0 %4500
      %4502 = vrot.lane.b32.xlu0 %v4444, 8
      %v4503 = vpop.permute.xlu0 %4502
      %4504 = vrot.lane.b32.xlu0 %v4448, 8
      %v4505 = vpop.permute.xlu0 %4504
      %4506 = vrot.lane.b32.xlu0 %v4447, 8
      %v4507 = vpop.permute.xlu0 %4506
      %4508 = vrot.lane.b32.xlu0 %v4451, 8
      %v4509 = vpop.permute.xlu0 %4508
      %4510 = vrot.lane.b32.xlu0 %v4450, 8
      %v4511 = vpop.permute.xlu0 %4510
      %4512 = vrot.lane.b32.xlu0 %v4454, 8
      %v4513 = vpop.permute.xlu0 %4512
      %4514 = vrot.lane.b32.xlu0 %v4453, 8
      %v4515 = vpop.permute.xlu0 %4514
      %4516 = vrot.lane.b32.xlu0 %v4457, 8
      %v4517 = vpop.permute.xlu0 %4516
      %4518 = vrot.lane.b32.xlu0 %v4456, 8
      %v4519 = vpop.permute.xlu0 %4518
      %4520 = vrot.lane.b32.xlu0 %v4460, 8
      %v4521 = vpop.permute.xlu0 %4520
      %4522 = vrot.lane.b32.xlu0 %v4459, 8
      %v4523 = vpop.permute.xlu0 %4522
      %4524 = vrot.lane.b32.xlu0 %v4463, 8
      %v4525 = vpop.permute.xlu0 %4524
      %4526 = vrot.lane.b32.xlu0 %v4462, 8
      %v4527 = vpop.permute.xlu0 %4526
      %v4560 = vunpack.c.l.b16 %v3935
      %v4561 = vunpack.c.l.b16 %v3936
      %v4562 = vunpack.c.l.b16 %v3937
      %v4563 = vunpack.c.l.b16 %v3938
      %v4564 = vunpack.c.l.b16 %v3939
      %v4565 = vunpack.c.l.b16 %v3940
      %v4566 = vunpack.c.l.b16 %v3941
      %v4567 = vunpack.c.l.b16 %v3942
      %v4568 = vunpack.c.l.b16 %v3943
      %v4569 = vunpack.c.l.b16 %v3944
      %v4570 = vunpack.c.l.b16 %v3945
      %v4571 = vunpack.c.l.b16 %v3946
      %v4572 = vunpack.c.l.b16 %v3947
      %v4573 = vunpack.c.l.b16 %v3948
      %v4574 = vunpack.c.l.b16 %v3949
      %v4575 = vunpack.c.l.b16 %v3950
      %v4576 = vunpack.c.l.b16 %v3951
      %v4577 = vunpack.c.l.b16 %v3952
      %v4578 = vunpack.c.l.b16 %v3953
      %v4579 = vunpack.c.l.b16 %v3954
      %v4580 = vunpack.c.l.b16 %v3955
      %v4581 = vunpack.c.l.b16 %v3956
      %v4582 = vunpack.c.l.b16 %v3957
      %v4583 = vunpack.c.l.b16 %v3958
      %v4584 = vunpack.c.l.b16 %v3959
      %v4585 = vunpack.c.l.b16 %v3960
      %v4586 = vunpack.c.l.b16 %v3961
      %v4587 = vunpack.c.l.b16 %v3962
      %v4588 = vunpack.c.l.b16 %v3963
      %v4589 = vunpack.c.l.b16 %v3964
      %v4590 = vunpack.c.l.b16 %v3965
      %v4591 = vunpack.c.l.b16 %v3966
      %v4592 = vpack.c.b16 %v4241, %v4560
      %v4593 = vpack.c.b16 %v4561, %v4561
      %v4594 = vpack.c.b16 %v4244, %v4562
      %v4595 = vpack.c.b16 %v4563, %v4563
      %v4596 = vpack.c.b16 %v4247, %v4564
      %v4597 = vpack.c.b16 %v4565, %v4565
      %v4598 = vpack.c.b16 %v4250, %v4566
      %v4599 = vpack.c.b16 %v4567, %v4567
      %v4600 = vpack.c.b16 %v4253, %v4568
      %v4601 = vpack.c.b16 %v4569, %v4569
      %v4602 = vpack.c.b16 %v4256, %v4570
      %v4603 = vpack.c.b16 %v4571, %v4571
      %v4604 = vpack.c.b16 %v4259, %v4572
      %v4605 = vpack.c.b16 %v4573, %v4573
      %v4606 = vpack.c.b16 %v4262, %v4574
      %v4607 = vpack.c.b16 %v4575, %v4575
      %v4608 = vpack.c.b16 %v4265, %v4576
      %v4609 = vpack.c.b16 %v4577, %v4577
      %v4610 = vpack.c.b16 %v4268, %v4578
      %v4611 = vpack.c.b16 %v4579, %v4579
      %v4612 = vpack.c.b16 %v4271, %v4580
      %v4613 = vpack.c.b16 %v4581, %v4581
      %v4614 = vpack.c.b16 %v4274, %v4582
      %v4615 = vpack.c.b16 %v4583, %v4583
      %v4616 = vpack.c.b16 %v4277, %v4584
      %v4617 = vpack.c.b16 %v4585, %v4585
      %v4618 = vpack.c.b16 %v4280, %v4586
      %v4619 = vpack.c.b16 %v4587, %v4587
      %v4620 = vpack.c.b16 %v4283, %v4588
      %v4621 = vpack.c.b16 %v4589, %v4589
      %v4622 = vpack.c.b16 %v4286, %v4590
      %v4623 = vpack.c.b16 %v4591, %v4591
      %vm4624 = vcmask 1045504
      %v4625 = vrot.slane %v4592, 2
      %v4626 = vrot.slane %v4593, 2
      %v4627 = vsel %vm4624, %v4625, %v4626
      %v4628 = vrot.slane %v4594, 2
      %v4629 = vrot.slane %v4595, 2
      %v4630 = vsel %vm4624, %v4628, %v4629
      %v4631 = vrot.slane %v4596, 2
      %v4632 = vrot.slane %v4597, 2
      %v4633 = vsel %vm4624, %v4631, %v4632
      %v4634 = vrot.slane %v4598, 2
      %v4635 = vrot.slane %v4599, 2
      %v4636 = vsel %vm4624, %v4634, %v4635
      %v4637 = vrot.slane %v4600, 2
      %v4638 = vrot.slane %v4601, 2
      %v4639 = vsel %vm4624, %v4637, %v4638
      %v4640 = vrot.slane %v4602, 2
      %v4641 = vrot.slane %v4603, 2
      %v4642 = vsel %vm4624, %v4640, %v4641
      %v4643 = vrot.slane %v4604, 2
      %v4644 = vrot.slane %v4605, 2
      %v4645 = vsel %vm4624, %v4643, %v4644
      %v4646 = vrot.slane %v4606, 2
      %v4647 = vrot.slane %v4607, 2
      %v4648 = vsel %vm4624, %v4646, %v4647
      %v4649 = vrot.slane %v4608, 2
      %v4650 = vrot.slane %v4609, 2
      %v4651 = vsel %vm4624, %v4649, %v4650
      %v4652 = vrot.slane %v4610, 2
      %v4653 = vrot.slane %v4611, 2
      %v4654 = vsel %vm4624, %v4652, %v4653
      %v4655 = vrot.slane %v4612, 2
      %v4656 = vrot.slane %v4613, 2
      %v4657 = vsel %vm4624, %v4655, %v4656
      %v4658 = vrot.slane %v4614, 2
      %v4659 = vrot.slane %v4615, 2
      %v4660 = vsel %vm4624, %v4658, %v4659
      %v4661 = vrot.slane %v4616, 2
      %v4662 = vrot.slane %v4617, 2
      %v4663 = vsel %vm4624, %v4661, %v4662
      %v4664 = vrot.slane %v4618, 2
      %v4665 = vrot.slane %v4619, 2
      %v4666 = vsel %vm4624, %v4664, %v4665
      %v4667 = vrot.slane %v4620, 2
      %v4668 = vrot.slane %v4621, 2
      %v4669 = vsel %vm4624, %v4667, %v4668
      %v4670 = vrot.slane %v4622, 2
      %v4671 = vrot.slane %v4623, 2
      %v4672 = vsel %vm4624, %v4670, %v4671
      %4673 = vrot.lane.b32.xlu0 %v4627, 16
      %v4674 = vpop.permute.xlu0 %4673
      %4675 = vrot.lane.b32.xlu0 %v4626, 16
      %v4676 = vpop.permute.xlu0 %4675
      %4677 = vrot.lane.b32.xlu0 %v4630, 16
      %v4678 = vpop.permute.xlu0 %4677
      %4679 = vrot.lane.b32.xlu0 %v4629, 16
      %v4680 = vpop.permute.xlu0 %4679
      %4681 = vrot.lane.b32.xlu0 %v4633, 16
      %v4682 = vpop.permute.xlu0 %4681
      %4683 = vrot.lane.b32.xlu0 %v4632, 16
      %v4684 = vpop.permute.xlu0 %4683
      %4685 = vrot.lane.b32.xlu0 %v4636, 16
      %v4686 = vpop.permute.xlu0 %4685
      %4687 = vrot.lane.b32.xlu0 %v4635, 16
      %v4688 = vpop.permute.xlu0 %4687
      %4689 = vrot.lane.b32.xlu0 %v4639, 16
      %v4690 = vpop.permute.xlu0 %4689
      %4691 = vrot.lane.b32.xlu0 %v4638, 16
      %v4692 = vpop.permute.xlu0 %4691
      %4693 = vrot.lane.b32.xlu0 %v4642, 16
      %v4694 = vpop.permute.xlu0 %4693
      %4695 = vrot.lane.b32.xlu0 %v4641, 16
      %v4696 = vpop.permute.xlu0 %4695
      %4697 = vrot.lane.b32.xlu0 %v4645, 16
      %v4698 = vpop.permute.xlu0 %4697
      %4699 = vrot.lane.b32.xlu0 %v4644, 16
      %v4700 = vpop.permute.xlu0 %4699
      %4701 = vrot.lane.b32.xlu0 %v4648, 16
      %v4702 = vpop.permute.xlu0 %4701
      %4703 = vrot.lane.b32.xlu0 %v4647, 16
      %v4704 = vpop.permute.xlu0 %4703
      %4705 = vrot.lane.b32.xlu0 %v4651, 16
      %v4706 = vpop.permute.xlu0 %4705
      %4707 = vrot.lane.b32.xlu0 %v4650, 16
      %v4708 = vpop.permute.xlu0 %4707
      %4709 = vrot.lane.b32.xlu0 %v4654, 16
      %v4710 = vpop.permute.xlu0 %4709
      %4711 = vrot.lane.b32.xlu0 %v4653, 16
      %v4712 = vpop.permute.xlu0 %4711
      %4713 = vrot.lane.b32.xlu0 %v4657, 16
      %v4714 = vpop.permute.xlu0 %4713
      %4715 = vrot.lane.b32.xlu0 %v4656, 16
      %v4716 = vpop.permute.xlu0 %4715
      %4717 = vrot.lane.b32.xlu0 %v4660, 16
      %v4718 = vpop.permute.xlu0 %4717
      %4719 = vrot.lane.b32.xlu0 %v4659, 16
      %v4720 = vpop.permute.xlu0 %4719
      %4721 = vrot.lane.b32.xlu0 %v4663, 16
      %v4722 = vpop.permute.xlu0 %4721
      %4723 = vrot.lane.b32.xlu0 %v4662, 16
      %v4724 = vpop.permute.xlu0 %4723
      %4725 = vrot.lane.b32.xlu0 %v4666, 16
      %v4726 = vpop.permute.xlu0 %4725
      %4727 = vrot.lane.b32.xlu0 %v4665, 16
      %v4728 = vpop.permute.xlu0 %4727
      %4729 = vrot.lane.b32.xlu0 %v4669, 16
      %v4730 = vpop.permute.xlu0 %4729
      %4731 = vrot.lane.b32.xlu0 %v4668, 16
      %v4732 = vpop.permute.xlu0 %4731
      %4733 = vrot.lane.b32.xlu0 %v4672, 16
      %v4734 = vpop.permute.xlu0 %4733
      %4735 = vrot.lane.b32.xlu0 %v4671, 16
      %v4736 = vpop.permute.xlu0 %4735
      %v4785 = vunpack.c.l.b16 %v3967
      %v4786 = vunpack.c.l.b16 %v3968
      %v4787 = vunpack.c.l.b16 %v3969
      %v4788 = vunpack.c.l.b16 %v3970
      %v4789 = vunpack.c.l.b16 %v3971
      %v4790 = vunpack.c.l.b16 %v3972
      %v4791 = vunpack.c.l.b16 %v3973
      %v4792 = vunpack.c.l.b16 %v3974
      %v4793 = vunpack.c.l.b16 %v3975
      %v4794 = vunpack.c.l.b16 %v3976
      %v4795 = vunpack.c.l.b16 %v3977
      %v4796 = vunpack.c.l.b16 %v3978
      %v4797 = vunpack.c.l.b16 %v3979
      %v4798 = vunpack.c.l.b16 %v3980
      %v4799 = vunpack.c.l.b16 %v3981
      %v4800 = vunpack.c.l.b16 %v3982
      %v4801 = vunpack.c.l.b16 %v3983
      %v4802 = vunpack.c.l.b16 %v3984
      %v4803 = vunpack.c.l.b16 %v3985
      %v4804 = vunpack.c.l.b16 %v3986
      %v4805 = vunpack.c.l.b16 %v3987
      %v4806 = vunpack.c.l.b16 %v3988
      %v4807 = vunpack.c.l.b16 %v3989
      %v4808 = vunpack.c.l.b16 %v3990
      %v4809 = vunpack.c.l.b16 %v3991
      %v4810 = vunpack.c.l.b16 %v3992
      %v4811 = vunpack.c.l.b16 %v3993
      %v4812 = vunpack.c.l.b16 %v3994
      %v4813 = vunpack.c.l.b16 %v3995
      %v4814 = vunpack.c.l.b16 %v3996
      %v4815 = vunpack.c.l.b16 %v3997
      %v4816 = vunpack.c.l.b16 %v3998
      %v4817 = vunpack.c.l.b16 %v3999
      %v4818 = vunpack.c.l.b16 %v4000
      %v4819 = vunpack.c.l.b16 %v4001
      %v4820 = vunpack.c.l.b16 %v4002
      %v4821 = vunpack.c.l.b16 %v4003
      %v4822 = vunpack.c.l.b16 %v4004
      %v4823 = vunpack.c.l.b16 %v4005
      %v4824 = vunpack.c.l.b16 %v4006
      %v4825 = vunpack.c.l.b16 %v4007
      %v4826 = vunpack.c.l.b16 %v4008
      %v4827 = vunpack.c.l.b16 %v4009
      %v4828 = vunpack.c.l.b16 %v4010
      %v4829 = vunpack.c.l.b16 %v4011
      %v4830 = vunpack.c.l.b16 %v4012
      %v4831 = vunpack.c.l.b16 %v4013
      %v4832 = vunpack.c.l.b16 %v4014
      %v4833 = vpack.c.b16 %v4786, %v4785
      %v4834 = vpack.c.b16 %v4787, %v4787
      %v4835 = vpack.c.b16 %v4789, %v4788
      %v4836 = vpack.c.b16 %v4790, %v4790
      %v4837 = vpack.c.b16 %v4792, %v4791
      %v4838 = vpack.c.b16 %v4793, %v4793
      %v4839 = vpack.c.b16 %v4795, %v4794
      %v4840 = vpack.c.b16 %v4796, %v4796
      %v4841 = vpack.c.b16 %v4798, %v4797
      %v4842 = vpack.c.b16 %v4799, %v4799
      %v4843 = vpack.c.b16 %v4801, %v4800
      %v4844 = vpack.c.b16 %v4802, %v4802
      %v4845 = vpack.c.b16 %v4804, %v4803
      %v4846 = vpack.c.b16 %v4805, %v4805
      %v4847 = vpack.c.b16 %v4807, %v4806
      %v4848 = vpack.c.b16 %v4808, %v4808
      %v4849 = vpack.c.b16 %v4810, %v4809
      %v4850 = vpack.c.b16 %v4811, %v4811
      %v4851 = vpack.c.b16 %v4813, %v4812
      %v4852 = vpack.c.b16 %v4814, %v4814
      %v4853 = vpack.c.b16 %v4816, %v4815
      %v4854 = vpack.c.b16 %v4817, %v4817
      %v4855 = vpack.c.b16 %v4819, %v4818
      %v4856 = vpack.c.b16 %v4820, %v4820
      %v4857 = vpack.c.b16 %v4822, %v4821
      %v4858 = vpack.c.b16 %v4823, %v4823
      %v4859 = vpack.c.b16 %v4825, %v4824
      %v4860 = vpack.c.b16 %v4826, %v4826
      %v4861 = vpack.c.b16 %v4828, %v4827
      %v4862 = vpack.c.b16 %v4829, %v4829
      %v4863 = vpack.c.b16 %v4831, %v4830
      %v4864 = vpack.c.b16 %v4832, %v4832
      %4865 = vrot.lane.b32.xlu0 %v4833, 24
      %v4866 = vpop.permute.xlu0 %4865
      %4867 = vrot.lane.b32.xlu0 %v4834, 24
      %v4868 = vpop.permute.xlu0 %4867
      %4869 = vrot.lane.b32.xlu0 %v4835, 24
      %v4870 = vpop.permute.xlu0 %4869
      %4871 = vrot.lane.b32.xlu0 %v4836, 24
      %v4872 = vpop.permute.xlu0 %4871
      %4873 = vrot.lane.b32.xlu0 %v4837, 24
      %v4874 = vpop.permute.xlu0 %4873
      %4875 = vrot.lane.b32.xlu0 %v4838, 24
      %v4876 = vpop.permute.xlu0 %4875
      %4877 = vrot.lane.b32.xlu0 %v4839, 24
      %v4878 = vpop.permute.xlu0 %4877
      %4879 = vrot.lane.b32.xlu0 %v4840, 24
      %v4880 = vpop.permute.xlu0 %4879
      %4881 = vrot.lane.b32.xlu0 %v4841, 24
      %v4882 = vpop.permute.xlu0 %4881
      %4883 = vrot.lane.b32.xlu0 %v4842, 24
      %v4884 = vpop.permute.xlu0 %4883
      %4885 = vrot.lane.b32.xlu0 %v4843, 24
      %v4886 = vpop.permute.xlu0 %4885
      %4887 = vrot.lane.b32.xlu0 %v4844, 24
      %v4888 = vpop.permute.xlu0 %4887
      %4889 = vrot.lane.b32.xlu0 %v4845, 24
      %v4890 = vpop.permute.xlu0 %4889
      %4891 = vrot.lane.b32.xlu0 %v4846, 24
      %v4892 = vpop.permute.xlu0 %4891
      %4893 = vrot.lane.b32.xlu0 %v4847, 24
      %v4894 = vpop.permute.xlu0 %4893
      %4895 = vrot.lane.b32.xlu0 %v4848, 24
      %v4896 = vpop.permute.xlu0 %4895
      %4897 = vrot.lane.b32.xlu0 %v4849, 24
      %v4898 = vpop.permute.xlu0 %4897
      %4899 = vrot.lane.b32.xlu0 %v4850, 24
      %v4900 = vpop.permute.xlu0 %4899
      %4901 = vrot.lane.b32.xlu0 %v4851, 24
      %v4902 = vpop.permute.xlu0 %4901
      %4903 = vrot.lane.b32.xlu0 %v4852, 24
      %v4904 = vpop.permute.xlu0 %4903
      %4905 = vrot.lane.b32.xlu0 %v4853, 24
      %v4906 = vpop.permute.xlu0 %4905
      %4907 = vrot.lane.b32.xlu0 %v4854, 24
      %v4908 = vpop.permute.xlu0 %4907
      %4909 = vrot.lane.b32.xlu0 %v4855, 24
      %v4910 = vpop.permute.xlu0 %4909
      %4911 = vrot.lane.b32.xlu0 %v4856, 24
      %v4912 = vpop.permute.xlu0 %4911
      %4913 = vrot.lane.b32.xlu0 %v4857, 24
      %v4914 = vpop.permute.xlu0 %4913
      %4915 = vrot.lane.b32.xlu0 %v4858, 24
      %v4916 = vpop.permute.xlu0 %4915
      %4917 = vrot.lane.b32.xlu0 %v4859, 24
      %v4918 = vpop.permute.xlu0 %4917
      %4919 = vrot.lane.b32.xlu0 %v4860, 24
      %v4920 = vpop.permute.xlu0 %4919
      %4921 = vrot.lane.b32.xlu0 %v4861, 24
      %v4922 = vpop.permute.xlu0 %4921
      %4923 = vrot.lane.b32.xlu0 %v4862, 24
      %v4924 = vpop.permute.xlu0 %4923
      %4925 = vrot.lane.b32.xlu0 %v4863, 24
      %v4926 = vpop.permute.xlu0 %4925
      %4927 = vrot.lane.b32.xlu0 %v4864, 24
      %v4928 = vpop.permute.xlu0 %4927
      %v4961 = vunpack.c.l.b16 %v4015
      %v4962 = vunpack.c.l.b16 %v4016
      %v4963 = vunpack.c.l.b16 %v4017
      %v4964 = vunpack.c.l.b16 %v4018
      %v4965 = vunpack.c.l.b16 %v4019
      %v4966 = vunpack.c.l.b16 %v4020
      %v4967 = vunpack.c.l.b16 %v4021
      %v4968 = vunpack.c.l.b16 %v4022
      %v4969 = vunpack.c.l.b16 %v4023
      %v4970 = vunpack.c.l.b16 %v4024
      %v4971 = vunpack.c.l.b16 %v4025
      %v4972 = vunpack.c.l.b16 %v4026
      %v4973 = vunpack.c.l.b16 %v4027
      %v4974 = vunpack.c.l.b16 %v4028
      %v4975 = vunpack.c.l.b16 %v4029
      %v4976 = vunpack.c.l.b16 %v4030
      %v4977 = vunpack.c.l.b16 %v4031
      %v4978 = vunpack.c.l.b16 %v4032
      %v4979 = vunpack.c.l.b16 %v4033
      %v4980 = vunpack.c.l.b16 %v4034
      %v4981 = vunpack.c.l.b16 %v4035
      %v4982 = vunpack.c.l.b16 %v4036
      %v4983 = vunpack.c.l.b16 %v4037
      %v4984 = vunpack.c.l.b16 %v4038
      %v4985 = vunpack.c.l.b16 %v4039
      %v4986 = vunpack.c.l.b16 %v4040
      %v4987 = vunpack.c.l.b16 %v4041
      %v4988 = vunpack.c.l.b16 %v4042
      %v4989 = vunpack.c.l.b16 %v4043
      %v4990 = vunpack.c.l.b16 %v4044
      %v4991 = vunpack.c.l.b16 %v4045
      %v4992 = vunpack.c.l.b16 %v4046
      %v4993 = vpack.c.b16 %v4786, %v4961
      %v4994 = vpack.c.b16 %v4962, %v4962
      %v4995 = vpack.c.b16 %v4789, %v4963
      %v4996 = vpack.c.b16 %v4964, %v4964
      %v4997 = vpack.c.b16 %v4792, %v4965
      %v4998 = vpack.c.b16 %v4966, %v4966
      %v4999 = vpack.c.b16 %v4795, %v4967
      %v5000 = vpack.c.b16 %v4968, %v4968
      %v5001 = vpack.c.b16 %v4798, %v4969
      %v5002 = vpack.c.b16 %v4970, %v4970
      %v5003 = vpack.c.b16 %v4801, %v4971
      %v5004 = vpack.c.b16 %v4972, %v4972
      %v5005 = vpack.c.b16 %v4804, %v4973
      %v5006 = vpack.c.b16 %v4974, %v4974
      %v5007 = vpack.c.b16 %v4807, %v4975
      %v5008 = vpack.c.b16 %v4976, %v4976
      %v5009 = vpack.c.b16 %v4810, %v4977
      %v5010 = vpack.c.b16 %v4978, %v4978
      %v5011 = vpack.c.b16 %v4813, %v4979
      %v5012 = vpack.c.b16 %v4980, %v4980
      %v5013 = vpack.c.b16 %v4816, %v4981
      %v5014 = vpack.c.b16 %v4982, %v4982
      %v5015 = vpack.c.b16 %v4819, %v4983
      %v5016 = vpack.c.b16 %v4984, %v4984
      %v5017 = vpack.c.b16 %v4822, %v4985
      %v5018 = vpack.c.b16 %v4986, %v4986
      %v5019 = vpack.c.b16 %v4825, %v4987
      %v5020 = vpack.c.b16 %v4988, %v4988
      %v5021 = vpack.c.b16 %v4828, %v4989
      %v5022 = vpack.c.b16 %v4990, %v4990
      %v5023 = vpack.c.b16 %v4831, %v4991
      %v5024 = vpack.c.b16 %v4992, %v4992
      %v5025 = vrot.slane %v4993, 1
      %v5026 = vrot.slane %v4994, 1
      %v5027 = vsel %vm1289, %v5025, %v5026
      %v5028 = vrot.slane %v4995, 1
      %v5029 = vrot.slane %v4996, 1
      %v5030 = vsel %vm1289, %v5028, %v5029
      %v5031 = vrot.slane %v4997, 1
      %v5032 = vrot.slane %v4998, 1
      %v5033 = vsel %vm1289, %v5031, %v5032
      %v5034 = vrot.slane %v4999, 1
      %v5035 = vrot.slane %v5000, 1
      %v5036 = vsel %vm1289, %v5034, %v5035
      %v5037 = vrot.slane %v5001, 1
      %v5038 = vrot.slane %v5002, 1
      %v5039 = vsel %vm1289, %v5037, %v5038
      %v5040 = vrot.slane %v5003, 1
      %v5041 = vrot.slane %v5004, 1
      %v5042 = vsel %vm1289, %v5040, %v5041
      %v5043 = vrot.slane %v5005, 1
      %v5044 = vrot.slane %v5006, 1
      %v5045 = vsel %vm1289, %v5043, %v5044
      %v5046 = vrot.slane %v5007, 1
      %v5047 = vrot.slane %v5008, 1
      %v5048 = vsel %vm1289, %v5046, %v5047
      %v5049 = vrot.slane %v5009, 1
      %v5050 = vrot.slane %v5010, 1
      %v5051 = vsel %vm1289, %v5049, %v5050
      %v5052 = vrot.slane %v5011, 1
      %v5053 = vrot.slane %v5012, 1
      %v5054 = vsel %vm1289, %v5052, %v5053
      %v5055 = vrot.slane %v5013, 1
      %v5056 = vrot.slane %v5014, 1
      %v5057 = vsel %vm1289, %v5055, %v5056
      %v5058 = vrot.slane %v5015, 1
      %v5059 = vrot.slane %v5016, 1
      %v5060 = vsel %vm1289, %v5058, %v5059
      %v5061 = vrot.slane %v5017, 1
      %v5062 = vrot.slane %v5018, 1
      %v5063 = vsel %vm1289, %v5061, %v5062
      %v5064 = vrot.slane %v5019, 1
      %v5065 = vrot.slane %v5020, 1
      %v5066 = vsel %vm1289, %v5064, %v5065
      %v5067 = vrot.slane %v5021, 1
      %v5068 = vrot.slane %v5022, 1
      %v5069 = vsel %vm1289, %v5067, %v5068
      %v5070 = vrot.slane %v5023, 1
      %v5071 = vrot.slane %v5024, 1
      %v5072 = vsel %vm1289, %v5070, %v5071
      %5073 = vrot.lane.b32.xlu0 %v5027, 32
      %v5074 = vpop.permute.xlu0 %5073
      %5075 = vrot.lane.b32.xlu0 %v5026, 32
      %v5076 = vpop.permute.xlu0 %5075
      %5077 = vrot.lane.b32.xlu0 %v5030, 32
      %v5078 = vpop.permute.xlu0 %5077
      %5079 = vrot.lane.b32.xlu0 %v5029, 32
      %v5080 = vpop.permute.xlu0 %5079
      %5081 = vrot.lane.b32.xlu0 %v5033, 32
      %v5082 = vpop.permute.xlu0 %5081
      %5083 = vrot.lane.b32.xlu0 %v5032, 32
      %v5084 = vpop.permute.xlu0 %5083
      %5085 = vrot.lane.b32.xlu0 %v5036, 32
      %v5086 = vpop.permute.xlu0 %5085
      %5087 = vrot.lane.b32.xlu0 %v5035, 32
      %v5088 = vpop.permute.xlu0 %5087
      %5089 = vrot.lane.b32.xlu0 %v5039, 32
      %v5090 = vpop.permute.xlu0 %5089
      %5091 = vrot.lane.b32.xlu0 %v5038, 32
      %v5092 = vpop.permute.xlu0 %5091
      %5093 = vrot.lane.b32.xlu0 %v5042, 32
      %v5094 = vpop.permute.xlu0 %5093
      %5095 = vrot.lane.b32.xlu0 %v5041, 32
      %v5096 = vpop.permute.xlu0 %5095
      %5097 = vrot.lane.b32.xlu0 %v5045, 32
      %v5098 = vpop.permute.xlu0 %5097
      %5099 = vrot.lane.b32.xlu0 %v5044, 32
      %v5100 = vpop.permute.xlu0 %5099
      %5101 = vrot.lane.b32.xlu0 %v5048, 32
      %v5102 = vpop.permute.xlu0 %5101
      %5103 = vrot.lane.b32.xlu0 %v5047, 32
      %v5104 = vpop.permute.xlu0 %5103
      %5105 = vrot.lane.b32.xlu0 %v5051, 32
      %v5106 = vpop.permute.xlu0 %5105
      %5107 = vrot.lane.b32.xlu0 %v5050, 32
      %v5108 = vpop.permute.xlu0 %5107
      %5109 = vrot.lane.b32.xlu0 %v5054, 32
      %v5110 = vpop.permute.xlu0 %5109
      %5111 = vrot.lane.b32.xlu0 %v5053, 32
      %v5112 = vpop.permute.xlu0 %5111
      %5113 = vrot.lane.b32.xlu0 %v5057, 32
      %v5114 = vpop.permute.xlu0 %5113
      %5115 = vrot.lane.b32.xlu0 %v5056, 32
      %v5116 = vpop.permute.xlu0 %5115
      %5117 = vrot.lane.b32.xlu0 %v5060, 32
      %v5118 = vpop.permute.xlu0 %5117
      %5119 = vrot.lane.b32.xlu0 %v5059, 32
      %v5120 = vpop.permute.xlu0 %5119
      %5121 = vrot.lane.b32.xlu0 %v5063, 32
      %v5122 = vpop.permute.xlu0 %5121
      %5123 = vrot.lane.b32.xlu0 %v5062, 32
      %v5124 = vpop.permute.xlu0 %5123
      %5125 = vrot.lane.b32.xlu0 %v5066, 32
      %v5126 = vpop.permute.xlu0 %5125
      %5127 = vrot.lane.b32.xlu0 %v5065, 32
      %v5128 = vpop.permute.xlu0 %5127
      %5129 = vrot.lane.b32.xlu0 %v5069, 32
      %v5130 = vpop.permute.xlu0 %5129
      %5131 = vrot.lane.b32.xlu0 %v5068, 32
      %v5132 = vpop.permute.xlu0 %5131
      %5133 = vrot.lane.b32.xlu0 %v5072, 32
      %v5134 = vpop.permute.xlu0 %5133
      %5135 = vrot.lane.b32.xlu0 %v5071, 32
      %v5136 = vpop.permute.xlu0 %5135
      %v5169 = vunpack.c.l.b16 %v4047
      %v5170 = vunpack.c.l.b16 %v4048
      %v5171 = vunpack.c.l.b16 %v4049
      %v5172 = vunpack.c.l.b16 %v4050
      %v5173 = vunpack.c.l.b16 %v4051
      %v5174 = vunpack.c.l.b16 %v4052
      %v5175 = vunpack.c.l.b16 %v4053
      %v5176 = vunpack.c.l.b16 %v4054
      %v5177 = vunpack.c.l.b16 %v4055
      %v5178 = vunpack.c.l.b16 %v4056
      %v5179 = vunpack.c.l.b16 %v4057
      %v5180 = vunpack.c.l.b16 %v4058
      %v5181 = vunpack.c.l.b16 %v4059
      %v5182 = vunpack.c.l.b16 %v4060
      %v5183 = vunpack.c.l.b16 %v4061
      %v5184 = vunpack.c.l.b16 %v4062
      %v5185 = vunpack.c.l.b16 %v4063
      %v5186 = vunpack.c.l.b16 %v4064
      %v5187 = vunpack.c.l.b16 %v4065
      %v5188 = vunpack.c.l.b16 %v4066
      %v5189 = vunpack.c.l.b16 %v4067
      %v5190 = vunpack.c.l.b16 %v4068
      %v5191 = vunpack.c.l.b16 %v4069
      %v5192 = vunpack.c.l.b16 %v4070
      %v5193 = vunpack.c.l.b16 %v4071
      %v5194 = vunpack.c.l.b16 %v4072
      %v5195 = vunpack.c.l.b16 %v4073
      %v5196 = vunpack.c.l.b16 %v4074
      %v5197 = vunpack.c.l.b16 %v4075
      %v5198 = vunpack.c.l.b16 %v4076
      %v5199 = vunpack.c.l.b16 %v4077
      %v5200 = vunpack.c.l.b16 %v4078
      %v5201 = vpack.c.b16 %v4786, %v5169
      %v5202 = vpack.c.b16 %v5170, %v5170
      %v5203 = vpack.c.b16 %v4789, %v5171
      %v5204 = vpack.c.b16 %v5172, %v5172
      %v5205 = vpack.c.b16 %v4792, %v5173
      %v5206 = vpack.c.b16 %v5174, %v5174
      %v5207 = vpack.c.b16 %v4795, %v5175
      %v5208 = vpack.c.b16 %v5176, %v5176
      %v5209 = vpack.c.b16 %v4798, %v5177
      %v5210 = vpack.c.b16 %v5178, %v5178
      %v5211 = vpack.c.b16 %v4801, %v5179
      %v5212 = vpack.c.b16 %v5180, %v5180
      %v5213 = vpack.c.b16 %v4804, %v5181
      %v5214 = vpack.c.b16 %v5182, %v5182
      %v5215 = vpack.c.b16 %v4807, %v5183
      %v5216 = vpack.c.b16 %v5184, %v5184
      %v5217 = vpack.c.b16 %v4810, %v5185
      %v5218 = vpack.c.b16 %v5186, %v5186
      %v5219 = vpack.c.b16 %v4813, %v5187
      %v5220 = vpack.c.b16 %v5188, %v5188
      %v5221 = vpack.c.b16 %v4816, %v5189
      %v5222 = vpack.c.b16 %v5190, %v5190
      %v5223 = vpack.c.b16 %v4819, %v5191
      %v5224 = vpack.c.b16 %v5192, %v5192
      %v5225 = vpack.c.b16 %v4822, %v5193
      %v5226 = vpack.c.b16 %v5194, %v5194
      %v5227 = vpack.c.b16 %v4825, %v5195
      %v5228 = vpack.c.b16 %v5196, %v5196
      %v5229 = vpack.c.b16 %v4828, %v5197
      %v5230 = vpack.c.b16 %v5198, %v5198
      %v5231 = vpack.c.b16 %v4831, %v5199
      %v5232 = vpack.c.b16 %v5200, %v5200
      %v5233 = vrot.slane %v5201, 2
      %v5234 = vrot.slane %v5202, 2
      %v5235 = vsel %vm4624, %v5233, %v5234
      %v5236 = vrot.slane %v5203, 2
      %v5237 = vrot.slane %v5204, 2
      %v5238 = vsel %vm4624, %v5236, %v5237
      %v5239 = vrot.slane %v5205, 2
      %v5240 = vrot.slane %v5206, 2
      %v5241 = vsel %vm4624, %v5239, %v5240
      %v5242 = vrot.slane %v5207, 2
      %v5243 = vrot.slane %v5208, 2
      %v5244 = vsel %vm4624, %v5242, %v5243
      %v5245 = vrot.slane %v5209, 2
      %v5246 = vrot.slane %v5210, 2
      %v5247 = vsel %vm4624, %v5245, %v5246
      %v5248 = vrot.slane %v5211, 2
      %v5249 = vrot.slane %v5212, 2
      %v5250 = vsel %vm4624, %v5248, %v5249
      %v5251 = vrot.slane %v5213, 2
      %v5252 = vrot.slane %v5214, 2
      %v5253 = vsel %vm4624, %v5251, %v5252
      %v5254 = vrot.slane %v5215, 2
      %v5255 = vrot.slane %v5216, 2
      %v5256 = vsel %vm4624, %v5254, %v5255
      %v5257 = vrot.slane %v5217, 2
      %v5258 = vrot.slane %v5218, 2
      %v5259 = vsel %vm4624, %v5257, %v5258
      %v5260 = vrot.slane %v5219, 2
      %v5261 = vrot.slane %v5220, 2
      %v5262 = vsel %vm4624, %v5260, %v5261
      %v5263 = vrot.slane %v5221, 2
      %v5264 = vrot.slane %v5222, 2
      %v5265 = vsel %vm4624, %v5263, %v5264
      %v5266 = vrot.slane %v5223, 2
      %v5267 = vrot.slane %v5224, 2
      %v5268 = vsel %vm4624, %v5266, %v5267
      %v5269 = vrot.slane %v5225, 2
      %v5270 = vrot.slane %v5226, 2
      %v5271 = vsel %vm4624, %v5269, %v5270
      %v5272 = vrot.slane %v5227, 2
      %v5273 = vrot.slane %v5228, 2
      %v5274 = vsel %vm4624, %v5272, %v5273
      %v5275 = vrot.slane %v5229, 2
      %v5276 = vrot.slane %v5230, 2
      %v5277 = vsel %vm4624, %v5275, %v5276
      %v5278 = vrot.slane %v5231, 2
      %v5279 = vrot.slane %v5232, 2
      %v5280 = vsel %vm4624, %v5278, %v5279
      %5281 = vrot.lane.b32.xlu0 %v5235, 40
      %v5282 = vpop.permute.xlu0 %5281
      %5283 = vrot.lane.b32.xlu0 %v5234, 40
      %v5284 = vpop.permute.xlu0 %5283
      %5285 = vrot.lane.b32.xlu0 %v5238, 40
      %v5286 = vpop.permute.xlu0 %5285
      %5287 = vrot.lane.b32.xlu0 %v5237, 40
      %v5288 = vpop.permute.xlu0 %5287
      %5289 = vrot.lane.b32.xlu0 %v5241, 40
      %v5290 = vpop.permute.xlu0 %5289
      %5291 = vrot.lane.b32.xlu0 %v5240, 40
      %v5292 = vpop.permute.xlu0 %5291
      %5293 = vrot.lane.b32.xlu0 %v5244, 40
      %v5294 = vpop.permute.xlu0 %5293
      %5295 = vrot.lane.b32.xlu0 %v5243, 40
      %v5296 = vpop.permute.xlu0 %5295
      %5297 = vrot.lane.b32.xlu0 %v5247, 40
      %v5298 = vpop.permute.xlu0 %5297
      %5299 = vrot.lane.b32.xlu0 %v5246, 40
      %v5300 = vpop.permute.xlu0 %5299
      %5301 = vrot.lane.b32.xlu0 %v5250, 40
      %v5302 = vpop.permute.xlu0 %5301
      %5303 = vrot.lane.b32.xlu0 %v5249, 40
      %v5304 = vpop.permute.xlu0 %5303
      %5305 = vrot.lane.b32.xlu0 %v5253, 40
      %v5306 = vpop.permute.xlu0 %5305
      %5307 = vrot.lane.b32.xlu0 %v5252, 40
      %v5308 = vpop.permute.xlu0 %5307
      %5309 = vrot.lane.b32.xlu0 %v5256, 40
      %v5310 = vpop.permute.xlu0 %5309
      %5311 = vrot.lane.b32.xlu0 %v5255, 40
      %v5312 = vpop.permute.xlu0 %5311
      %5313 = vrot.lane.b32.xlu0 %v5259, 40
      %v5314 = vpop.permute.xlu0 %5313
      %5315 = vrot.lane.b32.xlu0 %v5258, 40
      %v5316 = vpop.permute.xlu0 %5315
      %5317 = vrot.lane.b32.xlu0 %v5262, 40
      %v5318 = vpop.permute.xlu0 %5317
      %5319 = vrot.lane.b32.xlu0 %v5261, 40
      %v5320 = vpop.permute.xlu0 %5319
      %5321 = vrot.lane.b32.xlu0 %v5265, 40
      %v5322 = vpop.permute.xlu0 %5321
      %5323 = vrot.lane.b32.xlu0 %v5264, 40
      %v5324 = vpop.permute.xlu0 %5323
      %5325 = vrot.lane.b32.xlu0 %v5268, 40
      %v5326 = vpop.permute.xlu0 %5325
      %5327 = vrot.lane.b32.xlu0 %v5267, 40
      %v5328 = vpop.permute.xlu0 %5327
      %5329 = vrot.lane.b32.xlu0 %v5271, 40
      %v5330 = vpop.permute.xlu0 %5329
      %5331 = vrot.lane.b32.xlu0 %v5270, 40
      %v5332 = vpop.permute.xlu0 %5331
      %5333 = vrot.lane.b32.xlu0 %v5274, 40
      %v5334 = vpop.permute.xlu0 %5333
      %5335 = vrot.lane.b32.xlu0 %v5273, 40
      %v5336 = vpop.permute.xlu0 %5335
      %5337 = vrot.lane.b32.xlu0 %v5277, 40
      %v5338 = vpop.permute.xlu0 %5337
      %5339 = vrot.lane.b32.xlu0 %v5276, 40
      %v5340 = vpop.permute.xlu0 %5339
      %5341 = vrot.lane.b32.xlu0 %v5280, 40
      %v5342 = vpop.permute.xlu0 %5341
      %5343 = vrot.lane.b32.xlu0 %v5279, 40
      %v5344 = vpop.permute.xlu0 %5343
      %v5393 = vunpack.c.l.b16 %v4080
      %v5394 = vunpack.c.l.b16 %v4081
      %v5395 = vunpack.c.l.b16 %v4082
      %v5396 = vunpack.c.l.b16 %v4083
      %v5397 = vunpack.c.l.b16 %v4084
      %v5398 = vunpack.c.l.b16 %v4085
      %v5399 = vunpack.c.l.b16 %v4086
      %v5400 = vunpack.c.l.b16 %v4087
      %v5401 = vunpack.c.l.b16 %v4088
      %v5402 = vunpack.c.l.b16 %v4089
      %v5403 = vunpack.c.l.b16 %v4090
      %v5404 = vunpack.c.l.b16 %v4091
      %v5405 = vunpack.c.l.b16 %v4092
      %v5406 = vunpack.c.l.b16 %v4093
      %v5407 = vunpack.c.l.b16 %v4094
      %v5408 = vunpack.c.l.b16 %v4095
      %v5409 = vunpack.c.l.b16 %v4096
      %v5410 = vunpack.c.l.b16 %v4097
      %v5411 = vunpack.c.l.b16 %v4098
      %v5412 = vunpack.c.l.b16 %v4099
      %v5413 = vunpack.c.l.b16 %v4100
      %v5414 = vunpack.c.l.b16 %v4101
      %v5415 = vunpack.c.l.b16 %v4102
      %v5416 = vunpack.c.l.b16 %v4103
      %v5417 = vunpack.c.l.b16 %v4104
      %v5418 = vunpack.c.l.b16 %v4105
      %v5419 = vunpack.c.l.b16 %v4106
      %v5420 = vunpack.c.l.b16 %v4107
      %v5421 = vunpack.c.l.b16 %v4108
      %v5422 = vunpack.c.l.b16 %v4109
      %v5423 = vunpack.c.l.b16 %v4110
      %v5424 = vunpack.c.l.b16 %v4111
      %v5425 = vunpack.c.l.b16 %v4112
      %v5426 = vunpack.c.l.b16 %v4113
      %v5427 = vunpack.c.l.b16 %v4114
      %v5428 = vunpack.c.l.b16 %v4115
      %v5429 = vunpack.c.l.b16 %v4116
      %v5430 = vunpack.c.l.b16 %v4117
      %v5431 = vunpack.c.l.b16 %v4118
      %v5432 = vunpack.c.l.b16 %v4119
      %v5433 = vunpack.c.l.b16 %v4120
      %v5434 = vunpack.c.l.b16 %v4121
      %v5435 = vunpack.c.l.b16 %v4122
      %v5436 = vunpack.c.l.b16 %v4123
      %v5437 = vunpack.c.l.b16 %v4124
      %v5438 = vunpack.c.l.b16 %v4125
      %v5439 = vunpack.c.l.b16 %v4126
      %v5440 = vunpack.c.l.b16 %v4127
      %v5441 = vpack.c.b16 %v5394, %v5393
      %v5442 = vpack.c.b16 %v5395, %v5395
      %v5443 = vpack.c.b16 %v5397, %v5396
      %v5444 = vpack.c.b16 %v5398, %v5398
      %v5445 = vpack.c.b16 %v5400, %v5399
      %v5446 = vpack.c.b16 %v5401, %v5401
      %v5447 = vpack.c.b16 %v5403, %v5402
      %v5448 = vpack.c.b16 %v5404, %v5404
      %v5449 = vpack.c.b16 %v5406, %v5405
      %v5450 = vpack.c.b16 %v5407, %v5407
      %v5451 = vpack.c.b16 %v5409, %v5408
      %v5452 = vpack.c.b16 %v5410, %v5410
      %v5453 = vpack.c.b16 %v5412, %v5411
      %v5454 = vpack.c.b16 %v5413, %v5413
      %v5455 = vpack.c.b16 %v5415, %v5414
      %v5456 = vpack.c.b16 %v5416, %v5416
      %v5457 = vpack.c.b16 %v5418, %v5417
      %v5458 = vpack.c.b16 %v5419, %v5419
      %v5459 = vpack.c.b16 %v5421, %v5420
      %v5460 = vpack.c.b16 %v5422, %v5422
      %v5461 = vpack.c.b16 %v5424, %v5423
      %v5462 = vpack.c.b16 %v5425, %v5425
      %v5463 = vpack.c.b16 %v5427, %v5426
      %v5464 = vpack.c.b16 %v5428, %v5428
      %v5465 = vpack.c.b16 %v5430, %v5429
      %v5466 = vpack.c.b16 %v5431, %v5431
      %v5467 = vpack.c.b16 %v5433, %v5432
      %v5468 = vpack.c.b16 %v5434, %v5434
      %v5469 = vpack.c.b16 %v5436, %v5435
      %v5470 = vpack.c.b16 %v5437, %v5437
      %v5471 = vpack.c.b16 %v5439, %v5438
      %v5472 = vpack.c.b16 %v5440, %v5440
      %5473 = vrot.lane.b32.xlu0 %v5441, 48
      %v5474 = vpop.permute.xlu0 %5473
      %5475 = vrot.lane.b32.xlu0 %v5442, 48
      %v5476 = vpop.permute.xlu0 %5475
      %5477 = vrot.lane.b32.xlu0 %v5443, 48
      %v5478 = vpop.permute.xlu0 %5477
      %5479 = vrot.lane.b32.xlu0 %v5444, 48
      %v5480 = vpop.permute.xlu0 %5479
      %5481 = vrot.lane.b32.xlu0 %v5445, 48
      %v5482 = vpop.permute.xlu0 %5481
      %5483 = vrot.lane.b32.xlu0 %v5446, 48
      %v5484 = vpop.permute.xlu0 %5483
      %5485 = vrot.lane.b32.xlu0 %v5447, 48
      %v5486 = vpop.permute.xlu0 %5485
      %5487 = vrot.lane.b32.xlu0 %v5448, 48
      %v5488 = vpop.permute.xlu0 %5487
      %5489 = vrot.lane.b32.xlu0 %v5449, 48
      %v5490 = vpop.permute.xlu0 %5489
      %5491 = vrot.lane.b32.xlu0 %v5450, 48
      %v5492 = vpop.permute.xlu0 %5491
      %5493 = vrot.lane.b32.xlu0 %v5451, 48
      %v5494 = vpop.permute.xlu0 %5493
      %5495 = vrot.lane.b32.xlu0 %v5452, 48
      %v5496 = vpop.permute.xlu0 %5495
      %5497 = vrot.lane.b32.xlu0 %v5453, 48
      %v5498 = vpop.permute.xlu0 %5497
      %5499 = vrot.lane.b32.xlu0 %v5454, 48
      %v5500 = vpop.permute.xlu0 %5499
      %5501 = vrot.lane.b32.xlu0 %v5455, 48
      %v5502 = vpop.permute.xlu0 %5501
      %5503 = vrot.lane.b32.xlu0 %v5456, 48
      %v5504 = vpop.permute.xlu0 %5503
      %5505 = vrot.lane.b32.xlu0 %v5457, 48
      %v5506 = vpop.permute.xlu0 %5505
      %5507 = vrot.lane.b32.xlu0 %v5458, 48
      %v5508 = vpop.permute.xlu0 %5507
      %5509 = vrot.lane.b32.xlu0 %v5459, 48
      %v5510 = vpop.permute.xlu0 %5509
      %5511 = vrot.lane.b32.xlu0 %v5460, 48
      %v5512 = vpop.permute.xlu0 %5511
      %5513 = vrot.lane.b32.xlu0 %v5461, 48
      %v5514 = vpop.permute.xlu0 %5513
      %5515 = vrot.lane.b32.xlu0 %v5462, 48
      %v5516 = vpop.permute.xlu0 %5515
      %5517 = vrot.lane.b32.xlu0 %v5463, 48
      %v5518 = vpop.permute.xlu0 %5517
      %5519 = vrot.lane.b32.xlu0 %v5464, 48
      %v5520 = vpop.permute.xlu0 %5519
      %5521 = vrot.lane.b32.xlu0 %v5465, 48
      %v5522 = vpop.permute.xlu0 %5521
      %5523 = vrot.lane.b32.xlu0 %v5466, 48
      %v5524 = vpop.permute.xlu0 %5523
      %5525 = vrot.lane.b32.xlu0 %v5467, 48
      %v5526 = vpop.permute.xlu0 %5525
      %5527 = vrot.lane.b32.xlu0 %v5468, 48
      %v5528 = vpop.permute.xlu0 %5527
      %5529 = vrot.lane.b32.xlu0 %v5469, 48
      %v5530 = vpop.permute.xlu0 %5529
      %5531 = vrot.lane.b32.xlu0 %v5470, 48
      %v5532 = vpop.permute.xlu0 %5531
      %5533 = vrot.lane.b32.xlu0 %v5471, 48
      %v5534 = vpop.permute.xlu0 %5533
      %5535 = vrot.lane.b32.xlu0 %v5472, 48
      %v5536 = vpop.permute.xlu0 %5535
      %v5569 = vunpack.c.l.b16 %v4128
      %v5570 = vunpack.c.l.b16 %v4129
      %v5571 = vunpack.c.l.b16 %v4130
      %v5572 = vunpack.c.l.b16 %v4131
      %v5573 = vunpack.c.l.b16 %v4132
      %v5574 = vunpack.c.l.b16 %v4133
      %v5575 = vunpack.c.l.b16 %v4134
      %v5576 = vunpack.c.l.b16 %v4135
      %v5577 = vunpack.c.l.b16 %v4136
      %v5578 = vunpack.c.l.b16 %v4137
      %v5579 = vunpack.c.l.b16 %v4138
      %v5580 = vunpack.c.l.b16 %v4139
      %v5581 = vunpack.c.l.b16 %v4140
      %v5582 = vunpack.c.l.b16 %v4141
      %v5583 = vunpack.c.l.b16 %v4142
      %v5584 = vunpack.c.l.b16 %v4143
      %v5585 = vunpack.c.l.b16 %v4144
      %v5586 = vunpack.c.l.b16 %v4145
      %v5587 = vunpack.c.l.b16 %v4146
      %v5588 = vunpack.c.l.b16 %v4147
      %v5589 = vunpack.c.l.b16 %v4148
      %v5590 = vunpack.c.l.b16 %v4149
      %v5591 = vunpack.c.l.b16 %v4150
      %v5592 = vunpack.c.l.b16 %v4151
      %v5593 = vunpack.c.l.b16 %v4152
      %v5594 = vunpack.c.l.b16 %v4153
      %v5595 = vunpack.c.l.b16 %v4154
      %v5596 = vunpack.c.l.b16 %v4155
      %v5597 = vunpack.c.l.b16 %v4156
      %v5598 = vunpack.c.l.b16 %v4157
      %v5599 = vunpack.c.l.b16 %v4158
      %v5600 = vunpack.c.l.b16 %v4159
      %v5601 = vpack.c.b16 %v5394, %v5569
      %v5602 = vpack.c.b16 %v5570, %v5570
      %v5603 = vpack.c.b16 %v5397, %v5571
      %v5604 = vpack.c.b16 %v5572, %v5572
      %v5605 = vpack.c.b16 %v5400, %v5573
      %v5606 = vpack.c.b16 %v5574, %v5574
      %v5607 = vpack.c.b16 %v5403, %v5575
      %v5608 = vpack.c.b16 %v5576, %v5576
      %v5609 = vpack.c.b16 %v5406, %v5577
      %v5610 = vpack.c.b16 %v5578, %v5578
      %v5611 = vpack.c.b16 %v5409, %v5579
      %v5612 = vpack.c.b16 %v5580, %v5580
      %v5613 = vpack.c.b16 %v5412, %v5581
      %v5614 = vpack.c.b16 %v5582, %v5582
      %v5615 = vpack.c.b16 %v5415, %v5583
      %v5616 = vpack.c.b16 %v5584, %v5584
      %v5617 = vpack.c.b16 %v5418, %v5585
      %v5618 = vpack.c.b16 %v5586, %v5586
      %v5619 = vpack.c.b16 %v5421, %v5587
      %v5620 = vpack.c.b16 %v5588, %v5588
      %v5621 = vpack.c.b16 %v5424, %v5589
      %v5622 = vpack.c.b16 %v5590, %v5590
      %v5623 = vpack.c.b16 %v5427, %v5591
      %v5624 = vpack.c.b16 %v5592, %v5592
      %v5625 = vpack.c.b16 %v5430, %v5593
      %v5626 = vpack.c.b16 %v5594, %v5594
      %v5627 = vpack.c.b16 %v5433, %v5595
      %v5628 = vpack.c.b16 %v5596, %v5596
      %v5629 = vpack.c.b16 %v5436, %v5597
      %v5630 = vpack.c.b16 %v5598, %v5598
      %v5631 = vpack.c.b16 %v5439, %v5599
      %v5632 = vpack.c.b16 %v5600, %v5600
      %v5633 = vrot.slane %v5601, 1
      %v5634 = vrot.slane %v5602, 1
      %v5635 = vsel %vm1289, %v5633, %v5634
      %v5636 = vrot.slane %v5603, 1
      %v5637 = vrot.slane %v5604, 1
      %v5638 = vsel %vm1289, %v5636, %v5637
      %v5639 = vrot.slane %v5605, 1
      %v5640 = vrot.slane %v5606, 1
      %v5641 = vsel %vm1289, %v5639, %v5640
      %v5642 = vrot.slane %v5607, 1
      %v5643 = vrot.slane %v5608, 1
      %v5644 = vsel %vm1289, %v5642, %v5643
      %v5645 = vrot.slane %v5609, 1
      %v5646 = vrot.slane %v5610, 1
      %v5647 = vsel %vm1289, %v5645, %v5646
      %v5648 = vrot.slane %v5611, 1
      %v5649 = vrot.slane %v5612, 1
      %v5650 = vsel %vm1289, %v5648, %v5649
      %v5651 = vrot.slane %v5613, 1
      %v5652 = vrot.slane %v5614, 1
      %v5653 = vsel %vm1289, %v5651, %v5652
      %v5654 = vrot.slane %v5615, 1
      %v5655 = vrot.slane %v5616, 1
      %v5656 = vsel %vm1289, %v5654, %v5655
      %v5657 = vrot.slane %v5617, 1
      %v5658 = vrot.slane %v5618, 1
      %v5659 = vsel %vm1289, %v5657, %v5658
      %v5660 = vrot.slane %v5619, 1
      %v5661 = vrot.slane %v5620, 1
      %v5662 = vsel %vm1289, %v5660, %v5661
      %v5663 = vrot.slane %v5621, 1
      %v5664 = vrot.slane %v5622, 1
      %v5665 = vsel %vm1289, %v5663, %v5664
      %v5666 = vrot.slane %v5623, 1
      %v5667 = vrot.slane %v5624, 1
      %v5668 = vsel %vm1289, %v5666, %v5667
      %v5669 = vrot.slane %v5625, 1
      %v5670 = vrot.slane %v5626, 1
      %v5671 = vsel %vm1289, %v5669, %v5670
      %v5672 = vrot.slane %v5627, 1
      %v5673 = vrot.slane %v5628, 1
      %v5674 = vsel %vm1289, %v5672, %v5673
      %v5675 = vrot.slane %v5629, 1
      %v5676 = vrot.slane %v5630, 1
      %v5677 = vsel %vm1289, %v5675, %v5676
      %v5678 = vrot.slane %v5631, 1
      %v5679 = vrot.slane %v5632, 1
      %v5680 = vsel %vm1289, %v5678, %v5679
      %5681 = vrot.lane.b32.xlu0 %v5635, 56
      %v5682 = vpop.permute.xlu0 %5681
      %5683 = vrot.lane.b32.xlu0 %v5634, 56
      %v5684 = vpop.permute.xlu0 %5683
      %5685 = vrot.lane.b32.xlu0 %v5638, 56
      %v5686 = vpop.permute.xlu0 %5685
      %5687 = vrot.lane.b32.xlu0 %v5637, 56
      %v5688 = vpop.permute.xlu0 %5687
      %5689 = vrot.lane.b32.xlu0 %v5641, 56
      %v5690 = vpop.permute.xlu0 %5689
      %5691 = vrot.lane.b32.xlu0 %v5640, 56
      %v5692 = vpop.permute.xlu0 %5691
      %5693 = vrot.lane.b32.xlu0 %v5644, 56
      %v5694 = vpop.permute.xlu0 %5693
      %5695 = vrot.lane.b32.xlu0 %v5643, 56
      %v5696 = vpop.permute.xlu0 %5695
      %5697 = vrot.lane.b32.xlu0 %v5647, 56
      %v5698 = vpop.permute.xlu0 %5697
      %5699 = vrot.lane.b32.xlu0 %v5646, 56
      %v5700 = vpop.permute.xlu0 %5699
      %5701 = vrot.lane.b32.xlu0 %v5650, 56
      %v5702 = vpop.permute.xlu0 %5701
      %5703 = vrot.lane.b32.xlu0 %v5649, 56
      %v5704 = vpop.permute.xlu0 %5703
      %5705 = vrot.lane.b32.xlu0 %v5653, 56
      %v5706 = vpop.permute.xlu0 %5705
      %5707 = vrot.lane.b32.xlu0 %v5652, 56
      %v5708 = vpop.permute.xlu0 %5707
      %5709 = vrot.lane.b32.xlu0 %v5656, 56
      %v5710 = vpop.permute.xlu0 %5709
      %5711 = vrot.lane.b32.xlu0 %v5655, 56
      %v5712 = vpop.permute.xlu0 %5711
      %5713 = vrot.lane.b32.xlu0 %v5659, 56
      %v5714 = vpop.permute.xlu0 %5713
      %5715 = vrot.lane.b32.xlu0 %v5658, 56
      %v5716 = vpop.permute.xlu0 %5715
      %5717 = vrot.lane.b32.xlu0 %v5662, 56
      %v5718 = vpop.permute.xlu0 %5717
      %5719 = vrot.lane.b32.xlu0 %v5661, 56
      %v5720 = vpop.permute.xlu0 %5719
      %5721 = vrot.lane.b32.xlu0 %v5665, 56
      %v5722 = vpop.permute.xlu0 %5721
      %5723 = vrot.lane.b32.xlu0 %v5664, 56
      %v5724 = vpop.permute.xlu0 %5723
      %5725 = vrot.lane.b32.xlu0 %v5668, 56
      %v5726 = vpop.permute.xlu0 %5725
      %5727 = vrot.lane.b32.xlu0 %v5667, 56
      %v5728 = vpop.permute.xlu0 %5727
      %5729 = vrot.lane.b32.xlu0 %v5671, 56
      %v5730 = vpop.permute.xlu0 %5729
      %5731 = vrot.lane.b32.xlu0 %v5670, 56
      %v5732 = vpop.permute.xlu0 %5731
      %5733 = vrot.lane.b32.xlu0 %v5674, 56
      %v5734 = vpop.permute.xlu0 %5733
      %5735 = vrot.lane.b32.xlu0 %v5673, 56
      %v5736 = vpop.permute.xlu0 %5735
      %5737 = vrot.lane.b32.xlu0 %v5677, 56
      %v5738 = vpop.permute.xlu0 %5737
      %5739 = vrot.lane.b32.xlu0 %v5676, 56
      %v5740 = vpop.permute.xlu0 %5739
      %5741 = vrot.lane.b32.xlu0 %v5680, 56
      %v5742 = vpop.permute.xlu0 %5741
      %5743 = vrot.lane.b32.xlu0 %v5679, 56
      %v5744 = vpop.permute.xlu0 %5743
      %v5777 = vunpack.c.l.b16 %v4160
      %v5778 = vunpack.c.l.b16 %v4161
      %v5779 = vunpack.c.l.b16 %v4162
      %v5780 = vunpack.c.l.b16 %v4163
      %v5781 = vunpack.c.l.b16 %v4164
      %v5782 = vunpack.c.l.b16 %v4165
      %v5783 = vunpack.c.l.b16 %v4166
      %v5784 = vunpack.c.l.b16 %v4167
      %v5785 = vunpack.c.l.b16 %v4168
      %v5786 = vunpack.c.l.b16 %v4169
      %v5787 = vunpack.c.l.b16 %v4170
      %v5788 = vunpack.c.l.b16 %v4171
      %v5789 = vunpack.c.l.b16 %v4172
      %v5790 = vunpack.c.l.b16 %v4173
      %v5791 = vunpack.c.l.b16 %v4174
      %v5792 = vunpack.c.l.b16 %v4175
      %v5793 = vunpack.c.l.b16 %v4176
      %v5794 = vunpack.c.l.b16 %v4177
      %v5795 = vunpack.c.l.b16 %v4178
      %v5796 = vunpack.c.l.b16 %v4179
      %v5797 = vunpack.c.l.b16 %v4180
      %v5798 = vunpack.c.l.b16 %v4181
      %v5799 = vunpack.c.l.b16 %v4182
      %v5800 = vunpack.c.l.b16 %v4183
      %v5801 = vunpack.c.l.b16 %v4184
      %v5802 = vunpack.c.l.b16 %v4185
      %v5803 = vunpack.c.l.b16 %v4186
      %v5804 = vunpack.c.l.b16 %v4187
      %v5805 = vunpack.c.l.b16 %v4188
      %v5806 = vunpack.c.l.b16 %v4189
      %v5807 = vunpack.c.l.b16 %v4190
      %v5808 = vunpack.c.l.b16 %v4191
      %v5809 = vpack.c.b16 %v5394, %v5777
      %v5810 = vpack.c.b16 %v5778, %v5778
      %v5811 = vpack.c.b16 %v5397, %v5779
      %v5812 = vpack.c.b16 %v5780, %v5780
      %v5813 = vpack.c.b16 %v5400, %v5781
      %v5814 = vpack.c.b16 %v5782, %v5782
      %v5815 = vpack.c.b16 %v5403, %v5783
      %v5816 = vpack.c.b16 %v5784, %v5784
      %v5817 = vpack.c.b16 %v5406, %v5785
      %v5818 = vpack.c.b16 %v5786, %v5786
      %v5819 = vpack.c.b16 %v5409, %v5787
      %v5820 = vpack.c.b16 %v5788, %v5788
      %v5821 = vpack.c.b16 %v5412, %v5789
      %v5822 = vpack.c.b16 %v5790, %v5790
      %v5823 = vpack.c.b16 %v5415, %v5791
      %v5824 = vpack.c.b16 %v5792, %v5792
      %v5825 = vpack.c.b16 %v5418, %v5793
      %v5826 = vpack.c.b16 %v5794, %v5794
      %v5827 = vpack.c.b16 %v5421, %v5795
      %v5828 = vpack.c.b16 %v5796, %v5796
      %v5829 = vpack.c.b16 %v5424, %v5797
      %v5830 = vpack.c.b16 %v5798, %v5798
      %v5831 = vpack.c.b16 %v5427, %v5799
      %v5832 = vpack.c.b16 %v5800, %v5800
      %v5833 = vpack.c.b16 %v5430, %v5801
      %v5834 = vpack.c.b16 %v5802, %v5802
      %v5835 = vpack.c.b16 %v5433, %v5803
      %v5836 = vpack.c.b16 %v5804, %v5804
      %v5837 = vpack.c.b16 %v5436, %v5805
      %v5838 = vpack.c.b16 %v5806, %v5806
      %v5839 = vpack.c.b16 %v5439, %v5807
      %v5840 = vpack.c.b16 %v5808, %v5808
      %v5841 = vrot.slane %v5809, 2
      %v5842 = vrot.slane %v5810, 2
      %v5843 = vsel %vm4624, %v5841, %v5842
      %v5844 = vrot.slane %v5811, 2
      %v5845 = vrot.slane %v5812, 2
      %v5846 = vsel %vm4624, %v5844, %v5845
      %v5847 = vrot.slane %v5813, 2
      %v5848 = vrot.slane %v5814, 2
      %v5849 = vsel %vm4624, %v5847, %v5848
      %v5850 = vrot.slane %v5815, 2
      %v5851 = vrot.slane %v5816, 2
      %v5852 = vsel %vm4624, %v5850, %v5851
      %v5853 = vrot.slane %v5817, 2
      %v5854 = vrot.slane %v5818, 2
      %v5855 = vsel %vm4624, %v5853, %v5854
      %v5856 = vrot.slane %v5819, 2
      %v5857 = vrot.slane %v5820, 2
      %v5858 = vsel %vm4624, %v5856, %v5857
      %v5859 = vrot.slane %v5821, 2
      %v5860 = vrot.slane %v5822, 2
      %v5861 = vsel %vm4624, %v5859, %v5860
      %v5862 = vrot.slane %v5823, 2
      %v5863 = vrot.slane %v5824, 2
      %v5864 = vsel %vm4624, %v5862, %v5863
      %v5865 = vrot.slane %v5825, 2
      %v5866 = vrot.slane %v5826, 2
      %v5867 = vsel %vm4624, %v5865, %v5866
      %v5868 = vrot.slane %v5827, 2
      %v5869 = vrot.slane %v5828, 2
      %v5870 = vsel %vm4624, %v5868, %v5869
      %v5871 = vrot.slane %v5829, 2
      %v5872 = vrot.slane %v5830, 2
      %v5873 = vsel %vm4624, %v5871, %v5872
      %v5874 = vrot.slane %v5831, 2
      %v5875 = vrot.slane %v5832, 2
      %v5876 = vsel %vm4624, %v5874, %v5875
      %v5877 = vrot.slane %v5833, 2
      %v5878 = vrot.slane %v5834, 2
      %v5879 = vsel %vm4624, %v5877, %v5878
      %v5880 = vrot.slane %v5835, 2
      %v5881 = vrot.slane %v5836, 2
      %v5882 = vsel %vm4624, %v5880, %v5881
      %v5883 = vrot.slane %v5837, 2
      %v5884 = vrot.slane %v5838, 2
      %v5885 = vsel %vm4624, %v5883, %v5884
      %v5886 = vrot.slane %v5839, 2
      %v5887 = vrot.slane %v5840, 2
      %v5888 = vsel %vm4624, %v5886, %v5887
      %5889 = vrot.lane.b32.xlu0 %v5843, 64
      %v5890 = vpop.permute.xlu0 %5889
      %5891 = vrot.lane.b32.xlu0 %v5842, 64
      %v5892 = vpop.permute.xlu0 %5891
      %5893 = vrot.lane.b32.xlu0 %v5846, 64
      %v5894 = vpop.permute.xlu0 %5893
      %5895 = vrot.lane.b32.xlu0 %v5845, 64
      %v5896 = vpop.permute.xlu0 %5895
      %5897 = vrot.lane.b32.xlu0 %v5849, 64
      %v5898 = vpop.permute.xlu0 %5897
      %5899 = vrot.lane.b32.xlu0 %v5848, 64
      %v5900 = vpop.permute.xlu0 %5899
      %5901 = vrot.lane.b32.xlu0 %v5852, 64
      %v5902 = vpop.permute.xlu0 %5901
      %5903 = vrot.lane.b32.xlu0 %v5851, 64
      %v5904 = vpop.permute.xlu0 %5903
      %5905 = vrot.lane.b32.xlu0 %v5855, 64
      %v5906 = vpop.permute.xlu0 %5905
      %5907 = vrot.lane.b32.xlu0 %v5854, 64
      %v5908 = vpop.permute.xlu0 %5907
      %5909 = vrot.lane.b32.xlu0 %v5858, 64
      %v5910 = vpop.permute.xlu0 %5909
      %5911 = vrot.lane.b32.xlu0 %v5857, 64
      %v5912 = vpop.permute.xlu0 %5911
      %5913 = vrot.lane.b32.xlu0 %v5861, 64
      %v5914 = vpop.permute.xlu0 %5913
      %5915 = vrot.lane.b32.xlu0 %v5860, 64
      %v5916 = vpop.permute.xlu0 %5915
      %5917 = vrot.lane.b32.xlu0 %v5864, 64
      %v5918 = vpop.permute.xlu0 %5917
      %5919 = vrot.lane.b32.xlu0 %v5863, 64
      %v5920 = vpop.permute.xlu0 %5919
      %5921 = vrot.lane.b32.xlu0 %v5867, 64
      %v5922 = vpop.permute.xlu0 %5921
      %5923 = vrot.lane.b32.xlu0 %v5866, 64
      %v5924 = vpop.permute.xlu0 %5923
      %5925 = vrot.lane.b32.xlu0 %v5870, 64
      %v5926 = vpop.permute.xlu0 %5925
      %5927 = vrot.lane.b32.xlu0 %v5869, 64
      %v5928 = vpop.permute.xlu0 %5927
      %5929 = vrot.lane.b32.xlu0 %v5873, 64
      %v5930 = vpop.permute.xlu0 %5929
      %5931 = vrot.lane.b32.xlu0 %v5872, 64
      %v5932 = vpop.permute.xlu0 %5931
      %5933 = vrot.lane.b32.xlu0 %v5876, 64
      %v5934 = vpop.permute.xlu0 %5933
      %5935 = vrot.lane.b32.xlu0 %v5875, 64
      %v5936 = vpop.permute.xlu0 %5935
      %5937 = vrot.lane.b32.xlu0 %v5879, 64
      %v5938 = vpop.permute.xlu0 %5937
      %5939 = vrot.lane.b32.xlu0 %v5878, 64
      %v5940 = vpop.permute.xlu0 %5939
      %5941 = vrot.lane.b32.xlu0 %v5882, 64
      %v5942 = vpop.permute.xlu0 %5941
      %5943 = vrot.lane.b32.xlu0 %v5881, 64
      %v5944 = vpop.permute.xlu0 %5943
      %5945 = vrot.lane.b32.xlu0 %v5885, 64
      %v5946 = vpop.permute.xlu0 %5945
      %5947 = vrot.lane.b32.xlu0 %v5884, 64
      %v5948 = vpop.permute.xlu0 %5947
      %5949 = vrot.lane.b32.xlu0 %v5888, 64
      %v5950 = vpop.permute.xlu0 %5949
      %5951 = vrot.lane.b32.xlu0 %v5887, 64
      %v5952 = vpop.permute.xlu0 %5951
      %v5955 = vsel %vm2810, %v4288, %v4465
      %v5958 = vsel %vm2810, %v4289, %v4467
      %v5961 = vsel %vm2810, %v4290, %v4469
      %v5964 = vsel %vm2810, %v4291, %v4471
      %v5967 = vsel %vm2810, %v4292, %v4473
      %v5970 = vsel %vm2810, %v4293, %v4475
      %v5973 = vsel %vm2810, %v4294, %v4477
      %v5976 = vsel %vm2810, %v4295, %v4479
      %v5979 = vsel %vm2810, %v4296, %v4481
      %v5982 = vsel %vm2810, %v4297, %v4483
      %v5985 = vsel %vm2810, %v4298, %v4485
      %v5988 = vsel %vm2810, %v4299, %v4487
      %v5991 = vsel %vm2810, %v4300, %v4489
      %v5994 = vsel %vm2810, %v4301, %v4491
      %v5997 = vsel %vm2810, %v4302, %v4493
      %v6000 = vsel %vm2810, %v4303, %v4495
      %v6003 = vsel %vm2810, %v4304, %v4497
      %v6006 = vsel %vm2810, %v4305, %v4499
      %v6009 = vsel %vm2810, %v4306, %v4501
      %v6012 = vsel %vm2810, %v4307, %v4503
      %v6015 = vsel %vm2810, %v4308, %v4505
      %v6018 = vsel %vm2810, %v4309, %v4507
      %v6021 = vsel %vm2810, %v4310, %v4509
      %v6024 = vsel %vm2810, %v4311, %v4511
      %v6027 = vsel %vm2810, %v4312, %v4513
      %v6030 = vsel %vm2810, %v4313, %v4515
      %v6033 = vsel %vm2810, %v4314, %v4517
      %v6036 = vsel %vm2810, %v4315, %v4519
      %v6039 = vsel %vm2810, %v4316, %v4521
      %v6042 = vsel %vm2810, %v4317, %v4523
      %v6045 = vsel %vm2810, %v4318, %v4525
      %v6048 = vsel %vm2810, %v4319, %v4527
      %v6050 = vsel %vm2891, %v5955, %v4674
      %v6052 = vsel %vm2891, %v5958, %v4676
      %v6054 = vsel %vm2891, %v5961, %v4678
      %v6056 = vsel %vm2891, %v5964, %v4680
      %v6058 = vsel %vm2891, %v5967, %v4682
      %v6060 = vsel %vm2891, %v5970, %v4684
      %v6062 = vsel %vm2891, %v5973, %v4686
      %v6064 = vsel %vm2891, %v5976, %v4688
      %v6066 = vsel %vm2891, %v5979, %v4690
      %v6068 = vsel %vm2891, %v5982, %v4692
      %v6070 = vsel %vm2891, %v5985, %v4694
      %v6072 = vsel %vm2891, %v5988, %v4696
      %v6074 = vsel %vm2891, %v5991, %v4698
      %v6076 = vsel %vm2891, %v5994, %v4700
      %v6078 = vsel %vm2891, %v5997, %v4702
      %v6080 = vsel %vm2891, %v6000, %v4704
      %v6082 = vsel %vm2891, %v6003, %v4706
      %v6084 = vsel %vm2891, %v6006, %v4708
      %v6086 = vsel %vm2891, %v6009, %v4710
      %v6088 = vsel %vm2891, %v6012, %v4712
      %v6090 = vsel %vm2891, %v6015, %v4714
      %v6092 = vsel %vm2891, %v6018, %v4716
      %v6094 = vsel %vm2891, %v6021, %v4718
      %v6096 = vsel %vm2891, %v6024, %v4720
      %v6098 = vsel %vm2891, %v6027, %v4722
      %v6100 = vsel %vm2891, %v6030, %v4724
      %v6102 = vsel %vm2891, %v6033, %v4726
      %v6104 = vsel %vm2891, %v6036, %v4728
      %v6106 = vsel %vm2891, %v6039, %v4730
      %v6108 = vsel %vm2891, %v6042, %v4732
      %v6110 = vsel %vm2891, %v6045, %v4734
      %v6112 = vsel %vm2891, %v6048, %v4736
      %v6114 = vsel %vm2956, %v6050, %v4866
      %v6116 = vsel %vm2956, %v6052, %v4868
      %v6118 = vsel %vm2956, %v6054, %v4870
      %v6120 = vsel %vm2956, %v6056, %v4872
      %v6122 = vsel %vm2956, %v6058, %v4874
      %v6124 = vsel %vm2956, %v6060, %v4876
      %v6126 = vsel %vm2956, %v6062, %v4878
      %v6128 = vsel %vm2956, %v6064, %v4880
      %v6130 = vsel %vm2956, %v6066, %v4882
      %v6132 = vsel %vm2956, %v6068, %v4884
      %v6134 = vsel %vm2956, %v6070, %v4886
      %v6136 = vsel %vm2956, %v6072, %v4888
      %v6138 = vsel %vm2956, %v6074, %v4890
      %v6140 = vsel %vm2956, %v6076, %v4892
      %v6142 = vsel %vm2956, %v6078, %v4894
      %v6144 = vsel %vm2956, %v6080, %v4896
      %v6146 = vsel %vm2956, %v6082, %v4898
      %v6148 = vsel %vm2956, %v6084, %v4900
      %v6150 = vsel %vm2956, %v6086, %v4902
      %v6152 = vsel %vm2956, %v6088, %v4904
      %v6154 = vsel %vm2956, %v6090, %v4906
      %v6156 = vsel %vm2956, %v6092, %v4908
      %v6158 = vsel %vm2956, %v6094, %v4910
      %v6160 = vsel %vm2956, %v6096, %v4912
      %v6162 = vsel %vm2956, %v6098, %v4914
      %v6164 = vsel %vm2956, %v6100, %v4916
      %v6166 = vsel %vm2956, %v6102, %v4918
      %v6168 = vsel %vm2956, %v6104, %v4920
      %v6170 = vsel %vm2956, %v6106, %v4922
      %v6172 = vsel %vm2956, %v6108, %v4924
      %v6174 = vsel %vm2956, %v6110, %v4926
      %v6176 = vsel %vm2956, %v6112, %v4928
      %v6178 = vsel %vm3021, %v6114, %v5074
      %v6180 = vsel %vm3021, %v6116, %v5076
      %v6182 = vsel %vm3021, %v6118, %v5078
      %v6184 = vsel %vm3021, %v6120, %v5080
      %v6186 = vsel %vm3021, %v6122, %v5082
      %v6188 = vsel %vm3021, %v6124, %v5084
      %v6190 = vsel %vm3021, %v6126, %v5086
      %v6192 = vsel %vm3021, %v6128, %v5088
      %v6194 = vsel %vm3021, %v6130, %v5090
      %v6196 = vsel %vm3021, %v6132, %v5092
      %v6198 = vsel %vm3021, %v6134, %v5094
      %v6200 = vsel %vm3021, %v6136, %v5096
      %v6202 = vsel %vm3021, %v6138, %v5098
      %v6204 = vsel %vm3021, %v6140, %v5100
      %v6206 = vsel %vm3021, %v6142, %v5102
      %v6208 = vsel %vm3021, %v6144, %v5104
      %v6210 = vsel %vm3021, %v6146, %v5106
      %v6212 = vsel %vm3021, %v6148, %v5108
      %v6214 = vsel %vm3021, %v6150, %v5110
      %v6216 = vsel %vm3021, %v6152, %v5112
      %v6218 = vsel %vm3021, %v6154, %v5114
      %v6220 = vsel %vm3021, %v6156, %v5116
      %v6222 = vsel %vm3021, %v6158, %v5118
      %v6224 = vsel %vm3021, %v6160, %v5120
      %v6226 = vsel %vm3021, %v6162, %v5122
      %v6228 = vsel %vm3021, %v6164, %v5124
      %v6230 = vsel %vm3021, %v6166, %v5126
      %v6232 = vsel %vm3021, %v6168, %v5128
      %v6234 = vsel %vm3021, %v6170, %v5130
      %v6236 = vsel %vm3021, %v6172, %v5132
      %v6238 = vsel %vm3021, %v6174, %v5134
      %v6240 = vsel %vm3021, %v6176, %v5136
      %v6242 = vsel %vm3086, %v6178, %v5282
      %v6244 = vsel %vm3086, %v6180, %v5284
      %v6246 = vsel %vm3086, %v6182, %v5286
      %v6248 = vsel %vm3086, %v6184, %v5288
      %v6250 = vsel %vm3086, %v6186, %v5290
      %v6252 = vsel %vm3086, %v6188, %v5292
      %v6254 = vsel %vm3086, %v6190, %v5294
      %v6256 = vsel %vm3086, %v6192, %v5296
      %v6258 = vsel %vm3086, %v6194, %v5298
      %v6260 = vsel %vm3086, %v6196, %v5300
      %v6262 = vsel %vm3086, %v6198, %v5302
      %v6264 = vsel %vm3086, %v6200, %v5304
      %v6266 = vsel %vm3086, %v6202, %v5306
      %v6268 = vsel %vm3086, %v6204, %v5308
      %v6270 = vsel %vm3086, %v6206, %v5310
      %v6272 = vsel %vm3086, %v6208, %v5312
      %v6274 = vsel %vm3086, %v6210, %v5314
      %v6276 = vsel %vm3086, %v6212, %v5316
      %v6278 = vsel %vm3086, %v6214, %v5318
      %v6280 = vsel %vm3086, %v6216, %v5320
      %v6282 = vsel %vm3086, %v6218, %v5322
      %v6284 = vsel %vm3086, %v6220, %v5324
      %v6286 = vsel %vm3086, %v6222, %v5326
      %v6288 = vsel %vm3086, %v6224, %v5328
      %v6290 = vsel %vm3086, %v6226, %v5330
      %v6292 = vsel %vm3086, %v6228, %v5332
      %v6294 = vsel %vm3086, %v6230, %v5334
      %v6296 = vsel %vm3086, %v6232, %v5336
      %v6298 = vsel %vm3086, %v6234, %v5338
      %v6300 = vsel %vm3086, %v6236, %v5340
      %v6302 = vsel %vm3086, %v6238, %v5342
      %v6304 = vsel %vm3086, %v6240, %v5344
      %v6306 = vsel %vm3151, %v6242, %v5474
      %v6308 = vsel %vm3151, %v6244, %v5476
      %v6310 = vsel %vm3151, %v6246, %v5478
      %v6312 = vsel %vm3151, %v6248, %v5480
      %v6314 = vsel %vm3151, %v6250, %v5482
      %v6316 = vsel %vm3151, %v6252, %v5484
      %v6318 = vsel %vm3151, %v6254, %v5486
      %v6320 = vsel %vm3151, %v6256, %v5488
      %v6322 = vsel %vm3151, %v6258, %v5490
      %v6324 = vsel %vm3151, %v6260, %v5492
      %v6326 = vsel %vm3151, %v6262, %v5494
      %v6328 = vsel %vm3151, %v6264, %v5496
      %v6330 = vsel %vm3151, %v6266, %v5498
      %v6332 = vsel %vm3151, %v6268, %v5500
      %v6334 = vsel %vm3151, %v6270, %v5502
      %v6336 = vsel %vm3151, %v6272, %v5504
      %v6338 = vsel %vm3151, %v6274, %v5506
      %v6340 = vsel %vm3151, %v6276, %v5508
      %v6342 = vsel %vm3151, %v6278, %v5510
      %v6344 = vsel %vm3151, %v6280, %v5512
      %v6346 = vsel %vm3151, %v6282, %v5514
      %v6348 = vsel %vm3151, %v6284, %v5516
      %v6350 = vsel %vm3151, %v6286, %v5518
      %v6352 = vsel %vm3151, %v6288, %v5520
      %v6354 = vsel %vm3151, %v6290, %v5522
      %v6356 = vsel %vm3151, %v6292, %v5524
      %v6358 = vsel %vm3151, %v6294, %v5526
      %v6360 = vsel %vm3151, %v6296, %v5528
      %v6362 = vsel %vm3151, %v6298, %v5530
      %v6364 = vsel %vm3151, %v6300, %v5532
      %v6366 = vsel %vm3151, %v6302, %v5534
      %v6368 = vsel %vm3151, %v6304, %v5536
      %v6370 = vsel %vm3216, %v6306, %v5682
      %v6372 = vsel %vm3216, %v6308, %v5684
      %v6374 = vsel %vm3216, %v6310, %v5686
      %v6376 = vsel %vm3216, %v6312, %v5688
      %v6378 = vsel %vm3216, %v6314, %v5690
      %v6380 = vsel %vm3216, %v6316, %v5692
      %v6382 = vsel %vm3216, %v6318, %v5694
      %v6384 = vsel %vm3216, %v6320, %v5696
      %v6386 = vsel %vm3216, %v6322, %v5698
      %v6388 = vsel %vm3216, %v6324, %v5700
      %v6390 = vsel %vm3216, %v6326, %v5702
      %v6392 = vsel %vm3216, %v6328, %v5704
      %v6394 = vsel %vm3216, %v6330, %v5706
      %v6396 = vsel %vm3216, %v6332, %v5708
      %v6398 = vsel %vm3216, %v6334, %v5710
      %v6400 = vsel %vm3216, %v6336, %v5712
      %v6402 = vsel %vm3216, %v6338, %v5714
      %v6404 = vsel %vm3216, %v6340, %v5716
      %v6406 = vsel %vm3216, %v6342, %v5718
      %v6408 = vsel %vm3216, %v6344, %v5720
      %v6410 = vsel %vm3216, %v6346, %v5722
      %v6412 = vsel %vm3216, %v6348, %v5724
      %v6414 = vsel %vm3216, %v6350, %v5726
      %v6416 = vsel %vm3216, %v6352, %v5728
      %v6418 = vsel %vm3216, %v6354, %v5730
      %v6420 = vsel %vm3216, %v6356, %v5732
      %v6422 = vsel %vm3216, %v6358, %v5734
      %v6424 = vsel %vm3216, %v6360, %v5736
      %v6426 = vsel %vm3216, %v6362, %v5738
      %v6428 = vsel %vm3216, %v6364, %v5740
      %v6430 = vsel %vm3216, %v6366, %v5742
      %v6432 = vsel %vm3216, %v6368, %v5744
      %v6434 = vsel %vm3281, %v6370, %v5890
      %v6436 = vsel %vm3281, %v6372, %v5892
      %v6438 = vsel %vm3281, %v6374, %v5894
      %v6440 = vsel %vm3281, %v6376, %v5896
      %v6442 = vsel %vm3281, %v6378, %v5898
      %v6444 = vsel %vm3281, %v6380, %v5900
      %v6446 = vsel %vm3281, %v6382, %v5902
      %v6448 = vsel %vm3281, %v6384, %v5904
      %v6450 = vsel %vm3281, %v6386, %v5906
      %v6452 = vsel %vm3281, %v6388, %v5908
      %v6454 = vsel %vm3281, %v6390, %v5910
      %v6456 = vsel %vm3281, %v6392, %v5912
      %v6458 = vsel %vm3281, %v6394, %v5914
      %v6460 = vsel %vm3281, %v6396, %v5916
      %v6462 = vsel %vm3281, %v6398, %v5918
      %v6464 = vsel %vm3281, %v6400, %v5920
      %v6466 = vsel %vm3281, %v6402, %v5922
      %v6468 = vsel %vm3281, %v6404, %v5924
      %v6470 = vsel %vm3281, %v6406, %v5926
      %v6472 = vsel %vm3281, %v6408, %v5928
      %v6474 = vsel %vm3281, %v6410, %v5930
      %v6476 = vsel %vm3281, %v6412, %v5932
      %v6478 = vsel %vm3281, %v6414, %v5934
      %v6480 = vsel %vm3281, %v6416, %v5936
      %v6482 = vsel %vm3281, %v6418, %v5938
      %v6484 = vsel %vm3281, %v6420, %v5940
      %v6486 = vsel %vm3281, %v6422, %v5942
      %v6488 = vsel %vm3281, %v6424, %v5944
      %v6490 = vsel %vm3281, %v6426, %v5946
      %v6492 = vsel %vm3281, %v6428, %v5948
      %v6494 = vsel %vm3281, %v6430, %v5950
      %v6496 = vsel %vm3281, %v6432, %v5952
      %s6497 = scalar_lea.vmem %s1, 36
      %v6498 = vld [vmem:[%s6497] sm:$0xf]
      %v6499 = vld [vmem:[%s6497 + $0x4] sm:$0xf]
      %v6500 = vld [vmem:[%s6497 + $0x8] sm:$0xf]
      %v6501 = vld [vmem:[%s6497 + $0xc] sm:$0xf]
      %v6502 = vld [vmem:[%s6497 + $0x10] sm:$0xf]
      %v6503 = vld [vmem:[%s6497 + $0x14] sm:$0xf]
      %v6504 = vld [vmem:[%s6497 + $0x18] sm:$0xf]
      %v6505 = vld [vmem:[%s6497 + $0x1c] sm:$0xf]
      %v6506 = vld [vmem:[%s6497 + $0x20] sm:$0xf]
      %v6539 = vrot.slane %v6434, 1
      %v6540 = vrot.slane %v6436, 1
      %v6541 = vsel %vm1289, %v6539, %v6540
      %v6542 = vrot.slane %v6438, 1
      %v6543 = vrot.slane %v6440, 1
      %v6544 = vsel %vm1289, %v6542, %v6543
      %v6545 = vrot.slane %v6442, 1
      %v6546 = vrot.slane %v6444, 1
      %v6547 = vsel %vm1289, %v6545, %v6546
      %v6548 = vrot.slane %v6446, 1
      %v6549 = vrot.slane %v6448, 1
      %v6550 = vsel %vm1289, %v6548, %v6549
      %v6551 = vrot.slane %v6450, 1
      %v6552 = vrot.slane %v6452, 1
      %v6553 = vsel %vm1289, %v6551, %v6552
      %v6554 = vrot.slane %v6454, 1
      %v6555 = vrot.slane %v6456, 1
      %v6556 = vsel %vm1289, %v6554, %v6555
      %v6557 = vrot.slane %v6458, 1
      %v6558 = vrot.slane %v6460, 1
      %v6559 = vsel %vm1289, %v6557, %v6558
      %v6560 = vrot.slane %v6462, 1
      %v6561 = vrot.slane %v6464, 1
      %v6562 = vsel %vm1289, %v6560, %v6561
      %v6563 = vrot.slane %v6466, 1
      %v6564 = vrot.slane %v6468, 1
      %v6565 = vsel %vm1289, %v6563, %v6564
      %v6566 = vrot.slane %v6470, 1
      %v6567 = vrot.slane %v6472, 1
      %v6568 = vsel %vm1289, %v6566, %v6567
      %v6569 = vrot.slane %v6474, 1
      %v6570 = vrot.slane %v6476, 1
      %v6571 = vsel %vm1289, %v6569, %v6570
      %v6572 = vrot.slane %v6478, 1
      %v6573 = vrot.slane %v6480, 1
      %v6574 = vsel %vm1289, %v6572, %v6573
      %v6575 = vrot.slane %v6482, 1
      %v6576 = vrot.slane %v6484, 1
      %v6577 = vsel %vm1289, %v6575, %v6576
      %v6578 = vrot.slane %v6486, 1
      %v6579 = vrot.slane %v6488, 1
      %v6580 = vsel %vm1289, %v6578, %v6579
      %v6581 = vrot.slane %v6490, 1
      %v6582 = vrot.slane %v6492, 1
      %v6583 = vsel %vm1289, %v6581, %v6582
      %v6584 = vrot.slane %v6494, 1
      %v6585 = vrot.slane %v6496, 1
      %v6586 = vsel %vm1289, %v6584, %v6585
      %v6596 = vunpack.c.l.b16 %v6498
      %v6597 = vunpack.c.l.b16 %v6499
      %v6598 = vunpack.c.l.b16 %v6500
      %v6599 = vunpack.c.l.b16 %v6501
      %v6600 = vunpack.c.l.b16 %v6502
      %v6601 = vunpack.c.l.b16 %v6503
      %v6602 = vunpack.c.l.b16 %v6504
      %v6603 = vunpack.c.l.b16 %v6505
      %v6604 = vunpack.c.l.b16 %v6506
      %v6605 = vpack.c.b16 %v6597, %v6596
      %v6606 = vpack.c.b16 %v6599, %v6598
      %v6607 = vpack.c.b16 %v6601, %v6600
      %v6608 = vpack.c.b16 %v6603, %v6602
      %v6609 = vpack.c.b16 %v6604, %v6604
      %v6615 = vsel %vm3623, %v6541, 0
      %v6618 = vsel %vm3623, %v6544, 0
      %v6621 = vsel %vm3623, %v6547, 0
      %v6624 = vsel %vm3623, %v6550, 0
      %v6627 = vsel %vm3623, %v6553, 0
      %v6630 = vsel %vm3623, %v6556, 0
      %v6633 = vsel %vm3623, %v6559, 0
      %v6636 = vsel %vm3623, %v6562, 0
      %v6639 = vsel %vm3623, %v6565, 0
      %v6642 = vsel %vm3623, %v6568, 0
      %v6645 = vsel %vm3623, %v6571, 0
      %v6648 = vsel %vm3623, %v6574, 0
      %v6651 = vsel %vm3623, %v6577, 0
      %v6654 = vsel %vm3623, %v6580, 0
      %v6657 = vsel %vm3623, %v6583, 0
      %v6660 = vsel %vm3623, %v6586, 0
      %v6663 = vsel %vm3672, %v6609, 0
      %6665 = vmatprep.subr.bf16.mxu0 0
      %6666 = vmatpush1.bf16.msra.mxu0 %v6605
      %6667 = vmatprep.subr.bf16.mxu0 0
      %6668 = vmatpush1.bf16.msra.mxu0 %v6606
      %6669 = vmatprep.subr.bf16.mxu0 0
      %6670 = vmatpush1.bf16.msra.mxu0 %v6607
      %6671 = vmatprep.subr.bf16.mxu0 0
      %6672 = vmatpush1.bf16.msra.mxu0 %v6608
      %6673 = vmatprep.subr.bf16.mxu0 0
      %6674 = vmatpush1.bf16.msra.mxu0 %v6663
      %6675 = vmatprep.subr.bf16.mxu0 0
      %6676 = vmatpush1.bf16.msra.mxu0 0
      %6677 = vmatprep.subr.bf16.mxu0 0
      %6678 = vmatpush1.bf16.msra.mxu0 0
      %6679 = vmatprep.subr.bf16.mxu0 0
      %6680 = vmatpush1.bf16.msra.mxu0 0
      %6681 = vmatprep.subr.bf16.mxu0 0
      %6682 = vmatpush1.bf16.msra.mxu0 0
      %6683 = vmatprep.subr.bf16.mxu0 0
      %6684 = vmatpush1.bf16.msra.mxu0 0
      %6685 = vmatprep.subr.bf16.mxu0 0
      %6686 = vmatpush1.bf16.msra.mxu0 0
      %6687 = vmatprep.subr.bf16.mxu0 0
      %6688 = vmatpush1.bf16.msra.mxu0 0
      %6689 = vmatprep.subr.bf16.mxu0 0
      %6690 = vmatpush1.bf16.msra.mxu0 0
      %6691 = vmatprep.subr.bf16.mxu0 0
      %6692 = vmatpush1.bf16.msra.mxu0 0
      %6693 = vmatprep.subr.bf16.mxu0 0
      %6694 = vmatpush1.bf16.msra.mxu0 0
      %6695 = vmatprep.subr.bf16.mxu0 0
      %6696 = vmatpush1.bf16.msra.mxu0 0
      %6697 = vmatprep.mubr.bf16.mxu0 0
      %6698 = vmatmul.mubr.bf16.gmra.mrb[0].mxu0 %v6615
      %v6699 = vpop.f32.mrb[0].mxu0
      %v6700 = vadd.f32 0.0, %v6699
      %v6701 = vpop.f32.mrb[0].mxu0
      %v6702 = vpop.f32.mrb[0].mxu0
      %v6703 = vadd.f32 0.0, %v6702
      %v6704 = vpop.f32.mrb[0].mxu0
      %6705 = vmatprep.mubr.bf16.mxu0 0
      %6706 = vmatmul.mubr.bf16.gmra.mrb[0].mxu0 %v6618
      %v6707 = vpop.f32.mrb[0].mxu0
      %v6708 = vadd.f32 0.0, %v6707
      %v6709 = vpop.f32.mrb[0].mxu0
      %v6710 = vpop.f32.mrb[0].mxu0
      %v6711 = vadd.f32 0.0, %v6710
      %v6712 = vpop.f32.mrb[0].mxu0
      %6713 = vmatprep.mubr.bf16.mxu0 0
      %6714 = vmatmul.mubr.bf16.gmra.mrb[0].mxu0 %v6621
      %v6715 = vpop.f32.mrb[0].mxu0
      %v6716 = vadd.f32 0.0, %v6715
      %v6717 = vpop.f32.mrb[0].mxu0
      %v6718 = vpop.f32.mrb[0].mxu0
      %v6719 = vadd.f32 0.0, %v6718
      %v6720 = vpop.f32.mrb[0].mxu0
      %6721 = vmatprep.mubr.bf16.mxu0 0
      %6722 = vmatmul.mubr.bf16.gmra.mrb[0].mxu0 %v6624
      %v6723 = vpop.f32.mrb[0].mxu0
      %v6724 = vadd.f32 0.0, %v6723
      %v6725 = vpop.f32.mrb[0].mxu0
      %v6726 = vpop.f32.mrb[0].mxu0
      %v6727 = vadd.f32 0.0, %v6726
      %v6728 = vpop.f32.mrb[0].mxu0
      %6729 = vmatprep.mubr.bf16.mxu0 0
      %6730 = vmatmul.mubr.bf16.gmra.mrb[0].mxu0 %v6627
      %v6731 = vpop.f32.mrb[0].mxu0
      %v6732 = vadd.f32 0.0, %v6731
      %v6733 = vpop.f32.mrb[0].mxu0
      %v6734 = vpop.f32.mrb[0].mxu0
      %v6735 = vadd.f32 0.0, %v6734
      %v6736 = vpop.f32.mrb[0].mxu0
      %6737 = vmatprep.mubr.bf16.mxu0 0
      %6738 = vmatmul.mubr.bf16.gmra.mrb[0].mxu0 %v6630
      %v6739 = vpop.f32.mrb[0].mxu0
      %v6740 = vadd.f32 0.0, %v6739
      %v6741 = vpop.f32.mrb[0].mxu0
      %v6742 = vpop.f32.mrb[0].mxu0
      %v6743 = vadd.f32 0.0, %v6742
      %v6744 = vpop.f32.mrb[0].mxu0
      %6745 = vmatprep.mubr.bf16.mxu0 0
      %6746 = vmatmul.mubr.bf16.gmra.mrb[0].mxu0 %v6633
      %v6747 = vpop.f32.mrb[0].mxu0
      %v6748 = vadd.f32 0.0, %v6747
      %v6749 = vpop.f32.mrb[0].mxu0
      %v6750 = vpop.f32.mrb[0].mxu0
      %v6751 = vadd.f32 0.0, %v6750
      %v6752 = vpop.f32.mrb[0].mxu0
      %6753 = vmatprep.mubr.bf16.mxu0 0
      %6754 = vmatmul.mubr.bf16.gmra.mrb[0].mxu0 %v6636
      %v6755 = vpop.f32.mrb[0].mxu0
      %v6756 = vadd.f32 0.0, %v6755
      %v6757 = vpop.f32.mrb[0].mxu0
      %v6758 = vpop.f32.mrb[0].mxu0
      %v6759 = vadd.f32 0.0, %v6758
      %v6760 = vpop.f32.mrb[0].mxu0
      %6761 = vmatprep.mubr.bf16.mxu0 0
      %6762 = vmatmul.mubr.bf16.gmra.mrb[0].mxu0 %v6639
      %v6763 = vpop.f32.mrb[0].mxu0
      %v6764 = vadd.f32 0.0, %v6763
      %v6765 = vpop.f32.mrb[0].mxu0
      %v6766 = vpop.f32.mrb[0].mxu0
      %v6767 = vadd.f32 0.0, %v6766
      %v6768 = vpop.f32.mrb[0].mxu0
      %6769 = vmatprep.mubr.bf16.mxu0 0
      %6770 = vmatmul.mubr.bf16.gmra.mrb[0].mxu0 %v6642
      %v6771 = vpop.f32.mrb[0].mxu0
      %v6772 = vadd.f32 0.0, %v6771
      %v6773 = vpop.f32.mrb[0].mxu0
      %v6774 = vpop.f32.mrb[0].mxu0
      %v6775 = vadd.f32 0.0, %v6774
      %v6776 = vpop.f32.mrb[0].mxu0
      %6777 = vmatprep.mubr.bf16.mxu0 0
      %6778 = vmatmul.mubr.bf16.gmra.mrb[0].mxu0 %v6645
      %v6779 = vpop.f32.mrb[0].mxu0
      %v6780 = vadd.f32 0.0, %v6779
      %v6781 = vpop.f32.mrb[0].mxu0
      %v6782 = vpop.f32.mrb[0].mxu0
      %v6783 = vadd.f32 0.0, %v6782
      %v6784 = vpop.f32.mrb[0].mxu0
      %6785 = vmatprep.mubr.bf16.mxu0 0
      %6786 = vmatmul.mubr.bf16.gmra.mrb[0].mxu0 %v6648
      %v6787 = vpop.f32.mrb[0].mxu0
      %v6788 = vadd.f32 0.0, %v6787
      %v6789 = vpop.f32.mrb[0].mxu0
      %v6790 = vpop.f32.mrb[0].mxu0
      %v6791 = vadd.f32 0.0, %v6790
      %v6792 = vpop.f32.mrb[0].mxu0
      %6793 = vmatprep.mubr.bf16.mxu0 0
      %6794 = vmatmul.mubr.bf16.gmra.mrb[0].mxu0 %v6651
      %v6795 = vpop.f32.mrb[0].mxu0
      %v6796 = vadd.f32 0.0, %v6795
      %v6797 = vpop.f32.mrb[0].mxu0
      %v6798 = vpop.f32.mrb[0].mxu0
      %v6799 = vadd.f32 0.0, %v6798
      %v6800 = vpop.f32.mrb[0].mxu0
      %6801 = vmatprep.mubr.bf16.mxu0 0
      %6802 = vmatmul.mubr.bf16.gmra.mrb[0].mxu0 %v6654
      %v6803 = vpop.f32.mrb[0].mxu0
      %v6804 = vadd.f32 0.0, %v6803
      %v6805 = vpop.f32.mrb[0].mxu0
      %v6806 = vpop.f32.mrb[0].mxu0
      %v6807 = vadd.f32 0.0, %v6806
      %v6808 = vpop.f32.mrb[0].mxu0
      %6809 = vmatprep.mubr.bf16.mxu0 0
      %6810 = vmatmul.mubr.bf16.gmra.mrb[0].mxu0 %v6657
      %v6811 = vpop.f32.mrb[0].mxu0
      %v6812 = vadd.f32 0.0, %v6811
      %v6813 = vpop.f32.mrb[0].mxu0
      %v6814 = vpop.f32.mrb[0].mxu0
      %v6815 = vadd.f32 0.0, %v6814
      %v6816 = vpop.f32.mrb[0].mxu0
      %6817 = vmatprep.mubr.bf16.mxu0 0
      %6818 = vmatmul.mubr.bf16.gmra.mrb[0].mxu0 %v6660
      %v6819 = vpop.f32.mrb[0].mxu0
      %v6820 = vadd.f32 0.0, %v6819
      %v6821 = vpop.f32.mrb[0].mxu0
      %v6822 = vpop.f32.mrb[0].mxu0
      %v6823 = vadd.f32 0.0, %v6822
      %v6824 = vpop.f32.mrb[0].mxu0
      %6825 = vdwg.mxu0
      %v6826 = vpack.c.bf16 %v6703, %v6700
      %v6827 = vpack.c.bf16 %v6711, %v6708
      %v6828 = vpack.c.bf16 %v6719, %v6716
      %v6829 = vpack.c.bf16 %v6727, %v6724
      %v6830 = vpack.c.bf16 %v6735, %v6732
      %v6831 = vpack.c.bf16 %v6743, %v6740
      %v6832 = vpack.c.bf16 %v6751, %v6748
      %v6833 = vpack.c.bf16 %v6759, %v6756
      %v6834 = vpack.c.bf16 %v6767, %v6764
      %v6835 = vpack.c.bf16 %v6775, %v6772
      %v6836 = vpack.c.bf16 %v6783, %v6780
      %v6837 = vpack.c.bf16 %v6791, %v6788
      %v6838 = vpack.c.bf16 %v6799, %v6796
      %v6839 = vpack.c.bf16 %v6807, %v6804
      %v6840 = vpack.c.bf16 %v6815, %v6812
      %v6841 = vpack.c.bf16 %v6823, %v6820
      %s6842 = scalar_lea.vmem %s2, 1
      %v6843 = vld [vmem:[%s6842] sm:$0x1]
      %vm6844 = vcmask 15360
      %v6846 = vsel %vm6844, %v6826, 0
      %v6849 = vsel %vm6844, %v6827, 0
      %v6852 = vsel %vm6844, %v6828, 0
      %v6855 = vsel %vm6844, %v6829, 0
      %v6858 = vsel %vm6844, %v6830, 0
      %v6861 = vsel %vm6844, %v6831, 0
      %v6864 = vsel %vm6844, %v6832, 0
      %v6867 = vsel %vm6844, %v6833, 0
      %v6870 = vsel %vm6844, %v6834, 0
      %v6873 = vsel %vm6844, %v6835, 0
      %v6876 = vsel %vm6844, %v6836, 0
      %v6879 = vsel %vm6844, %v6837, 0
      %v6882 = vsel %vm6844, %v6838, 0
      %v6885 = vsel %vm6844, %v6839, 0
      %v6888 = vsel %vm6844, %v6840, 0
      %v6891 = vsel %vm6844, %v6841, 0
      %vm6893 = vcmask 1040384
      %v6895 = vsel %vm6893, %v6843, 0
      %6897 = vmatprep.subr.bf16.mxu0 0
      %6898 = vmatpush1.bf16.msra.mxu0 %v6895
      %6899 = vmatprep.subr.bf16.mxu0 0
      %6900 = vmatpush1.bf16.msra.mxu0 0
      %6901 = vmatprep.subr.bf16.mxu0 0
      %6902 = vmatpush1.bf16.msra.mxu0 0
      %6903 = vmatprep.subr.bf16.mxu0 0
      %6904 = vmatpush1.bf16.msra.mxu0 0
      %6905 = vmatprep.subr.bf16.mxu0 0
      %6906 = vmatpush1.bf16.msra.mxu0 0
      %6907 = vmatprep.subr.bf16.mxu0 0
      %6908 = vmatpush1.bf16.msra.mxu0 0
      %6909 = vmatprep.subr.bf16.mxu0 0
      %6910 = vmatpush1.bf16.msra.mxu0 0
      %6911 = vmatprep.subr.bf16.mxu0 0
      %6912 = vmatpush1.bf16.msra.mxu0 0
      %6913 = vmatprep.subr.bf16.mxu0 0
      %6914 = vmatpush1.bf16.msra.mxu0 0
      %6915 = vmatprep.subr.bf16.mxu0 0
      %6916 = vmatpush1.bf16.msra.mxu0 0
      %6917 = vmatprep.subr.bf16.mxu0 0
      %6918 = vmatpush1.bf16.msra.mxu0 0
      %6919 = vmatprep.subr.bf16.mxu0 0
      %6920 = vmatpush1.bf16.msra.mxu0 0
      %6921 = vmatprep.subr.bf16.mxu0 0
      %6922 = vmatpush1.bf16.msra.mxu0 0
      %6923 = vmatprep.subr.bf16.mxu0 0
      %6924 = vmatpush1.bf16.msra.mxu0 0
      %6925 = vmatprep.subr.bf16.mxu0 0
      %6926 = vmatpush1.bf16.msra.mxu0 0
      %6927 = vmatprep.subr.bf16.mxu0 0
      %6928 = vmatpush1.bf16.msra.mxu0 0
      %6929 = vmatprep.mubr.bf16.mxu0 0
      %6930 = vmatmul.mubr.bf16.gmra.mrb[0].mxu0 %v6846
      %v6931 = vpop.f32.mrb[0].mxu0
      %v6932 = vadd.f32 0.0, %v6931
      %v6933 = vpop.f32.mrb[0].mxu0
      %v6934 = vpop.f32.mrb[0].mxu0
      %v6935 = vadd.f32 0.0, %v6934
      %v6936 = vpop.f32.mrb[0].mxu0
      %6937 = vmatprep.mubr.bf16.mxu0 0
      %6938 = vmatmul.mubr.bf16.gmra.mrb[0].mxu0 %v6849
      %v6939 = vpop.f32.mrb[0].mxu0
      %v6940 = vadd.f32 0.0, %v6939
      %v6941 = vpop.f32.mrb[0].mxu0
      %v6942 = vpop.f32.mrb[0].mxu0
      %v6943 = vadd.f32 0.0, %v6942
      %v6944 = vpop.f32.mrb[0].mxu0
      %6945 = vmatprep.mubr.bf16.mxu0 0
      %6946 = vmatmul.mubr.bf16.gmra.mrb[0].mxu0 %v6852
      %v6947 = vpop.f32.mrb[0].mxu0
      %v6948 = vadd.f32 0.0, %v6947
      %v6949 = vpop.f32.mrb[0].mxu0
      %v6950 = vpop.f32.mrb[0].mxu0
      %v6951 = vadd.f32 0.0, %v6950
      %v6952 = vpop.f32.mrb[0].mxu0
      %6953 = vmatprep.mubr.bf16.mxu0 0
      %6954 = vmatmul.mubr.bf16.gmra.mrb[0].mxu0 %v6855
      %v6955 = vpop.f32.mrb[0].mxu0
      %v6956 = vadd.f32 0.0, %v6955
      %v6957 = vpop.f32.mrb[0].mxu0
      %v6958 = vpop.f32.mrb[0].mxu0
      %v6959 = vadd.f32 0.0, %v6958
      %v6960 = vpop.f32.mrb[0].mxu0
      %6961 = vmatprep.mubr.bf16.mxu0 0
      %6962 = vmatmul.mubr.bf16.gmra.mrb[0].mxu0 %v6858
      %v6963 = vpop.f32.mrb[0].mxu0
      %v6964 = vadd.f32 0.0, %v6963
      %v6965 = vpop.f32.mrb[0].mxu0
      %v6966 = vpop.f32.mrb[0].mxu0
      %v6967 = vadd.f32 0.0, %v6966
      %v6968 = vpop.f32.mrb[0].mxu0
      %6969 = vmatprep.mubr.bf16.mxu0 0
      %6970 = vmatmul.mubr.bf16.gmra.mrb[0].mxu0 %v6861
      %v6971 = vpop.f32.mrb[0].mxu0
      %v6972 = vadd.f32 0.0, %v6971
      %v6973 = vpop.f32.mrb[0].mxu0
      %v6974 = vpop.f32.mrb[0].mxu0
      %v6975 = vadd.f32 0.0, %v6974
      %v6976 = vpop.f32.mrb[0].mxu0
      %6977 = vmatprep.mubr.bf16.mxu0 0
      %6978 = vmatmul.mubr.bf16.gmra.mrb[0].mxu0 %v6864
      %v6979 = vpop.f32.mrb[0].mxu0
      %v6980 = vadd.f32 0.0, %v6979
      %v6981 = vpop.f32.mrb[0].mxu0
      %v6982 = vpop.f32.mrb[0].mxu0
      %v6983 = vadd.f32 0.0, %v6982
      %v6984 = vpop.f32.mrb[0].mxu0
      %6985 = vmatprep.mubr.bf16.mxu0 0
      %6986 = vmatmul.mubr.bf16.gmra.mrb[0].mxu0 %v6867
      %v6987 = vpop.f32.mrb[0].mxu0
      %v6988 = vadd.f32 0.0, %v6987
      %v6989 = vpop.f32.mrb[0].mxu0
      %v6990 = vpop.f32.mrb[0].mxu0
      %v6991 = vadd.f32 0.0, %v6990
      %v6992 = vpop.f32.mrb[0].mxu0
      %6993 = vmatprep.mubr.bf16.mxu0 0
      %6994 = vmatmul.mubr.bf16.gmra.mrb[0].mxu0 %v6870
      %v6995 = vpop.f32.mrb[0].mxu0
      %v6996 = vadd.f32 0.0, %v6995
      %v6997 = vpop.f32.mrb[0].mxu0
      %v6998 = vpop.f32.mrb[0].mxu0
      %v6999 = vadd.f32 0.0, %v6998
      %v7000 = vpop.f32.mrb[0].mxu0
      %7001 = vmatprep.mubr.bf16.mxu0 0
      %7002 = vmatmul.mubr.bf16.gmra.mrb[0].mxu0 %v6873
      %v7003 = vpop.f32.mrb[0].mxu0
      %v7004 = vadd.f32 0.0, %v7003
      %v7005 = vpop.f32.mrb[0].mxu0
      %v7006 = vpop.f32.mrb[0].mxu0
      %v7007 = vadd.f32 0.0, %v7006
      %v7008 = vpop.f32.mrb[0].mxu0
      %7009 = vmatprep.mubr.bf16.mxu0 0
      %7010 = vmatmul.mubr.bf16.gmra.mrb[0].mxu0 %v6876
      %v7011 = vpop.f32.mrb[0].mxu0
      %v7012 = vadd.f32 0.0, %v7011
      %v7013 = vpop.f32.mrb[0].mxu0
      %v7014 = vpop.f32.mrb[0].mxu0
      %v7015 = vadd.f32 0.0, %v7014
      %v7016 = vpop.f32.mrb[0].mxu0
      %7017 = vmatprep.mubr.bf16.mxu0 0
      %7018 = vmatmul.mubr.bf16.gmra.mrb[0].mxu0 %v6879
      %v7019 = vpop.f32.mrb[0].mxu0
      %v7020 = vadd.f32 0.0, %v7019
      %v7021 = vpop.f32.mrb[0].mxu0
      %v7022 = vpop.f32.mrb[0].mxu0
      %v7023 = vadd.f32 0.0, %v7022
      %v7024 = vpop.f32.mrb[0].mxu0
      %7025 = vmatprep.mubr.bf16.mxu0 0
      %7026 = vmatmul.mubr.bf16.gmra.mrb[0].mxu0 %v6882
      %v7027 = vpop.f32.mrb[0].mxu0
      %v7028 = vadd.f32 0.0, %v7027
      %v7029 = vpop.f32.mrb[0].mxu0
      %v7030 = vpop.f32.mrb[0].mxu0
      %v7031 = vadd.f32 0.0, %v7030
      %v7032 = vpop.f32.mrb[0].mxu0
      %7033 = vmatprep.mubr.bf16.mxu0 0
      %7034 = vmatmul.mubr.bf16.gmra.mrb[0].mxu0 %v6885
      %v7035 = vpop.f32.mrb[0].mxu0
      %v7036 = vadd.f32 0.0, %v7035
      %v7037 = vpop.f32.mrb[0].mxu0
      %v7038 = vpop.f32.mrb[0].mxu0
      %v7039 = vadd.f32 0.0, %v7038
      %v7040 = vpop.f32.mrb[0].mxu0
      %7041 = vmatprep.mubr.bf16.mxu0 0
      %7042 = vmatmul.mubr.bf16.gmra.mrb[0].mxu0 %v6888
      %v7043 = vpop.f32.mrb[0].mxu0
      %v7044 = vadd.f32 0.0, %v7043
      %v7045 = vpop.f32.mrb[0].mxu0
      %v7046 = vpop.f32.mrb[0].mxu0
      %v7047 = vadd.f32 0.0, %v7046
      %v7048 = vpop.f32.mrb[0].mxu0
      %7049 = vmatprep.mubr.bf16.mxu0 0
      %7050 = vmatmul.mubr.bf16.gmra.mrb[0].mxu0 %v6891
      %v7051 = vpop.f32.mrb[0].mxu0
      %v7052 = vadd.f32 0.0, %v7051
      %v7053 = vpop.f32.mrb[0].mxu0
      %v7054 = vpop.f32.mrb[0].mxu0
      %v7055 = vadd.f32 0.0, %v7054
      %v7056 = vpop.f32.mrb[0].mxu0
      %7057 = vdwg.mxu0
      %v7059 = vsel %vm6844, %v3837, 0
      %v7062 = vsel %vm6844, %v3838, 0
      %v7065 = vsel %vm6844, %v3839, 0
      %v7068 = vsel %vm6844, %v3840, 0
      %v7071 = vsel %vm6844, %v3841, 0
      %v7074 = vsel %vm6844, %v3842, 0
      %v7077 = vsel %vm6844, %v3843, 0
      %v7080 = vsel %vm6844, %v3844, 0
      %v7083 = vsel %vm6844, %v3845, 0
      %v7086 = vsel %vm6844, %v3846, 0
      %v7089 = vsel %vm6844, %v3847, 0
      %v7092 = vsel %vm6844, %v3848, 0
      %v7095 = vsel %vm6844, %v3849, 0
      %v7098 = vsel %vm6844, %v3850, 0
      %v7101 = vsel %vm6844, %v3851, 0
      %v7104 = vsel %vm6844, %v3852, 0
      %v7107 = vsel %vm6893, %v3853, 0
      %7109 = vmatprep.subr.bf16.mxu0 0
      %7110 = vmatpush1.bf16.msra.mxu0 %v7107
      %7111 = vmatprep.subr.bf16.mxu0 0
      %7112 = vmatpush1.bf16.msra.mxu0 0
      %7113 = vmatprep.subr.bf16.mxu0 0
      %7114 = vmatpush1.bf16.msra.mxu0 0
      %7115 = vmatprep.subr.bf16.mxu0 0
      %7116 = vmatpush1.bf16.msra.mxu0 0
      %7117 = vmatprep.subr.bf16.mxu0 0
      %7118 = vmatpush1.bf16.msra.mxu0 0
      %7119 = vmatprep.subr.bf16.mxu0 0
      %7120 = vmatpush1.bf16.msra.mxu0 0
      %7121 = vmatprep.subr.bf16.mxu0 0
      %7122 = vmatpush1.bf16.msra.mxu0 0
      %7123 = vmatprep.subr.bf16.mxu0 0
      %7124 = vmatpush1.bf16.msra.mxu0 0
      %7125 = vmatprep.subr.bf16.mxu0 0
      %7126 = vmatpush1.bf16.msra.mxu0 0
      %7127 = vmatprep.subr.bf16.mxu0 0
      %7128 = vmatpush1.bf16.msra.mxu0 0
      %7129 = vmatprep.subr.bf16.mxu0 0
      %7130 = vmatpush1.bf16.msra.mxu0 0
      %7131 = vmatprep.subr.bf16.mxu0 0
      %7132 = vmatpush1.bf16.msra.mxu0 0
      %7133 = vmatprep.subr.bf16.mxu0 0
      %7134 = vmatpush1.bf16.msra.mxu0 0
      %7135 = vmatprep.subr.bf16.mxu0 0
      %7136 = vmatpush1.bf16.msra.mxu0 0
      %7137 = vmatprep.subr.bf16.mxu0 0
      %7138 = vmatpush1.bf16.msra.mxu0 0
      %7139 = vmatprep.subr.bf16.mxu0 0
      %7140 = vmatpush1.bf16.msra.mxu0 0
      %7141 = vmatprep.mubr.bf16.mxu0 0
      %7142 = vmatmul.mubr.bf16.gmra.mrb[0].mxu0 %v7059
      %v7143 = vpop.f32.mrb[0].mxu0
      %v7144 = vadd.f32 %v6932, %v7143
      %v7145 = vpop.f32.mrb[0].mxu0
      %v7146 = vpop.f32.mrb[0].mxu0
      %v7147 = vadd.f32 %v6935, %v7146
      %v7148 = vpop.f32.mrb[0].mxu0
      %7149 = vmatprep.mubr.bf16.mxu0 0
      %7150 = vmatmul.mubr.bf16.gmra.mrb[0].mxu0 %v7062
      %v7151 = vpop.f32.mrb[0].mxu0
      %v7152 = vadd.f32 %v6940, %v7151
      %v7153 = vpop.f32.mrb[0].mxu0
      %v7154 = vpop.f32.mrb[0].mxu0
      %v7155 = vadd.f32 %v6943, %v7154
      %v7156 = vpop.f32.mrb[0].mxu0
      %7157 = vmatprep.mubr.bf16.mxu0 0
      %7158 = vmatmul.mubr.bf16.gmra.mrb[0].mxu0 %v7065
      %v7159 = vpop.f32.mrb[0].mxu0
      %v7160 = vadd.f32 %v6948, %v7159
      %v7161 = vpop.f32.mrb[0].mxu0
      %v7162 = vpop.f32.mrb[0].mxu0
      %v7163 = vadd.f32 %v6951, %v7162
      %v7164 = vpop.f32.mrb[0].mxu0
      %7165 = vmatprep.mubr.bf16.mxu0 0
      %7166 = vmatmul.mubr.bf16.gmra.mrb[0].mxu0 %v7068
      %v7167 = vpop.f32.mrb[0].mxu0
      %v7168 = vadd.f32 %v6956, %v7167
      %v7169 = vpop.f32.mrb[0].mxu0
      %v7170 = vpop.f32.mrb[0].mxu0
      %v7171 = vadd.f32 %v6959, %v7170
      %v7172 = vpop.f32.mrb[0].mxu0
      %7173 = vmatprep.mubr.bf16.mxu0 0
      %7174 = vmatmul.mubr.bf16.gmra.mrb[0].mxu0 %v7071
      %v7175 = vpop.f32.mrb[0].mxu0
      %v7176 = vadd.f32 %v6964, %v7175
      %v7177 = vpop.f32.mrb[0].mxu0
      %v7178 = vpop.f32.mrb[0].mxu0
      %v7179 = vadd.f32 %v6967, %v7178
      %v7180 = vpop.f32.mrb[0].mxu0
      %7181 = vmatprep.mubr.bf16.mxu0 0
      %7182 = vmatmul.mubr.bf16.gmra.mrb[0].mxu0 %v7074
      %v7183 = vpop.f32.mrb[0].mxu0
      %v7184 = vadd.f32 %v6972, %v7183
      %v7185 = vpop.f32.mrb[0].mxu0
      %v7186 = vpop.f32.mrb[0].mxu0
      %v7187 = vadd.f32 %v6975, %v7186
      %v7188 = vpop.f32.mrb[0].mxu0
      %7189 = vmatprep.mubr.bf16.mxu0 0
      %7190 = vmatmul.mubr.bf16.gmra.mrb[0].mxu0 %v7077
      %v7191 = vpop.f32.mrb[0].mxu0
      %v7192 = vadd.f32 %v6980, %v7191
      %v7193 = vpop.f32.mrb[0].mxu0
      %v7194 = vpop.f32.mrb[0].mxu0
      %v7195 = vadd.f32 %v6983, %v7194
      %v7196 = vpop.f32.mrb[0].mxu0
      %7197 = vmatprep.mubr.bf16.mxu0 0
      %7198 = vmatmul.mubr.bf16.gmra.mrb[0].mxu0 %v7080
      %v7199 = vpop.f32.mrb[0].mxu0
      %v7200 = vadd.f32 %v6988, %v7199
      %v7201 = vpop.f32.mrb[0].mxu0
      %v7202 = vpop.f32.mrb[0].mxu0
      %v7203 = vadd.f32 %v6991, %v7202
      %v7204 = vpop.f32.mrb[0].mxu0
      %7205 = vmatprep.mubr.bf16.mxu0 0
      %7206 = vmatmul.mubr.bf16.gmra.mrb[0].mxu0 %v7083
      %v7207 = vpop.f32.mrb[0].mxu0
      %v7208 = vadd.f32 %v6996, %v7207
      %v7209 = vpop.f32.mrb[0].mxu0
      %v7210 = vpop.f32.mrb[0].mxu0
      %v7211 = vadd.f32 %v6999, %v7210
      %v7212 = vpop.f32.mrb[0].mxu0
      %7213 = vmatprep.mubr.bf16.mxu0 0
      %7214 = vmatmul.mubr.bf16.gmra.mrb[0].mxu0 %v7086
      %v7215 = vpop.f32.mrb[0].mxu0
      %v7216 = vadd.f32 %v7004, %v7215
      %v7217 = vpop.f32.mrb[0].mxu0
      %v7218 = vpop.f32.mrb[0].mxu0
      %v7219 = vadd.f32 %v7007, %v7218
      %v7220 = vpop.f32.mrb[0].mxu0
      %7221 = vmatprep.mubr.bf16.mxu0 0
      %7222 = vmatmul.mubr.bf16.gmra.mrb[0].mxu0 %v7089
      %v7223 = vpop.f32.mrb[0].mxu0
      %v7224 = vadd.f32 %v7012, %v7223
      %v7225 = vpop.f32.mrb[0].mxu0
      %v7226 = vpop.f32.mrb[0].mxu0
      %v7227 = vadd.f32 %v7015, %v7226
      %v7228 = vpop.f32.mrb[0].mxu0
      %7229 = vmatprep.mubr.bf16.mxu0 0
      %7230 = vmatmul.mubr.bf16.gmra.mrb[0].mxu0 %v7092
      %v7231 = vpop.f32.mrb[0].mxu0
      %v7232 = vadd.f32 %v7020, %v7231
      %v7233 = vpop.f32.mrb[0].mxu0
      %v7234 = vpop.f32.mrb[0].mxu0
      %v7235 = vadd.f32 %v7023, %v7234
      %v7236 = vpop.f32.mrb[0].mxu0
      %7237 = vmatprep.mubr.bf16.mxu0 0
      %7238 = vmatmul.mubr.bf16.gmra.mrb[0].mxu0 %v7095
      %v7239 = vpop.f32.mrb[0].mxu0
      %v7240 = vadd.f32 %v7028, %v7239
      %v7241 = vpop.f32.mrb[0].mxu0
      %v7242 = vpop.f32.mrb[0].mxu0
      %v7243 = vadd.f32 %v7031, %v7242
      %v7244 = vpop.f32.mrb[0].mxu0
      %7245 = vmatprep.mubr.bf16.mxu0 0
      %7246 = vmatmul.mubr.bf16.gmra.mrb[0].mxu0 %v7098
      %v7247 = vpop.f32.mrb[0].mxu0
      %v7248 = vadd.f32 %v7036, %v7247
      %v7249 = vpop.f32.mrb[0].mxu0
      %v7250 = vpop.f32.mrb[0].mxu0
      %v7251 = vadd.f32 %v7039, %v7250
      %v7252 = vpop.f32.mrb[0].mxu0
      %7253 = vmatprep.mubr.bf16.mxu0 0
      %7254 = vmatmul.mubr.bf16.gmra.mrb[0].mxu0 %v7101
      %v7255 = vpop.f32.mrb[0].mxu0
      %v7256 = vadd.f32 %v7044, %v7255
      %v7257 = vpop.f32.mrb[0].mxu0
      %v7258 = vpop.f32.mrb[0].mxu0
      %v7259 = vadd.f32 %v7047, %v7258
      %v7260 = vpop.f32.mrb[0].mxu0
      %7261 = vmatprep.mubr.bf16.mxu0 0
      %7262 = vmatmul.mubr.bf16.gmra.mrb[0].mxu0 %v7104
      %v7263 = vpop.f32.mrb[0].mxu0
      %v7264 = vadd.f32 %v7052, %v7263
      %v7265 = vpop.f32.mrb[0].mxu0
      %v7266 = vpop.f32.mrb[0].mxu0
      %v7267 = vadd.f32 %v7055, %v7266
      %v7268 = vpop.f32.mrb[0].mxu0
      %7269 = vdwg.mxu0
      %s7270 = scalar_lea.vmem [#allocation2], 12
      %v7271 = vld [vmem:[%s7270] sm:$0xf]
      %v7272 = vld [vmem:[%s7270 + $0x4] sm:$0xf]
      %v7273 = vld [vmem:[%s7270 + $0x8] sm:$0x1]
      %v7274 = vld [vmem:[%s7270 + $0xc] sm:$0xf]
      %v7275 = vld [vmem:[%s7270 + $0x10] sm:$0xf]
      %v7276 = vld [vmem:[%s7270 + $0x14] sm:$0x1]
      %v7277 = vld [vmem:[%s7270 + $0x18] sm:$0xf]
      %v7278 = vld [vmem:[%s7270 + $0x1c] sm:$0xf]
      %v7279 = vld [vmem:[%s7270 + $0x20] sm:$0x1]
      %v7280 = vld [vmem:[%s7270 + $0x24] sm:$0xf]
      %v7281 = vld [vmem:[%s7270 + $0x28] sm:$0xf]
      %v7282 = vld [vmem:[%s7270 + $0x2c] sm:$0x1]
      %v7283 = vld [vmem:[%s7270 + $0x30] sm:$0xf]
      %v7284 = vld [vmem:[%s7270 + $0x34] sm:$0xf]
      %v7285 = vld [vmem:[%s7270 + $0x38] sm:$0x1]
      %v7286 = vld [vmem:[%s7270 + $0x3c] sm:$0xf]
      %v7287 = vld [vmem:[%s7270 + $0x40] sm:$0xf]
      %v7288 = vld [vmem:[%s7270 + $0x44] sm:$0x1]
      %v7289 = vld [vmem:[%s7270 + $0x48] sm:$0xf]
      %v7290 = vld [vmem:[%s7270 + $0x4c] sm:$0xf]
      %v7291 = vld [vmem:[%s7270 + $0x50] sm:$0x1]
      %v7292 = vld [vmem:[%s7270 + $0x54] sm:$0xf]
      %v7293 = vld [vmem:[%s7270 + $0x58] sm:$0xf]
      %v7294 = vld [vmem:[%s7270 + $0x5c] sm:$0x1]
      %v7295 = vld [vmem:[%s7270 + $0x60] sm:$0xf]
      %v7296 = vld [vmem:[%s7270 + $0x64] sm:$0xf]
      %v7297 = vld [vmem:[%s7270 + $0x68] sm:$0x1]
      %v7298 = vld [vmem:[%s7270 + $0x6c] sm:$0xf]
      %v7299 = vld [vmem:[%s7270 + $0x70] sm:$0xf]
      %v7300 = vld [vmem:[%s7270 + $0x74] sm:$0x1]
      %v7301 = vld [vmem:[%s7270 + $0x78] sm:$0xf]
      %v7302 = vld [vmem:[%s7270 + $0x7c] sm:$0xf]
      %v7303 = vld [vmem:[%s7270 + $0x80] sm:$0x1]
      %v7304 = vld [vmem:[%s7270 + $0x84] sm:$0xf]
      %v7305 = vld [vmem:[%s7270 + $0x88] sm:$0xf]
      %v7306 = vld [vmem:[%s7270 + $0x8c] sm:$0x1]
      %v7307 = vld [vmem:[%s7270 + $0x90] sm:$0xf]
      %v7308 = vld [vmem:[%s7270 + $0x94] sm:$0xf]
      %v7309 = vld [vmem:[%s7270 + $0x98] sm:$0x1]
      %v7310 = vld [vmem:[%s7270 + $0x9c] sm:$0xf]
      %v7311 = vld [vmem:[%s7270 + $0xa0] sm:$0xf]
      %v7312 = vld [vmem:[%s7270 + $0xa4] sm:$0x1]
      %v7313 = vld [vmem:[%s7270 + $0xa8] sm:$0xf]
      %v7314 = vld [vmem:[%s7270 + $0xac] sm:$0xf]
      %v7315 = vld [vmem:[%s7270 + $0xb0] sm:$0x1]
      %v7316 = vld [vmem:[%s7270 + $0xb4] sm:$0xf]
      %v7317 = vld [vmem:[%s7270 + $0xb8] sm:$0xf]
      %v7318 = vld [vmem:[%s7270 + $0xbc] sm:$0x1]
      %v7319 = vld [vmem:[%s7270] sm:$0xc]
      %v7320 = vld [vmem:[%s7270 + $0x8] sm:$0x3]
      %v7321 = vld [vmem:[%s7270 + $0xc] sm:$0xc]
      %v7322 = vld [vmem:[%s7270 + $0x14] sm:$0x3]
      %v7323 = vld [vmem:[%s7270 + $0x18] sm:$0xc]
      %v7324 = vld [vmem:[%s7270 + $0x20] sm:$0x3]
      %v7325 = vld [vmem:[%s7270 + $0x24] sm:$0xc]
      %v7326 = vld [vmem:[%s7270 + $0x2c] sm:$0x3]
      %v7327 = vld [vmem:[%s7270 + $0x30] sm:$0xc]
      %v7328 = vld [vmem:[%s7270 + $0x38] sm:$0x3]
      %v7329 = vld [vmem:[%s7270 + $0x3c] sm:$0xc]
      %v7330 = vld [vmem:[%s7270 + $0x44] sm:$0x3]
      %v7331 = vld [vmem:[%s7270 + $0x48] sm:$0xc]
      %v7332 = vld [vmem:[%s7270 + $0x50] sm:$0x3]
      %v7333 = vld [vmem:[%s7270 + $0x54] sm:$0xc]
      %v7334 = vld [vmem:[%s7270 + $0x5c] sm:$0x3]
      %v7335 = vld [vmem:[%s7270 + $0x60] sm:$0xc]
      %v7336 = vld [vmem:[%s7270 + $0x68] sm:$0x3]
      %v7337 = vld [vmem:[%s7270 + $0x6c] sm:$0xc]
      %v7338 = vld [vmem:[%s7270 + $0x74] sm:$0x3]
      %v7339 = vld [vmem:[%s7270 + $0x78] sm:$0xc]
      %v7340 = vld [vmem:[%s7270 + $0x80] sm:$0x3]
      %v7341 = vld [vmem:[%s7270 + $0x84] sm:$0xc]
      %v7342 = vld [vmem:[%s7270 + $0x8c] sm:$0x3]
      %v7343 = vld [vmem:[%s7270 + $0x90] sm:$0xc]
      %v7344 = vld [vmem:[%s7270 + $0x98] sm:$0x3]
      %v7345 = vld [vmem:[%s7270 + $0x9c] sm:$0xc]
      %v7346 = vld [vmem:[%s7270 + $0xa4] sm:$0x3]
      %v7347 = vld [vmem:[%s7270 + $0xa8] sm:$0xc]
      %v7348 = vld [vmem:[%s7270 + $0xb0] sm:$0x3]
      %v7349 = vld [vmem:[%s7270 + $0xb4] sm:$0xc]
      %v7350 = vld [vmem:[%s7270 + $0xbc] sm:$0x3]
      %v7351 = vld [vmem:[%s7270] sm:$0x8]
      %v7352 = vld [vmem:[%s7270 + $0x8] sm:$0xf]
      %v7353 = vld [vmem:[%s7270 + $0xc] sm:$0x8]
      %v7354 = vld [vmem:[%s7270 + $0x14] sm:$0xf]
      %v7355 = vld [vmem:[%s7270 + $0x18] sm:$0x8]
      %v7356 = vld [vmem:[%s7270 + $0x20] sm:$0xf]
      %v7357 = vld [vmem:[%s7270 + $0x24] sm:$0x8]
      %v7358 = vld [vmem:[%s7270 + $0x2c] sm:$0xf]
      %v7359 = vld [vmem:[%s7270 + $0x30] sm:$0x8]
      %v7360 = vld [vmem:[%s7270 + $0x38] sm:$0xf]
      %v7361 = vld [vmem:[%s7270 + $0x3c] sm:$0x8]
      %v7362 = vld [vmem:[%s7270 + $0x44] sm:$0xf]
      %v7363 = vld [vmem:[%s7270 + $0x48] sm:$0x8]
      %v7364 = vld [vmem:[%s7270 + $0x50] sm:$0xf]
      %v7365 = vld [vmem:[%s7270 + $0x54] sm:$0x8]
      %v7366 = vld [vmem:[%s7270 + $0x5c] sm:$0xf]
      %v7367 = vld [vmem:[%s7270 + $0x60] sm:$0x8]
      %v7368 = vld [vmem:[%s7270 + $0x68] sm:$0xf]
      %v7369 = vld [vmem:[%s7270 + $0x6c] sm:$0x8]
      %v7370 = vld [vmem:[%s7270 + $0x74] sm:$0xf]
      %v7371 = vld [vmem:[%s7270 + $0x78] sm:$0x8]
      %v7372 = vld [vmem:[%s7270 + $0x80] sm:$0xf]
      %v7373 = vld [vmem:[%s7270 + $0x84] sm:$0x8]
      %v7374 = vld [vmem:[%s7270 + $0x8c] sm:$0xf]
      %v7375 = vld [vmem:[%s7270 + $0x90] sm:$0x8]
      %v7376 = vld [vmem:[%s7270 + $0x98] sm:$0xf]
      %v7377 = vld [vmem:[%s7270 + $0x9c] sm:$0x8]
      %v7378 = vld [vmem:[%s7270 + $0xa4] sm:$0xf]
      %v7379 = vld [vmem:[%s7270 + $0xa8] sm:$0x8]
      %v7380 = vld [vmem:[%s7270 + $0xb0] sm:$0xf]
      %v7381 = vld [vmem:[%s7270 + $0xb4] sm:$0x8]
      %v7382 = vld [vmem:[%s7270 + $0xbc] sm:$0xf]
      %v7383 = vld [vmem:[%s467] sm:$0xf]
      %v7384 = vld [vmem:[%s467 + $0x4] sm:$0xf]
      %v7385 = vld [vmem:[%s467 + $0x8] sm:$0x1]
      %v7386 = vld [vmem:[%s467 + $0xc] sm:$0xf]
      %v7387 = vld [vmem:[%s467 + $0x10] sm:$0xf]
      %v7388 = vld [vmem:[%s467 + $0x14] sm:$0x1]
      %v7389 = vld [vmem:[%s467 + $0x18] sm:$0xf]
      %v7390 = vld [vmem:[%s467 + $0x1c] sm:$0xf]
      %v7391 = vld [vmem:[%s467 + $0x20] sm:$0x1]
      %v7392 = vld [vmem:[%s467 + $0x24] sm:$0xf]
      %v7393 = vld [vmem:[%s467 + $0x28] sm:$0xf]
      %v7394 = vld [vmem:[%s467 + $0x2c] sm:$0x1]
      %v7395 = vld [vmem:[%s467 + $0x30] sm:$0xf]
      %v7396 = vld [vmem:[%s467 + $0x34] sm:$0xf]
      %v7397 = vld [vmem:[%s467 + $0x38] sm:$0x1]
      %v7398 = vld [vmem:[%s467 + $0x3c] sm:$0xf]
      %v7399 = vld [vmem:[%s467 + $0x40] sm:$0xf]
      %v7400 = vld [vmem:[%s467 + $0x44] sm:$0x1]
      %v7401 = vld [vmem:[%s467 + $0x48] sm:$0xf]
      %v7402 = vld [vmem:[%s467 + $0x4c] sm:$0xf]
      %v7403 = vld [vmem:[%s467 + $0x50] sm:$0x1]
      %v7404 = vld [vmem:[%s467 + $0x54] sm:$0xf]
      %v7405 = vld [vmem:[%s467 + $0x58] sm:$0xf]
      %v7406 = vld [vmem:[%s467 + $0x5c] sm:$0x1]
      %v7407 = vld [vmem:[%s467 + $0x60] sm:$0xf]
      %v7408 = vld [vmem:[%s467 + $0x64] sm:$0xf]
      %v7409 = vld [vmem:[%s467 + $0x68] sm:$0x1]
      %v7410 = vld [vmem:[%s467 + $0x6c] sm:$0xf]
      %v7411 = vld [vmem:[%s467 + $0x70] sm:$0xf]
      %v7412 = vld [vmem:[%s467 + $0x74] sm:$0x1]
      %v7413 = vld [vmem:[%s467 + $0x78] sm:$0xf]
      %v7414 = vld [vmem:[%s467 + $0x7c] sm:$0xf]
      %v7415 = vld [vmem:[%s467 + $0x80] sm:$0x1]
      %v7416 = vld [vmem:[%s467 + $0x84] sm:$0xf]
      %v7417 = vld [vmem:[%s467 + $0x88] sm:$0xf]
      %v7418 = vld [vmem:[%s467 + $0x8c] sm:$0x1]
      %v7419 = vld [vmem:[%s467 + $0x90] sm:$0xf]
      %v7420 = vld [vmem:[%s467 + $0x94] sm:$0xf]
      %v7421 = vld [vmem:[%s467 + $0x98] sm:$0x1]
      %v7422 = vld [vmem:[%s467 + $0x9c] sm:$0xf]
      %v7423 = vld [vmem:[%s467 + $0xa0] sm:$0xf]
      %v7424 = vld [vmem:[%s467 + $0xa4] sm:$0x1]
      %v7425 = vld [vmem:[%s467 + $0xa8] sm:$0xf]
      %v7426 = vld [vmem:[%s467 + $0xac] sm:$0xf]
      %v7427 = vld [vmem:[%s467 + $0xb0] sm:$0x1]
      %v7428 = vld [vmem:[%s467 + $0xb4] sm:$0xf]
      %v7429 = vld [vmem:[%s467 + $0xb8] sm:$0xf]
      %v7430 = vld [vmem:[%s467 + $0xbc] sm:$0x1]
      %v7431 = vld [vmem:[%s467] sm:$0xc]
      %v7432 = vld [vmem:[%s467 + $0x8] sm:$0x3]
      %v7433 = vld [vmem:[%s467 + $0xc] sm:$0xc]
      %v7434 = vld [vmem:[%s467 + $0x14] sm:$0x3]
      %v7435 = vld [vmem:[%s467 + $0x18] sm:$0xc]
      %v7436 = vld [vmem:[%s467 + $0x20] sm:$0x3]
      %v7437 = vld [vmem:[%s467 + $0x24] sm:$0xc]
      %v7438 = vld [vmem:[%s467 + $0x2c] sm:$0x3]
      %v7439 = vld [vmem:[%s467 + $0x30] sm:$0xc]
      %v7440 = vld [vmem:[%s467 + $0x38] sm:$0x3]
      %v7441 = vld [vmem:[%s467 + $0x3c] sm:$0xc]
      %v7442 = vld [vmem:[%s467 + $0x44] sm:$0x3]
      %v7443 = vld [vmem:[%s467 + $0x48] sm:$0xc]
      %v7444 = vld [vmem:[%s467 + $0x50] sm:$0x3]
      %v7445 = vld [vmem:[%s467 + $0x54] sm:$0xc]
      %v7446 = vld [vmem:[%s467 + $0x5c] sm:$0x3]
      %v7447 = vld [vmem:[%s467 + $0x60] sm:$0xc]
      %v7448 = vld [vmem:[%s467 + $0x68] sm:$0x3]
      %v7449 = vld [vmem:[%s467 + $0x6c] sm:$0xc]
      %v7450 = vld [vmem:[%s467 + $0x74] sm:$0x3]
      %v7451 = vld [vmem:[%s467 + $0x78] sm:$0xc]
      %v7452 = vld [vmem:[%s467 + $0x80] sm:$0x3]
      %v7453 = vld [vmem:[%s467 + $0x84] sm:$0xc]
      %v7454 = vld [vmem:[%s467 + $0x8c] sm:$0x3]
      %v7455 = vld [vmem:[%s467 + $0x90] sm:$0xc]
      %v7456 = vld [vmem:[%s467 + $0x98] sm:$0x3]
      %v7457 = vld [vmem:[%s467 + $0x9c] sm:$0xc]
      %v7458 = vld [vmem:[%s467 + $0xa4] sm:$0x3]
      %v7459 = vld [vmem:[%s467 + $0xa8] sm:$0xc]
      %v7460 = vld [vmem:[%s467 + $0xb0] sm:$0x3]
      %v7461 = vld [vmem:[%s467 + $0xb4] sm:$0xc]
      %v7462 = vld [vmem:[%s467 + $0xbc] sm:$0x3]
      %v7463 = vld [vmem:[%s467] sm:$0x8]
      %v7464 = vld [vmem:[%s467 + $0x8] sm:$0xf]
      %v7465 = vld [vmem:[%s467 + $0xc] sm:$0x8]
      %v7466 = vld [vmem:[%s467 + $0x14] sm:$0xf]
      %v7467 = vld [vmem:[%s467 + $0x18] sm:$0x8]
      %v7468 = vld [vmem:[%s467 + $0x20] sm:$0xf]
      %v7469 = vld [vmem:[%s467 + $0x24] sm:$0x8]
      %v7470 = vld [vmem:[%s467 + $0x2c] sm:$0xf]
      %v7471 = vld [vmem:[%s467 + $0x30] sm:$0x8]
      %v7472 = vld [vmem:[%s467 + $0x38] sm:$0xf]
      %v7473 = vld [vmem:[%s467 + $0x3c] sm:$0x8]
      %v7474 = vld [vmem:[%s467 + $0x44] sm:$0xf]
      %v7475 = vld [vmem:[%s467 + $0x48] sm:$0x8]
      %v7476 = vld [vmem:[%s467 + $0x50] sm:$0xf]
      %v7477 = vld [vmem:[%s467 + $0x54] sm:$0x8]
      %v7478 = vld [vmem:[%s467 + $0x5c] sm:$0xf]
      %v7479 = vld [vmem:[%s467 + $0x60] sm:$0x8]
      %v7480 = vld [vmem:[%s467 + $0x68] sm:$0xf]
      %v7481 = vld [vmem:[%s467 + $0x6c] sm:$0x8]
      %v7482 = vld [vmem:[%s467 + $0x74] sm:$0xf]
      %v7483 = vld [vmem:[%s467 + $0x78] sm:$0x8]
      %v7484 = vld [vmem:[%s467 + $0x80] sm:$0xf]
      %v7485 = vld [vmem:[%s467 + $0x84] sm:$0x8]
      %v7486 = vld [vmem:[%s467 + $0x8c] sm:$0xf]
      %v7487 = vld [vmem:[%s467 + $0x90] sm:$0x8]
      %v7488 = vld [vmem:[%s467 + $0x98] sm:$0xf]
      %v7489 = vld [vmem:[%s467 + $0x9c] sm:$0x8]
      %v7490 = vld [vmem:[%s467 + $0xa4] sm:$0xf]
      %v7491 = vld [vmem:[%s467 + $0xa8] sm:$0x8]
      %v7492 = vld [vmem:[%s467 + $0xb0] sm:$0xf]
      %v7493 = vld [vmem:[%s467 + $0xb4] sm:$0x8]
      %v7494 = vld [vmem:[%s467 + $0xbc] sm:$0xf]
      %s7495 = scalar_lea.vmem [#allocation2], 84
      %v7496 = vld [vmem:[%s7495] sm:$0xf]
      %v7497 = vld [vmem:[%s7495 + $0x4] sm:$0xf]
      %v7498 = vld [vmem:[%s7495 + $0x8] sm:$0x1]
      %v7499 = vld [vmem:[%s7495 + $0xc] sm:$0xf]
      %v7500 = vld [vmem:[%s7495 + $0x10] sm:$0xf]
      %v7501 = vld [vmem:[%s7495 + $0x14] sm:$0x1]
      %v7502 = vld [vmem:[%s7495 + $0x18] sm:$0xf]
      %v7503 = vld [vmem:[%s7495 + $0x1c] sm:$0xf]
      %v7504 = vld [vmem:[%s7495 + $0x20] sm:$0x1]
      %v7505 = vld [vmem:[%s7495 + $0x24] sm:$0xf]
      %v7506 = vld [vmem:[%s7495 + $0x28] sm:$0xf]
      %v7507 = vld [vmem:[%s7495 + $0x2c] sm:$0x1]
      %v7508 = vld [vmem:[%s7495 + $0x30] sm:$0xf]
      %v7509 = vld [vmem:[%s7495 + $0x34] sm:$0xf]
      %v7510 = vld [vmem:[%s7495 + $0x38] sm:$0x1]
      %v7511 = vld [vmem:[%s7495 + $0x3c] sm:$0xf]
      %v7512 = vld [vmem:[%s7495 + $0x40] sm:$0xf]
      %v7513 = vld [vmem:[%s7495 + $0x44] sm:$0x1]
      %v7514 = vld [vmem:[%s7495 + $0x48] sm:$0xf]
      %v7515 = vld [vmem:[%s7495 + $0x4c] sm:$0xf]
      %v7516 = vld [vmem:[%s7495 + $0x50] sm:$0x1]
      %v7517 = vld [vmem:[%s7495 + $0x54] sm:$0xf]
      %v7518 = vld [vmem:[%s7495 + $0x58] sm:$0xf]
      %v7519 = vld [vmem:[%s7495 + $0x5c] sm:$0x1]
      %v7520 = vld [vmem:[%s7495 + $0x60] sm:$0xf]
      %v7521 = vld [vmem:[%s7495 + $0x64] sm:$0xf]
      %v7522 = vld [vmem:[%s7495 + $0x68] sm:$0x1]
      %v7523 = vld [vmem:[%s7495 + $0x6c] sm:$0xf]
      %v7524 = vld [vmem:[%s7495 + $0x70] sm:$0xf]
      %v7525 = vld [vmem:[%s7495 + $0x74] sm:$0x1]
      %v7526 = vld [vmem:[%s7495 + $0x78] sm:$0xf]
      %v7527 = vld [vmem:[%s7495 + $0x7c] sm:$0xf]
      %v7528 = vld [vmem:[%s7495 + $0x80] sm:$0x1]
      %v7529 = vld [vmem:[%s7495 + $0x84] sm:$0xf]
      %v7530 = vld [vmem:[%s7495 + $0x88] sm:$0xf]
      %v7531 = vld [vmem:[%s7495 + $0x8c] sm:$0x1]
      %v7532 = vld [vmem:[%s7495 + $0x90] sm:$0xf]
      %v7533 = vld [vmem:[%s7495 + $0x94] sm:$0xf]
      %v7534 = vld [vmem:[%s7495 + $0x98] sm:$0x1]
      %v7535 = vld [vmem:[%s7495 + $0x9c] sm:$0xf]
      %v7536 = vld [vmem:[%s7495 + $0xa0] sm:$0xf]
      %v7537 = vld [vmem:[%s7495 + $0xa4] sm:$0x1]
      %v7538 = vld [vmem:[%s7495 + $0xa8] sm:$0xf]
      %v7539 = vld [vmem:[%s7495 + $0xac] sm:$0xf]
      %v7540 = vld [vmem:[%s7495 + $0xb0] sm:$0x1]
      %v7541 = vld [vmem:[%s7495 + $0xb4] sm:$0xf]
      %v7542 = vld [vmem:[%s7495 + $0xb8] sm:$0xf]
      %v7543 = vld [vmem:[%s7495 + $0xbc] sm:$0x1]
      %v7544 = vld [vmem:[%s7495] sm:$0xc]
      %v7545 = vld [vmem:[%s7495 + $0x8] sm:$0x3]
      %v7546 = vld [vmem:[%s7495 + $0xc] sm:$0xc]
      %v7547 = vld [vmem:[%s7495 + $0x14] sm:$0x3]
      %v7548 = vld [vmem:[%s7495 + $0x18] sm:$0xc]
      %v7549 = vld [vmem:[%s7495 + $0x20] sm:$0x3]
      %v7550 = vld [vmem:[%s7495 + $0x24] sm:$0xc]
      %v7551 = vld [vmem:[%s7495 + $0x2c] sm:$0x3]
      %v7552 = vld [vmem:[%s7495 + $0x30] sm:$0xc]
      %v7553 = vld [vmem:[%s7495 + $0x38] sm:$0x3]
      %v7554 = vld [vmem:[%s7495 + $0x3c] sm:$0xc]
      %v7555 = vld [vmem:[%s7495 + $0x44] sm:$0x3]
      %v7556 = vld [vmem:[%s7495 + $0x48] sm:$0xc]
      %v7557 = vld [vmem:[%s7495 + $0x50] sm:$0x3]
      %v7558 = vld [vmem:[%s7495 + $0x54] sm:$0xc]
      %v7559 = vld [vmem:[%s7495 + $0x5c] sm:$0x3]
      %v7560 = vld [vmem:[%s7495 + $0x60] sm:$0xc]
      %v7561 = vld [vmem:[%s7495 + $0x68] sm:$0x3]
      %v7562 = vld [vmem:[%s7495 + $0x6c] sm:$0xc]
      %v7563 = vld [vmem:[%s7495 + $0x74] sm:$0x3]
      %v7564 = vld [vmem:[%s7495 + $0x78] sm:$0xc]
      %v7565 = vld [vmem:[%s7495 + $0x80] sm:$0x3]
      %v7566 = vld [vmem:[%s7495 + $0x84] sm:$0xc]
      %v7567 = vld [vmem:[%s7495 + $0x8c] sm:$0x3]
      %v7568 = vld [vmem:[%s7495 + $0x90] sm:$0xc]
      %v7569 = vld [vmem:[%s7495 + $0x98] sm:$0x3]
      %v7570 = vld [vmem:[%s7495 + $0x9c] sm:$0xc]
      %v7571 = vld [vmem:[%s7495 + $0xa4] sm:$0x3]
      %v7572 = vld [vmem:[%s7495 + $0xa8] sm:$0xc]
      %v7573 = vld [vmem:[%s7495 + $0xb0] sm:$0x3]
      %v7574 = vld [vmem:[%s7495 + $0xb4] sm:$0xc]
      %v7575 = vld [vmem:[%s7495 + $0xbc] sm:$0x3]
      %v7576 = vld [vmem:[%s7495] sm:$0x8]
      %v7577 = vld [vmem:[%s7495 + $0x8] sm:$0xf]
      %v7578 = vld [vmem:[%s7495 + $0xc] sm:$0x8]
      %v7579 = vld [vmem:[%s7495 + $0x14] sm:$0xf]
      %v7580 = vld [vmem:[%s7495 + $0x18] sm:$0x8]
      %v7581 = vld [vmem:[%s7495 + $0x20] sm:$0xf]
      %v7582 = vld [vmem:[%s7495 + $0x24] sm:$0x8]
      %v7583 = vld [vmem:[%s7495 + $0x2c] sm:$0xf]
      %v7584 = vld [vmem:[%s7495 + $0x30] sm:$0x8]
      %v7585 = vld [vmem:[%s7495 + $0x38] sm:$0xf]
      %v7586 = vld [vmem:[%s7495 + $0x3c] sm:$0x8]
      %v7587 = vld [vmem:[%s7495 + $0x44] sm:$0xf]
      %v7588 = vld [vmem:[%s7495 + $0x48] sm:$0x8]
      %v7589 = vld [vmem:[%s7495 + $0x50] sm:$0xf]
      %v7590 = vld [vmem:[%s7495 + $0x54] sm:$0x8]
      %v7591 = vld [vmem:[%s7495 + $0x5c] sm:$0xf]
      %v7592 = vld [vmem:[%s7495 + $0x60] sm:$0x8]
      %v7593 = vld [vmem:[%s7495 + $0x68] sm:$0xf]
      %v7594 = vld [vmem:[%s7495 + $0x6c] sm:$0x8]
      %v7595 = vld [vmem:[%s7495 + $0x74] sm:$0xf]
      %v7596 = vld [vmem:[%s7495 + $0x78] sm:$0x8]
      %v7597 = vld [vmem:[%s7495 + $0x80] sm:$0xf]
      %v7598 = vld [vmem:[%s7495 + $0x84] sm:$0x8]
      %v7599 = vld [vmem:[%s7495 + $0x8c] sm:$0xf]
      %v7600 = vld [vmem:[%s7495 + $0x90] sm:$0x8]
      %v7601 = vld [vmem:[%s7495 + $0x98] sm:$0xf]
      %v7602 = vld [vmem:[%s7495 + $0x9c] sm:$0x8]
      %v7603 = vld [vmem:[%s7495 + $0xa4] sm:$0xf]
      %v7604 = vld [vmem:[%s7495 + $0xa8] sm:$0x8]
      %v7605 = vld [vmem:[%s7495 + $0xb0] sm:$0xf]
      %v7606 = vld [vmem:[%s7495 + $0xb4] sm:$0x8]
      %v7607 = vld [vmem:[%s7495 + $0xbc] sm:$0xf]
      %v7656 = vunpack.c.l.b16 %v7271
      %v7657 = vunpack.c.l.b16 %v7272
      %v7658 = vunpack.c.l.b16 %v7273
      %v7659 = vunpack.c.l.b16 %v7274
      %v7660 = vunpack.c.l.b16 %v7275
      %v7661 = vunpack.c.l.b16 %v7276
      %v7662 = vunpack.c.l.b16 %v7277
      %v7663 = vunpack.c.l.b16 %v7278
      %v7664 = vunpack.c.l.b16 %v7279
      %v7665 = vunpack.c.l.b16 %v7280
      %v7666 = vunpack.c.l.b16 %v7281
      %v7667 = vunpack.c.l.b16 %v7282
      %v7668 = vunpack.c.l.b16 %v7283
      %v7669 = vunpack.c.l.b16 %v7284
      %v7670 = vunpack.c.l.b16 %v7285
      %v7671 = vunpack.c.l.b16 %v7286
      %v7672 = vunpack.c.l.b16 %v7287
      %v7673 = vunpack.c.l.b16 %v7288
      %v7674 = vunpack.c.l.b16 %v7289
      %v7675 = vunpack.c.l.b16 %v7290
      %v7676 = vunpack.c.l.b16 %v7291
      %v7677 = vunpack.c.l.b16 %v7292
      %v7678 = vunpack.c.l.b16 %v7293
      %v7679 = vunpack.c.l.b16 %v7294
      %v7680 = vunpack.c.l.b16 %v7295
      %v7681 = vunpack.c.l.b16 %v7296
      %v7682 = vunpack.c.l.b16 %v7297
      %v7683 = vunpack.c.l.b16 %v7298
      %v7684 = vunpack.c.l.b16 %v7299
      %v7685 = vunpack.c.l.b16 %v7300
      %v7686 = vunpack.c.l.b16 %v7301
      %v7687 = vunpack.c.l.b16 %v7302
      %v7688 = vunpack.c.l.b16 %v7303
      %v7689 = vunpack.c.l.b16 %v7304
      %v7690 = vunpack.c.l.b16 %v7305
      %v7691 = vunpack.c.l.b16 %v7306
      %v7692 = vunpack.c.l.b16 %v7307
      %v7693 = vunpack.c.l.b16 %v7308
      %v7694 = vunpack.c.l.b16 %v7309
      %v7695 = vunpack.c.l.b16 %v7310
      %v7696 = vunpack.c.l.b16 %v7311
      %v7697 = vunpack.c.l.b16 %v7312
      %v7698 = vunpack.c.l.b16 %v7313
      %v7699 = vunpack.c.l.b16 %v7314
      %v7700 = vunpack.c.l.b16 %v7315
      %v7701 = vunpack.c.l.b16 %v7316
      %v7702 = vunpack.c.l.b16 %v7317
      %v7703 = vunpack.c.l.b16 %v7318
      %v7704 = vpack.c.b16 %v7657, %v7656
      %v7705 = vpack.c.b16 %v7658, %v7658
      %v7706 = vpack.c.b16 %v7660, %v7659
      %v7707 = vpack.c.b16 %v7661, %v7661
      %v7708 = vpack.c.b16 %v7663, %v7662
      %v7709 = vpack.c.b16 %v7664, %v7664
      %v7710 = vpack.c.b16 %v7666, %v7665
      %v7711 = vpack.c.b16 %v7667, %v7667
      %v7712 = vpack.c.b16 %v7669, %v7668
      %v7713 = vpack.c.b16 %v7670, %v7670
      %v7714 = vpack.c.b16 %v7672, %v7671
      %v7715 = vpack.c.b16 %v7673, %v7673
      %v7716 = vpack.c.b16 %v7675, %v7674
      %v7717 = vpack.c.b16 %v7676, %v7676
      %v7718 = vpack.c.b16 %v7678, %v7677
      %v7719 = vpack.c.b16 %v7679, %v7679
      %v7720 = vpack.c.b16 %v7681, %v7680
      %v7721 = vpack.c.b16 %v7682, %v7682
      %v7722 = vpack.c.b16 %v7684, %v7683
      %v7723 = vpack.c.b16 %v7685, %v7685
      %v7724 = vpack.c.b16 %v7687, %v7686
      %v7725 = vpack.c.b16 %v7688, %v7688
      %v7726 = vpack.c.b16 %v7690, %v7689
      %v7727 = vpack.c.b16 %v7691, %v7691
      %v7728 = vpack.c.b16 %v7693, %v7692
      %v7729 = vpack.c.b16 %v7694, %v7694
      %v7730 = vpack.c.b16 %v7696, %v7695
      %v7731 = vpack.c.b16 %v7697, %v7697
      %v7732 = vpack.c.b16 %v7699, %v7698
      %v7733 = vpack.c.b16 %v7700, %v7700
      %v7734 = vpack.c.b16 %v7702, %v7701
      %v7735 = vpack.c.b16 %v7703, %v7703
      %v7768 = vunpack.c.l.b16 %v7319
      %v7769 = vunpack.c.l.b16 %v7320
      %v7770 = vunpack.c.l.b16 %v7321
      %v7771 = vunpack.c.l.b16 %v7322
      %v7772 = vunpack.c.l.b16 %v7323
      %v7773 = vunpack.c.l.b16 %v7324
      %v7774 = vunpack.c.l.b16 %v7325
      %v7775 = vunpack.c.l.b16 %v7326
      %v7776 = vunpack.c.l.b16 %v7327
      %v7777 = vunpack.c.l.b16 %v7328
      %v7778 = vunpack.c.l.b16 %v7329
      %v7779 = vunpack.c.l.b16 %v7330
      %v7780 = vunpack.c.l.b16 %v7331
      %v7781 = vunpack.c.l.b16 %v7332
      %v7782 = vunpack.c.l.b16 %v7333
      %v7783 = vunpack.c.l.b16 %v7334
      %v7784 = vunpack.c.l.b16 %v7335
      %v7785 = vunpack.c.l.b16 %v7336
      %v7786 = vunpack.c.l.b16 %v7337
      %v7787 = vunpack.c.l.b16 %v7338
      %v7788 = vunpack.c.l.b16 %v7339
      %v7789 = vunpack.c.l.b16 %v7340
      %v7790 = vunpack.c.l.b16 %v7341
      %v7791 = vunpack.c.l.b16 %v7342
      %v7792 = vunpack.c.l.b16 %v7343
      %v7793 = vunpack.c.l.b16 %v7344
      %v7794 = vunpack.c.l.b16 %v7345
      %v7795 = vunpack.c.l.b16 %v7346
      %v7796 = vunpack.c.l.b16 %v7347
      %v7797 = vunpack.c.l.b16 %v7348
      %v7798 = vunpack.c.l.b16 %v7349
      %v7799 = vunpack.c.l.b16 %v7350
      %v7800 = vpack.c.b16 %v7657, %v7768
      %v7801 = vpack.c.b16 %v7769, %v7769
      %v7802 = vpack.c.b16 %v7660, %v7770
      %v7803 = vpack.c.b16 %v7771, %v7771
      %v7804 = vpack.c.b16 %v7663, %v7772
      %v7805 = vpack.c.b16 %v7773, %v7773
      %v7806 = vpack.c.b16 %v7666, %v7774
      %v7807 = vpack.c.b16 %v7775, %v7775
      %v7808 = vpack.c.b16 %v7669, %v7776
      %v7809 = vpack.c.b16 %v7777, %v7777
      %v7810 = vpack.c.b16 %v7672, %v7778
      %v7811 = vpack.c.b16 %v7779, %v7779
      %v7812 = vpack.c.b16 %v7675, %v7780
      %v7813 = vpack.c.b16 %v7781, %v7781
      %v7814 = vpack.c.b16 %v7678, %v7782
      %v7815 = vpack.c.b16 %v7783, %v7783
      %v7816 = vpack.c.b16 %v7681, %v7784
      %v7817 = vpack.c.b16 %v7785, %v7785
      %v7818 = vpack.c.b16 %v7684, %v7786
      %v7819 = vpack.c.b16 %v7787, %v7787
      %v7820 = vpack.c.b16 %v7687, %v7788
      %v7821 = vpack.c.b16 %v7789, %v7789
      %v7822 = vpack.c.b16 %v7690, %v7790
      %v7823 = vpack.c.b16 %v7791, %v7791
      %v7824 = vpack.c.b16 %v7693, %v7792
      %v7825 = vpack.c.b16 %v7793, %v7793
      %v7826 = vpack.c.b16 %v7696, %v7794
      %v7827 = vpack.c.b16 %v7795, %v7795
      %v7828 = vpack.c.b16 %v7699, %v7796
      %v7829 = vpack.c.b16 %v7797, %v7797
      %v7830 = vpack.c.b16 %v7702, %v7798
      %v7831 = vpack.c.b16 %v7799, %v7799
      %v7833 = vshrl.u32 %v7800, 16
      %v7835 = vrot.slane %v7833, 1
      %v7836 = vshll.u32 %v7800, 16
      %v7838 = vrot.slane %v7836, 2
      %v7839 = vor.u32 %v7835, %v7838
      %v7841 = vshrl.u32 %v7801, 16
      %v7843 = vrot.slane %v7841, 1
      %v7844 = vshll.u32 %v7801, 16
      %v7846 = vrot.slane %v7844, 2
      %v7847 = vor.u32 %v7843, %v7846
      %v7848 = vsel %vm3355, %v7839, %v7847
      %v7850 = vshrl.u32 %v7802, 16
      %v7852 = vrot.slane %v7850, 1
      %v7853 = vshll.u32 %v7802, 16
      %v7855 = vrot.slane %v7853, 2
      %v7856 = vor.u32 %v7852, %v7855
      %v7858 = vshrl.u32 %v7803, 16
      %v7860 = vrot.slane %v7858, 1
      %v7861 = vshll.u32 %v7803, 16
      %v7863 = vrot.slane %v7861, 2
      %v7864 = vor.u32 %v7860, %v7863
      %v7865 = vsel %vm3355, %v7856, %v7864
      %v7867 = vshrl.u32 %v7804, 16
      %v7869 = vrot.slane %v7867, 1
      %v7870 = vshll.u32 %v7804, 16
      %v7872 = vrot.slane %v7870, 2
      %v7873 = vor.u32 %v7869, %v7872
      %v7875 = vshrl.u32 %v7805, 16
      %v7877 = vrot.slane %v7875, 1
      %v7878 = vshll.u32 %v7805, 16
      %v7880 = vrot.slane %v7878, 2
      %v7881 = vor.u32 %v7877, %v7880
      %v7882 = vsel %vm3355, %v7873, %v7881
      %v7884 = vshrl.u32 %v7806, 16
      %v7886 = vrot.slane %v7884, 1
      %v7887 = vshll.u32 %v7806, 16
      %v7889 = vrot.slane %v7887, 2
      %v7890 = vor.u32 %v7886, %v7889
      %v7892 = vshrl.u32 %v7807, 16
      %v7894 = vrot.slane %v7892, 1
      %v7895 = vshll.u32 %v7807, 16
      %v7897 = vrot.slane %v7895, 2
      %v7898 = vor.u32 %v7894, %v7897
      %v7899 = vsel %vm3355, %v7890, %v7898
      %v7901 = vshrl.u32 %v7808, 16
      %v7903 = vrot.slane %v7901, 1
      %v7904 = vshll.u32 %v7808, 16
      %v7906 = vrot.slane %v7904, 2
      %v7907 = vor.u32 %v7903, %v7906
      %v7909 = vshrl.u32 %v7809, 16
      %v7911 = vrot.slane %v7909, 1
      %v7912 = vshll.u32 %v7809, 16
      %v7914 = vrot.slane %v7912, 2
      %v7915 = vor.u32 %v7911, %v7914
      %v7916 = vsel %vm3355, %v7907, %v7915
      %v7918 = vshrl.u32 %v7810, 16
      %v7920 = vrot.slane %v7918, 1
      %v7921 = vshll.u32 %v7810, 16
      %v7923 = vrot.slane %v7921, 2
      %v7924 = vor.u32 %v7920, %v7923
      %v7926 = vshrl.u32 %v7811, 16
      %v7928 = vrot.slane %v7926, 1
      %v7929 = vshll.u32 %v7811, 16
      %v7931 = vrot.slane %v7929, 2
      %v7932 = vor.u32 %v7928, %v7931
      %v7933 = vsel %vm3355, %v7924, %v7932
      %v7935 = vshrl.u32 %v7812, 16
      %v7937 = vrot.slane %v7935, 1
      %v7938 = vshll.u32 %v7812, 16
      %v7940 = vrot.slane %v7938, 2
      %v7941 = vor.u32 %v7937, %v7940
      %v7943 = vshrl.u32 %v7813, 16
      %v7945 = vrot.slane %v7943, 1
      %v7946 = vshll.u32 %v7813, 16
      %v7948 = vrot.slane %v7946, 2
      %v7949 = vor.u32 %v7945, %v7948
      %v7950 = vsel %vm3355, %v7941, %v7949
      %v7952 = vshrl.u32 %v7814, 16
      %v7954 = vrot.slane %v7952, 1
      %v7955 = vshll.u32 %v7814, 16
      %v7957 = vrot.slane %v7955, 2
      %v7958 = vor.u32 %v7954, %v7957
      %v7960 = vshrl.u32 %v7815, 16
      %v7962 = vrot.slane %v7960, 1
      %v7963 = vshll.u32 %v7815, 16
      %v7965 = vrot.slane %v7963, 2
      %v7966 = vor.u32 %v7962, %v7965
      %v7967 = vsel %vm3355, %v7958, %v7966
      %v7969 = vshrl.u32 %v7816, 16
      %v7971 = vrot.slane %v7969, 1
      %v7972 = vshll.u32 %v7816, 16
      %v7974 = vrot.slane %v7972, 2
      %v7975 = vor.u32 %v7971, %v7974
      %v7977 = vshrl.u32 %v7817, 16
      %v7979 = vrot.slane %v7977, 1
      %v7980 = vshll.u32 %v7817, 16
      %v7982 = vrot.slane %v7980, 2
      %v7983 = vor.u32 %v7979, %v7982
      %v7984 = vsel %vm3355, %v7975, %v7983
      %v7986 = vshrl.u32 %v7818, 16
      %v7988 = vrot.slane %v7986, 1
      %v7989 = vshll.u32 %v7818, 16
      %v7991 = vrot.slane %v7989, 2
      %v7992 = vor.u32 %v7988, %v7991
      %v7994 = vshrl.u32 %v7819, 16
      %v7996 = vrot.slane %v7994, 1
      %v7997 = vshll.u32 %v7819, 16
      %v7999 = vrot.slane %v7997, 2
      %v8000 = vor.u32 %v7996, %v7999
      %v8001 = vsel %vm3355, %v7992, %v8000
      %v8003 = vshrl.u32 %v7820, 16
      %v8005 = vrot.slane %v8003, 1
      %v8006 = vshll.u32 %v7820, 16
      %v8008 = vrot.slane %v8006, 2
      %v8009 = vor.u32 %v8005, %v8008
      %v8011 = vshrl.u32 %v7821, 16
      %v8013 = vrot.slane %v8011, 1
      %v8014 = vshll.u32 %v7821, 16
      %v8016 = vrot.slane %v8014, 2
      %v8017 = vor.u32 %v8013, %v8016
      %v8018 = vsel %vm3355, %v8009, %v8017
      %v8020 = vshrl.u32 %v7822, 16
      %v8022 = vrot.slane %v8020, 1
      %v8023 = vshll.u32 %v7822, 16
      %v8025 = vrot.slane %v8023, 2
      %v8026 = vor.u32 %v8022, %v8025
      %v8028 = vshrl.u32 %v7823, 16
      %v8030 = vrot.slane %v8028, 1
      %v8031 = vshll.u32 %v7823, 16
      %v8033 = vrot.slane %v8031, 2
      %v8034 = vor.u32 %v8030, %v8033
      %v8035 = vsel %vm3355, %v8026, %v8034
      %v8037 = vshrl.u32 %v7824, 16
      %v8039 = vrot.slane %v8037, 1
      %v8040 = vshll.u32 %v7824, 16
      %v8042 = vrot.slane %v8040, 2
      %v8043 = vor.u32 %v8039, %v8042
      %v8045 = vshrl.u32 %v7825, 16
      %v8047 = vrot.slane %v8045, 1
      %v8048 = vshll.u32 %v7825, 16
      %v8050 = vrot.slane %v8048, 2
      %v8051 = vor.u32 %v8047, %v8050
      %v8052 = vsel %vm3355, %v8043, %v8051
      %v8054 = vshrl.u32 %v7826, 16
      %v8056 = vrot.slane %v8054, 1
      %v8057 = vshll.u32 %v7826, 16
      %v8059 = vrot.slane %v8057, 2
      %v8060 = vor.u32 %v8056, %v8059
      %v8062 = vshrl.u32 %v7827, 16
      %v8064 = vrot.slane %v8062, 1
      %v8065 = vshll.u32 %v7827, 16
      %v8067 = vrot.slane %v8065, 2
      %v8068 = vor.u32 %v8064, %v8067
      %v8069 = vsel %vm3355, %v8060, %v8068
      %v8071 = vshrl.u32 %v7828, 16
      %v8073 = vrot.slane %v8071, 1
      %v8074 = vshll.u32 %v7828, 16
      %v8076 = vrot.slane %v8074, 2
      %v8077 = vor.u32 %v8073, %v8076
      %v8079 = vshrl.u32 %v7829, 16
      %v8081 = vrot.slane %v8079, 1
      %v8082 = vshll.u32 %v7829, 16
      %v8084 = vrot.slane %v8082, 2
      %v8085 = vor.u32 %v8081, %v8084
      %v8086 = vsel %vm3355, %v8077, %v8085
      %v8088 = vshrl.u32 %v7830, 16
      %v8090 = vrot.slane %v8088, 1
      %v8091 = vshll.u32 %v7830, 16
      %v8093 = vrot.slane %v8091, 2
      %v8094 = vor.u32 %v8090, %v8093
      %v8096 = vshrl.u32 %v7831, 16
      %v8098 = vrot.slane %v8096, 1
      %v8099 = vshll.u32 %v7831, 16
      %v8101 = vrot.slane %v8099, 2
      %v8102 = vor.u32 %v8098, %v8101
      %v8103 = vsel %vm3355, %v8094, %v8102
      %8104 = vrot.lane.b32.xlu0 %v7848, 8
      %v8105 = vpop.permute.xlu0 %8104
      %8106 = vrot.lane.b32.xlu0 %v7843, 8
      %v8107 = vpop.permute.xlu0 %8106
      %8108 = vrot.lane.b32.xlu0 %v7865, 8
      %v8109 = vpop.permute.xlu0 %8108
      %8110 = vrot.lane.b32.xlu0 %v7860, 8
      %v8111 = vpop.permute.xlu0 %8110
      %8112 = vrot.lane.b32.xlu0 %v7882, 8
      %v8113 = vpop.permute.xlu0 %8112
      %8114 = vrot.lane.b32.xlu0 %v7877, 8
      %v8115 = vpop.permute.xlu0 %8114
      %8116 = vrot.lane.b32.xlu0 %v7899, 8
      %v8117 = vpop.permute.xlu0 %8116
      %8118 = vrot.lane.b32.xlu0 %v7894, 8
      %v8119 = vpop.permute.xlu0 %8118
      %8120 = vrot.lane.b32.xlu0 %v7916, 8
      %v8121 = vpop.permute.xlu0 %8120
      %8122 = vrot.lane.b32.xlu0 %v7911, 8
      %v8123 = vpop.permute.xlu0 %8122
      %8124 = vrot.lane.b32.xlu0 %v7933, 8
      %v8125 = vpop.permute.xlu0 %8124
      %8126 = vrot.lane.b32.xlu0 %v7928, 8
      %v8127 = vpop.permute.xlu0 %8126
      %8128 = vrot.lane.b32.xlu0 %v7950, 8
      %v8129 = vpop.permute.xlu0 %8128
      %8130 = vrot.lane.b32.xlu0 %v7945, 8
      %v8131 = vpop.permute.xlu0 %8130
      %8132 = vrot.lane.b32.xlu0 %v7967, 8
      %v8133 = vpop.permute.xlu0 %8132
      %8134 = vrot.lane.b32.xlu0 %v7962, 8
      %v8135 = vpop.permute.xlu0 %8134
      %8136 = vrot.lane.b32.xlu0 %v7984, 8
      %v8137 = vpop.permute.xlu0 %8136
      %8138 = vrot.lane.b32.xlu0 %v7979, 8
      %v8139 = vpop.permute.xlu0 %8138
      %8140 = vrot.lane.b32.xlu0 %v8001, 8
      %v8141 = vpop.permute.xlu0 %8140
      %8142 = vrot.lane.b32.xlu0 %v7996, 8
      %v8143 = vpop.permute.xlu0 %8142
      %8144 = vrot.lane.b32.xlu0 %v8018, 8
      %v8145 = vpop.permute.xlu0 %8144
      %8146 = vrot.lane.b32.xlu0 %v8013, 8
      %v8147 = vpop.permute.xlu0 %8146
      %8148 = vrot.lane.b32.xlu0 %v8035, 8
      %v8149 = vpop.permute.xlu0 %8148
      %8150 = vrot.lane.b32.xlu0 %v8030, 8
      %v8151 = vpop.permute.xlu0 %8150
      %8152 = vrot.lane.b32.xlu0 %v8052, 8
      %v8153 = vpop.permute.xlu0 %8152
      %8154 = vrot.lane.b32.xlu0 %v8047, 8
      %v8155 = vpop.permute.xlu0 %8154
      %8156 = vrot.lane.b32.xlu0 %v8069, 8
      %v8157 = vpop.permute.xlu0 %8156
      %8158 = vrot.lane.b32.xlu0 %v8064, 8
      %v8159 = vpop.permute.xlu0 %8158
      %8160 = vrot.lane.b32.xlu0 %v8086, 8
      %v8161 = vpop.permute.xlu0 %8160
      %8162 = vrot.lane.b32.xlu0 %v8081, 8
      %v8163 = vpop.permute.xlu0 %8162
      %8164 = vrot.lane.b32.xlu0 %v8103, 8
      %v8165 = vpop.permute.xlu0 %8164
      %8166 = vrot.lane.b32.xlu0 %v8098, 8
      %v8167 = vpop.permute.xlu0 %8166
      %v8200 = vunpack.c.l.b16 %v7351
      %v8201 = vunpack.c.l.b16 %v7352
      %v8202 = vunpack.c.l.b16 %v7353
      %v8203 = vunpack.c.l.b16 %v7354
      %v8204 = vunpack.c.l.b16 %v7355
      %v8205 = vunpack.c.l.b16 %v7356
      %v8206 = vunpack.c.l.b16 %v7357
      %v8207 = vunpack.c.l.b16 %v7358
      %v8208 = vunpack.c.l.b16 %v7359
      %v8209 = vunpack.c.l.b16 %v7360
      %v8210 = vunpack.c.l.b16 %v7361
      %v8211 = vunpack.c.l.b16 %v7362
      %v8212 = vunpack.c.l.b16 %v7363
      %v8213 = vunpack.c.l.b16 %v7364
      %v8214 = vunpack.c.l.b16 %v7365
      %v8215 = vunpack.c.l.b16 %v7366
      %v8216 = vunpack.c.l.b16 %v7367
      %v8217 = vunpack.c.l.b16 %v7368
      %v8218 = vunpack.c.l.b16 %v7369
      %v8219 = vunpack.c.l.b16 %v7370
      %v8220 = vunpack.c.l.b16 %v7371
      %v8221 = vunpack.c.l.b16 %v7372
      %v8222 = vunpack.c.l.b16 %v7373
      %v8223 = vunpack.c.l.b16 %v7374
      %v8224 = vunpack.c.l.b16 %v7375
      %v8225 = vunpack.c.l.b16 %v7376
      %v8226 = vunpack.c.l.b16 %v7377
      %v8227 = vunpack.c.l.b16 %v7378
      %v8228 = vunpack.c.l.b16 %v7379
      %v8229 = vunpack.c.l.b16 %v7380
      %v8230 = vunpack.c.l.b16 %v7381
      %v8231 = vunpack.c.l.b16 %v7382
      %v8232 = vpack.c.b16 %v7657, %v8200
      %v8233 = vpack.c.b16 %v8201, %v8201
      %v8234 = vpack.c.b16 %v7660, %v8202
      %v8235 = vpack.c.b16 %v8203, %v8203
      %v8236 = vpack.c.b16 %v7663, %v8204
      %v8237 = vpack.c.b16 %v8205, %v8205
      %v8238 = vpack.c.b16 %v7666, %v8206
      %v8239 = vpack.c.b16 %v8207, %v8207
      %v8240 = vpack.c.b16 %v7669, %v8208
      %v8241 = vpack.c.b16 %v8209, %v8209
      %v8242 = vpack.c.b16 %v7672, %v8210
      %v8243 = vpack.c.b16 %v8211, %v8211
      %v8244 = vpack.c.b16 %v7675, %v8212
      %v8245 = vpack.c.b16 %v8213, %v8213
      %v8246 = vpack.c.b16 %v7678, %v8214
      %v8247 = vpack.c.b16 %v8215, %v8215
      %v8248 = vpack.c.b16 %v7681, %v8216
      %v8249 = vpack.c.b16 %v8217, %v8217
      %v8250 = vpack.c.b16 %v7684, %v8218
      %v8251 = vpack.c.b16 %v8219, %v8219
      %v8252 = vpack.c.b16 %v7687, %v8220
      %v8253 = vpack.c.b16 %v8221, %v8221
      %v8254 = vpack.c.b16 %v7690, %v8222
      %v8255 = vpack.c.b16 %v8223, %v8223
      %v8256 = vpack.c.b16 %v7693, %v8224
      %v8257 = vpack.c.b16 %v8225, %v8225
      %v8258 = vpack.c.b16 %v7696, %v8226
      %v8259 = vpack.c.b16 %v8227, %v8227
      %v8260 = vpack.c.b16 %v7699, %v8228
      %v8261 = vpack.c.b16 %v8229, %v8229
      %v8262 = vpack.c.b16 %v7702, %v8230
      %v8263 = vpack.c.b16 %v8231, %v8231
      %vm8264 = vcmask 1044480
      %v8265 = vrot.slane %v8232, 3
      %v8266 = vrot.slane %v8233, 3
      %v8267 = vsel %vm8264, %v8265, %v8266
      %v8268 = vrot.slane %v8234, 3
      %v8269 = vrot.slane %v8235, 3
      %v8270 = vsel %vm8264, %v8268, %v8269
      %v8271 = vrot.slane %v8236, 3
      %v8272 = vrot.slane %v8237, 3
      %v8273 = vsel %vm8264, %v8271, %v8272
      %v8274 = vrot.slane %v8238, 3
      %v8275 = vrot.slane %v8239, 3
      %v8276 = vsel %vm8264, %v8274, %v8275
      %v8277 = vrot.slane %v8240, 3
      %v8278 = vrot.slane %v8241, 3
      %v8279 = vsel %vm8264, %v8277, %v8278
      %v8280 = vrot.slane %v8242, 3
      %v8281 = vrot.slane %v8243, 3
      %v8282 = vsel %vm8264, %v8280, %v8281
      %v8283 = vrot.slane %v8244, 3
      %v8284 = vrot.slane %v8245, 3
      %v8285 = vsel %vm8264, %v8283, %v8284
      %v8286 = vrot.slane %v8246, 3
      %v8287 = vrot.slane %v8247, 3
      %v8288 = vsel %vm8264, %v8286, %v8287
      %v8289 = vrot.slane %v8248, 3
      %v8290 = vrot.slane %v8249, 3
      %v8291 = vsel %vm8264, %v8289, %v8290
      %v8292 = vrot.slane %v8250, 3
      %v8293 = vrot.slane %v8251, 3
      %v8294 = vsel %vm8264, %v8292, %v8293
      %v8295 = vrot.slane %v8252, 3
      %v8296 = vrot.slane %v8253, 3
      %v8297 = vsel %vm8264, %v8295, %v8296
      %v8298 = vrot.slane %v8254, 3
      %v8299 = vrot.slane %v8255, 3
      %v8300 = vsel %vm8264, %v8298, %v8299
      %v8301 = vrot.slane %v8256, 3
      %v8302 = vrot.slane %v8257, 3
      %v8303 = vsel %vm8264, %v8301, %v8302
      %v8304 = vrot.slane %v8258, 3
      %v8305 = vrot.slane %v8259, 3
      %v8306 = vsel %vm8264, %v8304, %v8305
      %v8307 = vrot.slane %v8260, 3
      %v8308 = vrot.slane %v8261, 3
      %v8309 = vsel %vm8264, %v8307, %v8308
      %v8310 = vrot.slane %v8262, 3
      %v8311 = vrot.slane %v8263, 3
      %v8312 = vsel %vm8264, %v8310, %v8311
      %8313 = vrot.lane.b32.xlu0 %v8267, 16
      %v8314 = vpop.permute.xlu0 %8313
      %8315 = vrot.lane.b32.xlu0 %v8266, 16
      %v8316 = vpop.permute.xlu0 %8315
      %8317 = vrot.lane.b32.xlu0 %v8270, 16
      %v8318 = vpop.permute.xlu0 %8317
      %8319 = vrot.lane.b32.xlu0 %v8269, 16
      %v8320 = vpop.permute.xlu0 %8319
      %8321 = vrot.lane.b32.xlu0 %v8273, 16
      %v8322 = vpop.permute.xlu0 %8321
      %8323 = vrot.lane.b32.xlu0 %v8272, 16
      %v8324 = vpop.permute.xlu0 %8323
      %8325 = vrot.lane.b32.xlu0 %v8276, 16
      %v8326 = vpop.permute.xlu0 %8325
      %8327 = vrot.lane.b32.xlu0 %v8275, 16
      %v8328 = vpop.permute.xlu0 %8327
      %8329 = vrot.lane.b32.xlu0 %v8279, 16
      %v8330 = vpop.permute.xlu0 %8329
      %8331 = vrot.lane.b32.xlu0 %v8278, 16
      %v8332 = vpop.permute.xlu0 %8331
      %8333 = vrot.lane.b32.xlu0 %v8282, 16
      %v8334 = vpop.permute.xlu0 %8333
      %8335 = vrot.lane.b32.xlu0 %v8281, 16
      %v8336 = vpop.permute.xlu0 %8335
      %8337 = vrot.lane.b32.xlu0 %v8285, 16
      %v8338 = vpop.permute.xlu0 %8337
      %8339 = vrot.lane.b32.xlu0 %v8284, 16
      %v8340 = vpop.permute.xlu0 %8339
      %8341 = vrot.lane.b32.xlu0 %v8288, 16
      %v8342 = vpop.permute.xlu0 %8341
      %8343 = vrot.lane.b32.xlu0 %v8287, 16
      %v8344 = vpop.permute.xlu0 %8343
      %8345 = vrot.lane.b32.xlu0 %v8291, 16
      %v8346 = vpop.permute.xlu0 %8345
      %8347 = vrot.lane.b32.xlu0 %v8290, 16
      %v8348 = vpop.permute.xlu0 %8347
      %8349 = vrot.lane.b32.xlu0 %v8294, 16
      %v8350 = vpop.permute.xlu0 %8349
      %8351 = vrot.lane.b32.xlu0 %v8293, 16
      %v8352 = vpop.permute.xlu0 %8351
      %8353 = vrot.lane.b32.xlu0 %v8297, 16
      %v8354 = vpop.permute.xlu0 %8353
      %8355 = vrot.lane.b32.xlu0 %v8296, 16
      %v8356 = vpop.permute.xlu0 %8355
      %8357 = vrot.lane.b32.xlu0 %v8300, 16
      %v8358 = vpop.permute.xlu0 %8357
      %8359 = vrot.lane.b32.xlu0 %v8299, 16
      %v8360 = vpop.permute.xlu0 %8359
      %8361 = vrot.lane.b32.xlu0 %v8303, 16
      %v8362 = vpop.permute.xlu0 %8361
      %8363 = vrot.lane.b32.xlu0 %v8302, 16
      %v8364 = vpop.permute.xlu0 %8363
      %8365 = vrot.lane.b32.xlu0 %v8306, 16
      %v8366 = vpop.permute.xlu0 %8365
      %8367 = vrot.lane.b32.xlu0 %v8305, 16
      %v8368 = vpop.permute.xlu0 %8367
      %8369 = vrot.lane.b32.xlu0 %v8309, 16
      %v8370 = vpop.permute.xlu0 %8369
      %8371 = vrot.lane.b32.xlu0 %v8308, 16
      %v8372 = vpop.permute.xlu0 %8371
      %8373 = vrot.lane.b32.xlu0 %v8312, 16
      %v8374 = vpop.permute.xlu0 %8373
      %8375 = vrot.lane.b32.xlu0 %v8311, 16
      %v8376 = vpop.permute.xlu0 %8375
      %v8425 = vunpack.c.l.b16 %v7383
      %v8426 = vunpack.c.l.b16 %v7384
      %v8427 = vunpack.c.l.b16 %v7385
      %v8428 = vunpack.c.l.b16 %v7386
      %v8429 = vunpack.c.l.b16 %v7387
      %v8430 = vunpack.c.l.b16 %v7388
      %v8431 = vunpack.c.l.b16 %v7389
      %v8432 = vunpack.c.l.b16 %v7390
      %v8433 = vunpack.c.l.b16 %v7391
      %v8434 = vunpack.c.l.b16 %v7392
      %v8435 = vunpack.c.l.b16 %v7393
      %v8436 = vunpack.c.l.b16 %v7394
      %v8437 = vunpack.c.l.b16 %v7395
      %v8438 = vunpack.c.l.b16 %v7396
      %v8439 = vunpack.c.l.b16 %v7397
      %v8440 = vunpack.c.l.b16 %v7398
      %v8441 = vunpack.c.l.b16 %v7399
      %v8442 = vunpack.c.l.b16 %v7400
      %v8443 = vunpack.c.l.b16 %v7401
      %v8444 = vunpack.c.l.b16 %v7402
      %v8445 = vunpack.c.l.b16 %v7403
      %v8446 = vunpack.c.l.b16 %v7404
      %v8447 = vunpack.c.l.b16 %v7405
      %v8448 = vunpack.c.l.b16 %v7406
      %v8449 = vunpack.c.l.b16 %v7407
      %v8450 = vunpack.c.l.b16 %v7408
      %v8451 = vunpack.c.l.b16 %v7409
      %v8452 = vunpack.c.l.b16 %v7410
      %v8453 = vunpack.c.l.b16 %v7411
      %v8454 = vunpack.c.l.b16 %v7412
      %v8455 = vunpack.c.l.b16 %v7413
      %v8456 = vunpack.c.l.b16 %v7414
      %v8457 = vunpack.c.l.b16 %v7415
      %v8458 = vunpack.c.l.b16 %v7416
      %v8459 = vunpack.c.l.b16 %v7417
      %v8460 = vunpack.c.l.b16 %v7418
      %v8461 = vunpack.c.l.b16 %v7419
      %v8462 = vunpack.c.l.b16 %v7420
      %v8463 = vunpack.c.l.b16 %v7421
      %v8464 = vunpack.c.l.b16 %v7422
      %v8465 = vunpack.c.l.b16 %v7423
      %v8466 = vunpack.c.l.b16 %v7424
      %v8467 = vunpack.c.l.b16 %v7425
      %v8468 = vunpack.c.l.b16 %v7426
      %v8469 = vunpack.c.l.b16 %v7427
      %v8470 = vunpack.c.l.b16 %v7428
      %v8471 = vunpack.c.l.b16 %v7429
      %v8472 = vunpack.c.l.b16 %v7430
      %v8473 = vpack.c.b16 %v8426, %v8425
      %v8474 = vpack.c.b16 %v8427, %v8427
      %v8475 = vpack.c.b16 %v8429, %v8428
      %v8476 = vpack.c.b16 %v8430, %v8430
      %v8477 = vpack.c.b16 %v8432, %v8431
      %v8478 = vpack.c.b16 %v8433, %v8433
      %v8479 = vpack.c.b16 %v8435, %v8434
      %v8480 = vpack.c.b16 %v8436, %v8436
      %v8481 = vpack.c.b16 %v8438, %v8437
      %v8482 = vpack.c.b16 %v8439, %v8439
      %v8483 = vpack.c.b16 %v8441, %v8440
      %v8484 = vpack.c.b16 %v8442, %v8442
      %v8485 = vpack.c.b16 %v8444, %v8443
      %v8486 = vpack.c.b16 %v8445, %v8445
      %v8487 = vpack.c.b16 %v8447, %v8446
      %v8488 = vpack.c.b16 %v8448, %v8448
      %v8489 = vpack.c.b16 %v8450, %v8449
      %v8490 = vpack.c.b16 %v8451, %v8451
      %v8491 = vpack.c.b16 %v8453, %v8452
      %v8492 = vpack.c.b16 %v8454, %v8454
      %v8493 = vpack.c.b16 %v8456, %v8455
      %v8494 = vpack.c.b16 %v8457, %v8457
      %v8495 = vpack.c.b16 %v8459, %v8458
      %v8496 = vpack.c.b16 %v8460, %v8460
      %v8497 = vpack.c.b16 %v8462, %v8461
      %v8498 = vpack.c.b16 %v8463, %v8463
      %v8499 = vpack.c.b16 %v8465, %v8464
      %v8500 = vpack.c.b16 %v8466, %v8466
      %v8501 = vpack.c.b16 %v8468, %v8467
      %v8502 = vpack.c.b16 %v8469, %v8469
      %v8503 = vpack.c.b16 %v8471, %v8470
      %v8504 = vpack.c.b16 %v8472, %v8472
      %8505 = vrot.lane.b32.xlu0 %v8473, 24
      %v8506 = vpop.permute.xlu0 %8505
      %8507 = vrot.lane.b32.xlu0 %v8474, 24
      %v8508 = vpop.permute.xlu0 %8507
      %8509 = vrot.lane.b32.xlu0 %v8475, 24
      %v8510 = vpop.permute.xlu0 %8509
      %8511 = vrot.lane.b32.xlu0 %v8476, 24
      %v8512 = vpop.permute.xlu0 %8511
      %8513 = vrot.lane.b32.xlu0 %v8477, 24
      %v8514 = vpop.permute.xlu0 %8513
      %8515 = vrot.lane.b32.xlu0 %v8478, 24
      %v8516 = vpop.permute.xlu0 %8515
      %8517 = vrot.lane.b32.xlu0 %v8479, 24
      %v8518 = vpop.permute.xlu0 %8517
      %8519 = vrot.lane.b32.xlu0 %v8480, 24
      %v8520 = vpop.permute.xlu0 %8519
      %8521 = vrot.lane.b32.xlu0 %v8481, 24
      %v8522 = vpop.permute.xlu0 %8521
      %8523 = vrot.lane.b32.xlu0 %v8482, 24
      %v8524 = vpop.permute.xlu0 %8523
      %8525 = vrot.lane.b32.xlu0 %v8483, 24
      %v8526 = vpop.permute.xlu0 %8525
      %8527 = vrot.lane.b32.xlu0 %v8484, 24
      %v8528 = vpop.permute.xlu0 %8527
      %8529 = vrot.lane.b32.xlu0 %v8485, 24
      %v8530 = vpop.permute.xlu0 %8529
      %8531 = vrot.lane.b32.xlu0 %v8486, 24
      %v8532 = vpop.permute.xlu0 %8531
      %8533 = vrot.lane.b32.xlu0 %v8487, 24
      %v8534 = vpop.permute.xlu0 %8533
      %8535 = vrot.lane.b32.xlu0 %v8488, 24
      %v8536 = vpop.permute.xlu0 %8535
      %8537 = vrot.lane.b32.xlu0 %v8489, 24
      %v8538 = vpop.permute.xlu0 %8537
      %8539 = vrot.lane.b32.xlu0 %v8490, 24
      %v8540 = vpop.permute.xlu0 %8539
      %8541 = vrot.lane.b32.xlu0 %v8491, 24
      %v8542 = vpop.permute.xlu0 %8541
      %8543 = vrot.lane.b32.xlu0 %v8492, 24
      %v8544 = vpop.permute.xlu0 %8543
      %8545 = vrot.lane.b32.xlu0 %v8493, 24
      %v8546 = vpop.permute.xlu0 %8545
      %8547 = vrot.lane.b32.xlu0 %v8494, 24
      %v8548 = vpop.permute.xlu0 %8547
      %8549 = vrot.lane.b32.xlu0 %v8495, 24
      %v8550 = vpop.permute.xlu0 %8549
      %8551 = vrot.lane.b32.xlu0 %v8496, 24
      %v8552 = vpop.permute.xlu0 %8551
      %8553 = vrot.lane.b32.xlu0 %v8497, 24
      %v8554 = vpop.permute.xlu0 %8553
      %8555 = vrot.lane.b32.xlu0 %v8498, 24
      %v8556 = vpop.permute.xlu0 %8555
      %8557 = vrot.lane.b32.xlu0 %v8499, 24
      %v8558 = vpop.permute.xlu0 %8557
      %8559 = vrot.lane.b32.xlu0 %v8500, 24
      %v8560 = vpop.permute.xlu0 %8559
      %8561 = vrot.lane.b32.xlu0 %v8501, 24
      %v8562 = vpop.permute.xlu0 %8561
      %8563 = vrot.lane.b32.xlu0 %v8502, 24
      %v8564 = vpop.permute.xlu0 %8563
      %8565 = vrot.lane.b32.xlu0 %v8503, 24
      %v8566 = vpop.permute.xlu0 %8565
      %8567 = vrot.lane.b32.xlu0 %v8504, 24
      %v8568 = vpop.permute.xlu0 %8567
      %v8601 = vunpack.c.l.b16 %v7431
      %v8602 = vunpack.c.l.b16 %v7432
      %v8603 = vunpack.c.l.b16 %v7433
      %v8604 = vunpack.c.l.b16 %v7434
      %v8605 = vunpack.c.l.b16 %v7435
      %v8606 = vunpack.c.l.b16 %v7436
      %v8607 = vunpack.c.l.b16 %v7437
      %v8608 = vunpack.c.l.b16 %v7438
      %v8609 = vunpack.c.l.b16 %v7439
      %v8610 = vunpack.c.l.b16 %v7440
      %v8611 = vunpack.c.l.b16 %v7441
      %v8612 = vunpack.c.l.b16 %v7442
      %v8613 = vunpack.c.l.b16 %v7443
      %v8614 = vunpack.c.l.b16 %v7444
      %v8615 = vunpack.c.l.b16 %v7445
      %v8616 = vunpack.c.l.b16 %v7446
      %v8617 = vunpack.c.l.b16 %v7447
      %v8618 = vunpack.c.l.b16 %v7448
      %v8619 = vunpack.c.l.b16 %v7449
      %v8620 = vunpack.c.l.b16 %v7450
      %v8621 = vunpack.c.l.b16 %v7451
      %v8622 = vunpack.c.l.b16 %v7452
      %v8623 = vunpack.c.l.b16 %v7453
      %v8624 = vunpack.c.l.b16 %v7454
      %v8625 = vunpack.c.l.b16 %v7455
      %v8626 = vunpack.c.l.b16 %v7456
      %v8627 = vunpack.c.l.b16 %v7457
      %v8628 = vunpack.c.l.b16 %v7458
      %v8629 = vunpack.c.l.b16 %v7459
      %v8630 = vunpack.c.l.b16 %v7460
      %v8631 = vunpack.c.l.b16 %v7461
      %v8632 = vunpack.c.l.b16 %v7462
      %v8633 = vpack.c.b16 %v8426, %v8601
      %v8634 = vpack.c.b16 %v8602, %v8602
      %v8635 = vpack.c.b16 %v8429, %v8603
      %v8636 = vpack.c.b16 %v8604, %v8604
      %v8637 = vpack.c.b16 %v8432, %v8605
      %v8638 = vpack.c.b16 %v8606, %v8606
      %v8639 = vpack.c.b16 %v8435, %v8607
      %v8640 = vpack.c.b16 %v8608, %v8608
      %v8641 = vpack.c.b16 %v8438, %v8609
      %v8642 = vpack.c.b16 %v8610, %v8610
      %v8643 = vpack.c.b16 %v8441, %v8611
      %v8644 = vpack.c.b16 %v8612, %v8612
      %v8645 = vpack.c.b16 %v8444, %v8613
      %v8646 = vpack.c.b16 %v8614, %v8614
      %v8647 = vpack.c.b16 %v8447, %v8615
      %v8648 = vpack.c.b16 %v8616, %v8616
      %v8649 = vpack.c.b16 %v8450, %v8617
      %v8650 = vpack.c.b16 %v8618, %v8618
      %v8651 = vpack.c.b16 %v8453, %v8619
      %v8652 = vpack.c.b16 %v8620, %v8620
      %v8653 = vpack.c.b16 %v8456, %v8621
      %v8654 = vpack.c.b16 %v8622, %v8622
      %v8655 = vpack.c.b16 %v8459, %v8623
      %v8656 = vpack.c.b16 %v8624, %v8624
      %v8657 = vpack.c.b16 %v8462, %v8625
      %v8658 = vpack.c.b16 %v8626, %v8626
      %v8659 = vpack.c.b16 %v8465, %v8627
      %v8660 = vpack.c.b16 %v8628, %v8628
      %v8661 = vpack.c.b16 %v8468, %v8629
      %v8662 = vpack.c.b16 %v8630, %v8630
      %v8663 = vpack.c.b16 %v8471, %v8631
      %v8664 = vpack.c.b16 %v8632, %v8632
      %v8666 = vshrl.u32 %v8633, 16
      %v8668 = vrot.slane %v8666, 1
      %v8669 = vshll.u32 %v8633, 16
      %v8671 = vrot.slane %v8669, 2
      %v8672 = vor.u32 %v8668, %v8671
      %v8674 = vshrl.u32 %v8634, 16
      %v8676 = vrot.slane %v8674, 1
      %v8677 = vshll.u32 %v8634, 16
      %v8679 = vrot.slane %v8677, 2
      %v8680 = vor.u32 %v8676, %v8679
      %v8681 = vsel %vm3355, %v8672, %v8680
      %v8683 = vshrl.u32 %v8635, 16
      %v8685 = vrot.slane %v8683, 1
      %v8686 = vshll.u32 %v8635, 16
      %v8688 = vrot.slane %v8686, 2
      %v8689 = vor.u32 %v8685, %v8688
      %v8691 = vshrl.u32 %v8636, 16
      %v8693 = vrot.slane %v8691, 1
      %v8694 = vshll.u32 %v8636, 16
      %v8696 = vrot.slane %v8694, 2
      %v8697 = vor.u32 %v8693, %v8696
      %v8698 = vsel %vm3355, %v8689, %v8697
      %v8700 = vshrl.u32 %v8637, 16
      %v8702 = vrot.slane %v8700, 1
      %v8703 = vshll.u32 %v8637, 16
      %v8705 = vrot.slane %v8703, 2
      %v8706 = vor.u32 %v8702, %v8705
      %v8708 = vshrl.u32 %v8638, 16
      %v8710 = vrot.slane %v8708, 1
      %v8711 = vshll.u32 %v8638, 16
      %v8713 = vrot.slane %v8711, 2
      %v8714 = vor.u32 %v8710, %v8713
      %v8715 = vsel %vm3355, %v8706, %v8714
      %v8717 = vshrl.u32 %v8639, 16
      %v8719 = vrot.slane %v8717, 1
      %v8720 = vshll.u32 %v8639, 16
      %v8722 = vrot.slane %v8720, 2
      %v8723 = vor.u32 %v8719, %v8722
      %v8725 = vshrl.u32 %v8640, 16
      %v8727 = vrot.slane %v8725, 1
      %v8728 = vshll.u32 %v8640, 16
      %v8730 = vrot.slane %v8728, 2
      %v8731 = vor.u32 %v8727, %v8730
      %v8732 = vsel %vm3355, %v8723, %v8731
      %v8734 = vshrl.u32 %v8641, 16
      %v8736 = vrot.slane %v8734, 1
      %v8737 = vshll.u32 %v8641, 16
      %v8739 = vrot.slane %v8737, 2
      %v8740 = vor.u32 %v8736, %v8739
      %v8742 = vshrl.u32 %v8642, 16
      %v8744 = vrot.slane %v8742, 1
      %v8745 = vshll.u32 %v8642, 16
      %v8747 = vrot.slane %v8745, 2
      %v8748 = vor.u32 %v8744, %v8747
      %v8749 = vsel %vm3355, %v8740, %v8748
      %v8751 = vshrl.u32 %v8643, 16
      %v8753 = vrot.slane %v8751, 1
      %v8754 = vshll.u32 %v8643, 16
      %v8756 = vrot.slane %v8754, 2
      %v8757 = vor.u32 %v8753, %v8756
      %v8759 = vshrl.u32 %v8644, 16
      %v8761 = vrot.slane %v8759, 1
      %v8762 = vshll.u32 %v8644, 16
      %v8764 = vrot.slane %v8762, 2
      %v8765 = vor.u32 %v8761, %v8764
      %v8766 = vsel %vm3355, %v8757, %v8765
      %v8768 = vshrl.u32 %v8645, 16
      %v8770 = vrot.slane %v8768, 1
      %v8771 = vshll.u32 %v8645, 16
      %v8773 = vrot.slane %v8771, 2
      %v8774 = vor.u32 %v8770, %v8773
      %v8776 = vshrl.u32 %v8646, 16
      %v8778 = vrot.slane %v8776, 1
      %v8779 = vshll.u32 %v8646, 16
      %v8781 = vrot.slane %v8779, 2
      %v8782 = vor.u32 %v8778, %v8781
      %v8783 = vsel %vm3355, %v8774, %v8782
      %v8785 = vshrl.u32 %v8647, 16
      %v8787 = vrot.slane %v8785, 1
      %v8788 = vshll.u32 %v8647, 16
      %v8790 = vrot.slane %v8788, 2
      %v8791 = vor.u32 %v8787, %v8790
      %v8793 = vshrl.u32 %v8648, 16
      %v8795 = vrot.slane %v8793, 1
      %v8796 = vshll.u32 %v8648, 16
      %v8798 = vrot.slane %v8796, 2
      %v8799 = vor.u32 %v8795, %v8798
      %v8800 = vsel %vm3355, %v8791, %v8799
      %v8802 = vshrl.u32 %v8649, 16
      %v8804 = vrot.slane %v8802, 1
      %v8805 = vshll.u32 %v8649, 16
      %v8807 = vrot.slane %v8805, 2
      %v8808 = vor.u32 %v8804, %v8807
      %v8810 = vshrl.u32 %v8650, 16
      %v8812 = vrot.slane %v8810, 1
      %v8813 = vshll.u32 %v8650, 16
      %v8815 = vrot.slane %v8813, 2
      %v8816 = vor.u32 %v8812, %v8815
      %v8817 = vsel %vm3355, %v8808, %v8816
      %v8819 = vshrl.u32 %v8651, 16
      %v8821 = vrot.slane %v8819, 1
      %v8822 = vshll.u32 %v8651, 16
      %v8824 = vrot.slane %v8822, 2
      %v8825 = vor.u32 %v8821, %v8824
      %v8827 = vshrl.u32 %v8652, 16
      %v8829 = vrot.slane %v8827, 1
      %v8830 = vshll.u32 %v8652, 16
      %v8832 = vrot.slane %v8830, 2
      %v8833 = vor.u32 %v8829, %v8832
      %v8834 = vsel %vm3355, %v8825, %v8833
      %v8836 = vshrl.u32 %v8653, 16
      %v8838 = vrot.slane %v8836, 1
      %v8839 = vshll.u32 %v8653, 16
      %v8841 = vrot.slane %v8839, 2
      %v8842 = vor.u32 %v8838, %v8841
      %v8844 = vshrl.u32 %v8654, 16
      %v8846 = vrot.slane %v8844, 1
      %v8847 = vshll.u32 %v8654, 16
      %v8849 = vrot.slane %v8847, 2
      %v8850 = vor.u32 %v8846, %v8849
      %v8851 = vsel %vm3355, %v8842, %v8850
      %v8853 = vshrl.u32 %v8655, 16
      %v8855 = vrot.slane %v8853, 1
      %v8856 = vshll.u32 %v8655, 16
      %v8858 = vrot.slane %v8856, 2
      %v8859 = vor.u32 %v8855, %v8858
      %v8861 = vshrl.u32 %v8656, 16
      %v8863 = vrot.slane %v8861, 1
      %v8864 = vshll.u32 %v8656, 16
      %v8866 = vrot.slane %v8864, 2
      %v8867 = vor.u32 %v8863, %v8866
      %v8868 = vsel %vm3355, %v8859, %v8867
      %v8870 = vshrl.u32 %v8657, 16
      %v8872 = vrot.slane %v8870, 1
      %v8873 = vshll.u32 %v8657, 16
      %v8875 = vrot.slane %v8873, 2
      %v8876 = vor.u32 %v8872, %v8875
      %v8878 = vshrl.u32 %v8658, 16
      %v8880 = vrot.slane %v8878, 1
      %v8881 = vshll.u32 %v8658, 16
      %v8883 = vrot.slane %v8881, 2
      %v8884 = vor.u32 %v8880, %v8883
      %v8885 = vsel %vm3355, %v8876, %v8884
      %v8887 = vshrl.u32 %v8659, 16
      %v8889 = vrot.slane %v8887, 1
      %v8890 = vshll.u32 %v8659, 16
      %v8892 = vrot.slane %v8890, 2
      %v8893 = vor.u32 %v8889, %v8892
      %v8895 = vshrl.u32 %v8660, 16
      %v8897 = vrot.slane %v8895, 1
      %v8898 = vshll.u32 %v8660, 16
      %v8900 = vrot.slane %v8898, 2
      %v8901 = vor.u32 %v8897, %v8900
      %v8902 = vsel %vm3355, %v8893, %v8901
      %v8904 = vshrl.u32 %v8661, 16
      %v8906 = vrot.slane %v8904, 1
      %v8907 = vshll.u32 %v8661, 16
      %v8909 = vrot.slane %v8907, 2
      %v8910 = vor.u32 %v8906, %v8909
      %v8912 = vshrl.u32 %v8662, 16
      %v8914 = vrot.slane %v8912, 1
      %v8915 = vshll.u32 %v8662, 16
      %v8917 = vrot.slane %v8915, 2
      %v8918 = vor.u32 %v8914, %v8917
      %v8919 = vsel %vm3355, %v8910, %v8918
      %v8921 = vshrl.u32 %v8663, 16
      %v8923 = vrot.slane %v8921, 1
      %v8924 = vshll.u32 %v8663, 16
      %v8926 = vrot.slane %v8924, 2
      %v8927 = vor.u32 %v8923, %v8926
      %v8929 = vshrl.u32 %v8664, 16
      %v8931 = vrot.slane %v8929, 1
      %v8932 = vshll.u32 %v8664, 16
      %v8934 = vrot.slane %v8932, 2
      %v8935 = vor.u32 %v8931, %v8934
      %v8936 = vsel %vm3355, %v8927, %v8935
      %8937 = vrot.lane.b32.xlu0 %v8681, 32
      %v8938 = vpop.permute.xlu0 %8937
      %8939 = vrot.lane.b32.xlu0 %v8676, 32
      %v8940 = vpop.permute.xlu0 %8939
      %8941 = vrot.lane.b32.xlu0 %v8698, 32
      %v8942 = vpop.permute.xlu0 %8941
      %8943 = vrot.lane.b32.xlu0 %v8693, 32
      %v8944 = vpop.permute.xlu0 %8943
      %8945 = vrot.lane.b32.xlu0 %v8715, 32
      %v8946 = vpop.permute.xlu0 %8945
      %8947 = vrot.lane.b32.xlu0 %v8710, 32
      %v8948 = vpop.permute.xlu0 %8947
      %8949 = vrot.lane.b32.xlu0 %v8732, 32
      %v8950 = vpop.permute.xlu0 %8949
      %8951 = vrot.lane.b32.xlu0 %v8727, 32
      %v8952 = vpop.permute.xlu0 %8951
      %8953 = vrot.lane.b32.xlu0 %v8749, 32
      %v8954 = vpop.permute.xlu0 %8953
      %8955 = vrot.lane.b32.xlu0 %v8744, 32
      %v8956 = vpop.permute.xlu0 %8955
      %8957 = vrot.lane.b32.xlu0 %v8766, 32
      %v8958 = vpop.permute.xlu0 %8957
      %8959 = vrot.lane.b32.xlu0 %v8761, 32
      %v8960 = vpop.permute.xlu0 %8959
      %8961 = vrot.lane.b32.xlu0 %v8783, 32
      %v8962 = vpop.permute.xlu0 %8961
      %8963 = vrot.lane.b32.xlu0 %v8778, 32
      %v8964 = vpop.permute.xlu0 %8963
      %8965 = vrot.lane.b32.xlu0 %v8800, 32
      %v8966 = vpop.permute.xlu0 %8965
      %8967 = vrot.lane.b32.xlu0 %v8795, 32
      %v8968 = vpop.permute.xlu0 %8967
      %8969 = vrot.lane.b32.xlu0 %v8817, 32
      %v8970 = vpop.permute.xlu0 %8969
      %8971 = vrot.lane.b32.xlu0 %v8812, 32
      %v8972 = vpop.permute.xlu0 %8971
      %8973 = vrot.lane.b32.xlu0 %v8834, 32
      %v8974 = vpop.permute.xlu0 %8973
      %8975 = vrot.lane.b32.xlu0 %v8829, 32
      %v8976 = vpop.permute.xlu0 %8975
      %8977 = vrot.lane.b32.xlu0 %v8851, 32
      %v8978 = vpop.permute.xlu0 %8977
      %8979 = vrot.lane.b32.xlu0 %v8846, 32
      %v8980 = vpop.permute.xlu0 %8979
      %8981 = vrot.lane.b32.xlu0 %v8868, 32
      %v8982 = vpop.permute.xlu0 %8981
      %8983 = vrot.lane.b32.xlu0 %v8863, 32
      %v8984 = vpop.permute.xlu0 %8983
      %8985 = vrot.lane.b32.xlu0 %v8885, 32
      %v8986 = vpop.permute.xlu0 %8985
      %8987 = vrot.lane.b32.xlu0 %v8880, 32
      %v8988 = vpop.permute.xlu0 %8987
      %8989 = vrot.lane.b32.xlu0 %v8902, 32
      %v8990 = vpop.permute.xlu0 %8989
      %8991 = vrot.lane.b32.xlu0 %v8897, 32
      %v8992 = vpop.permute.xlu0 %8991
      %8993 = vrot.lane.b32.xlu0 %v8919, 32
      %v8994 = vpop.permute.xlu0 %8993
      %8995 = vrot.lane.b32.xlu0 %v8914, 32
      %v8996 = vpop.permute.xlu0 %8995
      %8997 = vrot.lane.b32.xlu0 %v8936, 32
      %v8998 = vpop.permute.xlu0 %8997
      %8999 = vrot.lane.b32.xlu0 %v8931, 32
      %v9000 = vpop.permute.xlu0 %8999
      %v9033 = vunpack.c.l.b16 %v7463
      %v9034 = vunpack.c.l.b16 %v7464
      %v9035 = vunpack.c.l.b16 %v7465
      %v9036 = vunpack.c.l.b16 %v7466
      %v9037 = vunpack.c.l.b16 %v7467
      %v9038 = vunpack.c.l.b16 %v7468
      %v9039 = vunpack.c.l.b16 %v7469
      %v9040 = vunpack.c.l.b16 %v7470
      %v9041 = vunpack.c.l.b16 %v7471
      %v9042 = vunpack.c.l.b16 %v7472
      %v9043 = vunpack.c.l.b16 %v7473
      %v9044 = vunpack.c.l.b16 %v7474
      %v9045 = vunpack.c.l.b16 %v7475
      %v9046 = vunpack.c.l.b16 %v7476
      %v9047 = vunpack.c.l.b16 %v7477
      %v9048 = vunpack.c.l.b16 %v7478
      %v9049 = vunpack.c.l.b16 %v7479
      %v9050 = vunpack.c.l.b16 %v7480
      %v9051 = vunpack.c.l.b16 %v7481
      %v9052 = vunpack.c.l.b16 %v7482
      %v9053 = vunpack.c.l.b16 %v7483
      %v9054 = vunpack.c.l.b16 %v7484
      %v9055 = vunpack.c.l.b16 %v7485
      %v9056 = vunpack.c.l.b16 %v7486
      %v9057 = vunpack.c.l.b16 %v7487
      %v9058 = vunpack.c.l.b16 %v7488
      %v9059 = vunpack.c.l.b16 %v7489
      %v9060 = vunpack.c.l.b16 %v7490
      %v9061 = vunpack.c.l.b16 %v7491
      %v9062 = vunpack.c.l.b16 %v7492
      %v9063 = vunpack.c.l.b16 %v7493
      %v9064 = vunpack.c.l.b16 %v7494
      %v9065 = vpack.c.b16 %v8426, %v9033
      %v9066 = vpack.c.b16 %v9034, %v9034
      %v9067 = vpack.c.b16 %v8429, %v9035
      %v9068 = vpack.c.b16 %v9036, %v9036
      %v9069 = vpack.c.b16 %v8432, %v9037
      %v9070 = vpack.c.b16 %v9038, %v9038
      %v9071 = vpack.c.b16 %v8435, %v9039
      %v9072 = vpack.c.b16 %v9040, %v9040
      %v9073 = vpack.c.b16 %v8438, %v9041
      %v9074 = vpack.c.b16 %v9042, %v9042
      %v9075 = vpack.c.b16 %v8441, %v9043
      %v9076 = vpack.c.b16 %v9044, %v9044
      %v9077 = vpack.c.b16 %v8444, %v9045
      %v9078 = vpack.c.b16 %v9046, %v9046
      %v9079 = vpack.c.b16 %v8447, %v9047
      %v9080 = vpack.c.b16 %v9048, %v9048
      %v9081 = vpack.c.b16 %v8450, %v9049
      %v9082 = vpack.c.b16 %v9050, %v9050
      %v9083 = vpack.c.b16 %v8453, %v9051
      %v9084 = vpack.c.b16 %v9052, %v9052
      %v9085 = vpack.c.b16 %v8456, %v9053
      %v9086 = vpack.c.b16 %v9054, %v9054
      %v9087 = vpack.c.b16 %v8459, %v9055
      %v9088 = vpack.c.b16 %v9056, %v9056
      %v9089 = vpack.c.b16 %v8462, %v9057
      %v9090 = vpack.c.b16 %v9058, %v9058
      %v9091 = vpack.c.b16 %v8465, %v9059
      %v9092 = vpack.c.b16 %v9060, %v9060
      %v9093 = vpack.c.b16 %v8468, %v9061
      %v9094 = vpack.c.b16 %v9062, %v9062
      %v9095 = vpack.c.b16 %v8471, %v9063
      %v9096 = vpack.c.b16 %v9064, %v9064
      %v9097 = vrot.slane %v9065, 3
      %v9098 = vrot.slane %v9066, 3
      %v9099 = vsel %vm8264, %v9097, %v9098
      %v9100 = vrot.slane %v9067, 3
      %v9101 = vrot.slane %v9068, 3
      %v9102 = vsel %vm8264, %v9100, %v9101
      %v9103 = vrot.slane %v9069, 3
      %v9104 = vrot.slane %v9070, 3
      %v9105 = vsel %vm8264, %v9103, %v9104
      %v9106 = vrot.slane %v9071, 3
      %v9107 = vrot.slane %v9072, 3
      %v9108 = vsel %vm8264, %v9106, %v9107
      %v9109 = vrot.slane %v9073, 3
      %v9110 = vrot.slane %v9074, 3
      %v9111 = vsel %vm8264, %v9109, %v9110
      %v9112 = vrot.slane %v9075, 3
      %v9113 = vrot.slane %v9076, 3
      %v9114 = vsel %vm8264, %v9112, %v9113
      %v9115 = vrot.slane %v9077, 3
      %v9116 = vrot.slane %v9078, 3
      %v9117 = vsel %vm8264, %v9115, %v9116
      %v9118 = vrot.slane %v9079, 3
      %v9119 = vrot.slane %v9080, 3
      %v9120 = vsel %vm8264, %v9118, %v9119
      %v9121 = vrot.slane %v9081, 3
      %v9122 = vrot.slane %v9082, 3
      %v9123 = vsel %vm8264, %v9121, %v9122
      %v9124 = vrot.slane %v9083, 3
      %v9125 = vrot.slane %v9084, 3
      %v9126 = vsel %vm8264, %v9124, %v9125
      %v9127 = vrot.slane %v9085, 3
      %v9128 = vrot.slane %v9086, 3
      %v9129 = vsel %vm8264, %v9127, %v9128
      %v9130 = vrot.slane %v9087, 3
      %v9131 = vrot.slane %v9088, 3
      %v9132 = vsel %vm8264, %v9130, %v9131
      %v9133 = vrot.slane %v9089, 3
      %v9134 = vrot.slane %v9090, 3
      %v9135 = vsel %vm8264, %v9133, %v9134
      %v9136 = vrot.slane %v9091, 3
      %v9137 = vrot.slane %v9092, 3
      %v9138 = vsel %vm8264, %v9136, %v9137
      %v9139 = vrot.slane %v9093, 3
      %v9140 = vrot.slane %v9094, 3
      %v9141 = vsel %vm8264, %v9139, %v9140
      %v9142 = vrot.slane %v9095, 3
      %v9143 = vrot.slane %v9096, 3
      %v9144 = vsel %vm8264, %v9142, %v9143
      %9145 = vrot.lane.b32.xlu0 %v9099, 40
      %v9146 = vpop.permute.xlu0 %9145
      %9147 = vrot.lane.b32.xlu0 %v9098, 40
      %v9148 = vpop.permute.xlu0 %9147
      %9149 = vrot.lane.b32.xlu0 %v9102, 40
      %v9150 = vpop.permute.xlu0 %9149
      %9151 = vrot.lane.b32.xlu0 %v9101, 40
      %v9152 = vpop.permute.xlu0 %9151
      %9153 = vrot.lane.b32.xlu0 %v9105, 40
      %v9154 = vpop.permute.xlu0 %9153
      %9155 = vrot.lane.b32.xlu0 %v9104, 40
      %v9156 = vpop.permute.xlu0 %9155
      %9157 = vrot.lane.b32.xlu0 %v9108, 40
      %v9158 = vpop.permute.xlu0 %9157
      %9159 = vrot.lane.b32.xlu0 %v9107, 40
      %v9160 = vpop.permute.xlu0 %9159
      %9161 = vrot.lane.b32.xlu0 %v9111, 40
      %v9162 = vpop.permute.xlu0 %9161
      %9163 = vrot.lane.b32.xlu0 %v9110, 40
      %v9164 = vpop.permute.xlu0 %9163
      %9165 = vrot.lane.b32.xlu0 %v9114, 40
      %v9166 = vpop.permute.xlu0 %9165
      %9167 = vrot.lane.b32.xlu0 %v9113, 40
      %v9168 = vpop.permute.xlu0 %9167
      %9169 = vrot.lane.b32.xlu0 %v9117, 40
      %v9170 = vpop.permute.xlu0 %9169
      %9171 = vrot.lane.b32.xlu0 %v9116, 40
      %v9172 = vpop.permute.xlu0 %9171
      %9173 = vrot.lane.b32.xlu0 %v9120, 40
      %v9174 = vpop.permute.xlu0 %9173
      %9175 = vrot.lane.b32.xlu0 %v9119, 40
      %v9176 = vpop.permute.xlu0 %9175
      %9177 = vrot.lane.b32.xlu0 %v9123, 40
      %v9178 = vpop.permute.xlu0 %9177
      %9179 = vrot.lane.b32.xlu0 %v9122, 40
      %v9180 = vpop.permute.xlu0 %9179
      %9181 = vrot.lane.b32.xlu0 %v9126, 40
      %v9182 = vpop.permute.xlu0 %9181
      %9183 = vrot.lane.b32.xlu0 %v9125, 40
      %v9184 = vpop.permute.xlu0 %9183
      %9185 = vrot.lane.b32.xlu0 %v9129, 40
      %v9186 = vpop.permute.xlu0 %9185
      %9187 = vrot.lane.b32.xlu0 %v9128, 40
      %v9188 = vpop.permute.xlu0 %9187
      %9189 = vrot.lane.b32.xlu0 %v9132, 40
      %v9190 = vpop.permute.xlu0 %9189
      %9191 = vrot.lane.b32.xlu0 %v9131, 40
      %v9192 = vpop.permute.xlu0 %9191
      %9193 = vrot.lane.b32.xlu0 %v9135, 40
      %v9194 = vpop.permute.xlu0 %9193
      %9195 = vrot.lane.b32.xlu0 %v9134, 40
      %v9196 = vpop.permute.xlu0 %9195
      %9197 = vrot.lane.b32.xlu0 %v9138, 40
      %v9198 = vpop.permute.xlu0 %9197
      %9199 = vrot.lane.b32.xlu0 %v9137, 40
      %v9200 = vpop.permute.xlu0 %9199
      %9201 = vrot.lane.b32.xlu0 %v9141, 40
      %v9202 = vpop.permute.xlu0 %9201
      %9203 = vrot.lane.b32.xlu0 %v9140, 40
      %v9204 = vpop.permute.xlu0 %9203
      %9205 = vrot.lane.b32.xlu0 %v9144, 40
      %v9206 = vpop.permute.xlu0 %9205
      %9207 = vrot.lane.b32.xlu0 %v9143, 40
      %v9208 = vpop.permute.xlu0 %9207
      %v9257 = vunpack.c.l.b16 %v7496
      %v9258 = vunpack.c.l.b16 %v7497
      %v9259 = vunpack.c.l.b16 %v7498
      %v9260 = vunpack.c.l.b16 %v7499
      %v9261 = vunpack.c.l.b16 %v7500
      %v9262 = vunpack.c.l.b16 %v7501
      %v9263 = vunpack.c.l.b16 %v7502
      %v9264 = vunpack.c.l.b16 %v7503
      %v9265 = vunpack.c.l.b16 %v7504
      %v9266 = vunpack.c.l.b16 %v7505
      %v9267 = vunpack.c.l.b16 %v7506
      %v9268 = vunpack.c.l.b16 %v7507
      %v9269 = vunpack.c.l.b16 %v7508
      %v9270 = vunpack.c.l.b16 %v7509
      %v9271 = vunpack.c.l.b16 %v7510
      %v9272 = vunpack.c.l.b16 %v7511
      %v9273 = vunpack.c.l.b16 %v7512
      %v9274 = vunpack.c.l.b16 %v7513
      %v9275 = vunpack.c.l.b16 %v7514
      %v9276 = vunpack.c.l.b16 %v7515
      %v9277 = vunpack.c.l.b16 %v7516
      %v9278 = vunpack.c.l.b16 %v7517
      %v9279 = vunpack.c.l.b16 %v7518
      %v9280 = vunpack.c.l.b16 %v7519
      %v9281 = vunpack.c.l.b16 %v7520
      %v9282 = vunpack.c.l.b16 %v7521
      %v9283 = vunpack.c.l.b16 %v7522
      %v9284 = vunpack.c.l.b16 %v7523
      %v9285 = vunpack.c.l.b16 %v7524
      %v9286 = vunpack.c.l.b16 %v7525
      %v9287 = vunpack.c.l.b16 %v7526
      %v9288 = vunpack.c.l.b16 %v7527
      %v9289 = vunpack.c.l.b16 %v7528
      %v9290 = vunpack.c.l.b16 %v7529
      %v9291 = vunpack.c.l.b16 %v7530
      %v9292 = vunpack.c.l.b16 %v7531
      %v9293 = vunpack.c.l.b16 %v7532
      %v9294 = vunpack.c.l.b16 %v7533
      %v9295 = vunpack.c.l.b16 %v7534
      %v9296 = vunpack.c.l.b16 %v7535
      %v9297 = vunpack.c.l.b16 %v7536
      %v9298 = vunpack.c.l.b16 %v7537
      %v9299 = vunpack.c.l.b16 %v7538
      %v9300 = vunpack.c.l.b16 %v7539
      %v9301 = vunpack.c.l.b16 %v7540
      %v9302 = vunpack.c.l.b16 %v7541
      %v9303 = vunpack.c.l.b16 %v7542
      %v9304 = vunpack.c.l.b16 %v7543
      %v9305 = vpack.c.b16 %v9258, %v9257
      %v9306 = vpack.c.b16 %v9259, %v9259
      %v9307 = vpack.c.b16 %v9261, %v9260
      %v9308 = vpack.c.b16 %v9262, %v9262
      %v9309 = vpack.c.b16 %v9264, %v9263
      %v9310 = vpack.c.b16 %v9265, %v9265
      %v9311 = vpack.c.b16 %v9267, %v9266
      %v9312 = vpack.c.b16 %v9268, %v9268
      %v9313 = vpack.c.b16 %v9270, %v9269
      %v9314 = vpack.c.b16 %v9271, %v9271
      %v9315 = vpack.c.b16 %v9273, %v9272
      %v9316 = vpack.c.b16 %v9274, %v9274
      %v9317 = vpack.c.b16 %v9276, %v9275
      %v9318 = vpack.c.b16 %v9277, %v9277
      %v9319 = vpack.c.b16 %v9279, %v9278
      %v9320 = vpack.c.b16 %v9280, %v9280
      %v9321 = vpack.c.b16 %v9282, %v9281
      %v9322 = vpack.c.b16 %v9283, %v9283
      %v9323 = vpack.c.b16 %v9285, %v9284
      %v9324 = vpack.c.b16 %v9286, %v9286
      %v9325 = vpack.c.b16 %v9288, %v9287
      %v9326 = vpack.c.b16 %v9289, %v9289
      %v9327 = vpack.c.b16 %v9291, %v9290
      %v9328 = vpack.c.b16 %v9292, %v9292
      %v9329 = vpack.c.b16 %v9294, %v9293
      %v9330 = vpack.c.b16 %v9295, %v9295
      %v9331 = vpack.c.b16 %v9297, %v9296
      %v9332 = vpack.c.b16 %v9298, %v9298
      %v9333 = vpack.c.b16 %v9300, %v9299
      %v9334 = vpack.c.b16 %v9301, %v9301
      %v9335 = vpack.c.b16 %v9303, %v9302
      %v9336 = vpack.c.b16 %v9304, %v9304
      %9337 = vrot.lane.b32.xlu0 %v9305, 48
      %v9338 = vpop.permute.xlu0 %9337
      %9339 = vrot.lane.b32.xlu0 %v9306, 48
      %v9340 = vpop.permute.xlu0 %9339
      %9341 = vrot.lane.b32.xlu0 %v9307, 48
      %v9342 = vpop.permute.xlu0 %9341
      %9343 = vrot.lane.b32.xlu0 %v9308, 48
      %v9344 = vpop.permute.xlu0 %9343
      %9345 = vrot.lane.b32.xlu0 %v9309, 48
      %v9346 = vpop.permute.xlu0 %9345
      %9347 = vrot.lane.b32.xlu0 %v9310, 48
      %v9348 = vpop.permute.xlu0 %9347
      %9349 = vrot.lane.b32.xlu0 %v9311, 48
      %v9350 = vpop.permute.xlu0 %9349
      %9351 = vrot.lane.b32.xlu0 %v9312, 48
      %v9352 = vpop.permute.xlu0 %9351
      %9353 = vrot.lane.b32.xlu0 %v9313, 48
      %v9354 = vpop.permute.xlu0 %9353
      %9355 = vrot.lane.b32.xlu0 %v9314, 48
      %v9356 = vpop.permute.xlu0 %9355
      %9357 = vrot.lane.b32.xlu0 %v9315, 48
      %v9358 = vpop.permute.xlu0 %9357
      %9359 = vrot.lane.b32.xlu0 %v9316, 48
      %v9360 = vpop.permute.xlu0 %9359
      %9361 = vrot.lane.b32.xlu0 %v9317, 48
      %v9362 = vpop.permute.xlu0 %9361
      %9363 = vrot.lane.b32.xlu0 %v9318, 48
      %v9364 = vpop.permute.xlu0 %9363
      %9365 = vrot.lane.b32.xlu0 %v9319, 48
      %v9366 = vpop.permute.xlu0 %9365
      %9367 = vrot.lane.b32.xlu0 %v9320, 48
      %v9368 = vpop.permute.xlu0 %9367
      %9369 = vrot.lane.b32.xlu0 %v9321, 48
      %v9370 = vpop.permute.xlu0 %9369
      %9371 = vrot.lane.b32.xlu0 %v9322, 48
      %v9372 = vpop.permute.xlu0 %9371
      %9373 = vrot.lane.b32.xlu0 %v9323, 48
      %v9374 = vpop.permute.xlu0 %9373
      %9375 = vrot.lane.b32.xlu0 %v9324, 48
      %v9376 = vpop.permute.xlu0 %9375
      %9377 = vrot.lane.b32.xlu0 %v9325, 48
      %v9378 = vpop.permute.xlu0 %9377
      %9379 = vrot.lane.b32.xlu0 %v9326, 48
      %v9380 = vpop.permute.xlu0 %9379
      %9381 = vrot.lane.b32.xlu0 %v9327, 48
      %v9382 = vpop.permute.xlu0 %9381
      %9383 = vrot.lane.b32.xlu0 %v9328, 48
      %v9384 = vpop.permute.xlu0 %9383
      %9385 = vrot.lane.b32.xlu0 %v9329, 48
      %v9386 = vpop.permute.xlu0 %9385
      %9387 = vrot.lane.b32.xlu0 %v9330, 48
      %v9388 = vpop.permute.xlu0 %9387
      %9389 = vrot.lane.b32.xlu0 %v9331, 48
      %v9390 = vpop.permute.xlu0 %9389
      %9391 = vrot.lane.b32.xlu0 %v9332, 48
      %v9392 = vpop.permute.xlu0 %9391
      %9393 = vrot.lane.b32.xlu0 %v9333, 48
      %v9394 = vpop.permute.xlu0 %9393
      %9395 = vrot.lane.b32.xlu0 %v9334, 48
      %v9396 = vpop.permute.xlu0 %9395
      %9397 = vrot.lane.b32.xlu0 %v9335, 48
      %v9398 = vpop.permute.xlu0 %9397
      %9399 = vrot.lane.b32.xlu0 %v9336, 48
      %v9400 = vpop.permute.xlu0 %9399
      %v9433 = vunpack.c.l.b16 %v7544
      %v9434 = vunpack.c.l.b16 %v7545
      %v9435 = vunpack.c.l.b16 %v7546
      %v9436 = vunpack.c.l.b16 %v7547
      %v9437 = vunpack.c.l.b16 %v7548
      %v9438 = vunpack.c.l.b16 %v7549
      %v9439 = vunpack.c.l.b16 %v7550
      %v9440 = vunpack.c.l.b16 %v7551
      %v9441 = vunpack.c.l.b16 %v7552
      %v9442 = vunpack.c.l.b16 %v7553
      %v9443 = vunpack.c.l.b16 %v7554
      %v9444 = vunpack.c.l.b16 %v7555
      %v9445 = vunpack.c.l.b16 %v7556
      %v9446 = vunpack.c.l.b16 %v7557
      %v9447 = vunpack.c.l.b16 %v7558
      %v9448 = vunpack.c.l.b16 %v7559
      %v9449 = vunpack.c.l.b16 %v7560
      %v9450 = vunpack.c.l.b16 %v7561
      %v9451 = vunpack.c.l.b16 %v7562
      %v9452 = vunpack.c.l.b16 %v7563
      %v9453 = vunpack.c.l.b16 %v7564
      %v9454 = vunpack.c.l.b16 %v7565
      %v9455 = vunpack.c.l.b16 %v7566
      %v9456 = vunpack.c.l.b16 %v7567
      %v9457 = vunpack.c.l.b16 %v7568
      %v9458 = vunpack.c.l.b16 %v7569
      %v9459 = vunpack.c.l.b16 %v7570
      %v9460 = vunpack.c.l.b16 %v7571
      %v9461 = vunpack.c.l.b16 %v7572
      %v9462 = vunpack.c.l.b16 %v7573
      %v9463 = vunpack.c.l.b16 %v7574
      %v9464 = vunpack.c.l.b16 %v7575
      %v9465 = vpack.c.b16 %v9258, %v9433
      %v9466 = vpack.c.b16 %v9434, %v9434
      %v9467 = vpack.c.b16 %v9261, %v9435
      %v9468 = vpack.c.b16 %v9436, %v9436
      %v9469 = vpack.c.b16 %v9264, %v9437
      %v9470 = vpack.c.b16 %v9438, %v9438
      %v9471 = vpack.c.b16 %v9267, %v9439
      %v9472 = vpack.c.b16 %v9440, %v9440
      %v9473 = vpack.c.b16 %v9270, %v9441
      %v9474 = vpack.c.b16 %v9442, %v9442
      %v9475 = vpack.c.b16 %v9273, %v9443
      %v9476 = vpack.c.b16 %v9444, %v9444
      %v9477 = vpack.c.b16 %v9276, %v9445
      %v9478 = vpack.c.b16 %v9446, %v9446
      %v9479 = vpack.c.b16 %v9279, %v9447
      %v9480 = vpack.c.b16 %v9448, %v9448
      %v9481 = vpack.c.b16 %v9282, %v9449
      %v9482 = vpack.c.b16 %v9450, %v9450
      %v9483 = vpack.c.b16 %v9285, %v9451
      %v9484 = vpack.c.b16 %v9452, %v9452
      %v9485 = vpack.c.b16 %v9288, %v9453
      %v9486 = vpack.c.b16 %v9454, %v9454
      %v9487 = vpack.c.b16 %v9291, %v9455
      %v9488 = vpack.c.b16 %v9456, %v9456
      %v9489 = vpack.c.b16 %v9294, %v9457
      %v9490 = vpack.c.b16 %v9458, %v9458
      %v9491 = vpack.c.b16 %v9297, %v9459
      %v9492 = vpack.c.b16 %v9460, %v9460
      %v9493 = vpack.c.b16 %v9300, %v9461
      %v9494 = vpack.c.b16 %v9462, %v9462
      %v9495 = vpack.c.b16 %v9303, %v9463
      %v9496 = vpack.c.b16 %v9464, %v9464
      %v9498 = vshrl.u32 %v9465, 16
      %v9500 = vrot.slane %v9498, 1
      %v9501 = vshll.u32 %v9465, 16
      %v9503 = vrot.slane %v9501, 2
      %v9504 = vor.u32 %v9500, %v9503
      %v9506 = vshrl.u32 %v9466, 16
      %v9508 = vrot.slane %v9506, 1
      %v9509 = vshll.u32 %v9466, 16
      %v9511 = vrot.slane %v9509, 2
      %v9512 = vor.u32 %v9508, %v9511
      %v9513 = vsel %vm3355, %v9504, %v9512
      %v9515 = vshrl.u32 %v9467, 16
      %v9517 = vrot.slane %v9515, 1
      %v9518 = vshll.u32 %v9467, 16
      %v9520 = vrot.slane %v9518, 2
      %v9521 = vor.u32 %v9517, %v9520
      %v9523 = vshrl.u32 %v9468, 16
      %v9525 = vrot.slane %v9523, 1
      %v9526 = vshll.u32 %v9468, 16
      %v9528 = vrot.slane %v9526, 2
      %v9529 = vor.u32 %v9525, %v9528
      %v9530 = vsel %vm3355, %v9521, %v9529
      %v9532 = vshrl.u32 %v9469, 16
      %v9534 = vrot.slane %v9532, 1
      %v9535 = vshll.u32 %v9469, 16
      %v9537 = vrot.slane %v9535, 2
      %v9538 = vor.u32 %v9534, %v9537
      %v9540 = vshrl.u32 %v9470, 16
      %v9542 = vrot.slane %v9540, 1
      %v9543 = vshll.u32 %v9470, 16
      %v9545 = vrot.slane %v9543, 2
      %v9546 = vor.u32 %v9542, %v9545
      %v9547 = vsel %vm3355, %v9538, %v9546
      %v9549 = vshrl.u32 %v9471, 16
      %v9551 = vrot.slane %v9549, 1
      %v9552 = vshll.u32 %v9471, 16
      %v9554 = vrot.slane %v9552, 2
      %v9555 = vor.u32 %v9551, %v9554
      %v9557 = vshrl.u32 %v9472, 16
      %v9559 = vrot.slane %v9557, 1
      %v9560 = vshll.u32 %v9472, 16
      %v9562 = vrot.slane %v9560, 2
      %v9563 = vor.u32 %v9559, %v9562
      %v9564 = vsel %vm3355, %v9555, %v9563
      %v9566 = vshrl.u32 %v9473, 16
      %v9568 = vrot.slane %v9566, 1
      %v9569 = vshll.u32 %v9473, 16
      %v9571 = vrot.slane %v9569, 2
      %v9572 = vor.u32 %v9568, %v9571
      %v9574 = vshrl.u32 %v9474, 16
      %v9576 = vrot.slane %v9574, 1
      %v9577 = vshll.u32 %v9474, 16
      %v9579 = vrot.slane %v9577, 2
      %v9580 = vor.u32 %v9576, %v9579
      %v9581 = vsel %vm3355, %v9572, %v9580
      %v9583 = vshrl.u32 %v9475, 16
      %v9585 = vrot.slane %v9583, 1
      %v9586 = vshll.u32 %v9475, 16
      %v9588 = vrot.slane %v9586, 2
      %v9589 = vor.u32 %v9585, %v9588
      %v9591 = vshrl.u32 %v9476, 16
      %v9593 = vrot.slane %v9591, 1
      %v9594 = vshll.u32 %v9476, 16
      %v9596 = vrot.slane %v9594, 2
      %v9597 = vor.u32 %v9593, %v9596
      %v9598 = vsel %vm3355, %v9589, %v9597
      %v9600 = vshrl.u32 %v9477, 16
      %v9602 = vrot.slane %v9600, 1
      %v9603 = vshll.u32 %v9477, 16
      %v9605 = vrot.slane %v9603, 2
      %v9606 = vor.u32 %v9602, %v9605
      %v9608 = vshrl.u32 %v9478, 16
      %v9610 = vrot.slane %v9608, 1
      %v9611 = vshll.u32 %v9478, 16
      %v9613 = vrot.slane %v9611, 2
      %v9614 = vor.u32 %v9610, %v9613
      %v9615 = vsel %vm3355, %v9606, %v9614
      %v9617 = vshrl.u32 %v9479, 16
      %v9619 = vrot.slane %v9617, 1
      %v9620 = vshll.u32 %v9479, 16
      %v9622 = vrot.slane %v9620, 2
      %v9623 = vor.u32 %v9619, %v9622
      %v9625 = vshrl.u32 %v9480, 16
      %v9627 = vrot.slane %v9625, 1
      %v9628 = vshll.u32 %v9480, 16
      %v9630 = vrot.slane %v9628, 2
      %v9631 = vor.u32 %v9627, %v9630
      %v9632 = vsel %vm3355, %v9623, %v9631
      %v9634 = vshrl.u32 %v9481, 16
      %v9636 = vrot.slane %v9634, 1
      %v9637 = vshll.u32 %v9481, 16
      %v9639 = vrot.slane %v9637, 2
      %v9640 = vor.u32 %v9636, %v9639
      %v9642 = vshrl.u32 %v9482, 16
      %v9644 = vrot.slane %v9642, 1
      %v9645 = vshll.u32 %v9482, 16
      %v9647 = vrot.slane %v9645, 2
      %v9648 = vor.u32 %v9644, %v9647
      %v9649 = vsel %vm3355, %v9640, %v9648
      %v9651 = vshrl.u32 %v9483, 16
      %v9653 = vrot.slane %v9651, 1
      %v9654 = vshll.u32 %v9483, 16
      %v9656 = vrot.slane %v9654, 2
      %v9657 = vor.u32 %v9653, %v9656
      %v9659 = vshrl.u32 %v9484, 16
      %v9661 = vrot.slane %v9659, 1
      %v9662 = vshll.u32 %v9484, 16
      %v9664 = vrot.slane %v9662, 2
      %v9665 = vor.u32 %v9661, %v9664
      %v9666 = vsel %vm3355, %v9657, %v9665
      %v9668 = vshrl.u32 %v9485, 16
      %v9670 = vrot.slane %v9668, 1
      %v9671 = vshll.u32 %v9485, 16
      %v9673 = vrot.slane %v9671, 2
      %v9674 = vor.u32 %v9670, %v9673
      %v9676 = vshrl.u32 %v9486, 16
      %v9678 = vrot.slane %v9676, 1
      %v9679 = vshll.u32 %v9486, 16
      %v9681 = vrot.slane %v9679, 2
      %v9682 = vor.u32 %v9678, %v9681
      %v9683 = vsel %vm3355, %v9674, %v9682
      %v9685 = vshrl.u32 %v9487, 16
      %v9687 = vrot.slane %v9685, 1
      %v9688 = vshll.u32 %v9487, 16
      %v9690 = vrot.slane %v9688, 2
      %v9691 = vor.u32 %v9687, %v9690
      %v9693 = vshrl.u32 %v9488, 16
      %v9695 = vrot.slane %v9693, 1
      %v9696 = vshll.u32 %v9488, 16
      %v9698 = vrot.slane %v9696, 2
      %v9699 = vor.u32 %v9695, %v9698
      %v9700 = vsel %vm3355, %v9691, %v9699
      %v9702 = vshrl.u32 %v9489, 16
      %v9704 = vrot.slane %v9702, 1
      %v9705 = vshll.u32 %v9489, 16
      %v9707 = vrot.slane %v9705, 2
      %v9708 = vor.u32 %v9704, %v9707
      %v9710 = vshrl.u32 %v9490, 16
      %v9712 = vrot.slane %v9710, 1
      %v9713 = vshll.u32 %v9490, 16
      %v9715 = vrot.slane %v9713, 2
      %v9716 = vor.u32 %v9712, %v9715
      %v9717 = vsel %vm3355, %v9708, %v9716
      %v9719 = vshrl.u32 %v9491, 16
      %v9721 = vrot.slane %v9719, 1
      %v9722 = vshll.u32 %v9491, 16
      %v9724 = vrot.slane %v9722, 2
      %v9725 = vor.u32 %v9721, %v9724
      %v9727 = vshrl.u32 %v9492, 16
      %v9729 = vrot.slane %v9727, 1
      %v9730 = vshll.u32 %v9492, 16
      %v9732 = vrot.slane %v9730, 2
      %v9733 = vor.u32 %v9729, %v9732
      %v9734 = vsel %vm3355, %v9725, %v9733
      %v9736 = vshrl.u32 %v9493, 16
      %v9738 = vrot.slane %v9736, 1
      %v9739 = vshll.u32 %v9493, 16
      %v9741 = vrot.slane %v9739, 2
      %v9742 = vor.u32 %v9738, %v9741
      %v9744 = vshrl.u32 %v9494, 16
      %v9746 = vrot.slane %v9744, 1
      %v9747 = vshll.u32 %v9494, 16
      %v9749 = vrot.slane %v9747, 2
      %v9750 = vor.u32 %v9746, %v9749
      %v9751 = vsel %vm3355, %v9742, %v9750
      %v9753 = vshrl.u32 %v9495, 16
      %v9755 = vrot.slane %v9753, 1
      %v9756 = vshll.u32 %v9495, 16
      %v9758 = vrot.slane %v9756, 2
      %v9759 = vor.u32 %v9755, %v9758
      %v9761 = vshrl.u32 %v9496, 16
      %v9763 = vrot.slane %v9761, 1
      %v9764 = vshll.u32 %v9496, 16
      %v9766 = vrot.slane %v9764, 2
      %v9767 = vor.u32 %v9763, %v9766
      %v9768 = vsel %vm3355, %v9759, %v9767
      %9769 = vrot.lane.b32.xlu0 %v9513, 56
      %v9770 = vpop.permute.xlu0 %9769
      %9771 = vrot.lane.b32.xlu0 %v9508, 56
      %v9772 = vpop.permute.xlu0 %9771
      %9773 = vrot.lane.b32.xlu0 %v9530, 56
      %v9774 = vpop.permute.xlu0 %9773
      %9775 = vrot.lane.b32.xlu0 %v9525, 56
      %v9776 = vpop.permute.xlu0 %9775
      %9777 = vrot.lane.b32.xlu0 %v9547, 56
      %v9778 = vpop.permute.xlu0 %9777
      %9779 = vrot.lane.b32.xlu0 %v9542, 56
      %v9780 = vpop.permute.xlu0 %9779
      %9781 = vrot.lane.b32.xlu0 %v9564, 56
      %v9782 = vpop.permute.xlu0 %9781
      %9783 = vrot.lane.b32.xlu0 %v9559, 56
      %v9784 = vpop.permute.xlu0 %9783
      %9785 = vrot.lane.b32.xlu0 %v9581, 56
      %v9786 = vpop.permute.xlu0 %9785
      %9787 = vrot.lane.b32.xlu0 %v9576, 56
      %v9788 = vpop.permute.xlu0 %9787
      %9789 = vrot.lane.b32.xlu0 %v9598, 56
      %v9790 = vpop.permute.xlu0 %9789
      %9791 = vrot.lane.b32.xlu0 %v9593, 56
      %v9792 = vpop.permute.xlu0 %9791
      %9793 = vrot.lane.b32.xlu0 %v9615, 56
      %v9794 = vpop.permute.xlu0 %9793
      %9795 = vrot.lane.b32.xlu0 %v9610, 56
      %v9796 = vpop.permute.xlu0 %9795
      %9797 = vrot.lane.b32.xlu0 %v9632, 56
      %v9798 = vpop.permute.xlu0 %9797
      %9799 = vrot.lane.b32.xlu0 %v9627, 56
      %v9800 = vpop.permute.xlu0 %9799
      %9801 = vrot.lane.b32.xlu0 %v9649, 56
      %v9802 = vpop.permute.xlu0 %9801
      %9803 = vrot.lane.b32.xlu0 %v9644, 56
      %v9804 = vpop.permute.xlu0 %9803
      %9805 = vrot.lane.b32.xlu0 %v9666, 56
      %v9806 = vpop.permute.xlu0 %9805
      %9807 = vrot.lane.b32.xlu0 %v9661, 56
      %v9808 = vpop.permute.xlu0 %9807
      %9809 = vrot.lane.b32.xlu0 %v9683, 56
      %v9810 = vpop.permute.xlu0 %9809
      %9811 = vrot.lane.b32.xlu0 %v9678, 56
      %v9812 = vpop.permute.xlu0 %9811
      %9813 = vrot.lane.b32.xlu0 %v9700, 56
      %v9814 = vpop.permute.xlu0 %9813
      %9815 = vrot.lane.b32.xlu0 %v9695, 56
      %v9816 = vpop.permute.xlu0 %9815
      %9817 = vrot.lane.b32.xlu0 %v9717, 56
      %v9818 = vpop.permute.xlu0 %9817
      %9819 = vrot.lane.b32.xlu0 %v9712, 56
      %v9820 = vpop.permute.xlu0 %9819
      %9821 = vrot.lane.b32.xlu0 %v9734, 56
      %v9822 = vpop.permute.xlu0 %9821
      %9823 = vrot.lane.b32.xlu0 %v9729, 56
      %v9824 = vpop.permute.xlu0 %9823
      %9825 = vrot.lane.b32.xlu0 %v9751, 56
      %v9826 = vpop.permute.xlu0 %9825
      %9827 = vrot.lane.b32.xlu0 %v9746, 56
      %v9828 = vpop.permute.xlu0 %9827
      %9829 = vrot.lane.b32.xlu0 %v9768, 56
      %v9830 = vpop.permute.xlu0 %9829
      %9831 = vrot.lane.b32.xlu0 %v9763, 56
      %v9832 = vpop.permute.xlu0 %9831
      %v9865 = vunpack.c.l.b16 %v7576
      %v9866 = vunpack.c.l.b16 %v7577
      %v9867 = vunpack.c.l.b16 %v7578
      %v9868 = vunpack.c.l.b16 %v7579
      %v9869 = vunpack.c.l.b16 %v7580
      %v9870 = vunpack.c.l.b16 %v7581
      %v9871 = vunpack.c.l.b16 %v7582
      %v9872 = vunpack.c.l.b16 %v7583
      %v9873 = vunpack.c.l.b16 %v7584
      %v9874 = vunpack.c.l.b16 %v7585
      %v9875 = vunpack.c.l.b16 %v7586
      %v9876 = vunpack.c.l.b16 %v7587
      %v9877 = vunpack.c.l.b16 %v7588
      %v9878 = vunpack.c.l.b16 %v7589
      %v9879 = vunpack.c.l.b16 %v7590
      %v9880 = vunpack.c.l.b16 %v7591
      %v9881 = vunpack.c.l.b16 %v7592
      %v9882 = vunpack.c.l.b16 %v7593
      %v9883 = vunpack.c.l.b16 %v7594
      %v9884 = vunpack.c.l.b16 %v7595
      %v9885 = vunpack.c.l.b16 %v7596
      %v9886 = vunpack.c.l.b16 %v7597
      %v9887 = vunpack.c.l.b16 %v7598
      %v9888 = vunpack.c.l.b16 %v7599
      %v9889 = vunpack.c.l.b16 %v7600
      %v9890 = vunpack.c.l.b16 %v7601
      %v9891 = vunpack.c.l.b16 %v7602
      %v9892 = vunpack.c.l.b16 %v7603
      %v9893 = vunpack.c.l.b16 %v7604
      %v9894 = vunpack.c.l.b16 %v7605
      %v9895 = vunpack.c.l.b16 %v7606
      %v9896 = vunpack.c.l.b16 %v7607
      %v9897 = vpack.c.b16 %v9258, %v9865
      %v9898 = vpack.c.b16 %v9866, %v9866
      %v9899 = vpack.c.b16 %v9261, %v9867
      %v9900 = vpack.c.b16 %v9868, %v9868
      %v9901 = vpack.c.b16 %v9264, %v9869
      %v9902 = vpack.c.b16 %v9870, %v9870
      %v9903 = vpack.c.b16 %v9267, %v9871
      %v9904 = vpack.c.b16 %v9872, %v9872
      %v9905 = vpack.c.b16 %v9270, %v9873
      %v9906 = vpack.c.b16 %v9874, %v9874
      %v9907 = vpack.c.b16 %v9273, %v9875
      %v9908 = vpack.c.b16 %v9876, %v9876
      %v9909 = vpack.c.b16 %v9276, %v9877
      %v9910 = vpack.c.b16 %v9878, %v9878
      %v9911 = vpack.c.b16 %v9279, %v9879
      %v9912 = vpack.c.b16 %v9880, %v9880
      %v9913 = vpack.c.b16 %v9282, %v9881
      %v9914 = vpack.c.b16 %v9882, %v9882
      %v9915 = vpack.c.b16 %v9285, %v9883
      %v9916 = vpack.c.b16 %v9884, %v9884
      %v9917 = vpack.c.b16 %v9288, %v9885
      %v9918 = vpack.c.b16 %v9886, %v9886
      %v9919 = vpack.c.b16 %v9291, %v9887
      %v9920 = vpack.c.b16 %v9888, %v9888
      %v9921 = vpack.c.b16 %v9294, %v9889
      %v9922 = vpack.c.b16 %v9890, %v9890
      %v9923 = vpack.c.b16 %v9297, %v9891
      %v9924 = vpack.c.b16 %v9892, %v9892
      %v9925 = vpack.c.b16 %v9300, %v9893
      %v9926 = vpack.c.b16 %v9894, %v9894
      %v9927 = vpack.c.b16 %v9303, %v9895
      %v9928 = vpack.c.b16 %v9896, %v9896
      %v9929 = vrot.slane %v9897, 3
      %v9930 = vrot.slane %v9898, 3
      %v9931 = vsel %vm8264, %v9929, %v9930
      %v9932 = vrot.slane %v9899, 3
      %v9933 = vrot.slane %v9900, 3
      %v9934 = vsel %vm8264, %v9932, %v9933
      %v9935 = vrot.slane %v9901, 3
      %v9936 = vrot.slane %v9902, 3
      %v9937 = vsel %vm8264, %v9935, %v9936
      %v9938 = vrot.slane %v9903, 3
      %v9939 = vrot.slane %v9904, 3
      %v9940 = vsel %vm8264, %v9938, %v9939
      %v9941 = vrot.slane %v9905, 3
      %v9942 = vrot.slane %v9906, 3
      %v9943 = vsel %vm8264, %v9941, %v9942
      %v9944 = vrot.slane %v9907, 3
      %v9945 = vrot.slane %v9908, 3
      %v9946 = vsel %vm8264, %v9944, %v9945
      %v9947 = vrot.slane %v9909, 3
      %v9948 = vrot.slane %v9910, 3
      %v9949 = vsel %vm8264, %v9947, %v9948
      %v9950 = vrot.slane %v9911, 3
      %v9951 = vrot.slane %v9912, 3
      %v9952 = vsel %vm8264, %v9950, %v9951
      %v9953 = vrot.slane %v9913, 3
      %v9954 = vrot.slane %v9914, 3
      %v9955 = vsel %vm8264, %v9953, %v9954
      %v9956 = vrot.slane %v9915, 3
      %v9957 = vrot.slane %v9916, 3
      %v9958 = vsel %vm8264, %v9956, %v9957
      %v9959 = vrot.slane %v9917, 3
      %v9960 = vrot.slane %v9918, 3
      %v9961 = vsel %vm8264, %v9959, %v9960
      %v9962 = vrot.slane %v9919, 3
      %v9963 = vrot.slane %v9920, 3
      %v9964 = vsel %vm8264, %v9962, %v9963
      %v9965 = vrot.slane %v9921, 3
      %v9966 = vrot.slane %v9922, 3
      %v9967 = vsel %vm8264, %v9965, %v9966
      %v9968 = vrot.slane %v9923, 3
      %v9969 = vrot.slane %v9924, 3
      %v9970 = vsel %vm8264, %v9968, %v9969
      %v9971 = vrot.slane %v9925, 3
      %v9972 = vrot.slane %v9926, 3
      %v9973 = vsel %vm8264, %v9971, %v9972
      %v9974 = vrot.slane %v9927, 3
      %v9975 = vrot.slane %v9928, 3
      %v9976 = vsel %vm8264, %v9974, %v9975
      %9977 = vrot.lane.b32.xlu0 %v9931, 64
      %v9978 = vpop.permute.xlu0 %9977
      %9979 = vrot.lane.b32.xlu0 %v9930, 64
      %v9980 = vpop.permute.xlu0 %9979
      %9981 = vrot.lane.b32.xlu0 %v9934, 64
      %v9982 = vpop.permute.xlu0 %9981
      %9983 = vrot.lane.b32.xlu0 %v9933, 64
      %v9984 = vpop.permute.xlu0 %9983
      %9985 = vrot.lane.b32.xlu0 %v9937, 64
      %v9986 = vpop.permute.xlu0 %9985
      %9987 = vrot.lane.b32.xlu0 %v9936, 64
      %v9988 = vpop.permute.xlu0 %9987
      %9989 = vrot.lane.b32.xlu0 %v9940, 64
      %v9990 = vpop.permute.xlu0 %9989
      %9991 = vrot.lane.b32.xlu0 %v9939, 64
      %v9992 = vpop.permute.xlu0 %9991
      %9993 = vrot.lane.b32.xlu0 %v9943, 64
      %v9994 = vpop.permute.xlu0 %9993
      %9995 = vrot.lane.b32.xlu0 %v9942, 64
      %v9996 = vpop.permute.xlu0 %9995
      %9997 = vrot.lane.b32.xlu0 %v9946, 64
      %v9998 = vpop.permute.xlu0 %9997
      %9999 = vrot.lane.b32.xlu0 %v9945, 64
      %v10000 = vpop.permute.xlu0 %9999
      %10001 = vrot.lane.b32.xlu0 %v9949, 64
      %v10002 = vpop.permute.xlu0 %10001
      %10003 = vrot.lane.b32.xlu0 %v9948, 64
      %v10004 = vpop.permute.xlu0 %10003
      %10005 = vrot.lane.b32.xlu0 %v9952, 64
      %v10006 = vpop.permute.xlu0 %10005
      %10007 = vrot.lane.b32.xlu0 %v9951, 64
      %v10008 = vpop.permute.xlu0 %10007
      %10009 = vrot.lane.b32.xlu0 %v9955, 64
      %v10010 = vpop.permute.xlu0 %10009
      %10011 = vrot.lane.b32.xlu0 %v9954, 64
      %v10012 = vpop.permute.xlu0 %10011
      %10013 = vrot.lane.b32.xlu0 %v9958, 64
      %v10014 = vpop.permute.xlu0 %10013
      %10015 = vrot.lane.b32.xlu0 %v9957, 64
      %v10016 = vpop.permute.xlu0 %10015
      %10017 = vrot.lane.b32.xlu0 %v9961, 64
      %v10018 = vpop.permute.xlu0 %10017
      %10019 = vrot.lane.b32.xlu0 %v9960, 64
      %v10020 = vpop.permute.xlu0 %10019
      %10021 = vrot.lane.b32.xlu0 %v9964, 64
      %v10022 = vpop.permute.xlu0 %10021
      %10023 = vrot.lane.b32.xlu0 %v9963, 64
      %v10024 = vpop.permute.xlu0 %10023
      %10025 = vrot.lane.b32.xlu0 %v9967, 64
      %v10026 = vpop.permute.xlu0 %10025
      %10027 = vrot.lane.b32.xlu0 %v9966, 64
      %v10028 = vpop.permute.xlu0 %10027
      %10029 = vrot.lane.b32.xlu0 %v9970, 64
      %v10030 = vpop.permute.xlu0 %10029
      %10031 = vrot.lane.b32.xlu0 %v9969, 64
      %v10032 = vpop.permute.xlu0 %10031
      %10033 = vrot.lane.b32.xlu0 %v9973, 64
      %v10034 = vpop.permute.xlu0 %10033
      %10035 = vrot.lane.b32.xlu0 %v9972, 64
      %v10036 = vpop.permute.xlu0 %10035
      %10037 = vrot.lane.b32.xlu0 %v9976, 64
      %v10038 = vpop.permute.xlu0 %10037
      %10039 = vrot.lane.b32.xlu0 %v9975, 64
      %v10040 = vpop.permute.xlu0 %10039
      %v10043 = vsel %vm2810, %v7704, %v8105
      %v10046 = vsel %vm2810, %v7705, %v8107
      %v10049 = vsel %vm2810, %v7706, %v8109
      %v10052 = vsel %vm2810, %v7707, %v8111
      %v10055 = vsel %vm2810, %v7708, %v8113
      %v10058 = vsel %vm2810, %v7709, %v8115
      %v10061 = vsel %vm2810, %v7710, %v8117
      %v10064 = vsel %vm2810, %v7711, %v8119
      %v10067 = vsel %vm2810, %v7712, %v8121
      %v10070 = vsel %vm2810, %v7713, %v8123
      %v10073 = vsel %vm2810, %v7714, %v8125
      %v10076 = vsel %vm2810, %v7715, %v8127
      %v10079 = vsel %vm2810, %v7716, %v8129
      %v10082 = vsel %vm2810, %v7717, %v8131
      %v10085 = vsel %vm2810, %v7718, %v8133
      %v10088 = vsel %vm2810, %v7719, %v8135
      %v10091 = vsel %vm2810, %v7720, %v8137
      %v10094 = vsel %vm2810, %v7721, %v8139
      %v10097 = vsel %vm2810, %v7722, %v8141
      %v10100 = vsel %vm2810, %v7723, %v8143
      %v10103 = vsel %vm2810, %v7724, %v8145
      %v10106 = vsel %vm2810, %v7725, %v8147
      %v10109 = vsel %vm2810, %v7726, %v8149
      %v10112 = vsel %vm2810, %v7727, %v8151
      %v10115 = vsel %vm2810, %v7728, %v8153
      %v10118 = vsel %vm2810, %v7729, %v8155
      %v10121 = vsel %vm2810, %v7730, %v8157
      %v10124 = vsel %vm2810, %v7731, %v8159
      %v10127 = vsel %vm2810, %v7732, %v8161
      %v10130 = vsel %vm2810, %v7733, %v8163
      %v10133 = vsel %vm2810, %v7734, %v8165
      %v10136 = vsel %vm2810, %v7735, %v8167
      %v10138 = vsel %vm2891, %v10043, %v8314
      %v10140 = vsel %vm2891, %v10046, %v8316
      %v10142 = vsel %vm2891, %v10049, %v8318
      %v10144 = vsel %vm2891, %v10052, %v8320
      %v10146 = vsel %vm2891, %v10055, %v8322
      %v10148 = vsel %vm2891, %v10058, %v8324
      %v10150 = vsel %vm2891, %v10061, %v8326
      %v10152 = vsel %vm2891, %v10064, %v8328
      %v10154 = vsel %vm2891, %v10067, %v8330
      %v10156 = vsel %vm2891, %v10070, %v8332
      %v10158 = vsel %vm2891, %v10073, %v8334
      %v10160 = vsel %vm2891, %v10076, %v8336
      %v10162 = vsel %vm2891, %v10079, %v8338
      %v10164 = vsel %vm2891, %v10082, %v8340
      %v10166 = vsel %vm2891, %v10085, %v8342
      %v10168 = vsel %vm2891, %v10088, %v8344
      %v10170 = vsel %vm2891, %v10091, %v8346
      %v10172 = vsel %vm2891, %v10094, %v8348
      %v10174 = vsel %vm2891, %v10097, %v8350
      %v10176 = vsel %vm2891, %v10100, %v8352
      %v10178 = vsel %vm2891, %v10103, %v8354
      %v10180 = vsel %vm2891, %v10106, %v8356
      %v10182 = vsel %vm2891, %v10109, %v8358
      %v10184 = vsel %vm2891, %v10112, %v8360
      %v10186 = vsel %vm2891, %v10115, %v8362
      %v10188 = vsel %vm2891, %v10118, %v8364
      %v10190 = vsel %vm2891, %v10121, %v8366
      %v10192 = vsel %vm2891, %v10124, %v8368
      %v10194 = vsel %vm2891, %v10127, %v8370
      %v10196 = vsel %vm2891, %v10130, %v8372
      %v10198 = vsel %vm2891, %v10133, %v8374
      %v10200 = vsel %vm2891, %v10136, %v8376
      %v10202 = vsel %vm2956, %v10138, %v8506
      %v10204 = vsel %vm2956, %v10140, %v8508
      %v10206 = vsel %vm2956, %v10142, %v8510
      %v10208 = vsel %vm2956, %v10144, %v8512
      %v10210 = vsel %vm2956, %v10146, %v8514
      %v10212 = vsel %vm2956, %v10148, %v8516
      %v10214 = vsel %vm2956, %v10150, %v8518
      %v10216 = vsel %vm2956, %v10152, %v8520
      %v10218 = vsel %vm2956, %v10154, %v8522
      %v10220 = vsel %vm2956, %v10156, %v8524
      %v10222 = vsel %vm2956, %v10158, %v8526
      %v10224 = vsel %vm2956, %v10160, %v8528
      %v10226 = vsel %vm2956, %v10162, %v8530
      %v10228 = vsel %vm2956, %v10164, %v8532
      %v10230 = vsel %vm2956, %v10166, %v8534
      %v10232 = vsel %vm2956, %v10168, %v8536
      %v10234 = vsel %vm2956, %v10170, %v8538
      %v10236 = vsel %vm2956, %v10172, %v8540
      %v10238 = vsel %vm2956, %v10174, %v8542
      %v10240 = vsel %vm2956, %v10176, %v8544
      %v10242 = vsel %vm2956, %v10178, %v8546
      %v10244 = vsel %vm2956, %v10180, %v8548
      %v10246 = vsel %vm2956, %v10182, %v8550
      %v10248 = vsel %vm2956, %v10184, %v8552
      %v10250 = vsel %vm2956, %v10186, %v8554
      %v10252 = vsel %vm2956, %v10188, %v8556
      %v10254 = vsel %vm2956, %v10190, %v8558
      %v10256 = vsel %vm2956, %v10192, %v8560
      %v10258 = vsel %vm2956, %v10194, %v8562
      %v10260 = vsel %vm2956, %v10196, %v8564
      %v10262 = vsel %vm2956, %v10198, %v8566
      %v10264 = vsel %vm2956, %v10200, %v8568
      %v10266 = vsel %vm3021, %v10202, %v8938
      %v10268 = vsel %vm3021, %v10204, %v8940
      %v10270 = vsel %vm3021, %v10206, %v8942
      %v10272 = vsel %vm3021, %v10208, %v8944
      %v10274 = vsel %vm3021, %v10210, %v8946
      %v10276 = vsel %vm3021, %v10212, %v8948
      %v10278 = vsel %vm3021, %v10214, %v8950
      %v10280 = vsel %vm3021, %v10216, %v8952
      %v10282 = vsel %vm3021, %v10218, %v8954
      %v10284 = vsel %vm3021, %v10220, %v8956
      %v10286 = vsel %vm3021, %v10222, %v8958
      %v10288 = vsel %vm3021, %v10224, %v8960
      %v10290 = vsel %vm3021, %v10226, %v8962
      %v10292 = vsel %vm3021, %v10228, %v8964
      %v10294 = vsel %vm3021, %v10230, %v8966
      %v10296 = vsel %vm3021, %v10232, %v8968
      %v10298 = vsel %vm3021, %v10234, %v8970
      %v10300 = vsel %vm3021, %v10236, %v8972
      %v10302 = vsel %vm3021, %v10238, %v8974
      %v10304 = vsel %vm3021, %v10240, %v8976
      %v10306 = vsel %vm3021, %v10242, %v8978
      %v10308 = vsel %vm3021, %v10244, %v8980
      %v10310 = vsel %vm3021, %v10246, %v8982
      %v10312 = vsel %vm3021, %v10248, %v8984
      %v10314 = vsel %vm3021, %v10250, %v8986
      %v10316 = vsel %vm3021, %v10252, %v8988
      %v10318 = vsel %vm3021, %v10254, %v8990
      %v10320 = vsel %vm3021, %v10256, %v8992
      %v10322 = vsel %vm3021, %v10258, %v8994
      %v10324 = vsel %vm3021, %v10260, %v8996
      %v10326 = vsel %vm3021, %v10262, %v8998
      %v10328 = vsel %vm3021, %v10264, %v9000
      %v10330 = vsel %vm3086, %v10266, %v9146
      %v10332 = vsel %vm3086, %v10268, %v9148
      %v10334 = vsel %vm3086, %v10270, %v9150
      %v10336 = vsel %vm3086, %v10272, %v9152
      %v10338 = vsel %vm3086, %v10274, %v9154
      %v10340 = vsel %vm3086, %v10276, %v9156
      %v10342 = vsel %vm3086, %v10278, %v9158
      %v10344 = vsel %vm3086, %v10280, %v9160
      %v10346 = vsel %vm3086, %v10282, %v9162
      %v10348 = vsel %vm3086, %v10284, %v9164
      %v10350 = vsel %vm3086, %v10286, %v9166
      %v10352 = vsel %vm3086, %v10288, %v9168
      %v10354 = vsel %vm3086, %v10290, %v9170
      %v10356 = vsel %vm3086, %v10292, %v9172
      %v10358 = vsel %vm3086, %v10294, %v9174
      %v10360 = vsel %vm3086, %v10296, %v9176
      %v10362 = vsel %vm3086, %v10298, %v9178
      %v10364 = vsel %vm3086, %v10300, %v9180
      %v10366 = vsel %vm3086, %v10302, %v9182
      %v10368 = vsel %vm3086, %v10304, %v9184
      %v10370 = vsel %vm3086, %v10306, %v9186
      %v10372 = vsel %vm3086, %v10308, %v9188
      %v10374 = vsel %vm3086, %v10310, %v9190
      %v10376 = vsel %vm3086, %v10312, %v9192
      %v10378 = vsel %vm3086, %v10314, %v9194
      %v10380 = vsel %vm3086, %v10316, %v9196
      %v10382 = vsel %vm3086, %v10318, %v9198
      %v10384 = vsel %vm3086, %v10320, %v9200
      %v10386 = vsel %vm3086, %v10322, %v9202
      %v10388 = vsel %vm3086, %v10324, %v9204
      %v10390 = vsel %vm3086, %v10326, %v9206
      %v10392 = vsel %vm3086, %v10328, %v9208
      %v10394 = vsel %vm3151, %v10330, %v9338
      %v10396 = vsel %vm3151, %v10332, %v9340
      %v10398 = vsel %vm3151, %v10334, %v9342
      %v10400 = vsel %vm3151, %v10336, %v9344
      %v10402 = vsel %vm3151, %v10338, %v9346
      %v10404 = vsel %vm3151, %v10340, %v9348
      %v10406 = vsel %vm3151, %v10342, %v9350
      %v10408 = vsel %vm3151, %v10344, %v9352
      %v10410 = vsel %vm3151, %v10346, %v9354
      %v10412 = vsel %vm3151, %v10348, %v9356
      %v10414 = vsel %vm3151, %v10350, %v9358
      %v10416 = vsel %vm3151, %v10352, %v9360
      %v10418 = vsel %vm3151, %v10354, %v9362
      %v10420 = vsel %vm3151, %v10356, %v9364
      %v10422 = vsel %vm3151, %v10358, %v9366
      %v10424 = vsel %vm3151, %v10360, %v9368
      %v10426 = vsel %vm3151, %v10362, %v9370
      %v10428 = vsel %vm3151, %v10364, %v9372
      %v10430 = vsel %vm3151, %v10366, %v9374
      %v10432 = vsel %vm3151, %v10368, %v9376
      %v10434 = vsel %vm3151, %v10370, %v9378
      %v10436 = vsel %vm3151, %v10372, %v9380
      %v10438 = vsel %vm3151, %v10374, %v9382
      %v10440 = vsel %vm3151, %v10376, %v9384
      %v10442 = vsel %vm3151, %v10378, %v9386
      %v10444 = vsel %vm3151, %v10380, %v9388
      %v10446 = vsel %vm3151, %v10382, %v9390
      %v10448 = vsel %vm3151, %v10384, %v9392
      %v10450 = vsel %vm3151, %v10386, %v9394
      %v10452 = vsel %vm3151, %v10388, %v9396
      %v10454 = vsel %vm3151, %v10390, %v9398
      %v10456 = vsel %vm3151, %v10392, %v9400
      %v10458 = vsel %vm3216, %v10394, %v9770
      %v10460 = vsel %vm3216, %v10396, %v9772
      %v10462 = vsel %vm3216, %v10398, %v9774
      %v10464 = vsel %vm3216, %v10400, %v9776
      %v10466 = vsel %vm3216, %v10402, %v9778
      %v10468 = vsel %vm3216, %v10404, %v9780
      %v10470 = vsel %vm3216, %v10406, %v9782
      %v10472 = vsel %vm3216, %v10408, %v9784
      %v10474 = vsel %vm3216, %v10410, %v9786
      %v10476 = vsel %vm3216, %v10412, %v9788
      %v10478 = vsel %vm3216, %v10414, %v9790
      %v10480 = vsel %vm3216, %v10416, %v9792
      %v10482 = vsel %vm3216, %v10418, %v9794
      %v10484 = vsel %vm3216, %v10420, %v9796
      %v10486 = vsel %vm3216, %v10422, %v9798
      %v10488 = vsel %vm3216, %v10424, %v9800
      %v10490 = vsel %vm3216, %v10426, %v9802
      %v10492 = vsel %vm3216, %v10428, %v9804
      %v10494 = vsel %vm3216, %v10430, %v9806
      %v10496 = vsel %vm3216, %v10432, %v9808
      %v10498 = vsel %vm3216, %v10434, %v9810
      %v10500 = vsel %vm3216, %v10436, %v9812
      %v10502 = vsel %vm3216, %v10438, %v9814
      %v10504 = vsel %vm3216, %v10440, %v9816
      %v10506 = vsel %vm3216, %v10442, %v9818
      %v10508 = vsel %vm3216, %v10444, %v9820
      %v10510 = vsel %vm3216, %v10446, %v9822
      %v10512 = vsel %vm3216, %v10448, %v9824
      %v10514 = vsel %vm3216, %v10450, %v9826
      %v10516 = vsel %vm3216, %v10452, %v9828
      %v10518 = vsel %vm3216, %v10454, %v9830
      %v10520 = vsel %vm3216, %v10456, %v9832
      %v10522 = vsel %vm3281, %v10458, %v9978
      %v10524 = vsel %vm3281, %v10460, %v9980
      %v10526 = vsel %vm3281, %v10462, %v9982
      %v10528 = vsel %vm3281, %v10464, %v9984
      %v10530 = vsel %vm3281, %v10466, %v9986
      %v10532 = vsel %vm3281, %v10468, %v9988
      %v10534 = vsel %vm3281, %v10470, %v9990
      %v10536 = vsel %vm3281, %v10472, %v9992
      %v10538 = vsel %vm3281, %v10474, %v9994
      %v10540 = vsel %vm3281, %v10476, %v9996
      %v10542 = vsel %vm3281, %v10478, %v9998
      %v10544 = vsel %vm3281, %v10480, %v10000
      %v10546 = vsel %vm3281, %v10482, %v10002
      %v10548 = vsel %vm3281, %v10484, %v10004
      %v10550 = vsel %vm3281, %v10486, %v10006
      %v10552 = vsel %vm3281, %v10488, %v10008
      %v10554 = vsel %vm3281, %v10490, %v10010
      %v10556 = vsel %vm3281, %v10492, %v10012
      %v10558 = vsel %vm3281, %v10494, %v10014
      %v10560 = vsel %vm3281, %v10496, %v10016
      %v10562 = vsel %vm3281, %v10498, %v10018
      %v10564 = vsel %vm3281, %v10500, %v10020
      %v10566 = vsel %vm3281, %v10502, %v10022
      %v10568 = vsel %vm3281, %v10504, %v10024
      %v10570 = vsel %vm3281, %v10506, %v10026
      %v10572 = vsel %vm3281, %v10508, %v10028
      %v10574 = vsel %vm3281, %v10510, %v10030
      %v10576 = vsel %vm3281, %v10512, %v10032
      %v10578 = vsel %vm3281, %v10514, %v10034
      %v10580 = vsel %vm3281, %v10516, %v10036
      %v10582 = vsel %vm3281, %v10518, %v10038
      %v10584 = vsel %vm3281, %v10520, %v10040
      %s10585 = scalar_lea.vmem %s1, 72
      %v10586 = vld [vmem:[%s10585] sm:$0xf]
      %v10587 = vld [vmem:[%s10585 + $0x4] sm:$0xf]
      %v10588 = vld [vmem:[%s10585 + $0x8] sm:$0xf]
      %v10589 = vld [vmem:[%s10585 + $0xc] sm:$0xf]
      %v10590 = vld [vmem:[%s10585 + $0x10] sm:$0xf]
      %v10591 = vld [vmem:[%s10585 + $0x14] sm:$0xf]
      %v10592 = vld [vmem:[%s10585 + $0x18] sm:$0xf]
      %v10593 = vld [vmem:[%s10585 + $0x1c] sm:$0xf]
      %v10594 = vld [vmem:[%s10585 + $0x20] sm:$0xf]
      %v10595 = vshrl.u32 %v10522, 16
      %v10597 = vshll.u32 %v10522, 16
      %v10599 = vrot.slane %v10597, 1
      %v10600 = vor.u32 %v10595, %v10599
      %v10601 = vshll.u32 %v10524, 16
      %v10603 = vrot.slane %v10601, 1
      %v10604 = vsel %vm936, %v10600, %v10603
      %v10605 = vshrl.u32 %v10526, 16
      %v10607 = vshll.u32 %v10526, 16
      %v10609 = vrot.slane %v10607, 1
      %v10610 = vor.u32 %v10605, %v10609
      %v10611 = vshll.u32 %v10528, 16
      %v10613 = vrot.slane %v10611, 1
      %v10614 = vsel %vm936, %v10610, %v10613
      %v10615 = vshrl.u32 %v10530, 16
      %v10617 = vshll.u32 %v10530, 16
      %v10619 = vrot.slane %v10617, 1
      %v10620 = vor.u32 %v10615, %v10619
      %v10621 = vshll.u32 %v10532, 16
      %v10623 = vrot.slane %v10621, 1
      %v10624 = vsel %vm936, %v10620, %v10623
      %v10625 = vshrl.u32 %v10534, 16
      %v10627 = vshll.u32 %v10534, 16
      %v10629 = vrot.slane %v10627, 1
      %v10630 = vor.u32 %v10625, %v10629
      %v10631 = vshll.u32 %v10536, 16
      %v10633 = vrot.slane %v10631, 1
      %v10634 = vsel %vm936, %v10630, %v10633
      %v10635 = vshrl.u32 %v10538, 16
      %v10637 = vshll.u32 %v10538, 16
      %v10639 = vrot.slane %v10637, 1
      %v10640 = vor.u32 %v10635, %v10639
      %v10641 = vshll.u32 %v10540, 16
      %v10643 = vrot.slane %v10641, 1
      %v10644 = vsel %vm936, %v10640, %v10643
      %v10645 = vshrl.u32 %v10542, 16
      %v10647 = vshll.u32 %v10542, 16
      %v10649 = vrot.slane %v10647, 1
      %v10650 = vor.u32 %v10645, %v10649
      %v10651 = vshll.u32 %v10544, 16
      %v10653 = vrot.slane %v10651, 1
      %v10654 = vsel %vm936, %v10650, %v10653
      %v10655 = vshrl.u32 %v10546, 16
      %v10657 = vshll.u32 %v10546, 16
      %v10659 = vrot.slane %v10657, 1
      %v10660 = vor.u32 %v10655, %v10659
      %v10661 = vshll.u32 %v10548, 16
      %v10663 = vrot.slane %v10661, 1
      %v10664 = vsel %vm936, %v10660, %v10663
      %v10665 = vshrl.u32 %v10550, 16
      %v10667 = vshll.u32 %v10550, 16
      %v10669 = vrot.slane %v10667, 1
      %v10670 = vor.u32 %v10665, %v10669
      %v10671 = vshll.u32 %v10552, 16
      %v10673 = vrot.slane %v10671, 1
      %v10674 = vsel %vm936, %v10670, %v10673
      %v10675 = vshrl.u32 %v10554, 16
      %v10677 = vshll.u32 %v10554, 16
      %v10679 = vrot.slane %v10677, 1
      %v10680 = vor.u32 %v10675, %v10679
      %v10681 = vshll.u32 %v10556, 16
      %v10683 = vrot.slane %v10681, 1
      %v10684 = vsel %vm936, %v10680, %v10683
      %v10685 = vshrl.u32 %v10558, 16
      %v10687 = vshll.u32 %v10558, 16
      %v10689 = vrot.slane %v10687, 1
      %v10690 = vor.u32 %v10685, %v10689
      %v10691 = vshll.u32 %v10560, 16
      %v10693 = vrot.slane %v10691, 1
      %v10694 = vsel %vm936, %v10690, %v10693
      %v10695 = vshrl.u32 %v10562, 16
      %v10697 = vshll.u32 %v10562, 16
      %v10699 = vrot.slane %v10697, 1
      %v10700 = vor.u32 %v10695, %v10699
      %v10701 = vshll.u32 %v10564, 16
      %v10703 = vrot.slane %v10701, 1
      %v10704 = vsel %vm936, %v10700, %v10703
      %v10705 = vshrl.u32 %v10566, 16
      %v10707 = vshll.u32 %v10566, 16
      %v10709 = vrot.slane %v10707, 1
      %v10710 = vor.u32 %v10705, %v10709
      %v10711 = vshll.u32 %v10568, 16
      %v10713 = vrot.slane %v10711, 1
      %v10714 = vsel %vm936, %v10710, %v10713
      %v10715 = vshrl.u32 %v10570, 16
      %v10717 = vshll.u32 %v10570, 16
      %v10719 = vrot.slane %v10717, 1
      %v10720 = vor.u32 %v10715, %v10719
      %v10721 = vshll.u32 %v10572, 16
      %v10723 = vrot.slane %v10721, 1
      %v10724 = vsel %vm936, %v10720, %v10723
      %v10725 = vshrl.u32 %v10574, 16
      %v10727 = vshll.u32 %v10574, 16
      %v10729 = vrot.slane %v10727, 1
      %v10730 = vor.u32 %v10725, %v10729
      %v10731 = vshll.u32 %v10576, 16
      %v10733 = vrot.slane %v10731, 1
      %v10734 = vsel %vm936, %v10730, %v10733
      %v10735 = vshrl.u32 %v10578, 16
      %v10737 = vshll.u32 %v10578, 16
      %v10739 = vrot.slane %v10737, 1
      %v10740 = vor.u32 %v10735, %v10739
      %v10741 = vshll.u32 %v10580, 16
      %v10743 = vrot.slane %v10741, 1
      %v10744 = vsel %vm936, %v10740, %v10743
      %v10745 = vshrl.u32 %v10582, 16
      %v10747 = vshll.u32 %v10582, 16
      %v10749 = vrot.slane %v10747, 1
      %v10750 = vor.u32 %v10745, %v10749
      %v10751 = vshll.u32 %v10584, 16
      %v10753 = vrot.slane %v10751, 1
      %v10754 = vsel %vm936, %v10750, %v10753
      %v10764 = vunpack.c.l.b16 %v10586
      %v10765 = vunpack.c.l.b16 %v10587
      %v10766 = vunpack.c.l.b16 %v10588
      %v10767 = vunpack.c.l.b16 %v10589
      %v10768 = vunpack.c.l.b16 %v10590
      %v10769 = vunpack.c.l.b16 %v10591
      %v10770 = vunpack.c.l.b16 %v10592
      %v10771 = vunpack.c.l.b16 %v10593
      %v10772 = vunpack.c.l.b16 %v10594
      %v10773 = vpack.c.b16 %v10765, %v10764
      %v10774 = vpack.c.b16 %v10767, %v10766
      %v10775 = vpack.c.b16 %v10769, %v10768
      %v10776 = vpack.c.b16 %v10771, %v10770
      %v10777 = vpack.c.b16 %v10772, %v10772
      %v10783 = vsel %vm3623, %v10604, 0
      %v10786 = vsel %vm3623, %v10614, 0
      %v10789 = vsel %vm3623, %v10624, 0
      %v10792 = vsel %vm3623, %v10634, 0
      %v10795 = vsel %vm3623, %v10644, 0
      %v10798 = vsel %vm3623, %v10654, 0
      %v10801 = vsel %vm3623, %v10664, 0
      %v10804 = vsel %vm3623, %v10674, 0
      %v10807 = vsel %vm3623, %v10684, 0
      %v10810 = vsel %vm3623, %v10694, 0
      %v10813 = vsel %vm3623, %v10704, 0
      %v10816 = vsel %vm3623, %v10714, 0
      %v10819 = vsel %vm3623, %v10724, 0
      %v10822 = vsel %vm3623, %v10734, 0
      %v10825 = vsel %vm3623, %v10744, 0
      %v10828 = vsel %vm3623, %v10754, 0
      %v10831 = vsel %vm3672, %v10777, 0
      %10833 = vmatprep.subr.bf16.mxu0 0
      %10834 = vmatpush1.bf16.msra.mxu0 %v10773
      %10835 = vmatprep.subr.bf16.mxu0 0
      %10836 = vmatpush1.bf16.msra.mxu0 %v10774
      %10837 = vmatprep.subr.bf16.mxu0 0
      %10838 = vmatpush1.bf16.msra.mxu0 %v10775
      %10839 = vmatprep.subr.bf16.mxu0 0
      %10840 = vmatpush1.bf16.msra.mxu0 %v10776
      %10841 = vmatprep.subr.bf16.mxu0 0
      %10842 = vmatpush1.bf16.msra.mxu0 %v10831
      %10843 = vmatprep.subr.bf16.mxu0 0
      %10844 = vmatpush1.bf16.msra.mxu0 0
      %10845 = vmatprep.subr.bf16.mxu0 0
      %10846 = vmatpush1.bf16.msra.mxu0 0
      %10847 = vmatprep.subr.bf16.mxu0 0
      %10848 = vmatpush1.bf16.msra.mxu0 0
      %10849 = vmatprep.subr.bf16.mxu0 0
      %10850 = vmatpush1.bf16.msra.mxu0 0
      %10851 = vmatprep.subr.bf16.mxu0 0
      %10852 = vmatpush1.bf16.msra.mxu0 0
      %10853 = vmatprep.subr.bf16.mxu0 0
      %10854 = vmatpush1.bf16.msra.mxu0 0
      %10855 = vmatprep.subr.bf16.mxu0 0
      %10856 = vmatpush1.bf16.msra.mxu0 0
      %10857 = vmatprep.subr.bf16.mxu0 0
      %10858 = vmatpush1.bf16.msra.mxu0 0
      %10859 = vmatprep.subr.bf16.mxu0 0
      %10860 = vmatpush1.bf16.msra.mxu0 0
      %10861 = vmatprep.subr.bf16.mxu0 0
      %10862 = vmatpush1.bf16.msra.mxu0 0
      %10863 = vmatprep.subr.bf16.mxu0 0
      %10864 = vmatpush1.bf16.msra.mxu0 0
      %10865 = vmatprep.mubr.bf16.mxu0 0
      %10866 = vmatmul.mubr.bf16.gmra.mrb[0].mxu0 %v10783
      %v10867 = vpop.f32.mrb[0].mxu0
      %v10868 = vadd.f32 0.0, %v10867
      %v10869 = vpop.f32.mrb[0].mxu0
      %v10870 = vpop.f32.mrb[0].mxu0
      %v10871 = vadd.f32 0.0, %v10870
      %v10872 = vpop.f32.mrb[0].mxu0
      %10873 = vmatprep.mubr.bf16.mxu0 0
      %10874 = vmatmul.mubr.bf16.gmra.mrb[0].mxu0 %v10786
      %v10875 = vpop.f32.mrb[0].mxu0
      %v10876 = vadd.f32 0.0, %v10875
      %v10877 = vpop.f32.mrb[0].mxu0
      %v10878 = vpop.f32.mrb[0].mxu0
      %v10879 = vadd.f32 0.0, %v10878
      %v10880 = vpop.f32.mrb[0].mxu0
      %10881 = vmatprep.mubr.bf16.mxu0 0
      %10882 = vmatmul.mubr.bf16.gmra.mrb[0].mxu0 %v10789
      %v10883 = vpop.f32.mrb[0].mxu0
      %v10884 = vadd.f32 0.0, %v10883
      %v10885 = vpop.f32.mrb[0].mxu0
      %v10886 = vpop.f32.mrb[0].mxu0
      %v10887 = vadd.f32 0.0, %v10886
      %v10888 = vpop.f32.mrb[0].mxu0
      %10889 = vmatprep.mubr.bf16.mxu0 0
      %10890 = vmatmul.mubr.bf16.gmra.mrb[0].mxu0 %v10792
      %v10891 = vpop.f32.mrb[0].mxu0
      %v10892 = vadd.f32 0.0, %v10891
      %v10893 = vpop.f32.mrb[0].mxu0
      %v10894 = vpop.f32.mrb[0].mxu0
      %v10895 = vadd.f32 0.0, %v10894
      %v10896 = vpop.f32.mrb[0].mxu0
      %10897 = vmatprep.mubr.bf16.mxu0 0
      %10898 = vmatmul.mubr.bf16.gmra.mrb[0].mxu0 %v10795
      %v10899 = vpop.f32.mrb[0].mxu0
      %v10900 = vadd.f32 0.0, %v10899
      %v10901 = vpop.f32.mrb[0].mxu0
      %v10902 = vpop.f32.mrb[0].mxu0
      %v10903 = vadd.f32 0.0, %v10902
      %v10904 = vpop.f32.mrb[0].mxu0
      %10905 = vmatprep.mubr.bf16.mxu0 0
      %10906 = vmatmul.mubr.bf16.gmra.mrb[0].mxu0 %v10798
      %v10907 = vpop.f32.mrb[0].mxu0
      %v10908 = vadd.f32 0.0, %v10907
      %v10909 = vpop.f32.mrb[0].mxu0
      %v10910 = vpop.f32.mrb[0].mxu0
      %v10911 = vadd.f32 0.0, %v10910
      %v10912 = vpop.f32.mrb[0].mxu0
      %10913 = vmatprep.mubr.bf16.mxu0 0
      %10914 = vmatmul.mubr.bf16.gmra.mrb[0].mxu0 %v10801
      %v10915 = vpop.f32.mrb[0].mxu0
      %v10916 = vadd.f32 0.0, %v10915
      %v10917 = vpop.f32.mrb[0].mxu0
      %v10918 = vpop.f32.mrb[0].mxu0
      %v10919 = vadd.f32 0.0, %v10918
      %v10920 = vpop.f32.mrb[0].mxu0
      %10921 = vmatprep.mubr.bf16.mxu0 0
      %10922 = vmatmul.mubr.bf16.gmra.mrb[0].mxu0 %v10804
      %v10923 = vpop.f32.mrb[0].mxu0
      %v10924 = vadd.f32 0.0, %v10923
      %v10925 = vpop.f32.mrb[0].mxu0
      %v10926 = vpop.f32.mrb[0].mxu0
      %v10927 = vadd.f32 0.0, %v10926
      %v10928 = vpop.f32.mrb[0].mxu0
      %10929 = vmatprep.mubr.bf16.mxu0 0
      %10930 = vmatmul.mubr.bf16.gmra.mrb[0].mxu0 %v10807
      %v10931 = vpop.f32.mrb[0].mxu0
      %v10932 = vadd.f32 0.0, %v10931
      %v10933 = vpop.f32.mrb[0].mxu0
      %v10934 = vpop.f32.mrb[0].mxu0
      %v10935 = vadd.f32 0.0, %v10934
      %v10936 = vpop.f32.mrb[0].mxu0
      %10937 = vmatprep.mubr.bf16.mxu0 0
      %10938 = vmatmul.mubr.bf16.gmra.mrb[0].mxu0 %v10810
      %v10939 = vpop.f32.mrb[0].mxu0
      %v10940 = vadd.f32 0.0, %v10939
      %v10941 = vpop.f32.mrb[0].mxu0
      %v10942 = vpop.f32.mrb[0].mxu0
      %v10943 = vadd.f32 0.0, %v10942
      %v10944 = vpop.f32.mrb[0].mxu0
      %10945 = vmatprep.mubr.bf16.mxu0 0
      %10946 = vmatmul.mubr.bf16.gmra.mrb[0].mxu0 %v10813
      %v10947 = vpop.f32.mrb[0].mxu0
      %v10948 = vadd.f32 0.0, %v10947
      %v10949 = vpop.f32.mrb[0].mxu0
      %v10950 = vpop.f32.mrb[0].mxu0
      %v10951 = vadd.f32 0.0, %v10950
      %v10952 = vpop.f32.mrb[0].mxu0
      %10953 = vmatprep.mubr.bf16.mxu0 0
      %10954 = vmatmul.mubr.bf16.gmra.mrb[0].mxu0 %v10816
      %v10955 = vpop.f32.mrb[0].mxu0
      %v10956 = vadd.f32 0.0, %v10955
      %v10957 = vpop.f32.mrb[0].mxu0
      %v10958 = vpop.f32.mrb[0].mxu0
      %v10959 = vadd.f32 0.0, %v10958
      %v10960 = vpop.f32.mrb[0].mxu0
      %10961 = vmatprep.mubr.bf16.mxu0 0
      %10962 = vmatmul.mubr.bf16.gmra.mrb[0].mxu0 %v10819
      %v10963 = vpop.f32.mrb[0].mxu0
      %v10964 = vadd.f32 0.0, %v10963
      %v10965 = vpop.f32.mrb[0].mxu0
      %v10966 = vpop.f32.mrb[0].mxu0
      %v10967 = vadd.f32 0.0, %v10966
      %v10968 = vpop.f32.mrb[0].mxu0
      %10969 = vmatprep.mubr.bf16.mxu0 0
      %10970 = vmatmul.mubr.bf16.gmra.mrb[0].mxu0 %v10822
      %v10971 = vpop.f32.mrb[0].mxu0
      %v10972 = vadd.f32 0.0, %v10971
      %v10973 = vpop.f32.mrb[0].mxu0
      %v10974 = vpop.f32.mrb[0].mxu0
      %v10975 = vadd.f32 0.0, %v10974
      %v10976 = vpop.f32.mrb[0].mxu0
      %10977 = vmatprep.mubr.bf16.mxu0 0
      %10978 = vmatmul.mubr.bf16.gmra.mrb[0].mxu0 %v10825
      %v10979 = vpop.f32.mrb[0].mxu0
      %v10980 = vadd.f32 0.0, %v10979
      %v10981 = vpop.f32.mrb[0].mxu0
      %v10982 = vpop.f32.mrb[0].mxu0
      %v10983 = vadd.f32 0.0, %v10982
      %v10984 = vpop.f32.mrb[0].mxu0
      %10985 = vmatprep.mubr.bf16.mxu0 0
      %10986 = vmatmul.mubr.bf16.gmra.mrb[0].mxu0 %v10828
      %v10987 = vpop.f32.mrb[0].mxu0
      %v10988 = vadd.f32 0.0, %v10987
      %v10989 = vpop.f32.mrb[0].mxu0
      %v10990 = vpop.f32.mrb[0].mxu0
      %v10991 = vadd.f32 0.0, %v10990
      %v10992 = vpop.f32.mrb[0].mxu0
      %10993 = vdwg.mxu0
      %v10994 = vpack.c.bf16 %v10871, %v10868
      %v10995 = vpack.c.bf16 %v10879, %v10876
      %v10996 = vpack.c.bf16 %v10887, %v10884
      %v10997 = vpack.c.bf16 %v10895, %v10892
      %v10998 = vpack.c.bf16 %v10903, %v10900
      %v10999 = vpack.c.bf16 %v10911, %v10908
      %v11000 = vpack.c.bf16 %v10919, %v10916
      %v11001 = vpack.c.bf16 %v10927, %v10924
      %v11002 = vpack.c.bf16 %v10935, %v10932
      %v11003 = vpack.c.bf16 %v10943, %v10940
      %v11004 = vpack.c.bf16 %v10951, %v10948
      %v11005 = vpack.c.bf16 %v10959, %v10956
      %v11006 = vpack.c.bf16 %v10967, %v10964
      %v11007 = vpack.c.bf16 %v10975, %v10972
      %v11008 = vpack.c.bf16 %v10983, %v10980
      %v11009 = vpack.c.bf16 %v10991, %v10988
      %s11010 = scalar_lea.vmem %s2, 2
      %v11011 = vld [vmem:[%s11010] sm:$0x1]
      %v11013 = vsel %vm6844, %v10994, 0
      %v11016 = vsel %vm6844, %v10995, 0
      %v11019 = vsel %vm6844, %v10996, 0
      %v11022 = vsel %vm6844, %v10997, 0
      %v11025 = vsel %vm6844, %v10998, 0
      %v11028 = vsel %vm6844, %v10999, 0
      %v11031 = vsel %vm6844, %v11000, 0
      %v11034 = vsel %vm6844, %v11001, 0
      %v11037 = vsel %vm6844, %v11002, 0
      %v11040 = vsel %vm6844, %v11003, 0
      %v11043 = vsel %vm6844, %v11004, 0
      %v11046 = vsel %vm6844, %v11005, 0
      %v11049 = vsel %vm6844, %v11006, 0
      %v11052 = vsel %vm6844, %v11007, 0
      %v11055 = vsel %vm6844, %v11008, 0
      %v11058 = vsel %vm6844, %v11009, 0
      %v11061 = vsel %vm6893, %v11011, 0
      %11063 = vmatprep.subr.bf16.mxu0 0
      %11064 = vmatpush1.bf16.msra.mxu0 %v11061
      %11065 = vmatprep.subr.bf16.mxu0 0
      %11066 = vmatpush1.bf16.msra.mxu0 0
      %11067 = vmatprep.subr.bf16.mxu0 0
      %11068 = vmatpush1.bf16.msra.mxu0 0
      %11069 = vmatprep.subr.bf16.mxu0 0
      %11070 = vmatpush1.bf16.msra.mxu0 0
      %11071 = vmatprep.subr.bf16.mxu0 0
      %11072 = vmatpush1.bf16.msra.mxu0 0
      %11073 = vmatprep.subr.bf16.mxu0 0
      %11074 = vmatpush1.bf16.msra.mxu0 0
      %11075 = vmatprep.subr.bf16.mxu0 0
      %11076 = vmatpush1.bf16.msra.mxu0 0
      %11077 = vmatprep.subr.bf16.mxu0 0
      %11078 = vmatpush1.bf16.msra.mxu0 0
      %11079 = vmatprep.subr.bf16.mxu0 0
      %11080 = vmatpush1.bf16.msra.mxu0 0
      %11081 = vmatprep.subr.bf16.mxu0 0
      %11082 = vmatpush1.bf16.msra.mxu0 0
      %11083 = vmatprep.subr.bf16.mxu0 0
      %11084 = vmatpush1.bf16.msra.mxu0 0
      %11085 = vmatprep.subr.bf16.mxu0 0
      %11086 = vmatpush1.bf16.msra.mxu0 0
      %11087 = vmatprep.subr.bf16.mxu0 0
      %11088 = vmatpush1.bf16.msra.mxu0 0
      %11089 = vmatprep.subr.bf16.mxu0 0
      %11090 = vmatpush1.bf16.msra.mxu0 0
      %11091 = vmatprep.subr.bf16.mxu0 0
      %11092 = vmatpush1.bf16.msra.mxu0 0
      %11093 = vmatprep.subr.bf16.mxu0 0
      %11094 = vmatpush1.bf16.msra.mxu0 0
      %11095 = vmatprep.mubr.bf16.mxu0 0
      %11096 = vmatmul.mubr.bf16.gmra.mrb[0].mxu0 %v11013
      %v11097 = vpop.f32.mrb[0].mxu0
      %v11098 = vadd.f32 0.0, %v11097
      %v11099 = vpop.f32.mrb[0].mxu0
      %v11100 = vpop.f32.mrb[0].mxu0
      %v11101 = vadd.f32 0.0, %v11100
      %v11102 = vpop.f32.mrb[0].mxu0
      %11103 = vmatprep.mubr.bf16.mxu0 0
      %11104 = vmatmul.mubr.bf16.gmra.mrb[0].mxu0 %v11016
      %v11105 = vpop.f32.mrb[0].mxu0
      %v11106 = vadd.f32 0.0, %v11105
      %v11107 = vpop.f32.mrb[0].mxu0
      %v11108 = vpop.f32.mrb[0].mxu0
      %v11109 = vadd.f32 0.0, %v11108
      %v11110 = vpop.f32.mrb[0].mxu0
      %11111 = vmatprep.mubr.bf16.mxu0 0
      %11112 = vmatmul.mubr.bf16.gmra.mrb[0].mxu0 %v11019
      %v11113 = vpop.f32.mrb[0].mxu0
      %v11114 = vadd.f32 0.0, %v11113
      %v11115 = vpop.f32.mrb[0].mxu0
      %v11116 = vpop.f32.mrb[0].mxu0
      %v11117 = vadd.f32 0.0, %v11116
      %v11118 = vpop.f32.mrb[0].mxu0
      %11119 = vmatprep.mubr.bf16.mxu0 0
      %11120 = vmatmul.mubr.bf16.gmra.mrb[0].mxu0 %v11022
      %v11121 = vpop.f32.mrb[0].mxu0
      %v11122 = vadd.f32 0.0, %v11121
      %v11123 = vpop.f32.mrb[0].mxu0
      %v11124 = vpop.f32.mrb[0].mxu0
      %v11125 = vadd.f32 0.0, %v11124
      %v11126 = vpop.f32.mrb[0].mxu0
      %11127 = vmatprep.mubr.bf16.mxu0 0
      %11128 = vmatmul.mubr.bf16.gmra.mrb[0].mxu0 %v11025
      %v11129 = vpop.f32.mrb[0].mxu0
      %v11130 = vadd.f32 0.0, %v11129
      %v11131 = vpop.f32.mrb[0].mxu0
      %v11132 = vpop.f32.mrb[0].mxu0
      %v11133 = vadd.f32 0.0, %v11132
      %v11134 = vpop.f32.mrb[0].mxu0
      %11135 = vmatprep.mubr.bf16.mxu0 0
      %11136 = vmatmul.mubr.bf16.gmra.mrb[0].mxu0 %v11028
      %v11137 = vpop.f32.mrb[0].mxu0
      %v11138 = vadd.f32 0.0, %v11137
      %v11139 = vpop.f32.mrb[0].mxu0
      %v11140 = vpop.f32.mrb[0].mxu0
      %v11141 = vadd.f32 0.0, %v11140
      %v11142 = vpop.f32.mrb[0].mxu0
      %11143 = vmatprep.mubr.bf16.mxu0 0
      %11144 = vmatmul.mubr.bf16.gmra.mrb[0].mxu0 %v11031
      %v11145 = vpop.f32.mrb[0].mxu0
      %v11146 = vadd.f32 0.0, %v11145
      %v11147 = vpop.f32.mrb[0].mxu0
      %v11148 = vpop.f32.mrb[0].mxu0
      %v11149 = vadd.f32 0.0, %v11148
      %v11150 = vpop.f32.mrb[0].mxu0
      %11151 = vmatprep.mubr.bf16.mxu0 0
      %11152 = vmatmul.mubr.bf16.gmra.mrb[0].mxu0 %v11034
      %v11153 = vpop.f32.mrb[0].mxu0
      %v11154 = vadd.f32 0.0, %v11153
      %v11155 = vpop.f32.mrb[0].mxu0
      %v11156 = vpop.f32.mrb[0].mxu0
      %v11157 = vadd.f32 0.0, %v11156
      %v11158 = vpop.f32.mrb[0].mxu0
      %11159 = vmatprep.mubr.bf16.mxu0 0
      %11160 = vmatmul.mubr.bf16.gmra.mrb[0].mxu0 %v11037
      %v11161 = vpop.f32.mrb[0].mxu0
      %v11162 = vadd.f32 0.0, %v11161
      %v11163 = vpop.f32.mrb[0].mxu0
      %v11164 = vpop.f32.mrb[0].mxu0
      %v11165 = vadd.f32 0.0, %v11164
      %v11166 = vpop.f32.mrb[0].mxu0
      %11167 = vmatprep.mubr.bf16.mxu0 0
      %11168 = vmatmul.mubr.bf16.gmra.mrb[0].mxu0 %v11040
      %v11169 = vpop.f32.mrb[0].mxu0
      %v11170 = vadd.f32 0.0, %v11169
      %v11171 = vpop.f32.mrb[0].mxu0
      %v11172 = vpop.f32.mrb[0].mxu0
      %v11173 = vadd.f32 0.0, %v11172
      %v11174 = vpop.f32.mrb[0].mxu0
      %11175 = vmatprep.mubr.bf16.mxu0 0
      %11176 = vmatmul.mubr.bf16.gmra.mrb[0].mxu0 %v11043
      %v11177 = vpop.f32.mrb[0].mxu0
      %v11178 = vadd.f32 0.0, %v11177
      %v11179 = vpop.f32.mrb[0].mxu0
      %v11180 = vpop.f32.mrb[0].mxu0
      %v11181 = vadd.f32 0.0, %v11180
      %v11182 = vpop.f32.mrb[0].mxu0
      %11183 = vmatprep.mubr.bf16.mxu0 0
      %11184 = vmatmul.mubr.bf16.gmra.mrb[0].mxu0 %v11046
      %v11185 = vpop.f32.mrb[0].mxu0
      %v11186 = vadd.f32 0.0, %v11185
      %v11187 = vpop.f32.mrb[0].mxu0
      %v11188 = vpop.f32.mrb[0].mxu0
      %v11189 = vadd.f32 0.0, %v11188
      %v11190 = vpop.f32.mrb[0].mxu0
      %11191 = vmatprep.mubr.bf16.mxu0 0
      %11192 = vmatmul.mubr.bf16.gmra.mrb[0].mxu0 %v11049
      %v11193 = vpop.f32.mrb[0].mxu0
      %v11194 = vadd.f32 0.0, %v11193
      %v11195 = vpop.f32.mrb[0].mxu0
      %v11196 = vpop.f32.mrb[0].mxu0
      %v11197 = vadd.f32 0.0, %v11196
      %v11198 = vpop.f32.mrb[0].mxu0
      %11199 = vmatprep.mubr.bf16.mxu0 0
      %11200 = vmatmul.mubr.bf16.gmra.mrb[0].mxu0 %v11052
      %v11201 = vpop.f32.mrb[0].mxu0
      %v11202 = vadd.f32 0.0, %v11201
      %v11203 = vpop.f32.mrb[0].mxu0
      %v11204 = vpop.f32.mrb[0].mxu0
      %v11205 = vadd.f32 0.0, %v11204
      %v11206 = vpop.f32.mrb[0].mxu0
      %11207 = vmatprep.mubr.bf16.mxu0 0
      %11208 = vmatmul.mubr.bf16.gmra.mrb[0].mxu0 %v11055
      %v11209 = vpop.f32.mrb[0].mxu0
      %v11210 = vadd.f32 0.0, %v11209
      %v11211 = vpop.f32.mrb[0].mxu0
      %v11212 = vpop.f32.mrb[0].mxu0
      %v11213 = vadd.f32 0.0, %v11212
      %v11214 = vpop.f32.mrb[0].mxu0
      %11215 = vmatprep.mubr.bf16.mxu0 0
      %11216 = vmatmul.mubr.bf16.gmra.mrb[0].mxu0 %v11058
      %v11217 = vpop.f32.mrb[0].mxu0
      %v11218 = vadd.f32 0.0, %v11217
      %v11219 = vpop.f32.mrb[0].mxu0
      %v11220 = vpop.f32.mrb[0].mxu0
      %v11221 = vadd.f32 0.0, %v11220
      %v11222 = vpop.f32.mrb[0].mxu0
      %11223 = vdwg.mxu0
      %v11224 = vadd.f32 %v7144, %v11098
      %v11225 = vadd.f32 %v7147, %v11101
      %v11226 = vadd.f32 %v7152, %v11106
      %v11227 = vadd.f32 %v7155, %v11109
      %v11228 = vadd.f32 %v7160, %v11114
      %v11229 = vadd.f32 %v7163, %v11117
      %v11230 = vadd.f32 %v7168, %v11122
      %v11231 = vadd.f32 %v7171, %v11125
      %v11232 = vadd.f32 %v7176, %v11130
      %v11233 = vadd.f32 %v7179, %v11133
      %v11234 = vadd.f32 %v7184, %v11138
      %v11235 = vadd.f32 %v7187, %v11141
      %v11236 = vadd.f32 %v7192, %v11146
      %v11237 = vadd.f32 %v7195, %v11149
      %v11238 = vadd.f32 %v7200, %v11154
      %v11239 = vadd.f32 %v7203, %v11157
      %v11240 = vadd.f32 %v7208, %v11162
      %v11241 = vadd.f32 %v7211, %v11165
      %v11242 = vadd.f32 %v7216, %v11170
      %v11243 = vadd.f32 %v7219, %v11173
      %v11244 = vadd.f32 %v7224, %v11178
      %v11245 = vadd.f32 %v7227, %v11181
      %v11246 = vadd.f32 %v7232, %v11186
      %v11247 = vadd.f32 %v7235, %v11189
      %v11248 = vadd.f32 %v7240, %v11194
      %v11249 = vadd.f32 %v7243, %v11197
      %v11250 = vadd.f32 %v7248, %v11202
      %v11251 = vadd.f32 %v7251, %v11205
      %v11252 = vadd.f32 %v7256, %v11210
      %v11253 = vadd.f32 %v7259, %v11213
      %v11254 = vadd.f32 %v7264, %v11218
      %v11255 = vadd.f32 %v7267, %v11221
      %v11256 = vld [vmem:[#allocation2] sm:$0xf]
      %v11257 = vld [vmem:[#allocation2 + $0x4] sm:$0xf]
      %v11258 = vld [vmem:[#allocation2 + $0xc] sm:$0xf]
      %v11259 = vld [vmem:[#allocation2 + $0x10] sm:$0xf]
      %v11260 = vld [vmem:[#allocation2 + $0x18] sm:$0xf]
      %v11261 = vld [vmem:[#allocation2 + $0x1c] sm:$0xf]
      %v11262 = vld [vmem:[#allocation2 + $0x24] sm:$0xf]
      %v11263 = vld [vmem:[#allocation2 + $0x28] sm:$0xf]
      %v11264 = vld [vmem:[#allocation2 + $0x30] sm:$0xf]
      %v11265 = vld [vmem:[#allocation2 + $0x34] sm:$0xf]
      %v11266 = vld [vmem:[#allocation2 + $0x3c] sm:$0xf]
      %v11267 = vld [vmem:[#allocation2 + $0x40] sm:$0xf]
      %v11268 = vld [vmem:[#allocation2 + $0x48] sm:$0xf]
      %v11269 = vld [vmem:[#allocation2 + $0x4c] sm:$0xf]
      %v11270 = vld [vmem:[#allocation2 + $0x54] sm:$0xf]
      %v11271 = vld [vmem:[#allocation2 + $0x58] sm:$0xf]
      %v11272 = vld [vmem:[#allocation2 + $0x60] sm:$0xf]
      %v11273 = vld [vmem:[#allocation2 + $0x64] sm:$0xf]
      %v11274 = vld [vmem:[#allocation2 + $0x6c] sm:$0xf]
      %v11275 = vld [vmem:[#allocation2 + $0x70] sm:$0xf]
      %v11276 = vld [vmem:[#allocation2 + $0x78] sm:$0xf]
      %v11277 = vld [vmem:[#allocation2 + $0x7c] sm:$0xf]
      %v11278 = vld [vmem:[#allocation2 + $0x84] sm:$0xf]
      %v11279 = vld [vmem:[#allocation2 + $0x88] sm:$0xf]
      %v11280 = vld [vmem:[#allocation2 + $0x90] sm:$0xf]
      %v11281 = vld [vmem:[#allocation2 + $0x94] sm:$0xf]
      %v11282 = vld [vmem:[#allocation2 + $0x9c] sm:$0xf]
      %v11283 = vld [vmem:[#allocation2 + $0xa0] sm:$0xf]
      %v11284 = vld [vmem:[#allocation2 + $0xa8] sm:$0xf]
      %v11285 = vld [vmem:[#allocation2 + $0xac] sm:$0xf]
      %v11286 = vld [vmem:[#allocation2 + $0xb4] sm:$0xf]
      %v11287 = vld [vmem:[#allocation2 + $0xb8] sm:$0xf]
      %v11288 = vld [vmem:[#allocation2] sm:$0xc]
      %v11289 = vld [vmem:[#allocation2 + $0x8] sm:$0x3]
      %v11290 = vld [vmem:[#allocation2 + $0xc] sm:$0xc]
      %v11291 = vld [vmem:[#allocation2 + $0x14] sm:$0x3]
      %v11292 = vld [vmem:[#allocation2 + $0x18] sm:$0xc]
      %v11293 = vld [vmem:[#allocation2 + $0x20] sm:$0x3]
      %v11294 = vld [vmem:[#allocation2 + $0x24] sm:$0xc]
      %v11295 = vld [vmem:[#allocation2 + $0x2c] sm:$0x3]
      %v11296 = vld [vmem:[#allocation2 + $0x30] sm:$0xc]
      %v11297 = vld [vmem:[#allocation2 + $0x38] sm:$0x3]
      %v11298 = vld [vmem:[#allocation2 + $0x3c] sm:$0xc]
      %v11299 = vld [vmem:[#allocation2 + $0x44] sm:$0x3]
      %v11300 = vld [vmem:[#allocation2 + $0x48] sm:$0xc]
      %v11301 = vld [vmem:[#allocation2 + $0x50] sm:$0x3]
      %v11302 = vld [vmem:[#allocation2 + $0x54] sm:$0xc]
      %v11303 = vld [vmem:[#allocation2 + $0x5c] sm:$0x3]
      %v11304 = vld [vmem:[#allocation2 + $0x60] sm:$0xc]
      %v11305 = vld [vmem:[#allocation2 + $0x68] sm:$0x3]
      %v11306 = vld [vmem:[#allocation2 + $0x6c] sm:$0xc]
      %v11307 = vld [vmem:[#allocation2 + $0x74] sm:$0x3]
      %v11308 = vld [vmem:[#allocation2 + $0x78] sm:$0xc]
      %v11309 = vld [vmem:[#allocation2 + $0x80] sm:$0x3]
      %v11310 = vld [vmem:[#allocation2 + $0x84] sm:$0xc]
      %v11311 = vld [vmem:[#allocation2 + $0x8c] sm:$0x3]
      %v11312 = vld [vmem:[#allocation2 + $0x90] sm:$0xc]
      %v11313 = vld [vmem:[#allocation2 + $0x98] sm:$0x3]
      %v11314 = vld [vmem:[#allocation2 + $0x9c] sm:$0xc]
      %v11315 = vld [vmem:[#allocation2 + $0xa4] sm:$0x3]
      %v11316 = vld [vmem:[#allocation2 + $0xa8] sm:$0xc]
      %v11317 = vld [vmem:[#allocation2 + $0xb0] sm:$0x3]
      %v11318 = vld [vmem:[#allocation2 + $0xb4] sm:$0xc]
      %v11319 = vld [vmem:[#allocation2 + $0xbc] sm:$0x3]
      %v11320 = vld [vmem:[#allocation2 + $0x8] sm:$0xf]
      %v11321 = vld [vmem:[#allocation2 + $0x14] sm:$0xf]
      %v11322 = vld [vmem:[#allocation2 + $0x20] sm:$0xf]
      %v11323 = vld [vmem:[#allocation2 + $0x2c] sm:$0xf]
      %v11324 = vld [vmem:[#allocation2 + $0x38] sm:$0xf]
      %v11325 = vld [vmem:[#allocation2 + $0x44] sm:$0xf]
      %v11326 = vld [vmem:[#allocation2 + $0x50] sm:$0xf]
      %v11327 = vld [vmem:[#allocation2 + $0x5c] sm:$0xf]
      %v11328 = vld [vmem:[#allocation2 + $0x68] sm:$0xf]
      %v11329 = vld [vmem:[#allocation2 + $0x74] sm:$0xf]
      %v11330 = vld [vmem:[#allocation2 + $0x80] sm:$0xf]
      %v11331 = vld [vmem:[#allocation2 + $0x8c] sm:$0xf]
      %v11332 = vld [vmem:[#allocation2 + $0x98] sm:$0xf]
      %v11333 = vld [vmem:[#allocation2 + $0xa4] sm:$0xf]
      %v11334 = vld [vmem:[#allocation2 + $0xb0] sm:$0xf]
      %v11335 = vld [vmem:[#allocation2 + $0xbc] sm:$0xf]
      %v11336 = vld [vmem:[%s467] sm:$0xf]
      %v11337 = vld [vmem:[%s467 + $0x4] sm:$0xf]
      %v11338 = vld [vmem:[%s467 + $0xc] sm:$0xf]
      %v11339 = vld [vmem:[%s467 + $0x10] sm:$0xf]
      %v11340 = vld [vmem:[%s467 + $0x18] sm:$0xf]
      %v11341 = vld [vmem:[%s467 + $0x1c] sm:$0xf]
      %v11342 = vld [vmem:[%s467 + $0x24] sm:$0xf]
      %v11343 = vld [vmem:[%s467 + $0x28] sm:$0xf]
      %v11344 = vld [vmem:[%s467 + $0x30] sm:$0xf]
      %v11345 = vld [vmem:[%s467 + $0x34] sm:$0xf]
      %v11346 = vld [vmem:[%s467 + $0x3c] sm:$0xf]
      %v11347 = vld [vmem:[%s467 + $0x40] sm:$0xf]
      %v11348 = vld [vmem:[%s467 + $0x48] sm:$0xf]
      %v11349 = vld [vmem:[%s467 + $0x4c] sm:$0xf]
      %v11350 = vld [vmem:[%s467 + $0x54] sm:$0xf]
      %v11351 = vld [vmem:[%s467 + $0x58] sm:$0xf]
      %v11352 = vld [vmem:[%s467 + $0x60] sm:$0xf]
      %v11353 = vld [vmem:[%s467 + $0x64] sm:$0xf]
      %v11354 = vld [vmem:[%s467 + $0x6c] sm:$0xf]
      %v11355 = vld [vmem:[%s467 + $0x70] sm:$0xf]
      %v11356 = vld [vmem:[%s467 + $0x78] sm:$0xf]
      %v11357 = vld [vmem:[%s467 + $0x7c] sm:$0xf]
      %v11358 = vld [vmem:[%s467 + $0x84] sm:$0xf]
      %v11359 = vld [vmem:[%s467 + $0x88] sm:$0xf]
      %v11360 = vld [vmem:[%s467 + $0x90] sm:$0xf]
      %v11361 = vld [vmem:[%s467 + $0x94] sm:$0xf]
      %v11362 = vld [vmem:[%s467 + $0x9c] sm:$0xf]
      %v11363 = vld [vmem:[%s467 + $0xa0] sm:$0xf]
      %v11364 = vld [vmem:[%s467 + $0xa8] sm:$0xf]
      %v11365 = vld [vmem:[%s467 + $0xac] sm:$0xf]
      %v11366 = vld [vmem:[%s467 + $0xb4] sm:$0xf]
      %v11367 = vld [vmem:[%s467 + $0xb8] sm:$0xf]
      %v11368 = vld [vmem:[%s467] sm:$0xc]
      %v11369 = vld [vmem:[%s467 + $0x8] sm:$0x3]
      %v11370 = vld [vmem:[%s467 + $0xc] sm:$0xc]
      %v11371 = vld [vmem:[%s467 + $0x14] sm:$0x3]
      %v11372 = vld [vmem:[%s467 + $0x18] sm:$0xc]
      %v11373 = vld [vmem:[%s467 + $0x20] sm:$0x3]
      %v11374 = vld [vmem:[%s467 + $0x24] sm:$0xc]
      %v11375 = vld [vmem:[%s467 + $0x2c] sm:$0x3]
      %v11376 = vld [vmem:[%s467 + $0x30] sm:$0xc]
      %v11377 = vld [vmem:[%s467 + $0x38] sm:$0x3]
      %v11378 = vld [vmem:[%s467 + $0x3c] sm:$0xc]
      %v11379 = vld [vmem:[%s467 + $0x44] sm:$0x3]
      %v11380 = vld [vmem:[%s467 + $0x48] sm:$0xc]
      %v11381 = vld [vmem:[%s467 + $0x50] sm:$0x3]
      %v11382 = vld [vmem:[%s467 + $0x54] sm:$0xc]
      %v11383 = vld [vmem:[%s467 + $0x5c] sm:$0x3]
      %v11384 = vld [vmem:[%s467 + $0x60] sm:$0xc]
      %v11385 = vld [vmem:[%s467 + $0x68] sm:$0x3]
      %v11386 = vld [vmem:[%s467 + $0x6c] sm:$0xc]
      %v11387 = vld [vmem:[%s467 + $0x74] sm:$0x3]
      %v11388 = vld [vmem:[%s467 + $0x78] sm:$0xc]
      %v11389 = vld [vmem:[%s467 + $0x80] sm:$0x3]
      %v11390 = vld [vmem:[%s467 + $0x84] sm:$0xc]
      %v11391 = vld [vmem:[%s467 + $0x8c] sm:$0x3]
      %v11392 = vld [vmem:[%s467 + $0x90] sm:$0xc]
      %v11393 = vld [vmem:[%s467 + $0x98] sm:$0x3]
      %v11394 = vld [vmem:[%s467 + $0x9c] sm:$0xc]
      %v11395 = vld [vmem:[%s467 + $0xa4] sm:$0x3]
      %v11396 = vld [vmem:[%s467 + $0xa8] sm:$0xc]
      %v11397 = vld [vmem:[%s467 + $0xb0] sm:$0x3]
      %v11398 = vld [vmem:[%s467 + $0xb4] sm:$0xc]
      %v11399 = vld [vmem:[%s467 + $0xbc] sm:$0x3]
      %v11400 = vld [vmem:[%s467 + $0x8] sm:$0xf]
      %v11401 = vld [vmem:[%s467 + $0x14] sm:$0xf]
      %v11402 = vld [vmem:[%s467 + $0x20] sm:$0xf]
      %v11403 = vld [vmem:[%s467 + $0x2c] sm:$0xf]
      %v11404 = vld [vmem:[%s467 + $0x38] sm:$0xf]
      %v11405 = vld [vmem:[%s467 + $0x44] sm:$0xf]
      %v11406 = vld [vmem:[%s467 + $0x50] sm:$0xf]
      %v11407 = vld [vmem:[%s467 + $0x5c] sm:$0xf]
      %v11408 = vld [vmem:[%s467 + $0x68] sm:$0xf]
      %v11409 = vld [vmem:[%s467 + $0x74] sm:$0xf]
      %v11410 = vld [vmem:[%s467 + $0x80] sm:$0xf]
      %v11411 = vld [vmem:[%s467 + $0x8c] sm:$0xf]
      %v11412 = vld [vmem:[%s467 + $0x98] sm:$0xf]
      %v11413 = vld [vmem:[%s467 + $0xa4] sm:$0xf]
      %v11414 = vld [vmem:[%s467 + $0xb0] sm:$0xf]
      %v11415 = vld [vmem:[%s467 + $0xbc] sm:$0xf]
      %s11416 = scalar_lea.vmem [#allocation2], 96
      %v11417 = vld [vmem:[%s11416] sm:$0xf]
      %v11418 = vld [vmem:[%s11416 + $0x4] sm:$0xf]
      %v11419 = vld [vmem:[%s11416 + $0xc] sm:$0xf]
      %v11420 = vld [vmem:[%s11416 + $0x10] sm:$0xf]
      %v11421 = vld [vmem:[%s11416 + $0x18] sm:$0xf]
      %v11422 = vld [vmem:[%s11416 + $0x1c] sm:$0xf]
      %v11423 = vld [vmem:[%s11416 + $0x24] sm:$0xf]
      %v11424 = vld [vmem:[%s11416 + $0x28] sm:$0xf]
      %v11425 = vld [vmem:[%s11416 + $0x30] sm:$0xf]
      %v11426 = vld [vmem:[%s11416 + $0x34] sm:$0xf]
      %v11427 = vld [vmem:[%s11416 + $0x3c] sm:$0xf]
      %v11428 = vld [vmem:[%s11416 + $0x40] sm:$0xf]
      %v11429 = vld [vmem:[%s11416 + $0x48] sm:$0xf]
      %v11430 = vld [vmem:[%s11416 + $0x4c] sm:$0xf]
      %v11431 = vld [vmem:[%s11416 + $0x54] sm:$0xf]
      %v11432 = vld [vmem:[%s11416 + $0x58] sm:$0xf]
      %v11433 = vld [vmem:[%s11416 + $0x60] sm:$0xf]
      %v11434 = vld [vmem:[%s11416 + $0x64] sm:$0xf]
      %v11435 = vld [vmem:[%s11416 + $0x6c] sm:$0xf]
      %v11436 = vld [vmem:[%s11416 + $0x70] sm:$0xf]
      %v11437 = vld [vmem:[%s11416 + $0x78] sm:$0xf]
      %v11438 = vld [vmem:[%s11416 + $0x7c] sm:$0xf]
      %v11439 = vld [vmem:[%s11416 + $0x84] sm:$0xf]
      %v11440 = vld [vmem:[%s11416 + $0x88] sm:$0xf]
      %v11441 = vld [vmem:[%s11416 + $0x90] sm:$0xf]
      %v11442 = vld [vmem:[%s11416 + $0x94] sm:$0xf]
      %v11443 = vld [vmem:[%s11416 + $0x9c] sm:$0xf]
      %v11444 = vld [vmem:[%s11416 + $0xa0] sm:$0xf]
      %v11445 = vld [vmem:[%s11416 + $0xa8] sm:$0xf]
      %v11446 = vld [vmem:[%s11416 + $0xac] sm:$0xf]
      %v11447 = vld [vmem:[%s11416 + $0xb4] sm:$0xf]
      %v11448 = vld [vmem:[%s11416 + $0xb8] sm:$0xf]
      %v11449 = vld [vmem:[%s11416] sm:$0xc]
      %v11450 = vld [vmem:[%s11416 + $0x8] sm:$0x3]
      %v11451 = vld [vmem:[%s11416 + $0xc] sm:$0xc]
      %v11452 = vld [vmem:[%s11416 + $0x14] sm:$0x3]
      %v11453 = vld [vmem:[%s11416 + $0x18] sm:$0xc]
      %v11454 = vld [vmem:[%s11416 + $0x20] sm:$0x3]
      %v11455 = vld [vmem:[%s11416 + $0x24] sm:$0xc]
      %v11456 = vld [vmem:[%s11416 + $0x2c] sm:$0x3]
      %v11457 = vld [vmem:[%s11416 + $0x30] sm:$0xc]
      %v11458 = vld [vmem:[%s11416 + $0x38] sm:$0x3]
      %v11459 = vld [vmem:[%s11416 + $0x3c] sm:$0xc]
      %v11460 = vld [vmem:[%s11416 + $0x44] sm:$0x3]
      %v11461 = vld [vmem:[%s11416 + $0x48] sm:$0xc]
      %v11462 = vld [vmem:[%s11416 + $0x50] sm:$0x3]
      %v11463 = vld [vmem:[%s11416 + $0x54] sm:$0xc]
      %v11464 = vld [vmem:[%s11416 + $0x5c] sm:$0x3]
      %v11465 = vld [vmem:[%s11416 + $0x60] sm:$0xc]
      %v11466 = vld [vmem:[%s11416 + $0x68] sm:$0x3]
      %v11467 = vld [vmem:[%s11416 + $0x6c] sm:$0xc]
      %v11468 = vld [vmem:[%s11416 + $0x74] sm:$0x3]
      %v11469 = vld [vmem:[%s11416 + $0x78] sm:$0xc]
      %v11470 = vld [vmem:[%s11416 + $0x80] sm:$0x3]
      %v11471 = vld [vmem:[%s11416 + $0x84] sm:$0xc]
      %v11472 = vld [vmem:[%s11416 + $0x8c] sm:$0x3]
      %v11473 = vld [vmem:[%s11416 + $0x90] sm:$0xc]
      %v11474 = vld [vmem:[%s11416 + $0x98] sm:$0x3]
      %v11475 = vld [vmem:[%s11416 + $0x9c] sm:$0xc]
      %v11476 = vld [vmem:[%s11416 + $0xa4] sm:$0x3]
      %v11477 = vld [vmem:[%s11416 + $0xa8] sm:$0xc]
      %v11478 = vld [vmem:[%s11416 + $0xb0] sm:$0x3]
      %v11479 = vld [vmem:[%s11416 + $0xb4] sm:$0xc]
      %v11480 = vld [vmem:[%s11416 + $0xbc] sm:$0x3]
      %v11481 = vld [vmem:[%s11416 + $0x8] sm:$0xf]
      %v11482 = vld [vmem:[%s11416 + $0x14] sm:$0xf]
      %v11483 = vld [vmem:[%s11416 + $0x20] sm:$0xf]
      %v11484 = vld [vmem:[%s11416 + $0x2c] sm:$0xf]
      %v11485 = vld [vmem:[%s11416 + $0x38] sm:$0xf]
      %v11486 = vld [vmem:[%s11416 + $0x44] sm:$0xf]
      %v11487 = vld [vmem:[%s11416 + $0x50] sm:$0xf]
      %v11488 = vld [vmem:[%s11416 + $0x5c] sm:$0xf]
      %v11489 = vld [vmem:[%s11416 + $0x68] sm:$0xf]
      %v11490 = vld [vmem:[%s11416 + $0x74] sm:$0xf]
      %v11491 = vld [vmem:[%s11416 + $0x80] sm:$0xf]
      %v11492 = vld [vmem:[%s11416 + $0x8c] sm:$0xf]
      %v11493 = vld [vmem:[%s11416 + $0x98] sm:$0xf]
      %v11494 = vld [vmem:[%s11416 + $0xa4] sm:$0xf]
      %v11495 = vld [vmem:[%s11416 + $0xb0] sm:$0xf]
      %v11496 = vld [vmem:[%s11416 + $0xbc] sm:$0xf]
      %v11529 = vunpack.c.l.b16 %v11256
      %v11530 = vunpack.c.l.b16 %v11257
      %v11531 = vunpack.c.l.b16 %v11258
      %v11532 = vunpack.c.l.b16 %v11259
      %v11533 = vunpack.c.l.b16 %v11260
      %v11534 = vunpack.c.l.b16 %v11261
      %v11535 = vunpack.c.l.b16 %v11262
      %v11536 = vunpack.c.l.b16 %v11263
      %v11537 = vunpack.c.l.b16 %v11264
      %v11538 = vunpack.c.l.b16 %v11265
      %v11539 = vunpack.c.l.b16 %v11266
      %v11540 = vunpack.c.l.b16 %v11267
      %v11541 = vunpack.c.l.b16 %v11268
      %v11542 = vunpack.c.l.b16 %v11269
      %v11543 = vunpack.c.l.b16 %v11270
      %v11544 = vunpack.c.l.b16 %v11271
      %v11545 = vunpack.c.l.b16 %v11272
      %v11546 = vunpack.c.l.b16 %v11273
      %v11547 = vunpack.c.l.b16 %v11274
      %v11548 = vunpack.c.l.b16 %v11275
      %v11549 = vunpack.c.l.b16 %v11276
      %v11550 = vunpack.c.l.b16 %v11277
      %v11551 = vunpack.c.l.b16 %v11278
      %v11552 = vunpack.c.l.b16 %v11279
      %v11553 = vunpack.c.l.b16 %v11280
      %v11554 = vunpack.c.l.b16 %v11281
      %v11555 = vunpack.c.l.b16 %v11282
      %v11556 = vunpack.c.l.b16 %v11283
      %v11557 = vunpack.c.l.b16 %v11284
      %v11558 = vunpack.c.l.b16 %v11285
      %v11559 = vunpack.c.l.b16 %v11286
      %v11560 = vunpack.c.l.b16 %v11287
      %v11561 = vpack.c.b16 %v11530, %v11529
      %v11562 = vpack.c.b16 %v11532, %v11531
      %v11563 = vpack.c.b16 %v11534, %v11533
      %v11564 = vpack.c.b16 %v11536, %v11535
      %v11565 = vpack.c.b16 %v11538, %v11537
      %v11566 = vpack.c.b16 %v11540, %v11539
      %v11567 = vpack.c.b16 %v11542, %v11541
      %v11568 = vpack.c.b16 %v11544, %v11543
      %v11569 = vpack.c.b16 %v11546, %v11545
      %v11570 = vpack.c.b16 %v11548, %v11547
      %v11571 = vpack.c.b16 %v11550, %v11549
      %v11572 = vpack.c.b16 %v11552, %v11551
      %v11573 = vpack.c.b16 %v11554, %v11553
      %v11574 = vpack.c.b16 %v11556, %v11555
      %v11575 = vpack.c.b16 %v11558, %v11557
      %v11576 = vpack.c.b16 %v11560, %v11559
      %v11609 = vunpack.c.l.b16 %v11288
      %v11610 = vunpack.c.l.b16 %v11289
      %v11611 = vunpack.c.l.b16 %v11290
      %v11612 = vunpack.c.l.b16 %v11291
      %v11613 = vunpack.c.l.b16 %v11292
      %v11614 = vunpack.c.l.b16 %v11293
      %v11615 = vunpack.c.l.b16 %v11294
      %v11616 = vunpack.c.l.b16 %v11295
      %v11617 = vunpack.c.l.b16 %v11296
      %v11618 = vunpack.c.l.b16 %v11297
      %v11619 = vunpack.c.l.b16 %v11298
      %v11620 = vunpack.c.l.b16 %v11299
      %v11621 = vunpack.c.l.b16 %v11300
      %v11622 = vunpack.c.l.b16 %v11301
      %v11623 = vunpack.c.l.b16 %v11302
      %v11624 = vunpack.c.l.b16 %v11303
      %v11625 = vunpack.c.l.b16 %v11304
      %v11626 = vunpack.c.l.b16 %v11305
      %v11627 = vunpack.c.l.b16 %v11306
      %v11628 = vunpack.c.l.b16 %v11307
      %v11629 = vunpack.c.l.b16 %v11308
      %v11630 = vunpack.c.l.b16 %v11309
      %v11631 = vunpack.c.l.b16 %v11310
      %v11632 = vunpack.c.l.b16 %v11311
      %v11633 = vunpack.c.l.b16 %v11312
      %v11634 = vunpack.c.l.b16 %v11313
      %v11635 = vunpack.c.l.b16 %v11314
      %v11636 = vunpack.c.l.b16 %v11315
      %v11637 = vunpack.c.l.b16 %v11316
      %v11638 = vunpack.c.l.b16 %v11317
      %v11639 = vunpack.c.l.b16 %v11318
      %v11640 = vunpack.c.l.b16 %v11319
      %v11641 = vpack.c.b16 %v11530, %v11609
      %v11642 = vpack.c.b16 %v11610, %v11610
      %v11643 = vpack.c.b16 %v11532, %v11611
      %v11644 = vpack.c.b16 %v11612, %v11612
      %v11645 = vpack.c.b16 %v11534, %v11613
      %v11646 = vpack.c.b16 %v11614, %v11614
      %v11647 = vpack.c.b16 %v11536, %v11615
      %v11648 = vpack.c.b16 %v11616, %v11616
      %v11649 = vpack.c.b16 %v11538, %v11617
      %v11650 = vpack.c.b16 %v11618, %v11618
      %v11651 = vpack.c.b16 %v11540, %v11619
      %v11652 = vpack.c.b16 %v11620, %v11620
      %v11653 = vpack.c.b16 %v11542, %v11621
      %v11654 = vpack.c.b16 %v11622, %v11622
      %v11655 = vpack.c.b16 %v11544, %v11623
      %v11656 = vpack.c.b16 %v11624, %v11624
      %v11657 = vpack.c.b16 %v11546, %v11625
      %v11658 = vpack.c.b16 %v11626, %v11626
      %v11659 = vpack.c.b16 %v11548, %v11627
      %v11660 = vpack.c.b16 %v11628, %v11628
      %v11661 = vpack.c.b16 %v11550, %v11629
      %v11662 = vpack.c.b16 %v11630, %v11630
      %v11663 = vpack.c.b16 %v11552, %v11631
      %v11664 = vpack.c.b16 %v11632, %v11632
      %v11665 = vpack.c.b16 %v11554, %v11633
      %v11666 = vpack.c.b16 %v11634, %v11634
      %v11667 = vpack.c.b16 %v11556, %v11635
      %v11668 = vpack.c.b16 %v11636, %v11636
      %v11669 = vpack.c.b16 %v11558, %v11637
      %v11670 = vpack.c.b16 %v11638, %v11638
      %v11671 = vpack.c.b16 %v11560, %v11639
      %v11672 = vpack.c.b16 %v11640, %v11640
      %v11673 = vrot.slane %v11641, 2
      %v11674 = vrot.slane %v11642, 2
      %v11675 = vsel %vm4624, %v11673, %v11674
      %v11676 = vrot.slane %v11643, 2
      %v11677 = vrot.slane %v11644, 2
      %v11678 = vsel %vm4624, %v11676, %v11677
      %v11679 = vrot.slane %v11645, 2
      %v11680 = vrot.slane %v11646, 2
      %v11681 = vsel %vm4624, %v11679, %v11680
      %v11682 = vrot.slane %v11647, 2
      %v11683 = vrot.slane %v11648, 2
      %v11684 = vsel %vm4624, %v11682, %v11683
      %v11685 = vrot.slane %v11649, 2
      %v11686 = vrot.slane %v11650, 2
      %v11687 = vsel %vm4624, %v11685, %v11686
      %v11688 = vrot.slane %v11651, 2
      %v11689 = vrot.slane %v11652, 2
      %v11690 = vsel %vm4624, %v11688, %v11689
      %v11691 = vrot.slane %v11653, 2
      %v11692 = vrot.slane %v11654, 2
      %v11693 = vsel %vm4624, %v11691, %v11692
      %v11694 = vrot.slane %v11655, 2
      %v11695 = vrot.slane %v11656, 2
      %v11696 = vsel %vm4624, %v11694, %v11695
      %v11697 = vrot.slane %v11657, 2
      %v11698 = vrot.slane %v11658, 2
      %v11699 = vsel %vm4624, %v11697, %v11698
      %v11700 = vrot.slane %v11659, 2
      %v11701 = vrot.slane %v11660, 2
      %v11702 = vsel %vm4624, %v11700, %v11701
      %v11703 = vrot.slane %v11661, 2
      %v11704 = vrot.slane %v11662, 2
      %v11705 = vsel %vm4624, %v11703, %v11704
      %v11706 = vrot.slane %v11663, 2
      %v11707 = vrot.slane %v11664, 2
      %v11708 = vsel %vm4624, %v11706, %v11707
      %v11709 = vrot.slane %v11665, 2
      %v11710 = vrot.slane %v11666, 2
      %v11711 = vsel %vm4624, %v11709, %v11710
      %v11712 = vrot.slane %v11667, 2
      %v11713 = vrot.slane %v11668, 2
      %v11714 = vsel %vm4624, %v11712, %v11713
      %v11715 = vrot.slane %v11669, 2
      %v11716 = vrot.slane %v11670, 2
      %v11717 = vsel %vm4624, %v11715, %v11716
      %v11718 = vrot.slane %v11671, 2
      %v11719 = vrot.slane %v11672, 2
      %v11720 = vsel %vm4624, %v11718, %v11719
      %11721 = vrot.lane.b32.xlu0 %v11675, 8
      %v11722 = vpop.permute.xlu0 %11721
      %11723 = vrot.lane.b32.xlu0 %v11678, 8
      %v11724 = vpop.permute.xlu0 %11723
      %11725 = vrot.lane.b32.xlu0 %v11681, 8
      %v11726 = vpop.permute.xlu0 %11725
      %11727 = vrot.lane.b32.xlu0 %v11684, 8
      %v11728 = vpop.permute.xlu0 %11727
      %11729 = vrot.lane.b32.xlu0 %v11687, 8
      %v11730 = vpop.permute.xlu0 %11729
      %11731 = vrot.lane.b32.xlu0 %v11690, 8
      %v11732 = vpop.permute.xlu0 %11731
      %11733 = vrot.lane.b32.xlu0 %v11693, 8
      %v11734 = vpop.permute.xlu0 %11733
      %11735 = vrot.lane.b32.xlu0 %v11696, 8
      %v11736 = vpop.permute.xlu0 %11735
      %11737 = vrot.lane.b32.xlu0 %v11699, 8
      %v11738 = vpop.permute.xlu0 %11737
      %11739 = vrot.lane.b32.xlu0 %v11702, 8
      %v11740 = vpop.permute.xlu0 %11739
      %11741 = vrot.lane.b32.xlu0 %v11705, 8
      %v11742 = vpop.permute.xlu0 %11741
      %11743 = vrot.lane.b32.xlu0 %v11708, 8
      %v11744 = vpop.permute.xlu0 %11743
      %11745 = vrot.lane.b32.xlu0 %v11711, 8
      %v11746 = vpop.permute.xlu0 %11745
      %11747 = vrot.lane.b32.xlu0 %v11714, 8
      %v11748 = vpop.permute.xlu0 %11747
      %11749 = vrot.lane.b32.xlu0 %v11717, 8
      %v11750 = vpop.permute.xlu0 %11749
      %11751 = vrot.lane.b32.xlu0 %v11720, 8
      %v11752 = vpop.permute.xlu0 %11751
      %v11769 = vunpack.c.l.b16 %v11320
      %v11770 = vunpack.c.l.b16 %v11321
      %v11771 = vunpack.c.l.b16 %v11322
      %v11772 = vunpack.c.l.b16 %v11323
      %v11773 = vunpack.c.l.b16 %v11324
      %v11774 = vunpack.c.l.b16 %v11325
      %v11775 = vunpack.c.l.b16 %v11326
      %v11776 = vunpack.c.l.b16 %v11327
      %v11777 = vunpack.c.l.b16 %v11328
      %v11778 = vunpack.c.l.b16 %v11329
      %v11779 = vunpack.c.l.b16 %v11330
      %v11780 = vunpack.c.l.b16 %v11331
      %v11781 = vunpack.c.l.b16 %v11332
      %v11782 = vunpack.c.l.b16 %v11333
      %v11783 = vunpack.c.l.b16 %v11334
      %v11784 = vunpack.c.l.b16 %v11335
      %v11785 = vpack.c.b16 %v11769, %v11530
      %v11786 = vpack.c.b16 %v11770, %v11532
      %v11787 = vpack.c.b16 %v11771, %v11534
      %v11788 = vpack.c.b16 %v11772, %v11536
      %v11789 = vpack.c.b16 %v11773, %v11538
      %v11790 = vpack.c.b16 %v11774, %v11540
      %v11791 = vpack.c.b16 %v11775, %v11542
      %v11792 = vpack.c.b16 %v11776, %v11544
      %v11793 = vpack.c.b16 %v11777, %v11546
      %v11794 = vpack.c.b16 %v11778, %v11548
      %v11795 = vpack.c.b16 %v11779, %v11550
      %v11796 = vpack.c.b16 %v11780, %v11552
      %v11797 = vpack.c.b16 %v11781, %v11554
      %v11798 = vpack.c.b16 %v11782, %v11556
      %v11799 = vpack.c.b16 %v11783, %v11558
      %v11800 = vpack.c.b16 %v11784, %v11560
      %11801 = vrot.lane.b32.xlu0 %v11785, 16
      %v11802 = vpop.permute.xlu0 %11801
      %11803 = vrot.lane.b32.xlu0 %v11786, 16
      %v11804 = vpop.permute.xlu0 %11803
      %11805 = vrot.lane.b32.xlu0 %v11787, 16
      %v11806 = vpop.permute.xlu0 %11805
      %11807 = vrot.lane.b32.xlu0 %v11788, 16
      %v11808 = vpop.permute.xlu0 %11807
      %11809 = vrot.lane.b32.xlu0 %v11789, 16
      %v11810 = vpop.permute.xlu0 %11809
      %11811 = vrot.lane.b32.xlu0 %v11790, 16
      %v11812 = vpop.permute.xlu0 %11811
      %11813 = vrot.lane.b32.xlu0 %v11791, 16
      %v11814 = vpop.permute.xlu0 %11813
      %11815 = vrot.lane.b32.xlu0 %v11792, 16
      %v11816 = vpop.permute.xlu0 %11815
      %11817 = vrot.lane.b32.xlu0 %v11793, 16
      %v11818 = vpop.permute.xlu0 %11817
      %11819 = vrot.lane.b32.xlu0 %v11794, 16
      %v11820 = vpop.permute.xlu0 %11819
      %11821 = vrot.lane.b32.xlu0 %v11795, 16
      %v11822 = vpop.permute.xlu0 %11821
      %11823 = vrot.lane.b32.xlu0 %v11796, 16
      %v11824 = vpop.permute.xlu0 %11823
      %11825 = vrot.lane.b32.xlu0 %v11797, 16
      %v11826 = vpop.permute.xlu0 %11825
      %11827 = vrot.lane.b32.xlu0 %v11798, 16
      %v11828 = vpop.permute.xlu0 %11827
      %11829 = vrot.lane.b32.xlu0 %v11799, 16
      %v11830 = vpop.permute.xlu0 %11829
      %11831 = vrot.lane.b32.xlu0 %v11800, 16
      %v11832 = vpop.permute.xlu0 %11831
      %v11865 = vunpack.c.l.b16 %v11336
      %v11866 = vunpack.c.l.b16 %v11337
      %v11867 = vunpack.c.l.b16 %v11338
      %v11868 = vunpack.c.l.b16 %v11339
      %v11869 = vunpack.c.l.b16 %v11340
      %v11870 = vunpack.c.l.b16 %v11341
      %v11871 = vunpack.c.l.b16 %v11342
      %v11872 = vunpack.c.l.b16 %v11343
      %v11873 = vunpack.c.l.b16 %v11344
      %v11874 = vunpack.c.l.b16 %v11345
      %v11875 = vunpack.c.l.b16 %v11346
      %v11876 = vunpack.c.l.b16 %v11347
      %v11877 = vunpack.c.l.b16 %v11348
      %v11878 = vunpack.c.l.b16 %v11349
      %v11879 = vunpack.c.l.b16 %v11350
      %v11880 = vunpack.c.l.b16 %v11351
      %v11881 = vunpack.c.l.b16 %v11352
      %v11882 = vunpack.c.l.b16 %v11353
      %v11883 = vunpack.c.l.b16 %v11354
      %v11884 = vunpack.c.l.b16 %v11355
      %v11885 = vunpack.c.l.b16 %v11356
      %v11886 = vunpack.c.l.b16 %v11357
      %v11887 = vunpack.c.l.b16 %v11358
      %v11888 = vunpack.c.l.b16 %v11359
      %v11889 = vunpack.c.l.b16 %v11360
      %v11890 = vunpack.c.l.b16 %v11361
      %v11891 = vunpack.c.l.b16 %v11362
      %v11892 = vunpack.c.l.b16 %v11363
      %v11893 = vunpack.c.l.b16 %v11364
      %v11894 = vunpack.c.l.b16 %v11365
      %v11895 = vunpack.c.l.b16 %v11366
      %v11896 = vunpack.c.l.b16 %v11367
      %v11897 = vpack.c.b16 %v11866, %v11865
      %v11898 = vpack.c.b16 %v11868, %v11867
      %v11899 = vpack.c.b16 %v11870, %v11869
      %v11900 = vpack.c.b16 %v11872, %v11871
      %v11901 = vpack.c.b16 %v11874, %v11873
      %v11902 = vpack.c.b16 %v11876, %v11875
      %v11903 = vpack.c.b16 %v11878, %v11877
      %v11904 = vpack.c.b16 %v11880, %v11879
      %v11905 = vpack.c.b16 %v11882, %v11881
      %v11906 = vpack.c.b16 %v11884, %v11883
      %v11907 = vpack.c.b16 %v11886, %v11885
      %v11908 = vpack.c.b16 %v11888, %v11887
      %v11909 = vpack.c.b16 %v11890, %v11889
      %v11910 = vpack.c.b16 %v11892, %v11891
      %v11911 = vpack.c.b16 %v11894, %v11893
      %v11912 = vpack.c.b16 %v11896, %v11895
      %11913 = vrot.lane.b32.xlu0 %v11897, 24
      %v11914 = vpop.permute.xlu0 %11913
      %11915 = vrot.lane.b32.xlu0 %v11898, 24
      %v11916 = vpop.permute.xlu0 %11915
      %11917 = vrot.lane.b32.xlu0 %v11899, 24
      %v11918 = vpop.permute.xlu0 %11917
      %11919 = vrot.lane.b32.xlu0 %v11900, 24
      %v11920 = vpop.permute.xlu0 %11919
      %11921 = vrot.lane.b32.xlu0 %v11901, 24
      %v11922 = vpop.permute.xlu0 %11921
      %11923 = vrot.lane.b32.xlu0 %v11902, 24
      %v11924 = vpop.permute.xlu0 %11923
      %11925 = vrot.lane.b32.xlu0 %v11903, 24
      %v11926 = vpop.permute.xlu0 %11925
      %11927 = vrot.lane.b32.xlu0 %v11904, 24
      %v11928 = vpop.permute.xlu0 %11927
      %11929 = vrot.lane.b32.xlu0 %v11905, 24
      %v11930 = vpop.permute.xlu0 %11929
      %11931 = vrot.lane.b32.xlu0 %v11906, 24
      %v11932 = vpop.permute.xlu0 %11931
      %11933 = vrot.lane.b32.xlu0 %v11907, 24
      %v11934 = vpop.permute.xlu0 %11933
      %11935 = vrot.lane.b32.xlu0 %v11908, 24
      %v11936 = vpop.permute.xlu0 %11935
      %11937 = vrot.lane.b32.xlu0 %v11909, 24
      %v11938 = vpop.permute.xlu0 %11937
      %11939 = vrot.lane.b32.xlu0 %v11910, 24
      %v11940 = vpop.permute.xlu0 %11939
      %11941 = vrot.lane.b32.xlu0 %v11911, 24
      %v11942 = vpop.permute.xlu0 %11941
      %11943 = vrot.lane.b32.xlu0 %v11912, 24
      %v11944 = vpop.permute.xlu0 %11943
      %v11977 = vunpack.c.l.b16 %v11368
      %v11978 = vunpack.c.l.b16 %v11369
      %v11979 = vunpack.c.l.b16 %v11370
      %v11980 = vunpack.c.l.b16 %v11371
      %v11981 = vunpack.c.l.b16 %v11372
      %v11982 = vunpack.c.l.b16 %v11373
      %v11983 = vunpack.c.l.b16 %v11374
      %v11984 = vunpack.c.l.b16 %v11375
      %v11985 = vunpack.c.l.b16 %v11376
      %v11986 = vunpack.c.l.b16 %v11377
      %v11987 = vunpack.c.l.b16 %v11378
      %v11988 = vunpack.c.l.b16 %v11379
      %v11989 = vunpack.c.l.b16 %v11380
      %v11990 = vunpack.c.l.b16 %v11381
      %v11991 = vunpack.c.l.b16 %v11382
      %v11992 = vunpack.c.l.b16 %v11383
      %v11993 = vunpack.c.l.b16 %v11384
      %v11994 = vunpack.c.l.b16 %v11385
      %v11995 = vunpack.c.l.b16 %v11386
      %v11996 = vunpack.c.l.b16 %v11387
      %v11997 = vunpack.c.l.b16 %v11388
      %v11998 = vunpack.c.l.b16 %v11389
      %v11999 = vunpack.c.l.b16 %v11390
      %v12000 = vunpack.c.l.b16 %v11391
      %v12001 = vunpack.c.l.b16 %v11392
      %v12002 = vunpack.c.l.b16 %v11393
      %v12003 = vunpack.c.l.b16 %v11394
      %v12004 = vunpack.c.l.b16 %v11395
      %v12005 = vunpack.c.l.b16 %v11396
      %v12006 = vunpack.c.l.b16 %v11397
      %v12007 = vunpack.c.l.b16 %v11398
      %v12008 = vunpack.c.l.b16 %v11399
      %v12009 = vpack.c.b16 %v11866, %v11977
      %v12010 = vpack.c.b16 %v11978, %v11978
      %v12011 = vpack.c.b16 %v11868, %v11979
      %v12012 = vpack.c.b16 %v11980, %v11980
      %v12013 = vpack.c.b16 %v11870, %v11981
      %v12014 = vpack.c.b16 %v11982, %v11982
      %v12015 = vpack.c.b16 %v11872, %v11983
      %v12016 = vpack.c.b16 %v11984, %v11984
      %v12017 = vpack.c.b16 %v11874, %v11985
      %v12018 = vpack.c.b16 %v11986, %v11986
      %v12019 = vpack.c.b16 %v11876, %v11987
      %v12020 = vpack.c.b16 %v11988, %v11988
      %v12021 = vpack.c.b16 %v11878, %v11989
      %v12022 = vpack.c.b16 %v11990, %v11990
      %v12023 = vpack.c.b16 %v11880, %v11991
      %v12024 = vpack.c.b16 %v11992, %v11992
      %v12025 = vpack.c.b16 %v11882, %v11993
      %v12026 = vpack.c.b16 %v11994, %v11994
      %v12027 = vpack.c.b16 %v11884, %v11995
      %v12028 = vpack.c.b16 %v11996, %v11996
      %v12029 = vpack.c.b16 %v11886, %v11997
      %v12030 = vpack.c.b16 %v11998, %v11998
      %v12031 = vpack.c.b16 %v11888, %v11999
      %v12032 = vpack.c.b16 %v12000, %v12000
      %v12033 = vpack.c.b16 %v11890, %v12001
      %v12034 = vpack.c.b16 %v12002, %v12002
      %v12035 = vpack.c.b16 %v11892, %v12003
      %v12036 = vpack.c.b16 %v12004, %v12004
      %v12037 = vpack.c.b16 %v11894, %v12005
      %v12038 = vpack.c.b16 %v12006, %v12006
      %v12039 = vpack.c.b16 %v11896, %v12007
      %v12040 = vpack.c.b16 %v12008, %v12008
      %v12041 = vrot.slane %v12009, 2
      %v12042 = vrot.slane %v12010, 2
      %v12043 = vsel %vm4624, %v12041, %v12042
      %v12044 = vrot.slane %v12011, 2
      %v12045 = vrot.slane %v12012, 2
      %v12046 = vsel %vm4624, %v12044, %v12045
      %v12047 = vrot.slane %v12013, 2
      %v12048 = vrot.slane %v12014, 2
      %v12049 = vsel %vm4624, %v12047, %v12048
      %v12050 = vrot.slane %v12015, 2
      %v12051 = vrot.slane %v12016, 2
      %v12052 = vsel %vm4624, %v12050, %v12051
      %v12053 = vrot.slane %v12017, 2
      %v12054 = vrot.slane %v12018, 2
      %v12055 = vsel %vm4624, %v12053, %v12054
      %v12056 = vrot.slane %v12019, 2
      %v12057 = vrot.slane %v12020, 2
      %v12058 = vsel %vm4624, %v12056, %v12057
      %v12059 = vrot.slane %v12021, 2
      %v12060 = vrot.slane %v12022, 2
      %v12061 = vsel %vm4624, %v12059, %v12060
      %v12062 = vrot.slane %v12023, 2
      %v12063 = vrot.slane %v12024, 2
      %v12064 = vsel %vm4624, %v12062, %v12063
      %v12065 = vrot.slane %v12025, 2
      %v12066 = vrot.slane %v12026, 2
      %v12067 = vsel %vm4624, %v12065, %v12066
      %v12068 = vrot.slane %v12027, 2
      %v12069 = vrot.slane %v12028, 2
      %v12070 = vsel %vm4624, %v12068, %v12069
      %v12071 = vrot.slane %v12029, 2
      %v12072 = vrot.slane %v12030, 2
      %v12073 = vsel %vm4624, %v12071, %v12072
      %v12074 = vrot.slane %v12031, 2
      %v12075 = vrot.slane %v12032, 2
      %v12076 = vsel %vm4624, %v12074, %v12075
      %v12077 = vrot.slane %v12033, 2
      %v12078 = vrot.slane %v12034, 2
      %v12079 = vsel %vm4624, %v12077, %v12078
      %v12080 = vrot.slane %v12035, 2
      %v12081 = vrot.slane %v12036, 2
      %v12082 = vsel %vm4624, %v12080, %v12081
      %v12083 = vrot.slane %v12037, 2
      %v12084 = vrot.slane %v12038, 2
      %v12085 = vsel %vm4624, %v12083, %v12084
      %v12086 = vrot.slane %v12039, 2
      %v12087 = vrot.slane %v12040, 2
      %v12088 = vsel %vm4624, %v12086, %v12087
      %12089 = vrot.lane.b32.xlu0 %v12043, 32
      %v12090 = vpop.permute.xlu0 %12089
      %12091 = vrot.lane.b32.xlu0 %v12046, 32
      %v12092 = vpop.permute.xlu0 %12091
      %12093 = vrot.lane.b32.xlu0 %v12049, 32
      %v12094 = vpop.permute.xlu0 %12093
      %12095 = vrot.lane.b32.xlu0 %v12052, 32
      %v12096 = vpop.permute.xlu0 %12095
      %12097 = vrot.lane.b32.xlu0 %v12055, 32
      %v12098 = vpop.permute.xlu0 %12097
      %12099 = vrot.lane.b32.xlu0 %v12058, 32
      %v12100 = vpop.permute.xlu0 %12099
      %12101 = vrot.lane.b32.xlu0 %v12061, 32
      %v12102 = vpop.permute.xlu0 %12101
      %12103 = vrot.lane.b32.xlu0 %v12064, 32
      %v12104 = vpop.permute.xlu0 %12103
      %12105 = vrot.lane.b32.xlu0 %v12067, 32
      %v12106 = vpop.permute.xlu0 %12105
      %12107 = vrot.lane.b32.xlu0 %v12070, 32
      %v12108 = vpop.permute.xlu0 %12107
      %12109 = vrot.lane.b32.xlu0 %v12073, 32
      %v12110 = vpop.permute.xlu0 %12109
      %12111 = vrot.lane.b32.xlu0 %v12076, 32
      %v12112 = vpop.permute.xlu0 %12111
      %12113 = vrot.lane.b32.xlu0 %v12079, 32
      %v12114 = vpop.permute.xlu0 %12113
      %12115 = vrot.lane.b32.xlu0 %v12082, 32
      %v12116 = vpop.permute.xlu0 %12115
      %12117 = vrot.lane.b32.xlu0 %v12085, 32
      %v12118 = vpop.permute.xlu0 %12117
      %12119 = vrot.lane.b32.xlu0 %v12088, 32
      %v12120 = vpop.permute.xlu0 %12119
      %v12137 = vunpack.c.l.b16 %v11400
      %v12138 = vunpack.c.l.b16 %v11401
      %v12139 = vunpack.c.l.b16 %v11402
      %v12140 = vunpack.c.l.b16 %v11403
      %v12141 = vunpack.c.l.b16 %v11404
      %v12142 = vunpack.c.l.b16 %v11405
      %v12143 = vunpack.c.l.b16 %v11406
      %v12144 = vunpack.c.l.b16 %v11407
      %v12145 = vunpack.c.l.b16 %v11408
      %v12146 = vunpack.c.l.b16 %v11409
      %v12147 = vunpack.c.l.b16 %v11410
      %v12148 = vunpack.c.l.b16 %v11411
      %v12149 = vunpack.c.l.b16 %v11412
      %v12150 = vunpack.c.l.b16 %v11413
      %v12151 = vunpack.c.l.b16 %v11414
      %v12152 = vunpack.c.l.b16 %v11415
      %v12153 = vpack.c.b16 %v12137, %v11866
      %v12154 = vpack.c.b16 %v12138, %v11868
      %v12155 = vpack.c.b16 %v12139, %v11870
      %v12156 = vpack.c.b16 %v12140, %v11872
      %v12157 = vpack.c.b16 %v12141, %v11874
      %v12158 = vpack.c.b16 %v12142, %v11876
      %v12159 = vpack.c.b16 %v12143, %v11878
      %v12160 = vpack.c.b16 %v12144, %v11880
      %v12161 = vpack.c.b16 %v12145, %v11882
      %v12162 = vpack.c.b16 %v12146, %v11884
      %v12163 = vpack.c.b16 %v12147, %v11886
      %v12164 = vpack.c.b16 %v12148, %v11888
      %v12165 = vpack.c.b16 %v12149, %v11890
      %v12166 = vpack.c.b16 %v12150, %v11892
      %v12167 = vpack.c.b16 %v12151, %v11894
      %v12168 = vpack.c.b16 %v12152, %v11896
      %12169 = vrot.lane.b32.xlu0 %v12153, 40
      %v12170 = vpop.permute.xlu0 %12169
      %12171 = vrot.lane.b32.xlu0 %v12154, 40
      %v12172 = vpop.permute.xlu0 %12171
      %12173 = vrot.lane.b32.xlu0 %v12155, 40
      %v12174 = vpop.permute.xlu0 %12173
      %12175 = vrot.lane.b32.xlu0 %v12156, 40
      %v12176 = vpop.permute.xlu0 %12175
      %12177 = vrot.lane.b32.xlu0 %v12157, 40
      %v12178 = vpop.permute.xlu0 %12177
      %12179 = vrot.lane.b32.xlu0 %v12158, 40
      %v12180 = vpop.permute.xlu0 %12179
      %12181 = vrot.lane.b32.xlu0 %v12159, 40
      %v12182 = vpop.permute.xlu0 %12181
      %12183 = vrot.lane.b32.xlu0 %v12160, 40
      %v12184 = vpop.permute.xlu0 %12183
      %12185 = vrot.lane.b32.xlu0 %v12161, 40
      %v12186 = vpop.permute.xlu0 %12185
      %12187 = vrot.lane.b32.xlu0 %v12162, 40
      %v12188 = vpop.permute.xlu0 %12187
      %12189 = vrot.lane.b32.xlu0 %v12163, 40
      %v12190 = vpop.permute.xlu0 %12189
      %12191 = vrot.lane.b32.xlu0 %v12164, 40
      %v12192 = vpop.permute.xlu0 %12191
      %12193 = vrot.lane.b32.xlu0 %v12165, 40
      %v12194 = vpop.permute.xlu0 %12193
      %12195 = vrot.lane.b32.xlu0 %v12166, 40
      %v12196 = vpop.permute.xlu0 %12195
      %12197 = vrot.lane.b32.xlu0 %v12167, 40
      %v12198 = vpop.permute.xlu0 %12197
      %12199 = vrot.lane.b32.xlu0 %v12168, 40
      %v12200 = vpop.permute.xlu0 %12199
      %v12233 = vunpack.c.l.b16 %v11417
      %v12234 = vunpack.c.l.b16 %v11418
      %v12235 = vunpack.c.l.b16 %v11419
      %v12236 = vunpack.c.l.b16 %v11420
      %v12237 = vunpack.c.l.b16 %v11421
      %v12238 = vunpack.c.l.b16 %v11422
      %v12239 = vunpack.c.l.b16 %v11423
      %v12240 = vunpack.c.l.b16 %v11424
      %v12241 = vunpack.c.l.b16 %v11425
      %v12242 = vunpack.c.l.b16 %v11426
      %v12243 = vunpack.c.l.b16 %v11427
      %v12244 = vunpack.c.l.b16 %v11428
      %v12245 = vunpack.c.l.b16 %v11429
      %v12246 = vunpack.c.l.b16 %v11430
      %v12247 = vunpack.c.l.b16 %v11431
      %v12248 = vunpack.c.l.b16 %v11432
      %v12249 = vunpack.c.l.b16 %v11433
      %v12250 = vunpack.c.l.b16 %v11434
      %v12251 = vunpack.c.l.b16 %v11435
      %v12252 = vunpack.c.l.b16 %v11436
      %v12253 = vunpack.c.l.b16 %v11437
      %v12254 = vunpack.c.l.b16 %v11438
      %v12255 = vunpack.c.l.b16 %v11439
      %v12256 = vunpack.c.l.b16 %v11440
      %v12257 = vunpack.c.l.b16 %v11441
      %v12258 = vunpack.c.l.b16 %v11442
      %v12259 = vunpack.c.l.b16 %v11443
      %v12260 = vunpack.c.l.b16 %v11444
      %v12261 = vunpack.c.l.b16 %v11445
      %v12262 = vunpack.c.l.b16 %v11446
      %v12263 = vunpack.c.l.b16 %v11447
      %v12264 = vunpack.c.l.b16 %v11448
      %v12265 = vpack.c.b16 %v12234, %v12233
      %v12266 = vpack.c.b16 %v12236, %v12235
      %v12267 = vpack.c.b16 %v12238, %v12237
      %v12268 = vpack.c.b16 %v12240, %v12239
      %v12269 = vpack.c.b16 %v12242, %v12241
      %v12270 = vpack.c.b16 %v12244, %v12243
      %v12271 = vpack.c.b16 %v12246, %v12245
      %v12272 = vpack.c.b16 %v12248, %v12247
      %v12273 = vpack.c.b16 %v12250, %v12249
      %v12274 = vpack.c.b16 %v12252, %v12251
      %v12275 = vpack.c.b16 %v12254, %v12253
      %v12276 = vpack.c.b16 %v12256, %v12255
      %v12277 = vpack.c.b16 %v12258, %v12257
      %v12278 = vpack.c.b16 %v12260, %v12259
      %v12279 = vpack.c.b16 %v12262, %v12261
      %v12280 = vpack.c.b16 %v12264, %v12263
      %12281 = vrot.lane.b32.xlu0 %v12265, 48
      %v12282 = vpop.permute.xlu0 %12281
      %12283 = vrot.lane.b32.xlu0 %v12266, 48
      %v12284 = vpop.permute.xlu0 %12283
      %12285 = vrot.lane.b32.xlu0 %v12267, 48
      %v12286 = vpop.permute.xlu0 %12285
      %12287 = vrot.lane.b32.xlu0 %v12268, 48
      %v12288 = vpop.permute.xlu0 %12287
      %12289 = vrot.lane.b32.xlu0 %v12269, 48
      %v12290 = vpop.permute.xlu0 %12289
      %12291 = vrot.lane.b32.xlu0 %v12270, 48
      %v12292 = vpop.permute.xlu0 %12291
      %12293 = vrot.lane.b32.xlu0 %v12271, 48
      %v12294 = vpop.permute.xlu0 %12293
      %12295 = vrot.lane.b32.xlu0 %v12272, 48
      %v12296 = vpop.permute.xlu0 %12295
      %12297 = vrot.lane.b32.xlu0 %v12273, 48
      %v12298 = vpop.permute.xlu0 %12297
      %12299 = vrot.lane.b32.xlu0 %v12274, 48
      %v12300 = vpop.permute.xlu0 %12299
      %12301 = vrot.lane.b32.xlu0 %v12275, 48
      %v12302 = vpop.permute.xlu0 %12301
      %12303 = vrot.lane.b32.xlu0 %v12276, 48
      %v12304 = vpop.permute.xlu0 %12303
      %12305 = vrot.lane.b32.xlu0 %v12277, 48
      %v12306 = vpop.permute.xlu0 %12305
      %12307 = vrot.lane.b32.xlu0 %v12278, 48
      %v12308 = vpop.permute.xlu0 %12307
      %12309 = vrot.lane.b32.xlu0 %v12279, 48
      %v12310 = vpop.permute.xlu0 %12309
      %12311 = vrot.lane.b32.xlu0 %v12280, 48
      %v12312 = vpop.permute.xlu0 %12311
      %v12345 = vunpack.c.l.b16 %v11449
      %v12346 = vunpack.c.l.b16 %v11450
      %v12347 = vunpack.c.l.b16 %v11451
      %v12348 = vunpack.c.l.b16 %v11452
      %v12349 = vunpack.c.l.b16 %v11453
      %v12350 = vunpack.c.l.b16 %v11454
      %v12351 = vunpack.c.l.b16 %v11455
      %v12352 = vunpack.c.l.b16 %v11456
      %v12353 = vunpack.c.l.b16 %v11457
      %v12354 = vunpack.c.l.b16 %v11458
      %v12355 = vunpack.c.l.b16 %v11459
      %v12356 = vunpack.c.l.b16 %v11460
      %v12357 = vunpack.c.l.b16 %v11461
      %v12358 = vunpack.c.l.b16 %v11462
      %v12359 = vunpack.c.l.b16 %v11463
      %v12360 = vunpack.c.l.b16 %v11464
      %v12361 = vunpack.c.l.b16 %v11465
      %v12362 = vunpack.c.l.b16 %v11466
      %v12363 = vunpack.c.l.b16 %v11467
      %v12364 = vunpack.c.l.b16 %v11468
      %v12365 = vunpack.c.l.b16 %v11469
      %v12366 = vunpack.c.l.b16 %v11470
      %v12367 = vunpack.c.l.b16 %v11471
      %v12368 = vunpack.c.l.b16 %v11472
      %v12369 = vunpack.c.l.b16 %v11473
      %v12370 = vunpack.c.l.b16 %v11474
      %v12371 = vunpack.c.l.b16 %v11475
      %v12372 = vunpack.c.l.b16 %v11476
      %v12373 = vunpack.c.l.b16 %v11477
      %v12374 = vunpack.c.l.b16 %v11478
      %v12375 = vunpack.c.l.b16 %v11479
      %v12376 = vunpack.c.l.b16 %v11480
      %v12377 = vpack.c.b16 %v12234, %v12345
      %v12378 = vpack.c.b16 %v12346, %v12346
      %v12379 = vpack.c.b16 %v12236, %v12347
      %v12380 = vpack.c.b16 %v12348, %v12348
      %v12381 = vpack.c.b16 %v12238, %v12349
      %v12382 = vpack.c.b16 %v12350, %v12350
      %v12383 = vpack.c.b16 %v12240, %v12351
      %v12384 = vpack.c.b16 %v12352, %v12352
      %v12385 = vpack.c.b16 %v12242, %v12353
      %v12386 = vpack.c.b16 %v12354, %v12354
      %v12387 = vpack.c.b16 %v12244, %v12355
      %v12388 = vpack.c.b16 %v12356, %v12356
      %v12389 = vpack.c.b16 %v12246, %v12357
      %v12390 = vpack.c.b16 %v12358, %v12358
      %v12391 = vpack.c.b16 %v12248, %v12359
      %v12392 = vpack.c.b16 %v12360, %v12360
      %v12393 = vpack.c.b16 %v12250, %v12361
      %v12394 = vpack.c.b16 %v12362, %v12362
      %v12395 = vpack.c.b16 %v12252, %v12363
      %v12396 = vpack.c.b16 %v12364, %v12364
      %v12397 = vpack.c.b16 %v12254, %v12365
      %v12398 = vpack.c.b16 %v12366, %v12366
      %v12399 = vpack.c.b16 %v12256, %v12367
      %v12400 = vpack.c.b16 %v12368, %v12368
      %v12401 = vpack.c.b16 %v12258, %v12369
      %v12402 = vpack.c.b16 %v12370, %v12370
      %v12403 = vpack.c.b16 %v12260, %v12371
      %v12404 = vpack.c.b16 %v12372, %v12372
      %v12405 = vpack.c.b16 %v12262, %v12373
      %v12406 = vpack.c.b16 %v12374, %v12374
      %v12407 = vpack.c.b16 %v12264, %v12375
      %v12408 = vpack.c.b16 %v12376, %v12376
      %v12409 = vrot.slane %v12377, 2
      %v12410 = vrot.slane %v12378, 2
      %v12411 = vsel %vm4624, %v12409, %v12410
      %v12412 = vrot.slane %v12379, 2
      %v12413 = vrot.slane %v12380, 2
      %v12414 = vsel %vm4624, %v12412, %v12413
      %v12415 = vrot.slane %v12381, 2
      %v12416 = vrot.slane %v12382, 2
      %v12417 = vsel %vm4624, %v12415, %v12416
      %v12418 = vrot.slane %v12383, 2
      %v12419 = vrot.slane %v12384, 2
      %v12420 = vsel %vm4624, %v12418, %v12419
      %v12421 = vrot.slane %v12385, 2
      %v12422 = vrot.slane %v12386, 2
      %v12423 = vsel %vm4624, %v12421, %v12422
      %v12424 = vrot.slane %v12387, 2
      %v12425 = vrot.slane %v12388, 2
      %v12426 = vsel %vm4624, %v12424, %v12425
      %v12427 = vrot.slane %v12389, 2
      %v12428 = vrot.slane %v12390, 2
      %v12429 = vsel %vm4624, %v12427, %v12428
      %v12430 = vrot.slane %v12391, 2
      %v12431 = vrot.slane %v12392, 2
      %v12432 = vsel %vm4624, %v12430, %v12431
      %v12433 = vrot.slane %v12393, 2
      %v12434 = vrot.slane %v12394, 2
      %v12435 = vsel %vm4624, %v12433, %v12434
      %v12436 = vrot.slane %v12395, 2
      %v12437 = vrot.slane %v12396, 2
      %v12438 = vsel %vm4624, %v12436, %v12437
      %v12439 = vrot.slane %v12397, 2
      %v12440 = vrot.slane %v12398, 2
      %v12441 = vsel %vm4624, %v12439, %v12440
      %v12442 = vrot.slane %v12399, 2
      %v12443 = vrot.slane %v12400, 2
      %v12444 = vsel %vm4624, %v12442, %v12443
      %v12445 = vrot.slane %v12401, 2
      %v12446 = vrot.slane %v12402, 2
      %v12447 = vsel %vm4624, %v12445, %v12446
      %v12448 = vrot.slane %v12403, 2
      %v12449 = vrot.slane %v12404, 2
      %v12450 = vsel %vm4624, %v12448, %v12449
      %v12451 = vrot.slane %v12405, 2
      %v12452 = vrot.slane %v12406, 2
      %v12453 = vsel %vm4624, %v12451, %v12452
      %v12454 = vrot.slane %v12407, 2
      %v12455 = vrot.slane %v12408, 2
      %v12456 = vsel %vm4624, %v12454, %v12455
      %12457 = vrot.lane.b32.xlu0 %v12411, 56
      %v12458 = vpop.permute.xlu0 %12457
      %12459 = vrot.lane.b32.xlu0 %v12414, 56
      %v12460 = vpop.permute.xlu0 %12459
      %12461 = vrot.lane.b32.xlu0 %v12417, 56
      %v12462 = vpop.permute.xlu0 %12461
      %12463 = vrot.lane.b32.xlu0 %v12420, 56
      %v12464 = vpop.permute.xlu0 %12463
      %12465 = vrot.lane.b32.xlu0 %v12423, 56
      %v12466 = vpop.permute.xlu0 %12465
      %12467 = vrot.lane.b32.xlu0 %v12426, 56
      %v12468 = vpop.permute.xlu0 %12467
      %12469 = vrot.lane.b32.xlu0 %v12429, 56
      %v12470 = vpop.permute.xlu0 %12469
      %12471 = vrot.lane.b32.xlu0 %v12432, 56
      %v12472 = vpop.permute.xlu0 %12471
      %12473 = vrot.lane.b32.xlu0 %v12435, 56
      %v12474 = vpop.permute.xlu0 %12473
      %12475 = vrot.lane.b32.xlu0 %v12438, 56
      %v12476 = vpop.permute.xlu0 %12475
      %12477 = vrot.lane.b32.xlu0 %v12441, 56
      %v12478 = vpop.permute.xlu0 %12477
      %12479 = vrot.lane.b32.xlu0 %v12444, 56
      %v12480 = vpop.permute.xlu0 %12479
      %12481 = vrot.lane.b32.xlu0 %v12447, 56
      %v12482 = vpop.permute.xlu0 %12481
      %12483 = vrot.lane.b32.xlu0 %v12450, 56
      %v12484 = vpop.permute.xlu0 %12483
      %12485 = vrot.lane.b32.xlu0 %v12453, 56
      %v12486 = vpop.permute.xlu0 %12485
      %12487 = vrot.lane.b32.xlu0 %v12456, 56
      %v12488 = vpop.permute.xlu0 %12487
      %v12505 = vunpack.c.l.b16 %v11481
      %v12506 = vunpack.c.l.b16 %v11482
      %v12507 = vunpack.c.l.b16 %v11483
      %v12508 = vunpack.c.l.b16 %v11484
      %v12509 = vunpack.c.l.b16 %v11485
      %v12510 = vunpack.c.l.b16 %v11486
      %v12511 = vunpack.c.l.b16 %v11487
      %v12512 = vunpack.c.l.b16 %v11488
      %v12513 = vunpack.c.l.b16 %v11489
      %v12514 = vunpack.c.l.b16 %v11490
      %v12515 = vunpack.c.l.b16 %v11491
      %v12516 = vunpack.c.l.b16 %v11492
      %v12517 = vunpack.c.l.b16 %v11493
      %v12518 = vunpack.c.l.b16 %v11494
      %v12519 = vunpack.c.l.b16 %v11495
      %v12520 = vunpack.c.l.b16 %v11496
      %v12521 = vpack.c.b16 %v12505, %v12234
      %v12522 = vpack.c.b16 %v12506, %v12236
      %v12523 = vpack.c.b16 %v12507, %v12238
      %v12524 = vpack.c.b16 %v12508, %v12240
      %v12525 = vpack.c.b16 %v12509, %v12242
      %v12526 = vpack.c.b16 %v12510, %v12244
      %v12527 = vpack.c.b16 %v12511, %v12246
      %v12528 = vpack.c.b16 %v12512, %v12248
      %v12529 = vpack.c.b16 %v12513, %v12250
      %v12530 = vpack.c.b16 %v12514, %v12252
      %v12531 = vpack.c.b16 %v12515, %v12254
      %v12532 = vpack.c.b16 %v12516, %v12256
      %v12533 = vpack.c.b16 %v12517, %v12258
      %v12534 = vpack.c.b16 %v12518, %v12260
      %v12535 = vpack.c.b16 %v12519, %v12262
      %v12536 = vpack.c.b16 %v12520, %v12264
      %12537 = vrot.lane.b32.xlu0 %v12521, 64
      %v12538 = vpop.permute.xlu0 %12537
      %12539 = vrot.lane.b32.xlu0 %v12522, 64
      %v12540 = vpop.permute.xlu0 %12539
      %12541 = vrot.lane.b32.xlu0 %v12523, 64
      %v12542 = vpop.permute.xlu0 %12541
      %12543 = vrot.lane.b32.xlu0 %v12524, 64
      %v12544 = vpop.permute.xlu0 %12543
      %12545 = vrot.lane.b32.xlu0 %v12525, 64
      %v12546 = vpop.permute.xlu0 %12545
      %12547 = vrot.lane.b32.xlu0 %v12526, 64
      %v12548 = vpop.permute.xlu0 %12547
      %12549 = vrot.lane.b32.xlu0 %v12527, 64
      %v12550 = vpop.permute.xlu0 %12549
      %12551 = vrot.lane.b32.xlu0 %v12528, 64
      %v12552 = vpop.permute.xlu0 %12551
      %12553 = vrot.lane.b32.xlu0 %v12529, 64
      %v12554 = vpop.permute.xlu0 %12553
      %12555 = vrot.lane.b32.xlu0 %v12530, 64
      %v12556 = vpop.permute.xlu0 %12555
      %12557 = vrot.lane.b32.xlu0 %v12531, 64
      %v12558 = vpop.permute.xlu0 %12557
      %12559 = vrot.lane.b32.xlu0 %v12532, 64
      %v12560 = vpop.permute.xlu0 %12559
      %12561 = vrot.lane.b32.xlu0 %v12533, 64
      %v12562 = vpop.permute.xlu0 %12561
      %12563 = vrot.lane.b32.xlu0 %v12534, 64
      %v12564 = vpop.permute.xlu0 %12563
      %12565 = vrot.lane.b32.xlu0 %v12535, 64
      %v12566 = vpop.permute.xlu0 %12565
      %12567 = vrot.lane.b32.xlu0 %v12536, 64
      %v12568 = vpop.permute.xlu0 %12567
      %v12571 = vsel %vm2810, %v11561, %v11722
      %v12574 = vsel %vm2810, %v11562, %v11724
      %v12577 = vsel %vm2810, %v11563, %v11726
      %v12580 = vsel %vm2810, %v11564, %v11728
      %v12583 = vsel %vm2810, %v11565, %v11730
      %v12586 = vsel %vm2810, %v11566, %v11732
      %v12589 = vsel %vm2810, %v11567, %v11734
      %v12592 = vsel %vm2810, %v11568, %v11736
      %v12595 = vsel %vm2810, %v11569, %v11738
      %v12598 = vsel %vm2810, %v11570, %v11740
      %v12601 = vsel %vm2810, %v11571, %v11742
      %v12604 = vsel %vm2810, %v11572, %v11744
      %v12607 = vsel %vm2810, %v11573, %v11746
      %v12610 = vsel %vm2810, %v11574, %v11748
      %v12613 = vsel %vm2810, %v11575, %v11750
      %v12616 = vsel %vm2810, %v11576, %v11752
      %v12618 = vsel %vm2891, %v12571, %v11802
      %v12620 = vsel %vm2891, %v12574, %v11804
      %v12622 = vsel %vm2891, %v12577, %v11806
      %v12624 = vsel %vm2891, %v12580, %v11808
      %v12626 = vsel %vm2891, %v12583, %v11810
      %v12628 = vsel %vm2891, %v12586, %v11812
      %v12630 = vsel %vm2891, %v12589, %v11814
      %v12632 = vsel %vm2891, %v12592, %v11816
      %v12634 = vsel %vm2891, %v12595, %v11818
      %v12636 = vsel %vm2891, %v12598, %v11820
      %v12638 = vsel %vm2891, %v12601, %v11822
      %v12640 = vsel %vm2891, %v12604, %v11824
      %v12642 = vsel %vm2891, %v12607, %v11826
      %v12644 = vsel %vm2891, %v12610, %v11828
      %v12646 = vsel %vm2891, %v12613, %v11830
      %v12648 = vsel %vm2891, %v12616, %v11832
      %v12650 = vsel %vm2956, %v12618, %v11914
      %v12652 = vsel %vm2956, %v12620, %v11916
      %v12654 = vsel %vm2956, %v12622, %v11918
      %v12656 = vsel %vm2956, %v12624, %v11920
      %v12658 = vsel %vm2956, %v12626, %v11922
      %v12660 = vsel %vm2956, %v12628, %v11924
      %v12662 = vsel %vm2956, %v12630, %v11926
      %v12664 = vsel %vm2956, %v12632, %v11928
      %v12666 = vsel %vm2956, %v12634, %v11930
      %v12668 = vsel %vm2956, %v12636, %v11932
      %v12670 = vsel %vm2956, %v12638, %v11934
      %v12672 = vsel %vm2956, %v12640, %v11936
      %v12674 = vsel %vm2956, %v12642, %v11938
      %v12676 = vsel %vm2956, %v12644, %v11940
      %v12678 = vsel %vm2956, %v12646, %v11942
      %v12680 = vsel %vm2956, %v12648, %v11944
      %v12682 = vsel %vm3021, %v12650, %v12090
      %v12684 = vsel %vm3021, %v12652, %v12092
      %v12686 = vsel %vm3021, %v12654, %v12094
      %v12688 = vsel %vm3021, %v12656, %v12096
      %v12690 = vsel %vm3021, %v12658, %v12098
      %v12692 = vsel %vm3021, %v12660, %v12100
      %v12694 = vsel %vm3021, %v12662, %v12102
      %v12696 = vsel %vm3021, %v12664, %v12104
      %v12698 = vsel %vm3021, %v12666, %v12106
      %v12700 = vsel %vm3021, %v12668, %v12108
      %v12702 = vsel %vm3021, %v12670, %v12110
      %v12704 = vsel %vm3021, %v12672, %v12112
      %v12706 = vsel %vm3021, %v12674, %v12114
      %v12708 = vsel %vm3021, %v12676, %v12116
      %v12710 = vsel %vm3021, %v12678, %v12118
      %v12712 = vsel %vm3021, %v12680, %v12120
      %v12714 = vsel %vm3086, %v12682, %v12170
      %v12716 = vsel %vm3086, %v12684, %v12172
      %v12718 = vsel %vm3086, %v12686, %v12174
      %v12720 = vsel %vm3086, %v12688, %v12176
      %v12722 = vsel %vm3086, %v12690, %v12178
      %v12724 = vsel %vm3086, %v12692, %v12180
      %v12726 = vsel %vm3086, %v12694, %v12182
      %v12728 = vsel %vm3086, %v12696, %v12184
      %v12730 = vsel %vm3086, %v12698, %v12186
      %v12732 = vsel %vm3086, %v12700, %v12188
      %v12734 = vsel %vm3086, %v12702, %v12190
      %v12736 = vsel %vm3086, %v12704, %v12192
      %v12738 = vsel %vm3086, %v12706, %v12194
      %v12740 = vsel %vm3086, %v12708, %v12196
      %v12742 = vsel %vm3086, %v12710, %v12198
      %v12744 = vsel %vm3086, %v12712, %v12200
      %v12746 = vsel %vm3151, %v12714, %v12282
      %v12748 = vsel %vm3151, %v12716, %v12284
      %v12750 = vsel %vm3151, %v12718, %v12286
      %v12752 = vsel %vm3151, %v12720, %v12288
      %v12754 = vsel %vm3151, %v12722, %v12290
      %v12756 = vsel %vm3151, %v12724, %v12292
      %v12758 = vsel %vm3151, %v12726, %v12294
      %v12760 = vsel %vm3151, %v12728, %v12296
      %v12762 = vsel %vm3151, %v12730, %v12298
      %v12764 = vsel %vm3151, %v12732, %v12300
      %v12766 = vsel %vm3151, %v12734, %v12302
      %v12768 = vsel %vm3151, %v12736, %v12304
      %v12770 = vsel %vm3151, %v12738, %v12306
      %v12772 = vsel %vm3151, %v12740, %v12308
      %v12774 = vsel %vm3151, %v12742, %v12310
      %v12776 = vsel %vm3151, %v12744, %v12312
      %v12778 = vsel %vm3216, %v12746, %v12458
      %v12780 = vsel %vm3216, %v12748, %v12460
      %v12782 = vsel %vm3216, %v12750, %v12462
      %v12784 = vsel %vm3216, %v12752, %v12464
      %v12786 = vsel %vm3216, %v12754, %v12466
      %v12788 = vsel %vm3216, %v12756, %v12468
      %v12790 = vsel %vm3216, %v12758, %v12470
      %v12792 = vsel %vm3216, %v12760, %v12472
      %v12794 = vsel %vm3216, %v12762, %v12474
      %v12796 = vsel %vm3216, %v12764, %v12476
      %v12798 = vsel %vm3216, %v12766, %v12478
      %v12800 = vsel %vm3216, %v12768, %v12480
      %v12802 = vsel %vm3216, %v12770, %v12482
      %v12804 = vsel %vm3216, %v12772, %v12484
      %v12806 = vsel %vm3216, %v12774, %v12486
      %v12808 = vsel %vm3216, %v12776, %v12488
      %v12810 = vsel %vm3281, %v12778, %v12538
      %v12812 = vsel %vm3281, %v12780, %v12540
      %v12814 = vsel %vm3281, %v12782, %v12542
      %v12816 = vsel %vm3281, %v12784, %v12544
      %v12818 = vsel %vm3281, %v12786, %v12546
      %v12820 = vsel %vm3281, %v12788, %v12548
      %v12822 = vsel %vm3281, %v12790, %v12550
      %v12824 = vsel %vm3281, %v12792, %v12552
      %v12826 = vsel %vm3281, %v12794, %v12554
      %v12828 = vsel %vm3281, %v12796, %v12556
      %v12830 = vsel %vm3281, %v12798, %v12558
      %v12832 = vsel %vm3281, %v12800, %v12560
      %v12834 = vsel %vm3281, %v12802, %v12562
      %v12836 = vsel %vm3281, %v12804, %v12564
      %v12838 = vsel %vm3281, %v12806, %v12566
      %v12840 = vsel %vm3281, %v12808, %v12568
      %s12841 = scalar_lea.vmem %s1, 108
      %v12842 = vld [vmem:[%s12841] sm:$0xf]
      %v12843 = vld [vmem:[%s12841 + $0x4] sm:$0xf]
      %v12844 = vld [vmem:[%s12841 + $0x8] sm:$0xf]
      %v12845 = vld [vmem:[%s12841 + $0xc] sm:$0xf]
      %v12846 = vld [vmem:[%s12841 + $0x10] sm:$0xf]
      %v12847 = vld [vmem:[%s12841 + $0x14] sm:$0xf]
      %v12848 = vld [vmem:[%s12841 + $0x18] sm:$0xf]
      %v12849 = vld [vmem:[%s12841 + $0x1c] sm:$0xf]
      %v12850 = vld [vmem:[%s12841 + $0x20] sm:$0xf]
      %v12860 = vunpack.c.l.b16 %v12842
      %v12861 = vunpack.c.l.b16 %v12843
      %v12862 = vunpack.c.l.b16 %v12844
      %v12863 = vunpack.c.l.b16 %v12845
      %v12864 = vunpack.c.l.b16 %v12846
      %v12865 = vunpack.c.l.b16 %v12847
      %v12866 = vunpack.c.l.b16 %v12848
      %v12867 = vunpack.c.l.b16 %v12849
      %v12868 = vunpack.c.l.b16 %v12850
      %v12869 = vpack.c.b16 %v12861, %v12860
      %v12870 = vpack.c.b16 %v12863, %v12862
      %v12871 = vpack.c.b16 %v12865, %v12864
      %v12872 = vpack.c.b16 %v12867, %v12866
      %v12873 = vpack.c.b16 %v12868, %v12868
      %v12878 = vsel %vm3623, %v12810, 0
      %v12880 = vsel %vm3623, %v12812, 0
      %v12882 = vsel %vm3623, %v12814, 0
      %v12884 = vsel %vm3623, %v12816, 0
      %v12886 = vsel %vm3623, %v12818, 0
      %v12888 = vsel %vm3623, %v12820, 0
      %v12890 = vsel %vm3623, %v12822, 0
      %v12892 = vsel %vm3623, %v12824, 0
      %v12894 = vsel %vm3623, %v12826, 0
      %v12896 = vsel %vm3623, %v12828, 0
      %v12898 = vsel %vm3623, %v12830, 0
      %v12900 = vsel %vm3623, %v12832, 0
      %v12902 = vsel %vm3623, %v12834, 0
      %v12904 = vsel %vm3623, %v12836, 0
      %v12906 = vsel %vm3623, %v12838, 0
      %v12908 = vsel %vm3623, %v12840, 0
      %v12911 = vsel %vm3672, %v12873, 0
      %12913 = vmatprep.subr.bf16.mxu0 0
      %12914 = vmatpush1.bf16.msra.mxu0 %v12869
      %12915 = vmatprep.subr.bf16.mxu0 0
      %12916 = vmatpush1.bf16.msra.mxu0 %v12870
      %12917 = vmatprep.subr.bf16.mxu0 0
      %12918 = vmatpush1.bf16.msra.mxu0 %v12871
      %12919 = vmatprep.subr.bf16.mxu0 0
      %12920 = vmatpush1.bf16.msra.mxu0 %v12872
      %12921 = vmatprep.subr.bf16.mxu0 0
      %12922 = vmatpush1.bf16.msra.mxu0 %v12911
      %12923 = vmatprep.subr.bf16.mxu0 0
      %12924 = vmatpush1.bf16.msra.mxu0 0
      %12925 = vmatprep.subr.bf16.mxu0 0
      %12926 = vmatpush1.bf16.msra.mxu0 0
      %12927 = vmatprep.subr.bf16.mxu0 0
      %12928 = vmatpush1.bf16.msra.mxu0 0
      %12929 = vmatprep.subr.bf16.mxu0 0
      %12930 = vmatpush1.bf16.msra.mxu0 0
      %12931 = vmatprep.subr.bf16.mxu0 0
      %12932 = vmatpush1.bf16.msra.mxu0 0
      %12933 = vmatprep.subr.bf16.mxu0 0
      %12934 = vmatpush1.bf16.msra.mxu0 0
      %12935 = vmatprep.subr.bf16.mxu0 0
      %12936 = vmatpush1.bf16.msra.mxu0 0
      %12937 = vmatprep.subr.bf16.mxu0 0
      %12938 = vmatpush1.bf16.msra.mxu0 0
      %12939 = vmatprep.subr.bf16.mxu0 0
      %12940 = vmatpush1.bf16.msra.mxu0 0
      %12941 = vmatprep.subr.bf16.mxu0 0
      %12942 = vmatpush1.bf16.msra.mxu0 0
      %12943 = vmatprep.subr.bf16.mxu0 0
      %12944 = vmatpush1.bf16.msra.mxu0 0
      %12945 = vmatprep.mubr.bf16.mxu0 0
      %12946 = vmatmul.mubr.bf16.gmra.mrb[0].mxu0 %v12878
      %v12947 = vpop.f32.mrb[0].mxu0
      %v12948 = vadd.f32 0.0, %v12947
      %v12949 = vpop.f32.mrb[0].mxu0
      %v12950 = vpop.f32.mrb[0].mxu0
      %v12951 = vadd.f32 0.0, %v12950
      %v12952 = vpop.f32.mrb[0].mxu0
      %12953 = vmatprep.mubr.bf16.mxu0 0
      %12954 = vmatmul.mubr.bf16.gmra.mrb[0].mxu0 %v12880
      %v12955 = vpop.f32.mrb[0].mxu0
      %v12956 = vadd.f32 0.0, %v12955
      %v12957 = vpop.f32.mrb[0].mxu0
      %v12958 = vpop.f32.mrb[0].mxu0
      %v12959 = vadd.f32 0.0, %v12958
      %v12960 = vpop.f32.mrb[0].mxu0
      %12961 = vmatprep.mubr.bf16.mxu0 0
      %12962 = vmatmul.mubr.bf16.gmra.mrb[0].mxu0 %v12882
      %v12963 = vpop.f32.mrb[0].mxu0
      %v12964 = vadd.f32 0.0, %v12963
      %v12965 = vpop.f32.mrb[0].mxu0
      %v12966 = vpop.f32.mrb[0].mxu0
      %v12967 = vadd.f32 0.0, %v12966
      %v12968 = vpop.f32.mrb[0].mxu0
      %12969 = vmatprep.mubr.bf16.mxu0 0
      %12970 = vmatmul.mubr.bf16.gmra.mrb[0].mxu0 %v12884
      %v12971 = vpop.f32.mrb[0].mxu0
      %v12972 = vadd.f32 0.0, %v12971
      %v12973 = vpop.f32.mrb[0].mxu0
      %v12974 = vpop.f32.mrb[0].mxu0
      %v12975 = vadd.f32 0.0, %v12974
      %v12976 = vpop.f32.mrb[0].mxu0
      %12977 = vmatprep.mubr.bf16.mxu0 0
      %12978 = vmatmul.mubr.bf16.gmra.mrb[0].mxu0 %v12886
      %v12979 = vpop.f32.mrb[0].mxu0
      %v12980 = vadd.f32 0.0, %v12979
      %v12981 = vpop.f32.mrb[0].mxu0
      %v12982 = vpop.f32.mrb[0].mxu0
      %v12983 = vadd.f32 0.0, %v12982
      %v12984 = vpop.f32.mrb[0].mxu0
      %12985 = vmatprep.mubr.bf16.mxu0 0
      %12986 = vmatmul.mubr.bf16.gmra.mrb[0].mxu0 %v12888
      %v12987 = vpop.f32.mrb[0].mxu0
      %v12988 = vadd.f32 0.0, %v12987
      %v12989 = vpop.f32.mrb[0].mxu0
      %v12990 = vpop.f32.mrb[0].mxu0
      %v12991 = vadd.f32 0.0, %v12990
      %v12992 = vpop.f32.mrb[0].mxu0
      %12993 = vmatprep.mubr.bf16.mxu0 0
      %12994 = vmatmul.mubr.bf16.gmra.mrb[0].mxu0 %v12890
      %v12995 = vpop.f32.mrb[0].mxu0
      %v12996 = vadd.f32 0.0, %v12995
      %v12997 = vpop.f32.mrb[0].mxu0
      %v12998 = vpop.f32.mrb[0].mxu0
      %v12999 = vadd.f32 0.0, %v12998
      %v13000 = vpop.f32.mrb[0].mxu0
      %13001 = vmatprep.mubr.bf16.mxu0 0
      %13002 = vmatmul.mubr.bf16.gmra.mrb[0].mxu0 %v12892
      %v13003 = vpop.f32.mrb[0].mxu0
      %v13004 = vadd.f32 0.0, %v13003
      %v13005 = vpop.f32.mrb[0].mxu0
      %v13006 = vpop.f32.mrb[0].mxu0
      %v13007 = vadd.f32 0.0, %v13006
      %v13008 = vpop.f32.mrb[0].mxu0
      %13009 = vmatprep.mubr.bf16.mxu0 0
      %13010 = vmatmul.mubr.bf16.gmra.mrb[0].mxu0 %v12894
      %v13011 = vpop.f32.mrb[0].mxu0
      %v13012 = vadd.f32 0.0, %v13011
      %v13013 = vpop.f32.mrb[0].mxu0
      %v13014 = vpop.f32.mrb[0].mxu0
      %v13015 = vadd.f32 0.0, %v13014
      %v13016 = vpop.f32.mrb[0].mxu0
      %13017 = vmatprep.mubr.bf16.mxu0 0
      %13018 = vmatmul.mubr.bf16.gmra.mrb[0].mxu0 %v12896
      %v13019 = vpop.f32.mrb[0].mxu0
      %v13020 = vadd.f32 0.0, %v13019
      %v13021 = vpop.f32.mrb[0].mxu0
      %v13022 = vpop.f32.mrb[0].mxu0
      %v13023 = vadd.f32 0.0, %v13022
      %v13024 = vpop.f32.mrb[0].mxu0
      %13025 = vmatprep.mubr.bf16.mxu0 0
      %13026 = vmatmul.mubr.bf16.gmra.mrb[0].mxu0 %v12898
      %v13027 = vpop.f32.mrb[0].mxu0
      %v13028 = vadd.f32 0.0, %v13027
      %v13029 = vpop.f32.mrb[0].mxu0
      %v13030 = vpop.f32.mrb[0].mxu0
      %v13031 = vadd.f32 0.0, %v13030
      %v13032 = vpop.f32.mrb[0].mxu0
      %13033 = vmatprep.mubr.bf16.mxu0 0
      %13034 = vmatmul.mubr.bf16.gmra.mrb[0].mxu0 %v12900
      %v13035 = vpop.f32.mrb[0].mxu0
      %v13036 = vadd.f32 0.0, %v13035
      %v13037 = vpop.f32.mrb[0].mxu0
      %v13038 = vpop.f32.mrb[0].mxu0
      %v13039 = vadd.f32 0.0, %v13038
      %v13040 = vpop.f32.mrb[0].mxu0
      %13041 = vmatprep.mubr.bf16.mxu0 0
      %13042 = vmatmul.mubr.bf16.gmra.mrb[0].mxu0 %v12902
      %v13043 = vpop.f32.mrb[0].mxu0
      %v13044 = vadd.f32 0.0, %v13043
      %v13045 = vpop.f32.mrb[0].mxu0
      %v13046 = vpop.f32.mrb[0].mxu0
      %v13047 = vadd.f32 0.0, %v13046
      %v13048 = vpop.f32.mrb[0].mxu0
      %13049 = vmatprep.mubr.bf16.mxu0 0
      %13050 = vmatmul.mubr.bf16.gmra.mrb[0].mxu0 %v12904
      %v13051 = vpop.f32.mrb[0].mxu0
      %v13052 = vadd.f32 0.0, %v13051
      %v13053 = vpop.f32.mrb[0].mxu0
      %v13054 = vpop.f32.mrb[0].mxu0
      %v13055 = vadd.f32 0.0, %v13054
      %v13056 = vpop.f32.mrb[0].mxu0
      %13057 = vmatprep.mubr.bf16.mxu0 0
      %13058 = vmatmul.mubr.bf16.gmra.mrb[0].mxu0 %v12906
      %v13059 = vpop.f32.mrb[0].mxu0
      %v13060 = vadd.f32 0.0, %v13059
      %v13061 = vpop.f32.mrb[0].mxu0
      %v13062 = vpop.f32.mrb[0].mxu0
      %v13063 = vadd.f32 0.0, %v13062
      %v13064 = vpop.f32.mrb[0].mxu0
      %13065 = vmatprep.mubr.bf16.mxu0 0
      %13066 = vmatmul.mubr.bf16.gmra.mrb[0].mxu0 %v12908
      %v13067 = vpop.f32.mrb[0].mxu0
      %v13068 = vadd.f32 0.0, %v13067
      %v13069 = vpop.f32.mrb[0].mxu0
      %v13070 = vpop.f32.mrb[0].mxu0
      %v13071 = vadd.f32 0.0, %v13070
      %v13072 = vpop.f32.mrb[0].mxu0
      %13073 = vdwg.mxu0
      %v13074 = vpack.c.bf16 %v12951, %v12948
      %v13075 = vpack.c.bf16 %v12959, %v12956
      %v13076 = vpack.c.bf16 %v12967, %v12964
      %v13077 = vpack.c.bf16 %v12975, %v12972
      %v13078 = vpack.c.bf16 %v12983, %v12980
      %v13079 = vpack.c.bf16 %v12991, %v12988
      %v13080 = vpack.c.bf16 %v12999, %v12996
      %v13081 = vpack.c.bf16 %v13007, %v13004
      %v13082 = vpack.c.bf16 %v13015, %v13012
      %v13083 = vpack.c.bf16 %v13023, %v13020
      %v13084 = vpack.c.bf16 %v13031, %v13028
      %v13085 = vpack.c.bf16 %v13039, %v13036
      %v13086 = vpack.c.bf16 %v13047, %v13044
      %v13087 = vpack.c.bf16 %v13055, %v13052
      %v13088 = vpack.c.bf16 %v13063, %v13060
      %v13089 = vpack.c.bf16 %v13071, %v13068
      %s13090 = scalar_lea.vmem %s2, 3
      %v13091 = vld [vmem:[%s13090] sm:$0x1]
      %v13093 = vsel %vm6844, %v13074, 0
      %v13096 = vsel %vm6844, %v13075, 0
      %v13099 = vsel %vm6844, %v13076, 0
      %v13102 = vsel %vm6844, %v13077, 0
      %v13105 = vsel %vm6844, %v13078, 0
      %v13108 = vsel %vm6844, %v13079, 0
      %v13111 = vsel %vm6844, %v13080, 0
      %v13114 = vsel %vm6844, %v13081, 0
      %v13117 = vsel %vm6844, %v13082, 0
      %v13120 = vsel %vm6844, %v13083, 0
      %v13123 = vsel %vm6844, %v13084, 0
      %v13126 = vsel %vm6844, %v13085, 0
      %v13129 = vsel %vm6844, %v13086, 0
      %v13132 = vsel %vm6844, %v13087, 0
      %v13135 = vsel %vm6844, %v13088, 0
      %v13138 = vsel %vm6844, %v13089, 0
      %v13141 = vsel %vm6893, %v13091, 0
      %13143 = vmatprep.subr.bf16.mxu0 0
      %13144 = vmatpush1.bf16.msra.mxu0 %v13141
      %13145 = vmatprep.subr.bf16.mxu0 0
      %13146 = vmatpush1.bf16.msra.mxu0 0
      %13147 = vmatprep.subr.bf16.mxu0 0
      %13148 = vmatpush1.bf16.msra.mxu0 0
      %13149 = vmatprep.subr.bf16.mxu0 0
      %13150 = vmatpush1.bf16.msra.mxu0 0
      %13151 = vmatprep.subr.bf16.mxu0 0
      %13152 = vmatpush1.bf16.msra.mxu0 0
      %13153 = vmatprep.subr.bf16.mxu0 0
      %13154 = vmatpush1.bf16.msra.mxu0 0
      %13155 = vmatprep.subr.bf16.mxu0 0
      %13156 = vmatpush1.bf16.msra.mxu0 0
      %13157 = vmatprep.subr.bf16.mxu0 0
      %13158 = vmatpush1.bf16.msra.mxu0 0
      %13159 = vmatprep.subr.bf16.mxu0 0
      %13160 = vmatpush1.bf16.msra.mxu0 0
      %13161 = vmatprep.subr.bf16.mxu0 0
      %13162 = vmatpush1.bf16.msra.mxu0 0
      %13163 = vmatprep.subr.bf16.mxu0 0
      %13164 = vmatpush1.bf16.msra.mxu0 0
      %13165 = vmatprep.subr.bf16.mxu0 0
      %13166 = vmatpush1.bf16.msra.mxu0 0
      %13167 = vmatprep.subr.bf16.mxu0 0
      %13168 = vmatpush1.bf16.msra.mxu0 0
      %13169 = vmatprep.subr.bf16.mxu0 0
      %13170 = vmatpush1.bf16.msra.mxu0 0
      %13171 = vmatprep.subr.bf16.mxu0 0
      %13172 = vmatpush1.bf16.msra.mxu0 0
      %13173 = vmatprep.subr.bf16.mxu0 0
      %13174 = vmatpush1.bf16.msra.mxu0 0
      %13175 = vmatprep.mubr.bf16.mxu0 0
      %13176 = vmatmul.mubr.bf16.gmra.mrb[0].mxu0 %v13093
      %v13177 = vpop.f32.mrb[0].mxu0
      %v13178 = vadd.f32 0.0, %v13177
      %v13179 = vpop.f32.mrb[0].mxu0
      %v13180 = vpop.f32.mrb[0].mxu0
      %v13181 = vadd.f32 0.0, %v13180
      %v13182 = vpop.f32.mrb[0].mxu0
      %13183 = vmatprep.mubr.bf16.mxu0 0
      %13184 = vmatmul.mubr.bf16.gmra.mrb[0].mxu0 %v13096
      %v13185 = vpop.f32.mrb[0].mxu0
      %v13186 = vadd.f32 0.0, %v13185
      %v13187 = vpop.f32.mrb[0].mxu0
      %v13188 = vpop.f32.mrb[0].mxu0
      %v13189 = vadd.f32 0.0, %v13188
      %v13190 = vpop.f32.mrb[0].mxu0
      %13191 = vmatprep.mubr.bf16.mxu0 0
      %13192 = vmatmul.mubr.bf16.gmra.mrb[0].mxu0 %v13099
      %v13193 = vpop.f32.mrb[0].mxu0
      %v13194 = vadd.f32 0.0, %v13193
      %v13195 = vpop.f32.mrb[0].mxu0
      %v13196 = vpop.f32.mrb[0].mxu0
      %v13197 = vadd.f32 0.0, %v13196
      %v13198 = vpop.f32.mrb[0].mxu0
      %13199 = vmatprep.mubr.bf16.mxu0 0
      %13200 = vmatmul.mubr.bf16.gmra.mrb[0].mxu0 %v13102
      %v13201 = vpop.f32.mrb[0].mxu0
      %v13202 = vadd.f32 0.0, %v13201
      %v13203 = vpop.f32.mrb[0].mxu0
      %v13204 = vpop.f32.mrb[0].mxu0
      %v13205 = vadd.f32 0.0, %v13204
      %v13206 = vpop.f32.mrb[0].mxu0
      %13207 = vmatprep.mubr.bf16.mxu0 0
      %13208 = vmatmul.mubr.bf16.gmra.mrb[0].mxu0 %v13105
      %v13209 = vpop.f32.mrb[0].mxu0
      %v13210 = vadd.f32 0.0, %v13209
      %v13211 = vpop.f32.mrb[0].mxu0
      %v13212 = vpop.f32.mrb[0].mxu0
      %v13213 = vadd.f32 0.0, %v13212
      %v13214 = vpop.f32.mrb[0].mxu0
      %13215 = vmatprep.mubr.bf16.mxu0 0
      %13216 = vmatmul.mubr.bf16.gmra.mrb[0].mxu0 %v13108
      %v13217 = vpop.f32.mrb[0].mxu0
      %v13218 = vadd.f32 0.0, %v13217
      %v13219 = vpop.f32.mrb[0].mxu0
      %v13220 = vpop.f32.mrb[0].mxu0
      %v13221 = vadd.f32 0.0, %v13220
      %v13222 = vpop.f32.mrb[0].mxu0
      %13223 = vmatprep.mubr.bf16.mxu0 0
      %13224 = vmatmul.mubr.bf16.gmra.mrb[0].mxu0 %v13111
      %v13225 = vpop.f32.mrb[0].mxu0
      %v13226 = vadd.f32 0.0, %v13225
      %v13227 = vpop.f32.mrb[0].mxu0
      %v13228 = vpop.f32.mrb[0].mxu0
      %v13229 = vadd.f32 0.0, %v13228
      %v13230 = vpop.f32.mrb[0].mxu0
      %13231 = vmatprep.mubr.bf16.mxu0 0
      %13232 = vmatmul.mubr.bf16.gmra.mrb[0].mxu0 %v13114
      %v13233 = vpop.f32.mrb[0].mxu0
      %v13234 = vadd.f32 0.0, %v13233
      %v13235 = vpop.f32.mrb[0].mxu0
      %v13236 = vpop.f32.mrb[0].mxu0
      %v13237 = vadd.f32 0.0, %v13236
      %v13238 = vpop.f32.mrb[0].mxu0
      %13239 = vmatprep.mubr.bf16.mxu0 0
      %13240 = vmatmul.mubr.bf16.gmra.mrb[0].mxu0 %v13117
      %v13241 = vpop.f32.mrb[0].mxu0
      %v13242 = vadd.f32 0.0, %v13241
      %v13243 = vpop.f32.mrb[0].mxu0
      %v13244 = vpop.f32.mrb[0].mxu0
      %v13245 = vadd.f32 0.0, %v13244
      %v13246 = vpop.f32.mrb[0].mxu0
      %13247 = vmatprep.mubr.bf16.mxu0 0
      %13248 = vmatmul.mubr.bf16.gmra.mrb[0].mxu0 %v13120
      %v13249 = vpop.f32.mrb[0].mxu0
      %v13250 = vadd.f32 0.0, %v13249
      %v13251 = vpop.f32.mrb[0].mxu0
      %v13252 = vpop.f32.mrb[0].mxu0
      %v13253 = vadd.f32 0.0, %v13252
      %v13254 = vpop.f32.mrb[0].mxu0
      %13255 = vmatprep.mubr.bf16.mxu0 0
      %13256 = vmatmul.mubr.bf16.gmra.mrb[0].mxu0 %v13123
      %v13257 = vpop.f32.mrb[0].mxu0
      %v13258 = vadd.f32 0.0, %v13257
      %v13259 = vpop.f32.mrb[0].mxu0
      %v13260 = vpop.f32.mrb[0].mxu0
      %v13261 = vadd.f32 0.0, %v13260
      %v13262 = vpop.f32.mrb[0].mxu0
      %13263 = vmatprep.mubr.bf16.mxu0 0
      %13264 = vmatmul.mubr.bf16.gmra.mrb[0].mxu0 %v13126
      %v13265 = vpop.f32.mrb[0].mxu0
      %v13266 = vadd.f32 0.0, %v13265
      %v13267 = vpop.f32.mrb[0].mxu0
      %v13268 = vpop.f32.mrb[0].mxu0
      %v13269 = vadd.f32 0.0, %v13268
      %v13270 = vpop.f32.mrb[0].mxu0
      %13271 = vmatprep.mubr.bf16.mxu0 0
      %13272 = vmatmul.mubr.bf16.gmra.mrb[0].mxu0 %v13129
      %v13273 = vpop.f32.mrb[0].mxu0
      %v13274 = vadd.f32 0.0, %v13273
      %v13275 = vpop.f32.mrb[0].mxu0
      %v13276 = vpop.f32.mrb[0].mxu0
      %v13277 = vadd.f32 0.0, %v13276
      %v13278 = vpop.f32.mrb[0].mxu0
      %13279 = vmatprep.mubr.bf16.mxu0 0
      %13280 = vmatmul.mubr.bf16.gmra.mrb[0].mxu0 %v13132
      %v13281 = vpop.f32.mrb[0].mxu0
      %v13282 = vadd.f32 0.0, %v13281
      %v13283 = vpop.f32.mrb[0].mxu0
      %v13284 = vpop.f32.mrb[0].mxu0
      %v13285 = vadd.f32 0.0, %v13284
      %v13286 = vpop.f32.mrb[0].mxu0
      %13287 = vmatprep.mubr.bf16.mxu0 0
      %13288 = vmatmul.mubr.bf16.gmra.mrb[0].mxu0 %v13135
      %v13289 = vpop.f32.mrb[0].mxu0
      %v13290 = vadd.f32 0.0, %v13289
      %v13291 = vpop.f32.mrb[0].mxu0
      %v13292 = vpop.f32.mrb[0].mxu0
      %v13293 = vadd.f32 0.0, %v13292
      %v13294 = vpop.f32.mrb[0].mxu0
      %13295 = vmatprep.mubr.bf16.mxu0 0
      %13296 = vmatmul.mubr.bf16.gmra.mrb[0].mxu0 %v13138
      %v13297 = vpop.f32.mrb[0].mxu0
      %v13298 = vadd.f32 0.0, %v13297
      %v13299 = vpop.f32.mrb[0].mxu0
      %v13300 = vpop.f32.mrb[0].mxu0
      %v13301 = vadd.f32 0.0, %v13300
      %v13302 = vpop.f32.mrb[0].mxu0
      %13303 = vdwg.mxu0
      %v13304 = vadd.f32 %v11224, %v13178
      %v13305 = vadd.f32 %v11225, %v13181
      %v13306 = vadd.f32 %v11226, %v13186
      %v13307 = vadd.f32 %v11227, %v13189
      %v13308 = vadd.f32 %v11228, %v13194
      %v13309 = vadd.f32 %v11229, %v13197
      %v13310 = vadd.f32 %v11230, %v13202
      %v13311 = vadd.f32 %v11231, %v13205
      %v13312 = vadd.f32 %v11232, %v13210
      %v13313 = vadd.f32 %v11233, %v13213
      %v13314 = vadd.f32 %v11234, %v13218
      %v13315 = vadd.f32 %v11235, %v13221
      %v13316 = vadd.f32 %v11236, %v13226
      %v13317 = vadd.f32 %v11237, %v13229
      %v13318 = vadd.f32 %v11238, %v13234
      %v13319 = vadd.f32 %v11239, %v13237
      %v13320 = vadd.f32 %v11240, %v13242
      %v13321 = vadd.f32 %v11241, %v13245
      %v13322 = vadd.f32 %v11242, %v13250
      %v13323 = vadd.f32 %v11243, %v13253
      %v13324 = vadd.f32 %v11244, %v13258
      %v13325 = vadd.f32 %v11245, %v13261
      %v13326 = vadd.f32 %v11246, %v13266
      %v13327 = vadd.f32 %v11247, %v13269
      %v13328 = vadd.f32 %v11248, %v13274
      %v13329 = vadd.f32 %v11249, %v13277
      %v13330 = vadd.f32 %v11250, %v13282
      %v13331 = vadd.f32 %v11251, %v13285
      %v13332 = vadd.f32 %v11252, %v13290
      %v13333 = vadd.f32 %v11253, %v13293
      %v13334 = vadd.f32 %v11254, %v13298
      %v13335 = vadd.f32 %v11255, %v13301
      %v13336 = vld [vmem:[%s3] sm:$0x1]
      %v13338 = vlaneseq
      %v13339 = vshrl.u32 %v13338, 7
      %v13340 = vsub.s32 0, %v13339
      %v13341 = vrot.slane %v13336, %v13340
      %v13343 = vadd.f32 %v13304, %v13341
      %v13344 = vadd.f32 %v13305, %v13341
      %v13345 = vadd.f32 %v13306, %v13341
      %v13346 = vadd.f32 %v13307, %v13341
      %v13347 = vadd.f32 %v13308, %v13341
      %v13348 = vadd.f32 %v13309, %v13341
      %v13349 = vadd.f32 %v13310, %v13341
      %v13350 = vadd.f32 %v13311, %v13341
      %v13351 = vadd.f32 %v13312, %v13341
      %v13352 = vadd.f32 %v13313, %v13341
      %v13353 = vadd.f32 %v13314, %v13341
      %v13354 = vadd.f32 %v13315, %v13341
      %v13355 = vadd.f32 %v13316, %v13341
      %v13356 = vadd.f32 %v13317, %v13341
      %v13357 = vadd.f32 %v13318, %v13341
      %v13358 = vadd.f32 %v13319, %v13341
      %v13359 = vadd.f32 %v13320, %v13341
      %v13360 = vadd.f32 %v13321, %v13341
      %v13361 = vadd.f32 %v13322, %v13341
      %v13362 = vadd.f32 %v13323, %v13341
      %v13363 = vadd.f32 %v13324, %v13341
      %v13364 = vadd.f32 %v13325, %v13341
      %v13365 = vadd.f32 %v13326, %v13341
      %v13366 = vadd.f32 %v13327, %v13341
      %v13367 = vadd.f32 %v13328, %v13341
      %v13368 = vadd.f32 %v13329, %v13341
      %v13369 = vadd.f32 %v13330, %v13341
      %v13370 = vadd.f32 %v13331, %v13341
      %v13371 = vadd.f32 %v13332, %v13341
      %v13372 = vadd.f32 %v13333, %v13341
      %v13373 = vadd.f32 %v13334, %v13341
      %v13374 = vadd.f32 %v13335, %v13341
      %v13375 = vmax.f32 %v13343, 0.0
      %v13376 = vmax.f32 %v13344, 0.0
      %v13377 = vmax.f32 %v13345, 0.0
      %v13378 = vmax.f32 %v13346, 0.0
      %v13379 = vmax.f32 %v13347, 0.0
      %v13380 = vmax.f32 %v13348, 0.0
      %v13381 = vmax.f32 %v13349, 0.0
      %v13382 = vmax.f32 %v13350, 0.0
      %v13383 = vmax.f32 %v13351, 0.0
      %v13384 = vmax.f32 %v13352, 0.0
      %v13385 = vmax.f32 %v13353, 0.0
      %v13386 = vmax.f32 %v13354, 0.0
      %v13387 = vmax.f32 %v13355, 0.0
      %v13388 = vmax.f32 %v13356, 0.0
      %v13389 = vmax.f32 %v13357, 0.0
      %v13390 = vmax.f32 %v13358, 0.0
      %v13391 = vmax.f32 %v13359, 0.0
      %v13392 = vmax.f32 %v13360, 0.0
      %v13393 = vmax.f32 %v13361, 0.0
      %v13394 = vmax.f32 %v13362, 0.0
      %v13395 = vmax.f32 %v13363, 0.0
      %v13396 = vmax.f32 %v13364, 0.0
      %v13397 = vmax.f32 %v13365, 0.0
      %v13398 = vmax.f32 %v13366, 0.0
      %v13399 = vmax.f32 %v13367, 0.0
      %v13400 = vmax.f32 %v13368, 0.0
      %v13401 = vmax.f32 %v13369, 0.0
      %v13402 = vmax.f32 %v13370, 0.0
      %v13403 = vmax.f32 %v13371, 0.0
      %v13404 = vmax.f32 %v13372, 0.0
      %v13405 = vmax.f32 %v13373, 0.0
      %v13406 = vmax.f32 %v13374, 0.0
      %v13407 = vld [vmem:[%s192] sm:$0xf]
      %v13408 = vld [vmem:[%s192 + $0x4] sm:$0xf]
      %v13409 = vld [vmem:[%s192 + $0x8] sm:$0xf]
      %v13410 = vld [vmem:[%s192 + $0xc] sm:$0xf]
      %v13411 = vld [vmem:[%s192 + $0x10] sm:$0xf]
      %v13412 = vld [vmem:[%s192 + $0x14] sm:$0xf]
      %v13413 = vld [vmem:[%s192 + $0x18] sm:$0xf]
      %v13414 = vld [vmem:[%s192 + $0x1c] sm:$0xf]
      %v13415 = vld [vmem:[%s192 + $0x20] sm:$0xf]
      %v13416 = vld [vmem:[%s192 + $0x24] sm:$0xf]
      %v13417 = vld [vmem:[%s192 + $0x28] sm:$0xf]
      %v13418 = vld [vmem:[%s192 + $0x2c] sm:$0xf]
      %v13419 = vld [vmem:[%s192 + $0x30] sm:$0xf]
      %v13420 = vld [vmem:[%s192 + $0x34] sm:$0xf]
      %v13421 = vld [vmem:[%s192 + $0x38] sm:$0xf]
      %v13422 = vld [vmem:[%s192 + $0x3c] sm:$0xf]
      %v13423 = vld [vmem:[%s192 + $0x40] sm:$0xf]
      %v13424 = vld [vmem:[%s192 + $0x44] sm:$0xf]
      %v13425 = vld [vmem:[%s192 + $0x48] sm:$0xf]
      %v13426 = vld [vmem:[%s192 + $0x4c] sm:$0xf]
      %v13427 = vld [vmem:[%s192 + $0x50] sm:$0xf]
      %v13428 = vld [vmem:[%s192 + $0x54] sm:$0xf]
      %v13429 = vld [vmem:[%s192 + $0x58] sm:$0xf]
      %v13430 = vld [vmem:[%s192 + $0x5c] sm:$0xf]
      %v13431 = vld [vmem:[%s192 + $0x60] sm:$0xf]
      %v13432 = vld [vmem:[%s192 + $0x64] sm:$0xf]
      %v13433 = vld [vmem:[%s192 + $0x68] sm:$0xf]
      %v13434 = vld [vmem:[%s192 + $0x6c] sm:$0xf]
      %v13435 = vld [vmem:[%s192 + $0x70] sm:$0xf]
      %v13436 = vld [vmem:[%s192 + $0x74] sm:$0xf]
      %v13437 = vld [vmem:[%s192 + $0x78] sm:$0xf]
      %v13438 = vld [vmem:[%s192 + $0x7c] sm:$0xf]
      %v13439 = vunpack.c.l.bf16 %v13407
      %v13440 = vunpack.c.l.bf16 %v13408
      %v13441 = vunpack.c.l.bf16 %v13409
      %v13442 = vunpack.c.l.bf16 %v13410
      %v13443 = vunpack.c.l.bf16 %v13411
      %v13444 = vunpack.c.l.bf16 %v13412
      %v13445 = vunpack.c.l.bf16 %v13413
      %v13446 = vunpack.c.l.bf16 %v13414
      %v13447 = vunpack.c.l.bf16 %v13415
      %v13448 = vunpack.c.l.bf16 %v13416
      %v13449 = vunpack.c.l.bf16 %v13417
      %v13450 = vunpack.c.l.bf16 %v13418
      %v13451 = vunpack.c.l.bf16 %v13419
      %v13452 = vunpack.c.l.bf16 %v13420
      %v13453 = vunpack.c.l.bf16 %v13421
      %v13454 = vunpack.c.l.bf16 %v13422
      %v13455 = vunpack.c.l.bf16 %v13423
      %v13456 = vunpack.c.l.bf16 %v13424
      %v13457 = vunpack.c.l.bf16 %v13425
      %v13458 = vunpack.c.l.bf16 %v13426
      %v13459 = vunpack.c.l.bf16 %v13427
      %v13460 = vunpack.c.l.bf16 %v13428
      %v13461 = vunpack.c.l.bf16 %v13429
      %v13462 = vunpack.c.l.bf16 %v13430
      %v13463 = vunpack.c.l.bf16 %v13431
      %v13464 = vunpack.c.l.bf16 %v13432
      %v13465 = vunpack.c.l.bf16 %v13433
      %v13466 = vunpack.c.l.bf16 %v13434
      %v13467 = vunpack.c.l.bf16 %v13435
      %v13468 = vunpack.c.l.bf16 %v13436
      %v13469 = vunpack.c.l.bf16 %v13437
      %v13470 = vunpack.c.l.bf16 %v13438
      %v13471 = vadd.f32 %v13439, %v13375
      %v13472 = vadd.f32 %v13440, %v13376
      %v13473 = vadd.f32 %v13441, %v13377
      %v13474 = vadd.f32 %v13442, %v13378
      %v13475 = vadd.f32 %v13443, %v13379
      %v13476 = vadd.f32 %v13444, %v13380
      %v13477 = vadd.f32 %v13445, %v13381
      %v13478 = vadd.f32 %v13446, %v13382
      %v13479 = vadd.f32 %v13447, %v13383
      %v13480 = vadd.f32 %v13448, %v13384
      %v13481 = vadd.f32 %v13449, %v13385
      %v13482 = vadd.f32 %v13450, %v13386
      %v13483 = vadd.f32 %v13451, %v13387
      %v13484 = vadd.f32 %v13452, %v13388
      %v13485 = vadd.f32 %v13453, %v13389
      %v13486 = vadd.f32 %v13454, %v13390
      %v13487 = vadd.f32 %v13455, %v13391
      %v13488 = vadd.f32 %v13456, %v13392
      %v13489 = vadd.f32 %v13457, %v13393
      %v13490 = vadd.f32 %v13458, %v13394
      %v13491 = vadd.f32 %v13459, %v13395
      %v13492 = vadd.f32 %v13460, %v13396
      %v13493 = vadd.f32 %v13461, %v13397
      %v13494 = vadd.f32 %v13462, %v13398
      %v13495 = vadd.f32 %v13463, %v13399
      %v13496 = vadd.f32 %v13464, %v13400
      %v13497 = vadd.f32 %v13465, %v13401
      %v13498 = vadd.f32 %v13466, %v13402
      %v13499 = vadd.f32 %v13467, %v13403
      %v13500 = vadd.f32 %v13468, %v13404
      %v13501 = vadd.f32 %v13469, %v13405
      %v13502 = vadd.f32 %v13470, %v13406
      %13503 = vst.msk [vmem:[%s197] sm:$0xff] %vm2810, %v13471
      %13504 = vst.msk [vmem:[%s197 + $0x8] sm:$0xff] %vm2810, %v13472
      %13505 = vst.msk [vmem:[%s197 + $0x10] sm:$0xff] %vm2810, %v13473
      %13506 = vst.msk [vmem:[%s197 + $0x18] sm:$0xff] %vm2810, %v13474
      %13507 = vst.msk [vmem:[%s197 + $0x20] sm:$0xff] %vm2810, %v13475
      %13508 = vst.msk [vmem:[%s197 + $0x28] sm:$0xff] %vm2810, %v13476
      %13509 = vst.msk [vmem:[%s197 + $0x30] sm:$0xff] %vm2810, %v13477
      %13510 = vst.msk [vmem:[%s197 + $0x38] sm:$0xff] %vm2810, %v13478
      %13511 = vst.msk [vmem:[%s197 + $0x40] sm:$0xff] %vm2810, %v13479
      %13512 = vst.msk [vmem:[%s197 + $0x48] sm:$0xff] %vm2810, %v13480
      %13513 = vst.msk [vmem:[%s197 + $0x50] sm:$0xff] %vm2810, %v13481
      %13514 = vst.msk [vmem:[%s197 + $0x58] sm:$0xff] %vm2810, %v13482
      %13515 = vst.msk [vmem:[%s197 + $0x60] sm:$0xff] %vm2810, %v13483
      %13516 = vst.msk [vmem:[%s197 + $0x68] sm:$0xff] %vm2810, %v13484
      %13517 = vst.msk [vmem:[%s197 + $0x70] sm:$0xff] %vm2810, %v13485
      %13518 = vst.msk [vmem:[%s197 + $0x78] sm:$0xff] %vm2810, %v13486
      %13519 = vst.msk [vmem:[%s197 + $0x80] sm:$0xff] %vm2810, %v13487
      %13520 = vst.msk [vmem:[%s197 + $0x88] sm:$0xff] %vm2810, %v13488
      %13521 = vst.msk [vmem:[%s197 + $0x90] sm:$0xff] %vm2810, %v13489
      %13522 = vst.msk [vmem:[%s197 + $0x98] sm:$0xff] %vm2810, %v13490
      %13523 = vst.msk [vmem:[%s197 + $0xa0] sm:$0xff] %vm2810, %v13491
      %13524 = vst.msk [vmem:[%s197 + $0xa8] sm:$0xff] %vm2810, %v13492
      %13525 = vst.msk [vmem:[%s197 + $0xb0] sm:$0xff] %vm2810, %v13493
      %13526 = vst.msk [vmem:[%s197 + $0xb8] sm:$0xff] %vm2810, %v13494
      %13527 = vst.msk [vmem:[%s197 + $0xc0] sm:$0xff] %vm2810, %v13495
      %13528 = vst.msk [vmem:[%s197 + $0xc8] sm:$0xff] %vm2810, %v13496
      %13529 = vst.msk [vmem:[%s197 + $0xd0] sm:$0xff] %vm2810, %v13497
      %13530 = vst.msk [vmem:[%s197 + $0xd8] sm:$0xff] %vm2810, %v13498
      %13531 = vst.msk [vmem:[%s197 + $0xe0] sm:$0xff] %vm2810, %v13499
      %13532 = vst.msk [vmem:[%s197 + $0xe8] sm:$0xff] %vm2810, %v13500
      %13533 = vst.msk [vmem:[%s197 + $0xf0] sm:$0xff] %vm2810, %v13501
      %13534 = vst.msk [vmem:[%s197 + $0xf8] sm:$0xff] %vm2810, %v13502
      %p13535 = scmp.lt.s32.totalorder %s15, 1
      %s13536 = scalar_select %p13535, %s15, 1
      %s13537 = smul.addr %s13536, 32
      %s13538 = smul.addr %s13537, 8
      %s13539 = scalar_lea.vmem %s4, %s13538
      // Predicated region
      $region37: #{tpu_custom_call.1} parent=35 // pred_check
        %p13540 = pneg %p122
      $region38: #{tpu_custom_call.1} parent=35 // pred_check_branch
        %13542 = sbr.rel (%p13540) target = $region40
      $region39: #{tpu_custom_call.1} parent=35 // pred_region
        _
      $region40: #{tpu_custom_call.1} parent=35 // pred_fallthru
        _
    $region36: #{tpu_custom_call.1} parent=5 // pred_fallthru
      _
    %p13543 = scmp.le.s32.totalorder 2, %s10
    // Predicated region
    $region41: #{tpu_custom_call.1} parent=5 // pred_check
      %p13544 = pneg %p13543
    $region42: #{tpu_custom_call.1} parent=5 // pred_check_branch
      %13546 = sbr.rel (%p13544) target = $region44
    $region43: #{tpu_custom_call.1} parent=5 // pred_region
      %s13547 = ssub.s32 %s10, 2
      // Predicated region
      $region45: #{tpu_custom_call.1} parent=43 // pred_check
        %p13548 = pneg %p128
      $region46: #{tpu_custom_call.1} parent=43 // pred_check_branch
        %13550 = sbr.rel (%p13548) target = $region48
      $region47: #{tpu_custom_call.1} parent=43 // pred_region
        %p13551 = scmp.lt.s32.totalorder %s16, 1
        %s13552 = scalar_select %p13551, %s16, 1
        %s13553 = smul.addr %s13552, 32
        %s13554 = smul.addr %s13553, 8
        %s13555 = scalar_lea.vmem %s4, %s13554
      $region48: #{tpu_custom_call.1} parent=43 // pred_fallthru
        _
    $region44: #{tpu_custom_call.1} parent=5 // pred_fallthru
      _
  $region6: #{tpu_custom_call.1} parent=0 // loop_footer
    %s14 = sadd.s32 1, %s10
  $region7: #{tpu_custom_call.1} parent=0 // loop_footer_branch
    %9 = sbr.rel target = $region3
  $region8: #{tpu_custom_call.1} parent=0 // loop_exit
    _

</llo_original>
